<compile_context>
chip_gen: v5e
topology: v5e:2x2
jax: 0.10.0
libtpu: 0.0.40
codegen_flags: <defaults>
</compile_context>

<pallas_src>
import jax
import jax.numpy as jnp
from jax import lax
from jax.experimental import pallas as pl
from jax.experimental.pallas import tpu as pltpu

IN_FEATURES = 196608
OUT_FEATURES = 10

N_SPLITS = 2                                # K-halves -> 2 TCs on v7x
K_TILE = 49152                              # 196608 = 2 splits * 2 steps * 49152
K_PER_SPLIT = IN_FEATURES // N_SPLITS       # 98304
N_K_STEPS = K_PER_SPLIT // K_TILE           # 2 reduction steps per split
MAX_BATCH_TILE = 64                         # bf16 x tile: 64*49152*2B = 6.3 MB/buffer
VMEM_LIMIT_BYTES = 32 * 1024 * 1024         # <= safe headroom on v7x's 64 MiB VMEM


def linear_kernel(x_ref, w_ref, o_ref):
    """Accumulate one K tile of out = x @ W.T into the resident output block.

    x_ref: (BT, K_TILE)   bf16 activation tile
    w_ref: (OUT, K_TILE)  bf16 lane-dense weight tile (PyTorch native layout)
    o_ref: (1, BT, OUT)   f32 partial-output block, resident across the K axis
    """
    ik = pl.program_id(2)

    # First K step of this (split, batch-tile): zero the accumulator.
    @pl.when(ik == 0)
    def _():
        o_ref[...] = jnp.zeros_like(o_ref)

    # Contract the shared last (K) dim: (BT, K) x (OUT, K) -> (BT, OUT).
    # Single-pass bf16 MXU matmul, f32 accumulation.
    acc = lax.dot_general(
        x_ref[...],
        w_ref[...],
        dimension_numbers=(((1,), (1,)), ((), ())),
        preferred_element_type=jnp.float32,
    )
    o_ref[...] += acc[None]


def _batch_tiling(batch):
    """Return (padded_batch, batch_tile) that satisfies layout + VMEM limits."""
    if batch <= MAX_BATCH_TILE:
        return batch, batch                       # single tile == full dim
    for t in (64, 32, 16, 8):                     # divisible by 8 -> layout-safe
        if batch % t == 0:
            return batch, t
    padded = ((batch + 7) // 8) * 8               # ragged: pad rows with zeros
    return padded, 8


@jax.jit
def mylinear_forward(x, w, b):
    """x: (B, 196608) f32, w: (10, 196608) f32 (PyTorch layout), b: (10,) f32."""
    batch, k_dim = x.shape
    assert k_dim == IN_FEATURES
    assert w.shape == (OUT_FEATURES, IN_FEATURES)
    assert k_dim == N_SPLITS * N_K_STEPS * K_TILE

    # bf16 MXU inputs (f32 accumulation stays inside the kernel).  In a real
    # deployment cast the weight once and reuse it; here it is fused in-jit.
    xb = x.astype(jnp.bfloat16)
    wb = w.astype(jnp.bfloat16)

    padded_batch, bt = _batch_tiling(batch)
    if padded_batch != batch:
        xb = jnp.pad(xb, ((0, padded_batch - batch), (0, 0)))
    n_b = padded_batch // bt

    partials = pl.pallas_call(
        linear_kernel,
        out_shape=jax.ShapeDtypeStruct(
            (N_SPLITS, padded_batch, OUT_FEATURES), jnp.float32
        ),
        grid_spec=pltpu.PrefetchScalarGridSpec(
            num_scalar_prefetch=0,
            # (K-half split, batch tile, K step) — reduction axis innermost.
            grid=(N_SPLITS, n_b, N_K_STEPS),
            in_specs=[
                pl.BlockSpec(
                    (bt, K_TILE), lambda s, ib, ik: (ib, s * N_K_STEPS + ik)
                ),
                pl.BlockSpec(
                    (OUT_FEATURES, K_TILE),
                    lambda s, ib, ik: (0, s * N_K_STEPS + ik),
                ),
            ],
            out_specs=pl.BlockSpec(
                (1, bt, OUT_FEATURES), lambda s, ib, ik: (s, ib, 0)
            ),
        ),
        compiler_params=pltpu.CompilerParams(
            # Leading split axis is parallel -> sharded across TCs on v7x.
            dimension_semantics=("parallel", "parallel", "arbitrary"),
            vmem_limit_bytes=VMEM_LIMIT_BYTES,
        ),
    )(xb, wb)

    # Epilogue (tiny, fused by XLA): combine the two K-half partials + bias.
    out = partials.sum(axis=0) + b.reshape(1, OUT_FEATURES).astype(jnp.float32)
    return out[:batch]


if __name__ == "__main__":
    key = jax.random.PRNGKey(0)
    kx, kw, kb = jax.random.split(key, 3)

    batch = 2
    # Deterministic init mirroring torch.nn.Linear's default
    # U(-1/sqrt(in_features), 1/sqrt(in_features)); PyTorch layouts:
    # weight (out_features, in_features), bias (out_features,).
    bound = 1.0 / float(IN_FEATURES) ** 0.5
    w = jax.random.uniform(
        kw, (OUT_FEATURES, IN_FEATURES), jnp.float32, -bound, bound
    )
    b = jax.random.uniform(kb, (OUT_FEATURES,), jnp.float32, -bound, bound)
    x = jax.random.normal(kx, (batch, IN_FEATURES), jnp.float32)

    out = jax.block_until_ready(mylinear_forward(x, w, b))
    assert out.shape == (batch, OUT_FEATURES)
    assert out.dtype == jnp.float32

    # Exact-path reference: same bf16-rounded inputs, f32 accumulation.
    xb32 = x.astype(jnp.bfloat16).astype(jnp.float32)
    wb32 = w.astype(jnp.bfloat16).astype(jnp.float32)
    ref_bf16 = xb32 @ wb32.T + b
    assert jnp.allclose(out, ref_bf16, atol=1e-3, rtol=1e-3), (
        "kernel mismatch vs bf16-input reference"
    )

    # Module-semantics reference (pure f32); bf16 input rounding costs ~1e-3 abs
    # on outputs of magnitude ~0.5 at K=196608.
    ref_f32 = x @ w.T + b
    assert jnp.allclose(out, ref_f32, atol=2e-2, rtol=2e-2), (
        "kernel too far from f32 nn.Linear reference"
    )

    print("KERNEL_OK")
</pallas_src>

<mosaic_0001>
module attributes {stable_mosaic.version = 11 : i64} {
  func.func @linear_kernel(%arg0: i32, %arg1: i32, %arg2: i32, %arg3: memref<2x49152xbf16, #tpu.memory_space<vmem>>, %arg4: memref<10x49152xbf16, #tpu.memory_space<vmem>>, %arg5: memref<1x2x10xf32, #tpu.memory_space<vmem>>) attributes {dimension_semantics = [#tpu.dimension_semantics<parallel>, #tpu.dimension_semantics<parallel>, #tpu.dimension_semantics<arbitrary>], iteration_bounds = array<i64: 2, 1, 2>, scalar_prefetch = 0 : i64, scratch_operands = 0 : i64, tpu.core_type = #tpu.core_type<tc>, window_params = [{transform_indices = @transform_0, window_bounds = array<i64: 2, 49152>}, {transform_indices = @transform_1, window_bounds = array<i64: 10, 49152>}, {transform_indices = @transform_2, window_bounds = array<i64: 1, 2, 10>}]} {
    %c0_i32 = arith.constant 0 : i32
    %0 = arith.cmpi eq, %arg2, %c0_i32 : i32
    %1 = arith.extui %0 : i1 to i32
    %c0_i32_0 = arith.constant 0 : i32
    %2 = arith.cmpi ne, %1, %c0_i32_0 : i32
    scf.if %2 {
      %cst_10 = arith.constant 0.000000e+00 : f32
      %10 = vector.broadcast %cst_10 : f32 to vector<1x2x10xf32>
      %c0_11 = arith.constant 0 : index
      %c0_12 = arith.constant 0 : index
      %c0_13 = arith.constant 0 : index
      %11 = vector.load %arg5[%c0_11, %c0_12, %c0_13] : memref<1x2x10xf32, #tpu.memory_space<vmem>>, vector<1x2x10xf32>
      tpu.vector_store %arg5[%c0_11, %c0_12, %c0_13], %10 {strides = array<i32>} : memref<1x2x10xf32, #tpu.memory_space<vmem>>, vector<1x2x10xf32>,
    } else {
    }
    %c0 = arith.constant 0 : index
    %c0_1 = arith.constant 0 : index
    %3 = vector.load %arg3[%c0, %c0_1] : memref<2x49152xbf16, #tpu.memory_space<vmem>>, vector<2x49152xbf16>
    %c0_2 = arith.constant 0 : index
    %c0_3 = arith.constant 0 : index
    %4 = vector.load %arg4[%c0_2, %c0_3] : memref<10x49152xbf16, #tpu.memory_space<vmem>>, vector<10x49152xbf16>
    %cst = arith.constant dense<0.000000e+00> : vector<2x10xf32>
    %5 = tpu.matmul %3, %4, %cst {dimension_numbers = #tpu.dot_dimension_numbers<[1], [1], [0], [0], [0, 0, 1, 0], [], []>} : vector<2x49152xbf16>, vector<10x49152xbf16>, vector<2x10xf32> -> vector<2x10xf32>
    %c0_4 = arith.constant 0 : index
    %c0_5 = arith.constant 0 : index
    %c0_6 = arith.constant 0 : index
    %6 = vector.load %arg5[%c0_4, %c0_5, %c0_6] : memref<1x2x10xf32, #tpu.memory_space<vmem>>, vector<1x2x10xf32>
    %7 = vector.shape_cast %5 : vector<2x10xf32> to vector<1x2x10xf32>
    %8 = arith.addf %6, %7 : vector<1x2x10xf32>
    %c0_7 = arith.constant 0 : index
    %c0_8 = arith.constant 0 : index
    %c0_9 = arith.constant 0 : index
    %9 = vector.load %arg5[%c0_7, %c0_8, %c0_9] : memref<1x2x10xf32, #tpu.memory_space<vmem>>, vector<1x2x10xf32>
    tpu.vector_store %arg5[%c0_7, %c0_8, %c0_9], %8 {strides = array<i32>} : memref<1x2x10xf32, #tpu.memory_space<vmem>>, vector<1x2x10xf32>,
    return
  }
  func.func @transform_0(%arg0: i32, %arg1: i32, %arg2: i32) -> (i32, i32) {
    %c2_i32 = arith.constant 2 : i32
    %0 = arith.muli %arg0, %c2_i32 : i32
    %1 = arith.addi %0, %arg2 : i32
    %c0_i32 = arith.constant 0 : i32
    return %arg1, %1 : i32, i32
  }
  func.func @transform_1(%arg0: i32, %arg1: i32, %arg2: i32) -> (i32, i32) {
    %c2_i32 = arith.constant 2 : i32
    %0 = arith.muli %arg0, %c2_i32 : i32
    %1 = arith.addi %0, %arg2 : i32
    %c0_i32 = arith.constant 0 : i32
    %c0_i32_0 = arith.constant 0 : i32
    return %c0_i32, %1 : i32, i32
  }
  func.func @transform_2(%arg0: i32, %arg1: i32, %arg2: i32) -> (i32, i32, i32) {
    %c0_i32 = arith.constant 0 : i32
    %c0_i32_0 = arith.constant 0 : i32
    return %arg0, %arg1, %c0_i32 : i32, i32, i32
  }
}

</mosaic_0001>

<llo_original>
// kernel: mylinear_forward.1
$region0: #{mylinear_forward.1}
  #allocation0 [shape = 'u32[]', space=smem, size = 0x4, offset = 0x4, fixed_abs, tag = 'smem constant byte address 0x4 - core index']
  #allocation1 [shape = 'u32[72,128]{1,0:T(1,128)}', space=vmem, size = 0x9000, scoped, tag = 'internal scratch']
  %s0 = inlined_call_operand.vmem [shape: bf16[2,196608], index: 0, kind: input, shape index: {}]
  %s1 = inlined_call_operand.vmem [shape: bf16[10,196608], index: 1, kind: input, shape index: {}]
  %s2 = inlined_call_operand.vmem [shape: f32[2,2,10], index: 2, kind: output, shape index: {}]
  %s3 = sld [smem:[#allocation0]]
  $region68: #{mylinear_forward.1} parent=0
    _
  %s5 = ssub.s32 1, %s3
  %s6 = scalar_select 0, %s5, %s3
  $region1: #{mylinear_forward.1} parent=0
    #allocation2 [shape = 'u8[3145728]{0}', space=vmem, size = 0x300000, scoped, tag = 'input window, operand 1']
    loop: start=0, step=1, limit=6
    $region2: #{mylinear_forward.1} parent=1 // loop_pre_header
      _
    $region3: #{mylinear_forward.1} parent=1 // loop_header
      %s8 = sphi 0, %s12
      %p9 = scmp.ge.s32.totalorder %s8, 6
      %s15 = sphi 0, %s34
      %s16 = sphi 0, %s30
      %s17 = sphi 0, %s26
      %s18 = sphi 0, %s15
      %s19 = sphi 0, %s16
      %s20 = sphi 0, %s17
      %s21 = sphi 0, %s18
      %s22 = sphi 0, %s19
      %s23 = sphi 0, %s20
      %s43 = sphi 0, %s45
      %s46 = sphi 0, %s43
      %s47 = sphi 0, %s46
      %s63 = sphi 0, %s47
      %s73 = sphi 0, %s75
      %s76 = sphi 0, %s73
      %s77 = sphi 0, %s76
      %s93 = sphi 0, %s77
      %s101 = sphi 0, %s103
      %s104 = sphi 0, %s101
      %s105 = sphi 0, %s104
      %s121 = sphi 0, %s105
    $region4: #{mylinear_forward.1} parent=1 // loop_header_branch
      %11 = sbr.rel (%p9) target = $region8
    $region5: #{mylinear_forward.1} parent=1 // loop_body
      %s13 = ssub.s32 %s8, 1
      %s14 = ssub.s32 %s8, 2
      %s24 = sadd.s32 1, %s17
      %p25 = scmp.ge.s32.totalorder %s24, 2
      %s26 = scalar_select %p25, 0, %s24
      %s27 = sadd.s32 1, %s16
      %s28 = scalar_select %p25, %s27, %s16
      %p29 = scmp.ge.s32.totalorder %s28, 1
      %s30 = scalar_select %p29, 0, %s28
      %s31 = sadd.s32 1, %s15
      %s32 = scalar_select %p29, %s31, %s15
      %p33 = scmp.ge.s32.totalorder %s32, 2
      %s34 = scalar_select %p33, 0, %s32
      %s35 = smul.u32 %s15, 2
      %s36 = sadd.s32 %s35, %s17
      %s37 = smul.u32 %s34, 2
      %s38 = sadd.s32 %s37, %s26
      %s39 = ssub.s32 %s16, %s30
      %s40 = ssub.s32 %s36, %s38
      %s41 = sor.u32 %s39, %s40
      %p42 = scmp.eq.s32.totalorder %s41, 0
      %s44 = sadd.s32 %s43, 1
      %s45 = scalar_select %p42, %s43, %s44
      %p48 = pneg %p42
      %p49 = scmp.eq.s32.totalorder %s8, 3
      %p50 = por %p48, %p49
      %p51 = scmp.ne.s32.totalorder %s43, %s46
      %p52 = scmp.eq.s32.totalorder %s8, 0
      %p53 = por %p51, %p52
      %p54 = scmp.ne.s32.totalorder %s43, %s46
      %p55 = scmp.eq.s32.totalorder %s13, 3
      %p56 = por %p54, %p55
      %p57 = scmp.ne.s32.totalorder %s46, %s47
      %p58 = scmp.eq.s32.totalorder %s13, 0
      %p59 = por %p57, %p58
      %p60 = scmp.ne.s32.totalorder %s46, %s47
      %p61 = scmp.eq.s32.totalorder %s14, 3
      %p62 = por %p60, %p61
      %p64 = scmp.ne.s32.totalorder %s47, %s63
      %p65 = scmp.eq.s32.totalorder %s14, 0
      %p66 = por %p64, %p65
      %s67 = smul.u32 %s15, 2
      %s68 = sadd.s32 %s67, %s17
      %s69 = smul.u32 %s34, 2
      %s70 = sadd.s32 %s69, %s26
      %s71 = ssub.s32 %s68, %s70
      %p72 = scmp.eq.s32.totalorder %s71, 0
      %s74 = sadd.s32 %s73, 1
      %s75 = scalar_select %p72, %s73, %s74
      %p78 = pneg %p72
      %p79 = scmp.eq.s32.totalorder %s8, 3
      %p80 = por %p78, %p79
      %p81 = scmp.ne.s32.totalorder %s73, %s76
      %p82 = scmp.eq.s32.totalorder %s8, 0
      %p83 = por %p81, %p82
      %p84 = scmp.ne.s32.totalorder %s73, %s76
      %p85 = scmp.eq.s32.totalorder %s13, 3
      %p86 = por %p84, %p85
      %p87 = scmp.ne.s32.totalorder %s76, %s77
      %p88 = scmp.eq.s32.totalorder %s13, 0
      %p89 = por %p87, %p88
      %p90 = scmp.ne.s32.totalorder %s76, %s77
      %p91 = scmp.eq.s32.totalorder %s14, 3
      %p92 = por %p90, %p91
      %p94 = scmp.ne.s32.totalorder %s77, %s93
      %p95 = scmp.eq.s32.totalorder %s14, 0
      %p96 = por %p94, %p95
      %s97 = ssub.s32 %s15, %s34
      %s98 = ssub.s32 %s16, %s30
      %s99 = sor.u32 %s97, %s98
      %p100 = scmp.eq.s32.totalorder %s99, 0
      %s102 = sadd.s32 %s101, 1
      %s103 = scalar_select %p100, %s101, %s102
      %p106 = pneg %p100
      %p107 = scmp.eq.s32.totalorder %s8, 3
      %p108 = por %p106, %p107
      %p109 = scmp.ne.s32.totalorder %s101, %s104
      %p110 = scmp.eq.s32.totalorder %s8, 0
      %p111 = por %p109, %p110
      %p112 = scmp.ne.s32.totalorder %s101, %s104
      %p113 = scmp.eq.s32.totalorder %s13, 3
      %p114 = por %p112, %p113
      %p115 = scmp.ne.s32.totalorder %s104, %s105
      %p116 = scmp.eq.s32.totalorder %s13, 0
      %p117 = por %p115, %p116
      %p118 = scmp.ne.s32.totalorder %s104, %s105
      %p119 = scmp.eq.s32.totalorder %s14, 3
      %p120 = por %p118, %p119
      %p122 = scmp.ne.s32.totalorder %s105, %s121
      %p123 = scmp.eq.s32.totalorder %s14, 0
      %p124 = por %p122, %p123
      %p125 = scmp.le.s32.totalorder 1, %s8
      %p126 = scmp.lt.s32.totalorder %s8, 5
      %p127 = pnand %p125, %p126
      %p128 = pneg %p127
      // Predicated region
      $region9: #{mylinear_forward.1} parent=5 // pred_check
        _
      $region10: #{mylinear_forward.1} parent=5 // pred_check_branch
        %130 = sbr.rel (%p127) target = $region12
      $region11: #{mylinear_forward.1} parent=5 // pred_region
        %s131 = ssub.s32 %s8, 1
      $region12: #{mylinear_forward.1} parent=5 // pred_fallthru
        _
      %p132 = scmp.lt.s32.totalorder %s8, 4
      // Predicated region
      $region13: #{mylinear_forward.1} parent=5 // pred_check
        %p133 = pneg %p132
      $region14: #{mylinear_forward.1} parent=5 // pred_check_branch
        %135 = sbr.rel (%p133) target = $region16
      $region15: #{mylinear_forward.1} parent=5 // pred_region
        // Predicated region
        $region17: #{mylinear_forward.1} parent=15 // pred_check
          %p136 = pneg %p53
        $region18: #{mylinear_forward.1} parent=15 // pred_check_branch
          %138 = sbr.rel (%p136) target = $region20
        $region19: #{mylinear_forward.1} parent=15 // pred_region
          %s139 = smul.u32 %s15, 2
          %s140 = sadd.s32 %s139, %s17
          %s141 = smul.u32 384, %s140
          %p142 = scmp.lt.s32.totalorder %s16, 0
          %s143 = scalar_select %p142, %s16, 0
          %p144 = scmp.lt.s32.totalorder %s141, 1535
          %s145 = scalar_select %p144, %s141, 1535
          %s146 = smul.addr %s143, 1536
          %s147 = sadd.s32 %s145, %s146
          %s148 = scalar_lea.vmem %s0, %s147
          %s149 = smul.u32 %s15, 2
          %s150 = sadd.s32 %s149, %s17
          %s151 = smul.u32 384, %s150
        $region20: #{mylinear_forward.1} parent=15 // pred_fallthru
          _
        // Predicated region
        $region21: #{mylinear_forward.1} parent=15 // pred_check
          %p152 = pneg %p83
        $region22: #{mylinear_forward.1} parent=15 // pred_check_branch
          %154 = sbr.rel (%p152) target = $region24
        $region23: #{mylinear_forward.1} parent=15 // pred_region
          %s155 = sand.u32 %s73, 1
          %s156 = sand.u32 %s73, 1
          %s157 = smul.addr %s156, 3072
          %s158 = scalar_lea.vmem [#allocation2], %s157
          %s159 = smul.u32 %s15, 2
          %s160 = sadd.s32 %s159, %s17
          %s161 = smul.u32 384, %s160
          %s162 = smul.addr %s161, 4
          %s163 = scalar_lea.vmem %s1, %s162
          // Predicated region
          $region25: #{mylinear_forward.1} parent=23 // pred_check
            _
          $region26: #{mylinear_forward.1} parent=23 // pred_check_branch
            %165 = sbr.rel (0) target = $region28
          $region27: #{mylinear_forward.1} parent=23 // pred_region
            // Predicated region
            $region29: #{mylinear_forward.1} parent=27 // pred_check
              _
            $region30: #{mylinear_forward.1} parent=27 // pred_check_branch
              %167 = sbr.rel (0) target = $region32
            $region31: #{mylinear_forward.1} parent=27 // pred_region
              loop: start=0, step=1, limit=1
              $region33: #{mylinear_forward.1} parent=31 // loop_pre_header
                _
              $region34: #{mylinear_forward.1} parent=31 // loop_header
                %s169 = sphi 0, %s173
                %p170 = scmp.ge.s32.totalorder %s169, 1
                %s174 = sphi %s163, %s163
                %s175 = sphi %s158, %s158
              $region35: #{mylinear_forward.1} parent=31 // loop_header_branch
                %172 = sbr.rel (%p170) target = $region39
              $region36: #{mylinear_forward.1} parent=31 // loop_body
                %v176 = vld [vmem:[%s174] sm:$0xff]
                %177 = vst [vmem:[%s175] sm:$0xff] %v176
                %v178 = vld [vmem:[%s174 + $0x8] sm:$0xff]
                %179 = vst [vmem:[%s175 + $0x8] sm:$0xff] %v178
                %v180 = vld [vmem:[%s174 + $0x10] sm:$0xff]
                %181 = vst [vmem:[%s175 + $0x10] sm:$0xff] %v180
                %v182 = vld [vmem:[%s174 + $0x18] sm:$0xff]
                %183 = vst [vmem:[%s175 + $0x18] sm:$0xff] %v182
                %v184 = vld [vmem:[%s174 + $0x20] sm:$0xff]
                %185 = vst [vmem:[%s175 + $0x20] sm:$0xff] %v184
                %v186 = vld [vmem:[%s174 + $0x28] sm:$0xff]
                %187 = vst [vmem:[%s175 + $0x28] sm:$0xff] %v186
                %v188 = vld [vmem:[%s174 + $0x30] sm:$0xff]
                %189 = vst [vmem:[%s175 + $0x30] sm:$0xff] %v188
                %v190 = vld [vmem:[%s174 + $0x38] sm:$0xff]
                %191 = vst [vmem:[%s175 + $0x38] sm:$0xff] %v190
                %v192 = vld [vmem:[%s174 + $0x40] sm:$0xff]
                %193 = vst [vmem:[%s175 + $0x40] sm:$0xff] %v192
                %v194 = vld [vmem:[%s174 + $0x48] sm:$0xff]
                %195 = vst [vmem:[%s175 + $0x48] sm:$0xff] %v194
                %v196 = vld [vmem:[%s174 + $0x50] sm:$0xff]
                %197 = vst [vmem:[%s175 + $0x50] sm:$0xff] %v196
                %v198 = vld [vmem:[%s174 + $0x58] sm:$0xff]
                %199 = vst [vmem:[%s175 + $0x58] sm:$0xff] %v198
                %v200 = vld [vmem:[%s174 + $0x60] sm:$0xff]
                %201 = vst [vmem:[%s175 + $0x60] sm:$0xff] %v200
                %v202 = vld [vmem:[%s174 + $0x68] sm:$0xff]
                %203 = vst [vmem:[%s175 + $0x68] sm:$0xff] %v202
                %v204 = vld [vmem:[%s174 + $0x70] sm:$0xff]
                %205 = vst [vmem:[%s175 + $0x70] sm:$0xff] %v204
                %v206 = vld [vmem:[%s174 + $0x78] sm:$0xff]
                %207 = vst [vmem:[%s175 + $0x78] sm:$0xff] %v206
                %v208 = vld [vmem:[%s174 + $0x80] sm:$0xff]
                %209 = vst [vmem:[%s175 + $0x80] sm:$0xff] %v208
                %v210 = vld [vmem:[%s174 + $0x88] sm:$0xff]
                %211 = vst [vmem:[%s175 + $0x88] sm:$0xff] %v210
                %v212 = vld [vmem:[%s174 + $0x90] sm:$0xff]
                %213 = vst [vmem:[%s175 + $0x90] sm:$0xff] %v212
                %v214 = vld [vmem:[%s174 + $0x98] sm:$0xff]
                %215 = vst [vmem:[%s175 + $0x98] sm:$0xff] %v214
                %v216 = vld [vmem:[%s174 + $0xa0] sm:$0xff]
                %217 = vst [vmem:[%s175 + $0xa0] sm:$0xff] %v216
                %v218 = vld [vmem:[%s174 + $0xa8] sm:$0xff]
                %219 = vst [vmem:[%s175 + $0xa8] sm:$0xff] %v218
                %v220 = vld [vmem:[%s174 + $0xb0] sm:$0xff]
                %221 = vst [vmem:[%s175 + $0xb0] sm:$0xff] %v220
                %v222 = vld [vmem:[%s174 + $0xb8] sm:$0xff]
                %223 = vst [vmem:[%s175 + $0xb8] sm:$0xff] %v222
                %v224 = vld [vmem:[%s174 + $0xc0] sm:$0xff]
                %225 = vst [vmem:[%s175 + $0xc0] sm:$0xff] %v224
                %v226 = vld [vmem:[%s174 + $0xc8] sm:$0xff]
                %227 = vst [vmem:[%s175 + $0xc8] sm:$0xff] %v226
                %v228 = vld [vmem:[%s174 + $0xd0] sm:$0xff]
                %229 = vst [vmem:[%s175 + $0xd0] sm:$0xff] %v228
                %v230 = vld [vmem:[%s174 + $0xd8] sm:$0xff]
                %231 = vst [vmem:[%s175 + $0xd8] sm:$0xff] %v230
                %v232 = vld [vmem:[%s174 + $0xe0] sm:$0xff]
                %233 = vst [vmem:[%s175 + $0xe0] sm:$0xff] %v232
                %v234 = vld [vmem:[%s174 + $0xe8] sm:$0xff]
                %235 = vst [vmem:[%s175 + $0xe8] sm:$0xff] %v234
                %v236 = vld [vmem:[%s174 + $0xf0] sm:$0xff]
                %237 = vst [vmem:[%s175 + $0xf0] sm:$0xff] %v236
                %v238 = vld [vmem:[%s174 + $0xf8] sm:$0xff]
                %239 = vst [vmem:[%s175 + $0xf8] sm:$0xff] %v238
                %v240 = vld [vmem:[%s174 + $0x100] sm:$0xff]
                %241 = vst [vmem:[%s175 + $0x100] sm:$0xff] %v240
                %v242 = vld [vmem:[%s174 + $0x108] sm:$0xff]
                %243 = vst [vmem:[%s175 + $0x108] sm:$0xff] %v242
                %v244 = vld [vmem:[%s174 + $0x110] sm:$0xff]
                %245 = vst [vmem:[%s175 + $0x110] sm:$0xff] %v244
                %v246 = vld [vmem:[%s174 + $0x118] sm:$0xff]
                %247 = vst [vmem:[%s175 + $0x118] sm:$0xff] %v246
                %v248 = vld [vmem:[%s174 + $0x120] sm:$0xff]
                %249 = vst [vmem:[%s175 + $0x120] sm:$0xff] %v248
                %v250 = vld [vmem:[%s174 + $0x128] sm:$0xff]
                %251 = vst [vmem:[%s175 + $0x128] sm:$0xff] %v250
                %v252 = vld [vmem:[%s174 + $0x130] sm:$0xff]
                %253 = vst [vmem:[%s175 + $0x130] sm:$0xff] %v252
                %v254 = vld [vmem:[%s174 + $0x138] sm:$0xff]
                %255 = vst [vmem:[%s175 + $0x138] sm:$0xff] %v254
                %v256 = vld [vmem:[%s174 + $0x140] sm:$0xff]
                %257 = vst [vmem:[%s175 + $0x140] sm:$0xff] %v256
                %v258 = vld [vmem:[%s174 + $0x148] sm:$0xff]
                %259 = vst [vmem:[%s175 + $0x148] sm:$0xff] %v258
                %v260 = vld [vmem:[%s174 + $0x150] sm:$0xff]
                %261 = vst [vmem:[%s175 + $0x150] sm:$0xff] %v260
                %v262 = vld [vmem:[%s174 + $0x158] sm:$0xff]
                %263 = vst [vmem:[%s175 + $0x158] sm:$0xff] %v262
                %v264 = vld [vmem:[%s174 + $0x160] sm:$0xff]
                %265 = vst [vmem:[%s175 + $0x160] sm:$0xff] %v264
                %v266 = vld [vmem:[%s174 + $0x168] sm:$0xff]
                %267 = vst [vmem:[%s175 + $0x168] sm:$0xff] %v266
                %v268 = vld [vmem:[%s174 + $0x170] sm:$0xff]
                %269 = vst [vmem:[%s175 + $0x170] sm:$0xff] %v268
                %v270 = vld [vmem:[%s174 + $0x178] sm:$0xff]
                %271 = vst [vmem:[%s175 + $0x178] sm:$0xff] %v270
                %v272 = vld [vmem:[%s174 + $0x180] sm:$0xff]
                %273 = vst [vmem:[%s175 + $0x180] sm:$0xff] %v272
                %v274 = vld [vmem:[%s174 + $0x188] sm:$0xff]
                %275 = vst [vmem:[%s175 + $0x188] sm:$0xff] %v274
                %v276 = vld [vmem:[%s174 + $0x190] sm:$0xff]
                %277 = vst [vmem:[%s175 + $0x190] sm:$0xff] %v276
                %v278 = vld [vmem:[%s174 + $0x198] sm:$0xff]
                %279 = vst [vmem:[%s175 + $0x198] sm:$0xff] %v278
                %v280 = vld [vmem:[%s174 + $0x1a0] sm:$0xff]
                %281 = vst [vmem:[%s175 + $0x1a0] sm:$0xff] %v280
                %v282 = vld [vmem:[%s174 + $0x1a8] sm:$0xff]
                %283 = vst [vmem:[%s175 + $0x1a8] sm:$0xff] %v282
                %v284 = vld [vmem:[%s174 + $0x1b0] sm:$0xff]
                %285 = vst [vmem:[%s175 + $0x1b0] sm:$0xff] %v284
                %v286 = vld [vmem:[%s174 + $0x1b8] sm:$0xff]
                %287 = vst [vmem:[%s175 + $0x1b8] sm:$0xff] %v286
                %v288 = vld [vmem:[%s174 + $0x1c0] sm:$0xff]
                %289 = vst [vmem:[%s175 + $0x1c0] sm:$0xff] %v288
                %v290 = vld [vmem:[%s174 + $0x1c8] sm:$0xff]
                %291 = vst [vmem:[%s175 + $0x1c8] sm:$0xff] %v290
                %v292 = vld [vmem:[%s174 + $0x1d0] sm:$0xff]
                %293 = vst [vmem:[%s175 + $0x1d0] sm:$0xff] %v292
                %v294 = vld [vmem:[%s174 + $0x1d8] sm:$0xff]
                %295 = vst [vmem:[%s175 + $0x1d8] sm:$0xff] %v294
                %v296 = vld [vmem:[%s174 + $0x1e0] sm:$0xff]
                %297 = vst [vmem:[%s175 + $0x1e0] sm:$0xff] %v296
                %v298 = vld [vmem:[%s174 + $0x1e8] sm:$0xff]
                %299 = vst [vmem:[%s175 + $0x1e8] sm:$0xff] %v298
                %v300 = vld [vmem:[%s174 + $0x1f0] sm:$0xff]
                %301 = vst [vmem:[%s175 + $0x1f0] sm:$0xff] %v300
                %v302 = vld [vmem:[%s174 + $0x1f8] sm:$0xff]
                %303 = vst [vmem:[%s175 + $0x1f8] sm:$0xff] %v302
                %v304 = vld [vmem:[%s174 + $0x200] sm:$0xff]
                %305 = vst [vmem:[%s175 + $0x200] sm:$0xff] %v304
                %v306 = vld [vmem:[%s174 + $0x208] sm:$0xff]
                %307 = vst [vmem:[%s175 + $0x208] sm:$0xff] %v306
                %v308 = vld [vmem:[%s174 + $0x210] sm:$0xff]
                %309 = vst [vmem:[%s175 + $0x210] sm:$0xff] %v308
                %v310 = vld [vmem:[%s174 + $0x218] sm:$0xff]
                %311 = vst [vmem:[%s175 + $0x218] sm:$0xff] %v310
                %v312 = vld [vmem:[%s174 + $0x220] sm:$0xff]
                %313 = vst [vmem:[%s175 + $0x220] sm:$0xff] %v312
                %v314 = vld [vmem:[%s174 + $0x228] sm:$0xff]
                %315 = vst [vmem:[%s175 + $0x228] sm:$0xff] %v314
                %v316 = vld [vmem:[%s174 + $0x230] sm:$0xff]
                %317 = vst [vmem:[%s175 + $0x230] sm:$0xff] %v316
                %v318 = vld [vmem:[%s174 + $0x238] sm:$0xff]
                %319 = vst [vmem:[%s175 + $0x238] sm:$0xff] %v318
                %v320 = vld [vmem:[%s174 + $0x240] sm:$0xff]
                %321 = vst [vmem:[%s175 + $0x240] sm:$0xff] %v320
                %v322 = vld [vmem:[%s174 + $0x248] sm:$0xff]
                %323 = vst [vmem:[%s175 + $0x248] sm:$0xff] %v322
                %v324 = vld [vmem:[%s174 + $0x250] sm:$0xff]
                %325 = vst [vmem:[%s175 + $0x250] sm:$0xff] %v324
                %v326 = vld [vmem:[%s174 + $0x258] sm:$0xff]
                %327 = vst [vmem:[%s175 + $0x258] sm:$0xff] %v326
                %v328 = vld [vmem:[%s174 + $0x260] sm:$0xff]
                %329 = vst [vmem:[%s175 + $0x260] sm:$0xff] %v328
                %v330 = vld [vmem:[%s174 + $0x268] sm:$0xff]
                %331 = vst [vmem:[%s175 + $0x268] sm:$0xff] %v330
                %v332 = vld [vmem:[%s174 + $0x270] sm:$0xff]
                %333 = vst [vmem:[%s175 + $0x270] sm:$0xff] %v332
                %v334 = vld [vmem:[%s174 + $0x278] sm:$0xff]
                %335 = vst [vmem:[%s175 + $0x278] sm:$0xff] %v334
                %v336 = vld [vmem:[%s174 + $0x280] sm:$0xff]
                %337 = vst [vmem:[%s175 + $0x280] sm:$0xff] %v336
                %v338 = vld [vmem:[%s174 + $0x288] sm:$0xff]
                %339 = vst [vmem:[%s175 + $0x288] sm:$0xff] %v338
                %v340 = vld [vmem:[%s174 + $0x290] sm:$0xff]
                %341 = vst [vmem:[%s175 + $0x290] sm:$0xff] %v340
                %v342 = vld [vmem:[%s174 + $0x298] sm:$0xff]
                %343 = vst [vmem:[%s175 + $0x298] sm:$0xff] %v342
                %v344 = vld [vmem:[%s174 + $0x2a0] sm:$0xff]
                %345 = vst [vmem:[%s175 + $0x2a0] sm:$0xff] %v344
                %v346 = vld [vmem:[%s174 + $0x2a8] sm:$0xff]
                %347 = vst [vmem:[%s175 + $0x2a8] sm:$0xff] %v346
                %v348 = vld [vmem:[%s174 + $0x2b0] sm:$0xff]
                %349 = vst [vmem:[%s175 + $0x2b0] sm:$0xff] %v348
                %v350 = vld [vmem:[%s174 + $0x2b8] sm:$0xff]
                %351 = vst [vmem:[%s175 + $0x2b8] sm:$0xff] %v350
                %v352 = vld [vmem:[%s174 + $0x2c0] sm:$0xff]
                %353 = vst [vmem:[%s175 + $0x2c0] sm:$0xff] %v352
                %v354 = vld [vmem:[%s174 + $0x2c8] sm:$0xff]
                %355 = vst [vmem:[%s175 + $0x2c8] sm:$0xff] %v354
                %v356 = vld [vmem:[%s174 + $0x2d0] sm:$0xff]
                %357 = vst [vmem:[%s175 + $0x2d0] sm:$0xff] %v356
                %v358 = vld [vmem:[%s174 + $0x2d8] sm:$0xff]
                %359 = vst [vmem:[%s175 + $0x2d8] sm:$0xff] %v358
                %v360 = vld [vmem:[%s174 + $0x2e0] sm:$0xff]
                %361 = vst [vmem:[%s175 + $0x2e0] sm:$0xff] %v360
                %v362 = vld [vmem:[%s174 + $0x2e8] sm:$0xff]
                %363 = vst [vmem:[%s175 + $0x2e8] sm:$0xff] %v362
                %v364 = vld [vmem:[%s174 + $0x2f0] sm:$0xff]
                %365 = vst [vmem:[%s175 + $0x2f0] sm:$0xff] %v364
                %v366 = vld [vmem:[%s174 + $0x2f8] sm:$0xff]
                %367 = vst [vmem:[%s175 + $0x2f8] sm:$0xff] %v366
                %v368 = vld [vmem:[%s174 + $0x300] sm:$0xff]
                %369 = vst [vmem:[%s175 + $0x300] sm:$0xff] %v368
                %v370 = vld [vmem:[%s174 + $0x308] sm:$0xff]
                %371 = vst [vmem:[%s175 + $0x308] sm:$0xff] %v370
                %v372 = vld [vmem:[%s174 + $0x310] sm:$0xff]
                %373 = vst [vmem:[%s175 + $0x310] sm:$0xff] %v372
                %v374 = vld [vmem:[%s174 + $0x318] sm:$0xff]
                %375 = vst [vmem:[%s175 + $0x318] sm:$0xff] %v374
                %v376 = vld [vmem:[%s174 + $0x320] sm:$0xff]
                %377 = vst [vmem:[%s175 + $0x320] sm:$0xff] %v376
                %v378 = vld [vmem:[%s174 + $0x328] sm:$0xff]
                %379 = vst [vmem:[%s175 + $0x328] sm:$0xff] %v378
                %v380 = vld [vmem:[%s174 + $0x330] sm:$0xff]
                %381 = vst [vmem:[%s175 + $0x330] sm:$0xff] %v380
                %v382 = vld [vmem:[%s174 + $0x338] sm:$0xff]
                %383 = vst [vmem:[%s175 + $0x338] sm:$0xff] %v382
                %v384 = vld [vmem:[%s174 + $0x340] sm:$0xff]
                %385 = vst [vmem:[%s175 + $0x340] sm:$0xff] %v384
                %v386 = vld [vmem:[%s174 + $0x348] sm:$0xff]
                %387 = vst [vmem:[%s175 + $0x348] sm:$0xff] %v386
                %v388 = vld [vmem:[%s174 + $0x350] sm:$0xff]
                %389 = vst [vmem:[%s175 + $0x350] sm:$0xff] %v388
                %v390 = vld [vmem:[%s174 + $0x358] sm:$0xff]
                %391 = vst [vmem:[%s175 + $0x358] sm:$0xff] %v390
                %v392 = vld [vmem:[%s174 + $0x360] sm:$0xff]
                %393 = vst [vmem:[%s175 + $0x360] sm:$0xff] %v392
                %v394 = vld [vmem:[%s174 + $0x368] sm:$0xff]
                %395 = vst [vmem:[%s175 + $0x368] sm:$0xff] %v394
                %v396 = vld [vmem:[%s174 + $0x370] sm:$0xff]
                %397 = vst [vmem:[%s175 + $0x370] sm:$0xff] %v396
                %v398 = vld [vmem:[%s174 + $0x378] sm:$0xff]
                %399 = vst [vmem:[%s175 + $0x378] sm:$0xff] %v398
                %v400 = vld [vmem:[%s174 + $0x380] sm:$0xff]
                %401 = vst [vmem:[%s175 + $0x380] sm:$0xff] %v400
                %v402 = vld [vmem:[%s174 + $0x388] sm:$0xff]
                %403 = vst [vmem:[%s175 + $0x388] sm:$0xff] %v402
                %v404 = vld [vmem:[%s174 + $0x390] sm:$0xff]
                %405 = vst [vmem:[%s175 + $0x390] sm:$0xff] %v404
                %v406 = vld [vmem:[%s174 + $0x398] sm:$0xff]
                %407 = vst [vmem:[%s175 + $0x398] sm:$0xff] %v406
                %v408 = vld [vmem:[%s174 + $0x3a0] sm:$0xff]
                %409 = vst [vmem:[%s175 + $0x3a0] sm:$0xff] %v408
                %v410 = vld [vmem:[%s174 + $0x3a8] sm:$0xff]
                %411 = vst [vmem:[%s175 + $0x3a8] sm:$0xff] %v410
                %v412 = vld [vmem:[%s174 + $0x3b0] sm:$0xff]
                %413 = vst [vmem:[%s175 + $0x3b0] sm:$0xff] %v412
                %v414 = vld [vmem:[%s174 + $0x3b8] sm:$0xff]
                %415 = vst [vmem:[%s175 + $0x3b8] sm:$0xff] %v414
                %v416 = vld [vmem:[%s174 + $0x3c0] sm:$0xff]
                %417 = vst [vmem:[%s175 + $0x3c0] sm:$0xff] %v416
                %v418 = vld [vmem:[%s174 + $0x3c8] sm:$0xff]
                %419 = vst [vmem:[%s175 + $0x3c8] sm:$0xff] %v418
                %v420 = vld [vmem:[%s174 + $0x3d0] sm:$0xff]
                %421 = vst [vmem:[%s175 + $0x3d0] sm:$0xff] %v420
                %v422 = vld [vmem:[%s174 + $0x3d8] sm:$0xff]
                %423 = vst [vmem:[%s175 + $0x3d8] sm:$0xff] %v422
                %v424 = vld [vmem:[%s174 + $0x3e0] sm:$0xff]
                %425 = vst [vmem:[%s175 + $0x3e0] sm:$0xff] %v424
                %v426 = vld [vmem:[%s174 + $0x3e8] sm:$0xff]
                %427 = vst [vmem:[%s175 + $0x3e8] sm:$0xff] %v426
                %v428 = vld [vmem:[%s174 + $0x3f0] sm:$0xff]
                %429 = vst [vmem:[%s175 + $0x3f0] sm:$0xff] %v428
                %v430 = vld [vmem:[%s174 + $0x3f8] sm:$0xff]
                %431 = vst [vmem:[%s175 + $0x3f8] sm:$0xff] %v430
                %v432 = vld [vmem:[%s174 + $0x400] sm:$0xff]
                %433 = vst [vmem:[%s175 + $0x400] sm:$0xff] %v432
                %v434 = vld [vmem:[%s174 + $0x408] sm:$0xff]
                %435 = vst [vmem:[%s175 + $0x408] sm:$0xff] %v434
                %v436 = vld [vmem:[%s174 + $0x410] sm:$0xff]
                %437 = vst [vmem:[%s175 + $0x410] sm:$0xff] %v436
                %v438 = vld [vmem:[%s174 + $0x418] sm:$0xff]
                %439 = vst [vmem:[%s175 + $0x418] sm:$0xff] %v438
                %v440 = vld [vmem:[%s174 + $0x420] sm:$0xff]
                %441 = vst [vmem:[%s175 + $0x420] sm:$0xff] %v440
                %v442 = vld [vmem:[%s174 + $0x428] sm:$0xff]
                %443 = vst [vmem:[%s175 + $0x428] sm:$0xff] %v442
                %v444 = vld [vmem:[%s174 + $0x430] sm:$0xff]
                %445 = vst [vmem:[%s175 + $0x430] sm:$0xff] %v444
                %v446 = vld [vmem:[%s174 + $0x438] sm:$0xff]
                %447 = vst [vmem:[%s175 + $0x438] sm:$0xff] %v446
                %v448 = vld [vmem:[%s174 + $0x440] sm:$0xff]
                %449 = vst [vmem:[%s175 + $0x440] sm:$0xff] %v448
                %v450 = vld [vmem:[%s174 + $0x448] sm:$0xff]
                %451 = vst [vmem:[%s175 + $0x448] sm:$0xff] %v450
                %v452 = vld [vmem:[%s174 + $0x450] sm:$0xff]
                %453 = vst [vmem:[%s175 + $0x450] sm:$0xff] %v452
                %v454 = vld [vmem:[%s174 + $0x458] sm:$0xff]
                %455 = vst [vmem:[%s175 + $0x458] sm:$0xff] %v454
                %v456 = vld [vmem:[%s174 + $0x460] sm:$0xff]
                %457 = vst [vmem:[%s175 + $0x460] sm:$0xff] %v456
                %v458 = vld [vmem:[%s174 + $0x468] sm:$0xff]
                %459 = vst [vmem:[%s175 + $0x468] sm:$0xff] %v458
                %v460 = vld [vmem:[%s174 + $0x470] sm:$0xff]
                %461 = vst [vmem:[%s175 + $0x470] sm:$0xff] %v460
                %v462 = vld [vmem:[%s174 + $0x478] sm:$0xff]
                %463 = vst [vmem:[%s175 + $0x478] sm:$0xff] %v462
                %v464 = vld [vmem:[%s174 + $0x480] sm:$0xff]
                %465 = vst [vmem:[%s175 + $0x480] sm:$0xff] %v464
                %v466 = vld [vmem:[%s174 + $0x488] sm:$0xff]
                %467 = vst [vmem:[%s175 + $0x488] sm:$0xff] %v466
                %v468 = vld [vmem:[%s174 + $0x490] sm:$0xff]
                %469 = vst [vmem:[%s175 + $0x490] sm:$0xff] %v468
                %v470 = vld [vmem:[%s174 + $0x498] sm:$0xff]
                %471 = vst [vmem:[%s175 + $0x498] sm:$0xff] %v470
                %v472 = vld [vmem:[%s174 + $0x4a0] sm:$0xff]
                %473 = vst [vmem:[%s175 + $0x4a0] sm:$0xff] %v472
                %v474 = vld [vmem:[%s174 + $0x4a8] sm:$0xff]
                %475 = vst [vmem:[%s175 + $0x4a8] sm:$0xff] %v474
                %v476 = vld [vmem:[%s174 + $0x4b0] sm:$0xff]
                %477 = vst [vmem:[%s175 + $0x4b0] sm:$0xff] %v476
                %v478 = vld [vmem:[%s174 + $0x4b8] sm:$0xff]
                %479 = vst [vmem:[%s175 + $0x4b8] sm:$0xff] %v478
                %v480 = vld [vmem:[%s174 + $0x4c0] sm:$0xff]
                %481 = vst [vmem:[%s175 + $0x4c0] sm:$0xff] %v480
                %v482 = vld [vmem:[%s174 + $0x4c8] sm:$0xff]
                %483 = vst [vmem:[%s175 + $0x4c8] sm:$0xff] %v482
                %v484 = vld [vmem:[%s174 + $0x4d0] sm:$0xff]
                %485 = vst [vmem:[%s175 + $0x4d0] sm:$0xff] %v484
                %v486 = vld [vmem:[%s174 + $0x4d8] sm:$0xff]
                %487 = vst [vmem:[%s175 + $0x4d8] sm:$0xff] %v486
                %v488 = vld [vmem:[%s174 + $0x4e0] sm:$0xff]
                %489 = vst [vmem:[%s175 + $0x4e0] sm:$0xff] %v488
                %v490 = vld [vmem:[%s174 + $0x4e8] sm:$0xff]
                %491 = vst [vmem:[%s175 + $0x4e8] sm:$0xff] %v490
                %v492 = vld [vmem:[%s174 + $0x4f0] sm:$0xff]
                %493 = vst [vmem:[%s175 + $0x4f0] sm:$0xff] %v492
                %v494 = vld [vmem:[%s174 + $0x4f8] sm:$0xff]
                %495 = vst [vmem:[%s175 + $0x4f8] sm:$0xff] %v494
                %v496 = vld [vmem:[%s174 + $0x500] sm:$0xff]
                %497 = vst [vmem:[%s175 + $0x500] sm:$0xff] %v496
                %v498 = vld [vmem:[%s174 + $0x508] sm:$0xff]
                %499 = vst [vmem:[%s175 + $0x508] sm:$0xff] %v498
                %v500 = vld [vmem:[%s174 + $0x510] sm:$0xff]
                %501 = vst [vmem:[%s175 + $0x510] sm:$0xff] %v500
                %v502 = vld [vmem:[%s174 + $0x518] sm:$0xff]
                %503 = vst [vmem:[%s175 + $0x518] sm:$0xff] %v502
                %v504 = vld [vmem:[%s174 + $0x520] sm:$0xff]
                %505 = vst [vmem:[%s175 + $0x520] sm:$0xff] %v504
                %v506 = vld [vmem:[%s174 + $0x528] sm:$0xff]
                %507 = vst [vmem:[%s175 + $0x528] sm:$0xff] %v506
                %v508 = vld [vmem:[%s174 + $0x530] sm:$0xff]
                %509 = vst [vmem:[%s175 + $0x530] sm:$0xff] %v508
                %v510 = vld [vmem:[%s174 + $0x538] sm:$0xff]
                %511 = vst [vmem:[%s175 + $0x538] sm:$0xff] %v510
                %v512 = vld [vmem:[%s174 + $0x540] sm:$0xff]
                %513 = vst [vmem:[%s175 + $0x540] sm:$0xff] %v512
                %v514 = vld [vmem:[%s174 + $0x548] sm:$0xff]
                %515 = vst [vmem:[%s175 + $0x548] sm:$0xff] %v514
                %v516 = vld [vmem:[%s174 + $0x550] sm:$0xff]
                %517 = vst [vmem:[%s175 + $0x550] sm:$0xff] %v516
                %v518 = vld [vmem:[%s174 + $0x558] sm:$0xff]
                %519 = vst [vmem:[%s175 + $0x558] sm:$0xff] %v518
                %v520 = vld [vmem:[%s174 + $0x560] sm:$0xff]
                %521 = vst [vmem:[%s175 + $0x560] sm:$0xff] %v520
                %v522 = vld [vmem:[%s174 + $0x568] sm:$0xff]
                %523 = vst [vmem:[%s175 + $0x568] sm:$0xff] %v522
                %v524 = vld [vmem:[%s174 + $0x570] sm:$0xff]
                %525 = vst [vmem:[%s175 + $0x570] sm:$0xff] %v524
                %v526 = vld [vmem:[%s174 + $0x578] sm:$0xff]
                %527 = vst [vmem:[%s175 + $0x578] sm:$0xff] %v526
                %v528 = vld [vmem:[%s174 + $0x580] sm:$0xff]
                %529 = vst [vmem:[%s175 + $0x580] sm:$0xff] %v528
                %v530 = vld [vmem:[%s174 + $0x588] sm:$0xff]
                %531 = vst [vmem:[%s175 + $0x588] sm:$0xff] %v530
                %v532 = vld [vmem:[%s174 + $0x590] sm:$0xff]
                %533 = vst [vmem:[%s175 + $0x590] sm:$0xff] %v532
                %v534 = vld [vmem:[%s174 + $0x598] sm:$0xff]
                %535 = vst [vmem:[%s175 + $0x598] sm:$0xff] %v534
                %v536 = vld [vmem:[%s174 + $0x5a0] sm:$0xff]
                %537 = vst [vmem:[%s175 + $0x5a0] sm:$0xff] %v536
                %v538 = vld [vmem:[%s174 + $0x5a8] sm:$0xff]
                %539 = vst [vmem:[%s175 + $0x5a8] sm:$0xff] %v538
                %v540 = vld [vmem:[%s174 + $0x5b0] sm:$0xff]
                %541 = vst [vmem:[%s175 + $0x5b0] sm:$0xff] %v540
                %v542 = vld [vmem:[%s174 + $0x5b8] sm:$0xff]
                %543 = vst [vmem:[%s175 + $0x5b8] sm:$0xff] %v542
                %v544 = vld [vmem:[%s174 + $0x5c0] sm:$0xff]
                %545 = vst [vmem:[%s175 + $0x5c0] sm:$0xff] %v544
                %v546 = vld [vmem:[%s174 + $0x5c8] sm:$0xff]
                %547 = vst [vmem:[%s175 + $0x5c8] sm:$0xff] %v546
                %v548 = vld [vmem:[%s174 + $0x5d0] sm:$0xff]
                %549 = vst [vmem:[%s175 + $0x5d0] sm:$0xff] %v548
                %v550 = vld [vmem:[%s174 + $0x5d8] sm:$0xff]
                %551 = vst [vmem:[%s175 + $0x5d8] sm:$0xff] %v550
                %v552 = vld [vmem:[%s174 + $0x5e0] sm:$0xff]
                %553 = vst [vmem:[%s175 + $0x5e0] sm:$0xff] %v552
                %v554 = vld [vmem:[%s174 + $0x5e8] sm:$0xff]
                %555 = vst [vmem:[%s175 + $0x5e8] sm:$0xff] %v554
                %v556 = vld [vmem:[%s174 + $0x5f0] sm:$0xff]
                %557 = vst [vmem:[%s175 + $0x5f0] sm:$0xff] %v556
                %v558 = vld [vmem:[%s174 + $0x5f8] sm:$0xff]
                %559 = vst [vmem:[%s175 + $0x5f8] sm:$0xff] %v558
                %v560 = vld [vmem:[%s174 + $0x1800] sm:$0xff]
                %561 = vst [vmem:[%s175 + $0x600] sm:$0xff] %v560
                %v562 = vld [vmem:[%s174 + $0x1808] sm:$0xff]
                %563 = vst [vmem:[%s175 + $0x608] sm:$0xff] %v562
                %v564 = vld [vmem:[%s174 + $0x1810] sm:$0xff]
                %565 = vst [vmem:[%s175 + $0x610] sm:$0xff] %v564
                %v566 = vld [vmem:[%s174 + $0x1818] sm:$0xff]
                %567 = vst [vmem:[%s175 + $0x618] sm:$0xff] %v566
                %v568 = vld [vmem:[%s174 + $0x1820] sm:$0xff]
                %569 = vst [vmem:[%s175 + $0x620] sm:$0xff] %v568
                %v570 = vld [vmem:[%s174 + $0x1828] sm:$0xff]
                %571 = vst [vmem:[%s175 + $0x628] sm:$0xff] %v570
                %v572 = vld [vmem:[%s174 + $0x1830] sm:$0xff]
                %573 = vst [vmem:[%s175 + $0x630] sm:$0xff] %v572
                %v574 = vld [vmem:[%s174 + $0x1838] sm:$0xff]
                %575 = vst [vmem:[%s175 + $0x638] sm:$0xff] %v574
                %v576 = vld [vmem:[%s174 + $0x1840] sm:$0xff]
                %577 = vst [vmem:[%s175 + $0x640] sm:$0xff] %v576
                %v578 = vld [vmem:[%s174 + $0x1848] sm:$0xff]
                %579 = vst [vmem:[%s175 + $0x648] sm:$0xff] %v578
                %v580 = vld [vmem:[%s174 + $0x1850] sm:$0xff]
                %581 = vst [vmem:[%s175 + $0x650] sm:$0xff] %v580
                %v582 = vld [vmem:[%s174 + $0x1858] sm:$0xff]
                %583 = vst [vmem:[%s175 + $0x658] sm:$0xff] %v582
                %v584 = vld [vmem:[%s174 + $0x1860] sm:$0xff]
                %585 = vst [vmem:[%s175 + $0x660] sm:$0xff] %v584
                %v586 = vld [vmem:[%s174 + $0x1868] sm:$0xff]
                %587 = vst [vmem:[%s175 + $0x668] sm:$0xff] %v586
                %v588 = vld [vmem:[%s174 + $0x1870] sm:$0xff]
                %589 = vst [vmem:[%s175 + $0x670] sm:$0xff] %v588
                %v590 = vld [vmem:[%s174 + $0x1878] sm:$0xff]
                %591 = vst [vmem:[%s175 + $0x678] sm:$0xff] %v590
                %v592 = vld [vmem:[%s174 + $0x1880] sm:$0xff]
                %593 = vst [vmem:[%s175 + $0x680] sm:$0xff] %v592
                %v594 = vld [vmem:[%s174 + $0x1888] sm:$0xff]
                %595 = vst [vmem:[%s175 + $0x688] sm:$0xff] %v594
                %v596 = vld [vmem:[%s174 + $0x1890] sm:$0xff]
                %597 = vst [vmem:[%s175 + $0x690] sm:$0xff] %v596
                %v598 = vld [vmem:[%s174 + $0x1898] sm:$0xff]
                %599 = vst [vmem:[%s175 + $0x698] sm:$0xff] %v598
                %v600 = vld [vmem:[%s174 + $0x18a0] sm:$0xff]
                %601 = vst [vmem:[%s175 + $0x6a0] sm:$0xff] %v600
                %v602 = vld [vmem:[%s174 + $0x18a8] sm:$0xff]
                %603 = vst [vmem:[%s175 + $0x6a8] sm:$0xff] %v602
                %v604 = vld [vmem:[%s174 + $0x18b0] sm:$0xff]
                %605 = vst [vmem:[%s175 + $0x6b0] sm:$0xff] %v604
                %v606 = vld [vmem:[%s174 + $0x18b8] sm:$0xff]
                %607 = vst [vmem:[%s175 + $0x6b8] sm:$0xff] %v606
                %v608 = vld [vmem:[%s174 + $0x18c0] sm:$0xff]
                %609 = vst [vmem:[%s175 + $0x6c0] sm:$0xff] %v608
                %v610 = vld [vmem:[%s174 + $0x18c8] sm:$0xff]
                %611 = vst [vmem:[%s175 + $0x6c8] sm:$0xff] %v610
                %v612 = vld [vmem:[%s174 + $0x18d0] sm:$0xff]
                %613 = vst [vmem:[%s175 + $0x6d0] sm:$0xff] %v612
                %v614 = vld [vmem:[%s174 + $0x18d8] sm:$0xff]
                %615 = vst [vmem:[%s175 + $0x6d8] sm:$0xff] %v614
                %v616 = vld [vmem:[%s174 + $0x18e0] sm:$0xff]
                %617 = vst [vmem:[%s175 + $0x6e0] sm:$0xff] %v616
                %v618 = vld [vmem:[%s174 + $0x18e8] sm:$0xff]
                %619 = vst [vmem:[%s175 + $0x6e8] sm:$0xff] %v618
                %v620 = vld [vmem:[%s174 + $0x18f0] sm:$0xff]
                %621 = vst [vmem:[%s175 + $0x6f0] sm:$0xff] %v620
                %v622 = vld [vmem:[%s174 + $0x18f8] sm:$0xff]
                %623 = vst [vmem:[%s175 + $0x6f8] sm:$0xff] %v622
                %v624 = vld [vmem:[%s174 + $0x1900] sm:$0xff]
                %625 = vst [vmem:[%s175 + $0x700] sm:$0xff] %v624
                %v626 = vld [vmem:[%s174 + $0x1908] sm:$0xff]
                %627 = vst [vmem:[%s175 + $0x708] sm:$0xff] %v626
                %v628 = vld [vmem:[%s174 + $0x1910] sm:$0xff]
                %629 = vst [vmem:[%s175 + $0x710] sm:$0xff] %v628
                %v630 = vld [vmem:[%s174 + $0x1918] sm:$0xff]
                %631 = vst [vmem:[%s175 + $0x718] sm:$0xff] %v630
                %v632 = vld [vmem:[%s174 + $0x1920] sm:$0xff]
                %633 = vst [vmem:[%s175 + $0x720] sm:$0xff] %v632
                %v634 = vld [vmem:[%s174 + $0x1928] sm:$0xff]
                %635 = vst [vmem:[%s175 + $0x728] sm:$0xff] %v634
                %v636 = vld [vmem:[%s174 + $0x1930] sm:$0xff]
                %637 = vst [vmem:[%s175 + $0x730] sm:$0xff] %v636
                %v638 = vld [vmem:[%s174 + $0x1938] sm:$0xff]
                %639 = vst [vmem:[%s175 + $0x738] sm:$0xff] %v638
                %v640 = vld [vmem:[%s174 + $0x1940] sm:$0xff]
                %641 = vst [vmem:[%s175 + $0x740] sm:$0xff] %v640
                %v642 = vld [vmem:[%s174 + $0x1948] sm:$0xff]
                %643 = vst [vmem:[%s175 + $0x748] sm:$0xff] %v642
                %v644 = vld [vmem:[%s174 + $0x1950] sm:$0xff]
                %645 = vst [vmem:[%s175 + $0x750] sm:$0xff] %v644
                %v646 = vld [vmem:[%s174 + $0x1958] sm:$0xff]
                %647 = vst [vmem:[%s175 + $0x758] sm:$0xff] %v646
                %v648 = vld [vmem:[%s174 + $0x1960] sm:$0xff]
                %649 = vst [vmem:[%s175 + $0x760] sm:$0xff] %v648
                %v650 = vld [vmem:[%s174 + $0x1968] sm:$0xff]
                %651 = vst [vmem:[%s175 + $0x768] sm:$0xff] %v650
                %v652 = vld [vmem:[%s174 + $0x1970] sm:$0xff]
                %653 = vst [vmem:[%s175 + $0x770] sm:$0xff] %v652
                %v654 = vld [vmem:[%s174 + $0x1978] sm:$0xff]
                %655 = vst [vmem:[%s175 + $0x778] sm:$0xff] %v654
                %v656 = vld [vmem:[%s174 + $0x1980] sm:$0xff]
                %657 = vst [vmem:[%s175 + $0x780] sm:$0xff] %v656
                %v658 = vld [vmem:[%s174 + $0x1988] sm:$0xff]
                %659 = vst [vmem:[%s175 + $0x788] sm:$0xff] %v658
                %v660 = vld [vmem:[%s174 + $0x1990] sm:$0xff]
                %661 = vst [vmem:[%s175 + $0x790] sm:$0xff] %v660
                %v662 = vld [vmem:[%s174 + $0x1998] sm:$0xff]
                %663 = vst [vmem:[%s175 + $0x798] sm:$0xff] %v662
                %v664 = vld [vmem:[%s174 + $0x19a0] sm:$0xff]
                %665 = vst [vmem:[%s175 + $0x7a0] sm:$0xff] %v664
                %v666 = vld [vmem:[%s174 + $0x19a8] sm:$0xff]
                %667 = vst [vmem:[%s175 + $0x7a8] sm:$0xff] %v666
                %v668 = vld [vmem:[%s174 + $0x19b0] sm:$0xff]
                %669 = vst [vmem:[%s175 + $0x7b0] sm:$0xff] %v668
                %v670 = vld [vmem:[%s174 + $0x19b8] sm:$0xff]
                %671 = vst [vmem:[%s175 + $0x7b8] sm:$0xff] %v670
                %v672 = vld [vmem:[%s174 + $0x19c0] sm:$0xff]
                %673 = vst [vmem:[%s175 + $0x7c0] sm:$0xff] %v672
                %v674 = vld [vmem:[%s174 + $0x19c8] sm:$0xff]
                %675 = vst [vmem:[%s175 + $0x7c8] sm:$0xff] %v674
                %v676 = vld [vmem:[%s174 + $0x19d0] sm:$0xff]
                %677 = vst [vmem:[%s175 + $0x7d0] sm:$0xff] %v676
                %v678 = vld [vmem:[%s174 + $0x19d8] sm:$0xff]
                %679 = vst [vmem:[%s175 + $0x7d8] sm:$0xff] %v678
                %v680 = vld [vmem:[%s174 + $0x19e0] sm:$0xff]
                %681 = vst [vmem:[%s175 + $0x7e0] sm:$0xff] %v680
                %v682 = vld [vmem:[%s174 + $0x19e8] sm:$0xff]
                %683 = vst [vmem:[%s175 + $0x7e8] sm:$0xff] %v682
                %v684 = vld [vmem:[%s174 + $0x19f0] sm:$0xff]
                %685 = vst [vmem:[%s175 + $0x7f0] sm:$0xff] %v684
                %v686 = vld [vmem:[%s174 + $0x19f8] sm:$0xff]
                %687 = vst [vmem:[%s175 + $0x7f8] sm:$0xff] %v686
                %v688 = vld [vmem:[%s174 + $0x1a00] sm:$0xff]
                %689 = vst [vmem:[%s175 + $0x800] sm:$0xff] %v688
                %v690 = vld [vmem:[%s174 + $0x1a08] sm:$0xff]
                %691 = vst [vmem:[%s175 + $0x808] sm:$0xff] %v690
                %v692 = vld [vmem:[%s174 + $0x1a10] sm:$0xff]
                %693 = vst [vmem:[%s175 + $0x810] sm:$0xff] %v692
                %v694 = vld [vmem:[%s174 + $0x1a18] sm:$0xff]
                %695 = vst [vmem:[%s175 + $0x818] sm:$0xff] %v694
                %v696 = vld [vmem:[%s174 + $0x1a20] sm:$0xff]
                %697 = vst [vmem:[%s175 + $0x820] sm:$0xff] %v696
                %v698 = vld [vmem:[%s174 + $0x1a28] sm:$0xff]
                %699 = vst [vmem:[%s175 + $0x828] sm:$0xff] %v698
                %v700 = vld [vmem:[%s174 + $0x1a30] sm:$0xff]
                %701 = vst [vmem:[%s175 + $0x830] sm:$0xff] %v700
                %v702 = vld [vmem:[%s174 + $0x1a38] sm:$0xff]
                %703 = vst [vmem:[%s175 + $0x838] sm:$0xff] %v702
                %v704 = vld [vmem:[%s174 + $0x1a40] sm:$0xff]
                %705 = vst [vmem:[%s175 + $0x840] sm:$0xff] %v704
                %v706 = vld [vmem:[%s174 + $0x1a48] sm:$0xff]
                %707 = vst [vmem:[%s175 + $0x848] sm:$0xff] %v706
                %v708 = vld [vmem:[%s174 + $0x1a50] sm:$0xff]
                %709 = vst [vmem:[%s175 + $0x850] sm:$0xff] %v708
                %v710 = vld [vmem:[%s174 + $0x1a58] sm:$0xff]
                %711 = vst [vmem:[%s175 + $0x858] sm:$0xff] %v710
                %v712 = vld [vmem:[%s174 + $0x1a60] sm:$0xff]
                %713 = vst [vmem:[%s175 + $0x860] sm:$0xff] %v712
                %v714 = vld [vmem:[%s174 + $0x1a68] sm:$0xff]
                %715 = vst [vmem:[%s175 + $0x868] sm:$0xff] %v714
                %v716 = vld [vmem:[%s174 + $0x1a70] sm:$0xff]
                %717 = vst [vmem:[%s175 + $0x870] sm:$0xff] %v716
                %v718 = vld [vmem:[%s174 + $0x1a78] sm:$0xff]
                %719 = vst [vmem:[%s175 + $0x878] sm:$0xff] %v718
                %v720 = vld [vmem:[%s174 + $0x1a80] sm:$0xff]
                %721 = vst [vmem:[%s175 + $0x880] sm:$0xff] %v720
                %v722 = vld [vmem:[%s174 + $0x1a88] sm:$0xff]
                %723 = vst [vmem:[%s175 + $0x888] sm:$0xff] %v722
                %v724 = vld [vmem:[%s174 + $0x1a90] sm:$0xff]
                %725 = vst [vmem:[%s175 + $0x890] sm:$0xff] %v724
                %v726 = vld [vmem:[%s174 + $0x1a98] sm:$0xff]
                %727 = vst [vmem:[%s175 + $0x898] sm:$0xff] %v726
                %v728 = vld [vmem:[%s174 + $0x1aa0] sm:$0xff]
                %729 = vst [vmem:[%s175 + $0x8a0] sm:$0xff] %v728
                %v730 = vld [vmem:[%s174 + $0x1aa8] sm:$0xff]
                %731 = vst [vmem:[%s175 + $0x8a8] sm:$0xff] %v730
                %v732 = vld [vmem:[%s174 + $0x1ab0] sm:$0xff]
                %733 = vst [vmem:[%s175 + $0x8b0] sm:$0xff] %v732
                %v734 = vld [vmem:[%s174 + $0x1ab8] sm:$0xff]
                %735 = vst [vmem:[%s175 + $0x8b8] sm:$0xff] %v734
                %v736 = vld [vmem:[%s174 + $0x1ac0] sm:$0xff]
                %737 = vst [vmem:[%s175 + $0x8c0] sm:$0xff] %v736
                %v738 = vld [vmem:[%s174 + $0x1ac8] sm:$0xff]
                %739 = vst [vmem:[%s175 + $0x8c8] sm:$0xff] %v738
                %v740 = vld [vmem:[%s174 + $0x1ad0] sm:$0xff]
                %741 = vst [vmem:[%s175 + $0x8d0] sm:$0xff] %v740
                %v742 = vld [vmem:[%s174 + $0x1ad8] sm:$0xff]
                %743 = vst [vmem:[%s175 + $0x8d8] sm:$0xff] %v742
                %v744 = vld [vmem:[%s174 + $0x1ae0] sm:$0xff]
                %745 = vst [vmem:[%s175 + $0x8e0] sm:$0xff] %v744
                %v746 = vld [vmem:[%s174 + $0x1ae8] sm:$0xff]
                %747 = vst [vmem:[%s175 + $0x8e8] sm:$0xff] %v746
                %v748 = vld [vmem:[%s174 + $0x1af0] sm:$0xff]
                %749 = vst [vmem:[%s175 + $0x8f0] sm:$0xff] %v748
                %v750 = vld [vmem:[%s174 + $0x1af8] sm:$0xff]
                %751 = vst [vmem:[%s175 + $0x8f8] sm:$0xff] %v750
                %v752 = vld [vmem:[%s174 + $0x1b00] sm:$0xff]
                %753 = vst [vmem:[%s175 + $0x900] sm:$0xff] %v752
                %v754 = vld [vmem:[%s174 + $0x1b08] sm:$0xff]
                %755 = vst [vmem:[%s175 + $0x908] sm:$0xff] %v754
                %v756 = vld [vmem:[%s174 + $0x1b10] sm:$0xff]
                %757 = vst [vmem:[%s175 + $0x910] sm:$0xff] %v756
                %v758 = vld [vmem:[%s174 + $0x1b18] sm:$0xff]
                %759 = vst [vmem:[%s175 + $0x918] sm:$0xff] %v758
                %v760 = vld [vmem:[%s174 + $0x1b20] sm:$0xff]
                %761 = vst [vmem:[%s175 + $0x920] sm:$0xff] %v760
                %v762 = vld [vmem:[%s174 + $0x1b28] sm:$0xff]
                %763 = vst [vmem:[%s175 + $0x928] sm:$0xff] %v762
                %v764 = vld [vmem:[%s174 + $0x1b30] sm:$0xff]
                %765 = vst [vmem:[%s175 + $0x930] sm:$0xff] %v764
                %v766 = vld [vmem:[%s174 + $0x1b38] sm:$0xff]
                %767 = vst [vmem:[%s175 + $0x938] sm:$0xff] %v766
                %v768 = vld [vmem:[%s174 + $0x1b40] sm:$0xff]
                %769 = vst [vmem:[%s175 + $0x940] sm:$0xff] %v768
                %v770 = vld [vmem:[%s174 + $0x1b48] sm:$0xff]
                %771 = vst [vmem:[%s175 + $0x948] sm:$0xff] %v770
                %v772 = vld [vmem:[%s174 + $0x1b50] sm:$0xff]
                %773 = vst [vmem:[%s175 + $0x950] sm:$0xff] %v772
                %v774 = vld [vmem:[%s174 + $0x1b58] sm:$0xff]
                %775 = vst [vmem:[%s175 + $0x958] sm:$0xff] %v774
                %v776 = vld [vmem:[%s174 + $0x1b60] sm:$0xff]
                %777 = vst [vmem:[%s175 + $0x960] sm:$0xff] %v776
                %v778 = vld [vmem:[%s174 + $0x1b68] sm:$0xff]
                %779 = vst [vmem:[%s175 + $0x968] sm:$0xff] %v778
                %v780 = vld [vmem:[%s174 + $0x1b70] sm:$0xff]
                %781 = vst [vmem:[%s175 + $0x970] sm:$0xff] %v780
                %v782 = vld [vmem:[%s174 + $0x1b78] sm:$0xff]
                %783 = vst [vmem:[%s175 + $0x978] sm:$0xff] %v782
                %v784 = vld [vmem:[%s174 + $0x1b80] sm:$0xff]
                %785 = vst [vmem:[%s175 + $0x980] sm:$0xff] %v784
                %v786 = vld [vmem:[%s174 + $0x1b88] sm:$0xff]
                %787 = vst [vmem:[%s175 + $0x988] sm:$0xff] %v786
                %v788 = vld [vmem:[%s174 + $0x1b90] sm:$0xff]
                %789 = vst [vmem:[%s175 + $0x990] sm:$0xff] %v788
                %v790 = vld [vmem:[%s174 + $0x1b98] sm:$0xff]
                %791 = vst [vmem:[%s175 + $0x998] sm:$0xff] %v790
                %v792 = vld [vmem:[%s174 + $0x1ba0] sm:$0xff]
                %793 = vst [vmem:[%s175 + $0x9a0] sm:$0xff] %v792
                %v794 = vld [vmem:[%s174 + $0x1ba8] sm:$0xff]
                %795 = vst [vmem:[%s175 + $0x9a8] sm:$0xff] %v794
                %v796 = vld [vmem:[%s174 + $0x1bb0] sm:$0xff]
                %797 = vst [vmem:[%s175 + $0x9b0] sm:$0xff] %v796
                %v798 = vld [vmem:[%s174 + $0x1bb8] sm:$0xff]
                %799 = vst [vmem:[%s175 + $0x9b8] sm:$0xff] %v798
                %v800 = vld [vmem:[%s174 + $0x1bc0] sm:$0xff]
                %801 = vst [vmem:[%s175 + $0x9c0] sm:$0xff] %v800
                %v802 = vld [vmem:[%s174 + $0x1bc8] sm:$0xff]
                %803 = vst [vmem:[%s175 + $0x9c8] sm:$0xff] %v802
                %v804 = vld [vmem:[%s174 + $0x1bd0] sm:$0xff]
                %805 = vst [vmem:[%s175 + $0x9d0] sm:$0xff] %v804
                %v806 = vld [vmem:[%s174 + $0x1bd8] sm:$0xff]
                %807 = vst [vmem:[%s175 + $0x9d8] sm:$0xff] %v806
                %v808 = vld [vmem:[%s174 + $0x1be0] sm:$0xff]
                %809 = vst [vmem:[%s175 + $0x9e0] sm:$0xff] %v808
                %v810 = vld [vmem:[%s174 + $0x1be8] sm:$0xff]
                %811 = vst [vmem:[%s175 + $0x9e8] sm:$0xff] %v810
                %v812 = vld [vmem:[%s174 + $0x1bf0] sm:$0xff]
                %813 = vst [vmem:[%s175 + $0x9f0] sm:$0xff] %v812
                %v814 = vld [vmem:[%s174 + $0x1bf8] sm:$0xff]
                %815 = vst [vmem:[%s175 + $0x9f8] sm:$0xff] %v814
                %v816 = vld [vmem:[%s174 + $0x1c00] sm:$0xff]
                %817 = vst [vmem:[%s175 + $0xa00] sm:$0xff] %v816
                %v818 = vld [vmem:[%s174 + $0x1c08] sm:$0xff]
                %819 = vst [vmem:[%s175 + $0xa08] sm:$0xff] %v818
                %v820 = vld [vmem:[%s174 + $0x1c10] sm:$0xff]
                %821 = vst [vmem:[%s175 + $0xa10] sm:$0xff] %v820
                %v822 = vld [vmem:[%s174 + $0x1c18] sm:$0xff]
                %823 = vst [vmem:[%s175 + $0xa18] sm:$0xff] %v822
                %v824 = vld [vmem:[%s174 + $0x1c20] sm:$0xff]
                %825 = vst [vmem:[%s175 + $0xa20] sm:$0xff] %v824
                %v826 = vld [vmem:[%s174 + $0x1c28] sm:$0xff]
                %827 = vst [vmem:[%s175 + $0xa28] sm:$0xff] %v826
                %v828 = vld [vmem:[%s174 + $0x1c30] sm:$0xff]
                %829 = vst [vmem:[%s175 + $0xa30] sm:$0xff] %v828
                %v830 = vld [vmem:[%s174 + $0x1c38] sm:$0xff]
                %831 = vst [vmem:[%s175 + $0xa38] sm:$0xff] %v830
                %v832 = vld [vmem:[%s174 + $0x1c40] sm:$0xff]
                %833 = vst [vmem:[%s175 + $0xa40] sm:$0xff] %v832
                %v834 = vld [vmem:[%s174 + $0x1c48] sm:$0xff]
                %835 = vst [vmem:[%s175 + $0xa48] sm:$0xff] %v834
                %v836 = vld [vmem:[%s174 + $0x1c50] sm:$0xff]
                %837 = vst [vmem:[%s175 + $0xa50] sm:$0xff] %v836
                %v838 = vld [vmem:[%s174 + $0x1c58] sm:$0xff]
                %839 = vst [vmem:[%s175 + $0xa58] sm:$0xff] %v838
                %v840 = vld [vmem:[%s174 + $0x1c60] sm:$0xff]
                %841 = vst [vmem:[%s175 + $0xa60] sm:$0xff] %v840
                %v842 = vld [vmem:[%s174 + $0x1c68] sm:$0xff]
                %843 = vst [vmem:[%s175 + $0xa68] sm:$0xff] %v842
                %v844 = vld [vmem:[%s174 + $0x1c70] sm:$0xff]
                %845 = vst [vmem:[%s175 + $0xa70] sm:$0xff] %v844
                %v846 = vld [vmem:[%s174 + $0x1c78] sm:$0xff]
                %847 = vst [vmem:[%s175 + $0xa78] sm:$0xff] %v846
                %v848 = vld [vmem:[%s174 + $0x1c80] sm:$0xff]
                %849 = vst [vmem:[%s175 + $0xa80] sm:$0xff] %v848
                %v850 = vld [vmem:[%s174 + $0x1c88] sm:$0xff]
                %851 = vst [vmem:[%s175 + $0xa88] sm:$0xff] %v850
                %v852 = vld [vmem:[%s174 + $0x1c90] sm:$0xff]
                %853 = vst [vmem:[%s175 + $0xa90] sm:$0xff] %v852
                %v854 = vld [vmem:[%s174 + $0x1c98] sm:$0xff]
                %855 = vst [vmem:[%s175 + $0xa98] sm:$0xff] %v854
                %v856 = vld [vmem:[%s174 + $0x1ca0] sm:$0xff]
                %857 = vst [vmem:[%s175 + $0xaa0] sm:$0xff] %v856
                %v858 = vld [vmem:[%s174 + $0x1ca8] sm:$0xff]
                %859 = vst [vmem:[%s175 + $0xaa8] sm:$0xff] %v858
                %v860 = vld [vmem:[%s174 + $0x1cb0] sm:$0xff]
                %861 = vst [vmem:[%s175 + $0xab0] sm:$0xff] %v860
                %v862 = vld [vmem:[%s174 + $0x1cb8] sm:$0xff]
                %863 = vst [vmem:[%s175 + $0xab8] sm:$0xff] %v862
                %v864 = vld [vmem:[%s174 + $0x1cc0] sm:$0xff]
                %865 = vst [vmem:[%s175 + $0xac0] sm:$0xff] %v864
                %v866 = vld [vmem:[%s174 + $0x1cc8] sm:$0xff]
                %867 = vst [vmem:[%s175 + $0xac8] sm:$0xff] %v866
                %v868 = vld [vmem:[%s174 + $0x1cd0] sm:$0xff]
                %869 = vst [vmem:[%s175 + $0xad0] sm:$0xff] %v868
                %v870 = vld [vmem:[%s174 + $0x1cd8] sm:$0xff]
                %871 = vst [vmem:[%s175 + $0xad8] sm:$0xff] %v870
                %v872 = vld [vmem:[%s174 + $0x1ce0] sm:$0xff]
                %873 = vst [vmem:[%s175 + $0xae0] sm:$0xff] %v872
                %v874 = vld [vmem:[%s174 + $0x1ce8] sm:$0xff]
                %875 = vst [vmem:[%s175 + $0xae8] sm:$0xff] %v874
                %v876 = vld [vmem:[%s174 + $0x1cf0] sm:$0xff]
                %877 = vst [vmem:[%s175 + $0xaf0] sm:$0xff] %v876
                %v878 = vld [vmem:[%s174 + $0x1cf8] sm:$0xff]
                %879 = vst [vmem:[%s175 + $0xaf8] sm:$0xff] %v878
                %v880 = vld [vmem:[%s174 + $0x1d00] sm:$0xff]
                %881 = vst [vmem:[%s175 + $0xb00] sm:$0xff] %v880
                %v882 = vld [vmem:[%s174 + $0x1d08] sm:$0xff]
                %883 = vst [vmem:[%s175 + $0xb08] sm:$0xff] %v882
                %v884 = vld [vmem:[%s174 + $0x1d10] sm:$0xff]
                %885 = vst [vmem:[%s175 + $0xb10] sm:$0xff] %v884
                %v886 = vld [vmem:[%s174 + $0x1d18] sm:$0xff]
                %887 = vst [vmem:[%s175 + $0xb18] sm:$0xff] %v886
                %v888 = vld [vmem:[%s174 + $0x1d20] sm:$0xff]
                %889 = vst [vmem:[%s175 + $0xb20] sm:$0xff] %v888
                %v890 = vld [vmem:[%s174 + $0x1d28] sm:$0xff]
                %891 = vst [vmem:[%s175 + $0xb28] sm:$0xff] %v890
                %v892 = vld [vmem:[%s174 + $0x1d30] sm:$0xff]
                %893 = vst [vmem:[%s175 + $0xb30] sm:$0xff] %v892
                %v894 = vld [vmem:[%s174 + $0x1d38] sm:$0xff]
                %895 = vst [vmem:[%s175 + $0xb38] sm:$0xff] %v894
                %v896 = vld [vmem:[%s174 + $0x1d40] sm:$0xff]
                %897 = vst [vmem:[%s175 + $0xb40] sm:$0xff] %v896
                %v898 = vld [vmem:[%s174 + $0x1d48] sm:$0xff]
                %899 = vst [vmem:[%s175 + $0xb48] sm:$0xff] %v898
                %v900 = vld [vmem:[%s174 + $0x1d50] sm:$0xff]
                %901 = vst [vmem:[%s175 + $0xb50] sm:$0xff] %v900
                %v902 = vld [vmem:[%s174 + $0x1d58] sm:$0xff]
                %903 = vst [vmem:[%s175 + $0xb58] sm:$0xff] %v902
                %v904 = vld [vmem:[%s174 + $0x1d60] sm:$0xff]
                %905 = vst [vmem:[%s175 + $0xb60] sm:$0xff] %v904
                %v906 = vld [vmem:[%s174 + $0x1d68] sm:$0xff]
                %907 = vst [vmem:[%s175 + $0xb68] sm:$0xff] %v906
                %v908 = vld [vmem:[%s174 + $0x1d70] sm:$0xff]
                %909 = vst [vmem:[%s175 + $0xb70] sm:$0xff] %v908
                %v910 = vld [vmem:[%s174 + $0x1d78] sm:$0xff]
                %911 = vst [vmem:[%s175 + $0xb78] sm:$0xff] %v910
                %v912 = vld [vmem:[%s174 + $0x1d80] sm:$0xff]
                %913 = vst [vmem:[%s175 + $0xb80] sm:$0xff] %v912
                %v914 = vld [vmem:[%s174 + $0x1d88] sm:$0xff]
                %915 = vst [vmem:[%s175 + $0xb88] sm:$0xff] %v914
                %v916 = vld [vmem:[%s174 + $0x1d90] sm:$0xff]
                %917 = vst [vmem:[%s175 + $0xb90] sm:$0xff] %v916
                %v918 = vld [vmem:[%s174 + $0x1d98] sm:$0xff]
                %919 = vst [vmem:[%s175 + $0xb98] sm:$0xff] %v918
                %v920 = vld [vmem:[%s174 + $0x1da0] sm:$0xff]
                %921 = vst [vmem:[%s175 + $0xba0] sm:$0xff] %v920
                %v922 = vld [vmem:[%s174 + $0x1da8] sm:$0xff]
                %923 = vst [vmem:[%s175 + $0xba8] sm:$0xff] %v922
                %v924 = vld [vmem:[%s174 + $0x1db0] sm:$0xff]
                %925 = vst [vmem:[%s175 + $0xbb0] sm:$0xff] %v924
                %v926 = vld [vmem:[%s174 + $0x1db8] sm:$0xff]
                %927 = vst [vmem:[%s175 + $0xbb8] sm:$0xff] %v926
                %v928 = vld [vmem:[%s174 + $0x1dc0] sm:$0xff]
                %929 = vst [vmem:[%s175 + $0xbc0] sm:$0xff] %v928
                %v930 = vld [vmem:[%s174 + $0x1dc8] sm:$0xff]
                %931 = vst [vmem:[%s175 + $0xbc8] sm:$0xff] %v930
                %v932 = vld [vmem:[%s174 + $0x1dd0] sm:$0xff]
                %933 = vst [vmem:[%s175 + $0xbd0] sm:$0xff] %v932
                %v934 = vld [vmem:[%s174 + $0x1dd8] sm:$0xff]
                %935 = vst [vmem:[%s175 + $0xbd8] sm:$0xff] %v934
                %v936 = vld [vmem:[%s174 + $0x1de0] sm:$0xff]
                %937 = vst [vmem:[%s175 + $0xbe0] sm:$0xff] %v936
                %v938 = vld [vmem:[%s174 + $0x1de8] sm:$0xff]
                %939 = vst [vmem:[%s175 + $0xbe8] sm:$0xff] %v938
                %v940 = vld [vmem:[%s174 + $0x1df0] sm:$0xff]
                %941 = vst [vmem:[%s175 + $0xbf0] sm:$0xff] %v940
                %v942 = vld [vmem:[%s174 + $0x1df8] sm:$0xff]
                %943 = vst [vmem:[%s175 + $0xbf8] sm:$0xff] %v942
              $region37: #{mylinear_forward.1} parent=31 // loop_footer
                %s173 = sadd.s32 1, %s169
              $region38: #{mylinear_forward.1} parent=31 // loop_footer_branch
                %168 = sbr.rel target = $region34
              $region39: #{mylinear_forward.1} parent=31 // loop_exit
                _
            $region32: #{mylinear_forward.1} parent=27 // pred_fallthru
              _
            // Predicated region
            $region40: #{mylinear_forward.1} parent=27 // pred_check
              _
            $region41: #{mylinear_forward.1} parent=27 // pred_check_branch
              %945 = sbr.rel target = $region43
            $region42: #{mylinear_forward.1} parent=27 // pred_region
              _
            $region43: #{mylinear_forward.1} parent=27 // pred_fallthru
              _
          $region28: #{mylinear_forward.1} parent=23 // pred_fallthru
            _
          %946 = vnop
        $region24: #{mylinear_forward.1} parent=15 // pred_fallthru
          _
      $region16: #{mylinear_forward.1} parent=5 // pred_fallthru
        _
      %p947 = scmp.le.s32.totalorder 1, %s8
      %p948 = scmp.lt.s32.totalorder %s8, 5
      %p949 = pnand %p947, %p948
      %p950 = pneg %p949
      // Predicated region
      $region44: #{mylinear_forward.1} parent=5 // pred_check
        _
      $region45: #{mylinear_forward.1} parent=5 // pred_check_branch
        %952 = sbr.rel (%p949) target = $region47
      $region46: #{mylinear_forward.1} parent=5 // pred_region
        %s953 = ssub.s32 %s8, 1
        %s954 = sand.u32 %s76, 1
        %s955 = sand.u32 %s76, 1
        %s956 = smul.addr %s955, 3072
        %s957 = scalar_lea.vmem [#allocation2], %s956
        // Predicated region
        $region48: #{mylinear_forward.1} parent=46 // pred_check
          %p958 = pneg %p89
        $region49: #{mylinear_forward.1} parent=46 // pred_check_branch
          %960 = sbr.rel (%p958) target = $region51
        $region50: #{mylinear_forward.1} parent=46 // pred_region
          _
        $region51: #{mylinear_forward.1} parent=46 // pred_fallthru
          _
        %s961 = smul.u32 %s18, 2
        %s962 = sadd.s32 %s961, %s20
        %s963 = smul.u32 384, %s962
        %p964 = scmp.lt.s32.totalorder %s19, 0
        %s965 = scalar_select %p964, %s19, 0
        %p966 = scmp.lt.s32.totalorder %s963, 1535
        %s967 = scalar_select %p966, %s963, 1535
        %s968 = smul.addr %s965, 1536
        %s969 = sadd.s32 %s967, %s968
        %s970 = scalar_lea.vmem %s0, %s969
        %p971 = pneg %p59
        %p972 = pneg %p56
        %s973 = sand.u32 %s76, 1
        %s974 = sand.u32 %s76, 1
        %s975 = smul.addr %s974, 3072
        %s976 = scalar_lea.vmem [#allocation2], %s975
        %p977 = pneg %p89
        %p978 = pneg %p86
        %p979 = pneg %p117
        %p980 = pneg %p114
        %p981 = scmp.lt.s32.totalorder %s18, 1
        %s982 = scalar_select %p981, %s18, 1
        %p983 = scmp.lt.s32.totalorder %s19, 0
        %s984 = scalar_select %p983, %s19, 0
        %s985 = sadd.s32 %s984, %s982
        %s986 = smul.addr %s985, 2
        %s987 = scalar_lea.vmem %s2, %s986
        %s988 = smul.u32 %s18, 2
        %s989 = sadd.s32 %s988, %s20
        %s990 = smul.u32 384, %s989
        %p991 = scmp.lt.s32.totalorder %s19, 0
        %s992 = scalar_select %p991, %s19, 0
        %p993 = scmp.lt.s32.totalorder %s990, 1535
        %s994 = scalar_select %p993, %s990, 1535
        %s995 = smul.addr %s992, 1536
        %s996 = sadd.s32 %s994, %s995
        %s997 = scalar_lea.vmem %s0, %s996
        %s998 = smul.u32 %s18, 2
        %s999 = sadd.s32 %s998, %s20
        %s1000 = smul.u32 384, %s999
        %s1001 = smul.u32 %s18, 2
        %s1002 = sadd.s32 %s1001, %s20
        %s1003 = smul.u32 384, %s1002
        %p1004 = scmp.lt.s32.totalorder %s18, 1
        %s1005 = scalar_select %p1004, %s18, 1
        %p1006 = scmp.lt.s32.totalorder %s19, 0
        %s1007 = scalar_select %p1006, %s19, 0
        %s1008 = sadd.s32 %s1007, %s1005
        %s1009 = smul.addr %s1008, 2
        %s1010 = scalar_lea.vmem %s2, %s1009
        %p1012 = scmp.eq.s32.totalorder %s20, 0
        // Predicated region
        $region52: #{mylinear_forward.1} parent=46 // pred_check
          %p1013 = pneg %p1012
        $region53: #{mylinear_forward.1} parent=46 // pred_check_branch
          %1015 = sbr.rel (%p1013) target = $region55
        $region54: #{mylinear_forward.1} parent=46 // pred_region
          %vm1016 = vcmask 74752
          %1017 = vst.msk [vmem:[%s1010] sm:$0x3] %vm1016, 0.0
        $region55: #{mylinear_forward.1} parent=46 // pred_fallthru
          _
        %v1018 = vld [vmem:[%s997] sm:$0xff]
        %v1019 = vld [vmem:[%s997 + $0x8] sm:$0xff]
        %v1020 = vld [vmem:[%s997 + $0x10] sm:$0xff]
        %v1021 = vld [vmem:[%s997 + $0x18] sm:$0xff]
        %v1022 = vld [vmem:[%s997 + $0x20] sm:$0xff]
        %v1023 = vld [vmem:[%s997 + $0x28] sm:$0xff]
        %v1024 = vld [vmem:[%s997 + $0x30] sm:$0xff]
        %v1025 = vld [vmem:[%s997 + $0x38] sm:$0xff]
        %v1026 = vld [vmem:[%s997 + $0x40] sm:$0xff]
        %v1027 = vld [vmem:[%s997 + $0x48] sm:$0xff]
        %v1028 = vld [vmem:[%s997 + $0x50] sm:$0xff]
        %v1029 = vld [vmem:[%s997 + $0x58] sm:$0xff]
        %v1030 = vld [vmem:[%s997 + $0x60] sm:$0xff]
        %v1031 = vld [vmem:[%s997 + $0x68] sm:$0xff]
        %v1032 = vld [vmem:[%s997 + $0x70] sm:$0xff]
        %v1033 = vld [vmem:[%s997 + $0x78] sm:$0xff]
        %v1034 = vld [vmem:[%s997 + $0x80] sm:$0xff]
        %v1035 = vld [vmem:[%s997 + $0x88] sm:$0xff]
        %v1036 = vld [vmem:[%s997 + $0x90] sm:$0xff]
        %v1037 = vld [vmem:[%s997 + $0x98] sm:$0xff]
        %v1038 = vld [vmem:[%s997 + $0xa0] sm:$0xff]
        %v1039 = vld [vmem:[%s997 + $0xa8] sm:$0xff]
        %v1040 = vld [vmem:[%s997 + $0xb0] sm:$0xff]
        %v1041 = vld [vmem:[%s997 + $0xb8] sm:$0xff]
        %v1042 = vld [vmem:[%s997 + $0xc0] sm:$0xff]
        %v1043 = vld [vmem:[%s997 + $0xc8] sm:$0xff]
        %v1044 = vld [vmem:[%s997 + $0xd0] sm:$0xff]
        %v1045 = vld [vmem:[%s997 + $0xd8] sm:$0xff]
        %v1046 = vld [vmem:[%s997 + $0xe0] sm:$0xff]
        %v1047 = vld [vmem:[%s997 + $0xe8] sm:$0xff]
        %v1048 = vld [vmem:[%s997 + $0xf0] sm:$0xff]
        %v1049 = vld [vmem:[%s997 + $0xf8] sm:$0xff]
        %v1050 = vld [vmem:[%s997 + $0x100] sm:$0xff]
        %v1051 = vld [vmem:[%s997 + $0x108] sm:$0xff]
        %v1052 = vld [vmem:[%s997 + $0x110] sm:$0xff]
        %v1053 = vld [vmem:[%s997 + $0x118] sm:$0xff]
        %v1054 = vld [vmem:[%s997 + $0x120] sm:$0xff]
        %v1055 = vld [vmem:[%s997 + $0x128] sm:$0xff]
        %v1056 = vld [vmem:[%s997 + $0x130] sm:$0xff]
        %v1057 = vld [vmem:[%s997 + $0x138] sm:$0xff]
        %v1058 = vld [vmem:[%s997 + $0x140] sm:$0xff]
        %v1059 = vld [vmem:[%s997 + $0x148] sm:$0xff]
        %v1060 = vld [vmem:[%s997 + $0x150] sm:$0xff]
        %v1061 = vld [vmem:[%s997 + $0x158] sm:$0xff]
        %v1062 = vld [vmem:[%s997 + $0x160] sm:$0xff]
        %v1063 = vld [vmem:[%s997 + $0x168] sm:$0xff]
        %v1064 = vld [vmem:[%s997 + $0x170] sm:$0xff]
        %v1065 = vld [vmem:[%s997 + $0x178] sm:$0xff]
        %v1066 = vld [vmem:[%s957] sm:$0xff]
        %v1067 = vld [vmem:[%s957 + $0x8] sm:$0xff]
        %v1068 = vld [vmem:[%s957 + $0x10] sm:$0xff]
        %v1069 = vld [vmem:[%s957 + $0x18] sm:$0xff]
        %v1070 = vld [vmem:[%s957 + $0x20] sm:$0xff]
        %v1071 = vld [vmem:[%s957 + $0x28] sm:$0xff]
        %v1072 = vld [vmem:[%s957 + $0x30] sm:$0xff]
        %v1073 = vld [vmem:[%s957 + $0x38] sm:$0xff]
        %v1074 = vld [vmem:[%s957 + $0x40] sm:$0xff]
        %v1075 = vld [vmem:[%s957 + $0x48] sm:$0xff]
        %v1076 = vld [vmem:[%s957 + $0x50] sm:$0xff]
        %v1077 = vld [vmem:[%s957 + $0x58] sm:$0xff]
        %v1078 = vld [vmem:[%s957 + $0x60] sm:$0xff]
        %v1079 = vld [vmem:[%s957 + $0x68] sm:$0xff]
        %v1080 = vld [vmem:[%s957 + $0x70] sm:$0xff]
        %v1081 = vld [vmem:[%s957 + $0x78] sm:$0xff]
        %v1082 = vld [vmem:[%s957 + $0x80] sm:$0xff]
        %v1083 = vld [vmem:[%s957 + $0x88] sm:$0xff]
        %v1084 = vld [vmem:[%s957 + $0x90] sm:$0xff]
        %v1085 = vld [vmem:[%s957 + $0x98] sm:$0xff]
        %v1086 = vld [vmem:[%s957 + $0xa0] sm:$0xff]
        %v1087 = vld [vmem:[%s957 + $0xa8] sm:$0xff]
        %v1088 = vld [vmem:[%s957 + $0xb0] sm:$0xff]
        %v1089 = vld [vmem:[%s957 + $0xb8] sm:$0xff]
        %v1090 = vld [vmem:[%s957 + $0xc0] sm:$0xff]
        %v1091 = vld [vmem:[%s957 + $0xc8] sm:$0xff]
        %v1092 = vld [vmem:[%s957 + $0xd0] sm:$0xff]
        %v1093 = vld [vmem:[%s957 + $0xd8] sm:$0xff]
        %v1094 = vld [vmem:[%s957 + $0xe0] sm:$0xff]
        %v1095 = vld [vmem:[%s957 + $0xe8] sm:$0xff]
        %v1096 = vld [vmem:[%s957 + $0xf0] sm:$0xff]
        %v1097 = vld [vmem:[%s957 + $0xf8] sm:$0xff]
        %v1098 = vld [vmem:[%s957 + $0x100] sm:$0xff]
        %v1099 = vld [vmem:[%s957 + $0x108] sm:$0xff]
        %v1100 = vld [vmem:[%s957 + $0x110] sm:$0xff]
        %v1101 = vld [vmem:[%s957 + $0x118] sm:$0xff]
        %v1102 = vld [vmem:[%s957 + $0x120] sm:$0xff]
        %v1103 = vld [vmem:[%s957 + $0x128] sm:$0xff]
        %v1104 = vld [vmem:[%s957 + $0x130] sm:$0xff]
        %v1105 = vld [vmem:[%s957 + $0x138] sm:$0xff]
        %v1106 = vld [vmem:[%s957 + $0x140] sm:$0xff]
        %v1107 = vld [vmem:[%s957 + $0x148] sm:$0xff]
        %v1108 = vld [vmem:[%s957 + $0x150] sm:$0xff]
        %v1109 = vld [vmem:[%s957 + $0x158] sm:$0xff]
        %v1110 = vld [vmem:[%s957 + $0x160] sm:$0xff]
        %v1111 = vld [vmem:[%s957 + $0x168] sm:$0xff]
        %v1112 = vld [vmem:[%s957 + $0x170] sm:$0xff]
        %v1113 = vld [vmem:[%s957 + $0x178] sm:$0xff]
        %v1114 = vld [vmem:[%s957 + $0x180] sm:$0xff]
        %v1115 = vld [vmem:[%s957 + $0x188] sm:$0xff]
        %v1116 = vld [vmem:[%s957 + $0x190] sm:$0xff]
        %v1117 = vld [vmem:[%s957 + $0x198] sm:$0xff]
        %v1118 = vld [vmem:[%s957 + $0x1a0] sm:$0xff]
        %v1119 = vld [vmem:[%s957 + $0x1a8] sm:$0xff]
        %v1120 = vld [vmem:[%s957 + $0x1b0] sm:$0xff]
        %v1121 = vld [vmem:[%s957 + $0x1b8] sm:$0xff]
        %v1122 = vld [vmem:[%s957 + $0x1c0] sm:$0xff]
        %v1123 = vld [vmem:[%s957 + $0x1c8] sm:$0xff]
        %v1124 = vld [vmem:[%s957 + $0x1d0] sm:$0xff]
        %v1125 = vld [vmem:[%s957 + $0x1d8] sm:$0xff]
        %v1126 = vld [vmem:[%s957 + $0x1e0] sm:$0xff]
        %v1127 = vld [vmem:[%s957 + $0x1e8] sm:$0xff]
        %v1128 = vld [vmem:[%s957 + $0x1f0] sm:$0xff]
        %v1129 = vld [vmem:[%s957 + $0x1f8] sm:$0xff]
        %v1130 = vld [vmem:[%s957 + $0x200] sm:$0xff]
        %v1131 = vld [vmem:[%s957 + $0x208] sm:$0xff]
        %v1132 = vld [vmem:[%s957 + $0x210] sm:$0xff]
        %v1133 = vld [vmem:[%s957 + $0x218] sm:$0xff]
        %v1134 = vld [vmem:[%s957 + $0x220] sm:$0xff]
        %v1135 = vld [vmem:[%s957 + $0x228] sm:$0xff]
        %v1136 = vld [vmem:[%s957 + $0x230] sm:$0xff]
        %v1137 = vld [vmem:[%s957 + $0x238] sm:$0xff]
        %v1138 = vld [vmem:[%s957 + $0x240] sm:$0xff]
        %v1139 = vld [vmem:[%s957 + $0x248] sm:$0xff]
        %v1140 = vld [vmem:[%s957 + $0x250] sm:$0xff]
        %v1141 = vld [vmem:[%s957 + $0x258] sm:$0xff]
        %v1142 = vld [vmem:[%s957 + $0x260] sm:$0xff]
        %v1143 = vld [vmem:[%s957 + $0x268] sm:$0xff]
        %v1144 = vld [vmem:[%s957 + $0x270] sm:$0xff]
        %v1145 = vld [vmem:[%s957 + $0x278] sm:$0xff]
        %v1146 = vld [vmem:[%s957 + $0x280] sm:$0xff]
        %v1147 = vld [vmem:[%s957 + $0x288] sm:$0xff]
        %v1148 = vld [vmem:[%s957 + $0x290] sm:$0xff]
        %v1149 = vld [vmem:[%s957 + $0x298] sm:$0xff]
        %v1150 = vld [vmem:[%s957 + $0x2a0] sm:$0xff]
        %v1151 = vld [vmem:[%s957 + $0x2a8] sm:$0xff]
        %v1152 = vld [vmem:[%s957 + $0x2b0] sm:$0xff]
        %v1153 = vld [vmem:[%s957 + $0x2b8] sm:$0xff]
        %v1154 = vld [vmem:[%s957 + $0x2c0] sm:$0xff]
        %v1155 = vld [vmem:[%s957 + $0x2c8] sm:$0xff]
        %v1156 = vld [vmem:[%s957 + $0x2d0] sm:$0xff]
        %v1157 = vld [vmem:[%s957 + $0x2d8] sm:$0xff]
        %v1158 = vld [vmem:[%s957 + $0x2e0] sm:$0xff]
        %v1159 = vld [vmem:[%s957 + $0x2e8] sm:$0xff]
        %v1160 = vld [vmem:[%s957 + $0x2f0] sm:$0xff]
        %v1161 = vld [vmem:[%s957 + $0x2f8] sm:$0xff]
        %v1162 = vld [vmem:[%s957 + $0x300] sm:$0xff]
        %v1163 = vld [vmem:[%s957 + $0x308] sm:$0xff]
        %v1164 = vld [vmem:[%s957 + $0x310] sm:$0xff]
        %v1165 = vld [vmem:[%s957 + $0x318] sm:$0xff]
        %v1166 = vld [vmem:[%s957 + $0x320] sm:$0xff]
        %v1167 = vld [vmem:[%s957 + $0x328] sm:$0xff]
        %v1168 = vld [vmem:[%s957 + $0x330] sm:$0xff]
        %v1169 = vld [vmem:[%s957 + $0x338] sm:$0xff]
        %v1170 = vld [vmem:[%s957 + $0x340] sm:$0xff]
        %v1171 = vld [vmem:[%s957 + $0x348] sm:$0xff]
        %v1172 = vld [vmem:[%s957 + $0x350] sm:$0xff]
        %v1173 = vld [vmem:[%s957 + $0x358] sm:$0xff]
        %v1174 = vld [vmem:[%s957 + $0x360] sm:$0xff]
        %v1175 = vld [vmem:[%s957 + $0x368] sm:$0xff]
        %v1176 = vld [vmem:[%s957 + $0x370] sm:$0xff]
        %v1177 = vld [vmem:[%s957 + $0x378] sm:$0xff]
        %v1178 = vld [vmem:[%s957 + $0x380] sm:$0xff]
        %v1179 = vld [vmem:[%s957 + $0x388] sm:$0xff]
        %v1180 = vld [vmem:[%s957 + $0x390] sm:$0xff]
        %v1181 = vld [vmem:[%s957 + $0x398] sm:$0xff]
        %v1182 = vld [vmem:[%s957 + $0x3a0] sm:$0xff]
        %v1183 = vld [vmem:[%s957 + $0x3a8] sm:$0xff]
        %v1184 = vld [vmem:[%s957 + $0x3b0] sm:$0xff]
        %v1185 = vld [vmem:[%s957 + $0x3b8] sm:$0xff]
        %v1186 = vld [vmem:[%s957 + $0x3c0] sm:$0xff]
        %v1187 = vld [vmem:[%s957 + $0x3c8] sm:$0xff]
        %v1188 = vld [vmem:[%s957 + $0x3d0] sm:$0xff]
        %v1189 = vld [vmem:[%s957 + $0x3d8] sm:$0xff]
        %v1190 = vld [vmem:[%s957 + $0x3e0] sm:$0xff]
        %v1191 = vld [vmem:[%s957 + $0x3e8] sm:$0xff]
        %v1192 = vld [vmem:[%s957 + $0x3f0] sm:$0xff]
        %v1193 = vld [vmem:[%s957 + $0x3f8] sm:$0xff]
        %v1194 = vld [vmem:[%s957 + $0x400] sm:$0xff]
        %v1195 = vld [vmem:[%s957 + $0x408] sm:$0xff]
        %v1196 = vld [vmem:[%s957 + $0x410] sm:$0xff]
        %v1197 = vld [vmem:[%s957 + $0x418] sm:$0xff]
        %v1198 = vld [vmem:[%s957 + $0x420] sm:$0xff]
        %v1199 = vld [vmem:[%s957 + $0x428] sm:$0xff]
        %v1200 = vld [vmem:[%s957 + $0x430] sm:$0xff]
        %v1201 = vld [vmem:[%s957 + $0x438] sm:$0xff]
        %v1202 = vld [vmem:[%s957 + $0x440] sm:$0xff]
        %v1203 = vld [vmem:[%s957 + $0x448] sm:$0xff]
        %v1204 = vld [vmem:[%s957 + $0x450] sm:$0xff]
        %v1205 = vld [vmem:[%s957 + $0x458] sm:$0xff]
        %v1206 = vld [vmem:[%s957 + $0x460] sm:$0xff]
        %v1207 = vld [vmem:[%s957 + $0x468] sm:$0xff]
        %v1208 = vld [vmem:[%s957 + $0x470] sm:$0xff]
        %v1209 = vld [vmem:[%s957 + $0x478] sm:$0xff]
        %v1210 = vld [vmem:[%s957 + $0x480] sm:$0xff]
        %v1211 = vld [vmem:[%s957 + $0x488] sm:$0xff]
        %v1212 = vld [vmem:[%s957 + $0x490] sm:$0xff]
        %v1213 = vld [vmem:[%s957 + $0x498] sm:$0xff]
        %v1214 = vld [vmem:[%s957 + $0x4a0] sm:$0xff]
        %v1215 = vld [vmem:[%s957 + $0x4a8] sm:$0xff]
        %v1216 = vld [vmem:[%s957 + $0x4b0] sm:$0xff]
        %v1217 = vld [vmem:[%s957 + $0x4b8] sm:$0xff]
        %v1218 = vld [vmem:[%s957 + $0x4c0] sm:$0xff]
        %v1219 = vld [vmem:[%s957 + $0x4c8] sm:$0xff]
        %v1220 = vld [vmem:[%s957 + $0x4d0] sm:$0xff]
        %v1221 = vld [vmem:[%s957 + $0x4d8] sm:$0xff]
        %v1222 = vld [vmem:[%s957 + $0x4e0] sm:$0xff]
        %v1223 = vld [vmem:[%s957 + $0x4e8] sm:$0xff]
        %v1224 = vld [vmem:[%s957 + $0x4f0] sm:$0xff]
        %v1225 = vld [vmem:[%s957 + $0x4f8] sm:$0xff]
        %v1226 = vld [vmem:[%s957 + $0x500] sm:$0xff]
        %v1227 = vld [vmem:[%s957 + $0x508] sm:$0xff]
        %v1228 = vld [vmem:[%s957 + $0x510] sm:$0xff]
        %v1229 = vld [vmem:[%s957 + $0x518] sm:$0xff]
        %v1230 = vld [vmem:[%s957 + $0x520] sm:$0xff]
        %v1231 = vld [vmem:[%s957 + $0x528] sm:$0xff]
        %v1232 = vld [vmem:[%s957 + $0x530] sm:$0xff]
        %v1233 = vld [vmem:[%s957 + $0x538] sm:$0xff]
        %v1234 = vld [vmem:[%s957 + $0x540] sm:$0xff]
        %v1235 = vld [vmem:[%s957 + $0x548] sm:$0xff]
        %v1236 = vld [vmem:[%s957 + $0x550] sm:$0xff]
        %v1237 = vld [vmem:[%s957 + $0x558] sm:$0xff]
        %v1238 = vld [vmem:[%s957 + $0x560] sm:$0xff]
        %v1239 = vld [vmem:[%s957 + $0x568] sm:$0xff]
        %v1240 = vld [vmem:[%s957 + $0x570] sm:$0xff]
        %v1241 = vld [vmem:[%s957 + $0x578] sm:$0xff]
        %v1242 = vld [vmem:[%s957 + $0x580] sm:$0xff]
        %v1243 = vld [vmem:[%s957 + $0x588] sm:$0xff]
        %v1244 = vld [vmem:[%s957 + $0x590] sm:$0xff]
        %v1245 = vld [vmem:[%s957 + $0x598] sm:$0xff]
        %v1246 = vld [vmem:[%s957 + $0x5a0] sm:$0xff]
        %v1247 = vld [vmem:[%s957 + $0x5a8] sm:$0xff]
        %v1248 = vld [vmem:[%s957 + $0x5b0] sm:$0xff]
        %v1249 = vld [vmem:[%s957 + $0x5b8] sm:$0xff]
        %v1250 = vld [vmem:[%s957 + $0x5c0] sm:$0xff]
        %v1251 = vld [vmem:[%s957 + $0x5c8] sm:$0xff]
        %v1252 = vld [vmem:[%s957 + $0x5d0] sm:$0xff]
        %v1253 = vld [vmem:[%s957 + $0x5d8] sm:$0xff]
        %v1254 = vld [vmem:[%s957 + $0x5e0] sm:$0xff]
        %v1255 = vld [vmem:[%s957 + $0x5e8] sm:$0xff]
        %v1256 = vld [vmem:[%s957 + $0x5f0] sm:$0xff]
        %v1257 = vld [vmem:[%s957 + $0x5f8] sm:$0xff]
        %v1258 = vld [vmem:[%s957 + $0x600] sm:$0x11]
        %v1259 = vld [vmem:[%s957 + $0x608] sm:$0x11]
        %v1260 = vld [vmem:[%s957 + $0x610] sm:$0x11]
        %v1261 = vld [vmem:[%s957 + $0x618] sm:$0x11]
        %v1262 = vld [vmem:[%s957 + $0x620] sm:$0x11]
        %v1263 = vld [vmem:[%s957 + $0x628] sm:$0x11]
        %v1264 = vld [vmem:[%s957 + $0x630] sm:$0x11]
        %v1265 = vld [vmem:[%s957 + $0x638] sm:$0x11]
        %v1266 = vld [vmem:[%s957 + $0x640] sm:$0x11]
        %v1267 = vld [vmem:[%s957 + $0x648] sm:$0x11]
        %v1268 = vld [vmem:[%s957 + $0x650] sm:$0x11]
        %v1269 = vld [vmem:[%s957 + $0x658] sm:$0x11]
        %v1270 = vld [vmem:[%s957 + $0x660] sm:$0x11]
        %v1271 = vld [vmem:[%s957 + $0x668] sm:$0x11]
        %v1272 = vld [vmem:[%s957 + $0x670] sm:$0x11]
        %v1273 = vld [vmem:[%s957 + $0x678] sm:$0x11]
        %v1274 = vld [vmem:[%s957 + $0x680] sm:$0x11]
        %v1275 = vld [vmem:[%s957 + $0x688] sm:$0x11]
        %v1276 = vld [vmem:[%s957 + $0x690] sm:$0x11]
        %v1277 = vld [vmem:[%s957 + $0x698] sm:$0x11]
        %v1278 = vld [vmem:[%s957 + $0x6a0] sm:$0x11]
        %v1279 = vld [vmem:[%s957 + $0x6a8] sm:$0x11]
        %v1280 = vld [vmem:[%s957 + $0x6b0] sm:$0x11]
        %v1281 = vld [vmem:[%s957 + $0x6b8] sm:$0x11]
        %v1282 = vld [vmem:[%s957 + $0x6c0] sm:$0x11]
        %v1283 = vld [vmem:[%s957 + $0x6c8] sm:$0x11]
        %v1284 = vld [vmem:[%s957 + $0x6d0] sm:$0x11]
        %v1285 = vld [vmem:[%s957 + $0x6d8] sm:$0x11]
        %v1286 = vld [vmem:[%s957 + $0x6e0] sm:$0x11]
        %v1287 = vld [vmem:[%s957 + $0x6e8] sm:$0x11]
        %v1288 = vld [vmem:[%s957 + $0x6f0] sm:$0x11]
        %v1289 = vld [vmem:[%s957 + $0x6f8] sm:$0x11]
        %v1290 = vld [vmem:[%s957 + $0x700] sm:$0x11]
        %v1291 = vld [vmem:[%s957 + $0x708] sm:$0x11]
        %v1292 = vld [vmem:[%s957 + $0x710] sm:$0x11]
        %v1293 = vld [vmem:[%s957 + $0x718] sm:$0x11]
        %v1294 = vld [vmem:[%s957 + $0x720] sm:$0x11]
        %v1295 = vld [vmem:[%s957 + $0x728] sm:$0x11]
        %v1296 = vld [vmem:[%s957 + $0x730] sm:$0x11]
        %v1297 = vld [vmem:[%s957 + $0x738] sm:$0x11]
        %v1298 = vld [vmem:[%s957 + $0x740] sm:$0x11]
        %v1299 = vld [vmem:[%s957 + $0x748] sm:$0x11]
        %v1300 = vld [vmem:[%s957 + $0x750] sm:$0x11]
        %v1301 = vld [vmem:[%s957 + $0x758] sm:$0x11]
        %v1302 = vld [vmem:[%s957 + $0x760] sm:$0x11]
        %v1303 = vld [vmem:[%s957 + $0x768] sm:$0x11]
        %v1304 = vld [vmem:[%s957 + $0x770] sm:$0x11]
        %v1305 = vld [vmem:[%s957 + $0x778] sm:$0x11]
        %v1306 = vld [vmem:[%s957 + $0x780] sm:$0x11]
        %v1307 = vld [vmem:[%s957 + $0x788] sm:$0x11]
        %v1308 = vld [vmem:[%s957 + $0x790] sm:$0x11]
        %v1309 = vld [vmem:[%s957 + $0x798] sm:$0x11]
        %v1310 = vld [vmem:[%s957 + $0x7a0] sm:$0x11]
        %v1311 = vld [vmem:[%s957 + $0x7a8] sm:$0x11]
        %v1312 = vld [vmem:[%s957 + $0x7b0] sm:$0x11]
        %v1313 = vld [vmem:[%s957 + $0x7b8] sm:$0x11]
        %v1314 = vld [vmem:[%s957 + $0x7c0] sm:$0x11]
        %v1315 = vld [vmem:[%s957 + $0x7c8] sm:$0x11]
        %v1316 = vld [vmem:[%s957 + $0x7d0] sm:$0x11]
        %v1317 = vld [vmem:[%s957 + $0x7d8] sm:$0x11]
        %v1318 = vld [vmem:[%s957 + $0x7e0] sm:$0x11]
        %v1319 = vld [vmem:[%s957 + $0x7e8] sm:$0x11]
        %v1320 = vld [vmem:[%s957 + $0x7f0] sm:$0x11]
        %v1321 = vld [vmem:[%s957 + $0x7f8] sm:$0x11]
        %v1322 = vld [vmem:[%s957 + $0x800] sm:$0x11]
        %v1323 = vld [vmem:[%s957 + $0x808] sm:$0x11]
        %v1324 = vld [vmem:[%s957 + $0x810] sm:$0x11]
        %v1325 = vld [vmem:[%s957 + $0x818] sm:$0x11]
        %v1326 = vld [vmem:[%s957 + $0x820] sm:$0x11]
        %v1327 = vld [vmem:[%s957 + $0x828] sm:$0x11]
        %v1328 = vld [vmem:[%s957 + $0x830] sm:$0x11]
        %v1329 = vld [vmem:[%s957 + $0x838] sm:$0x11]
        %v1330 = vld [vmem:[%s957 + $0x840] sm:$0x11]
        %v1331 = vld [vmem:[%s957 + $0x848] sm:$0x11]
        %v1332 = vld [vmem:[%s957 + $0x850] sm:$0x11]
        %v1333 = vld [vmem:[%s957 + $0x858] sm:$0x11]
        %v1334 = vld [vmem:[%s957 + $0x860] sm:$0x11]
        %v1335 = vld [vmem:[%s957 + $0x868] sm:$0x11]
        %v1336 = vld [vmem:[%s957 + $0x870] sm:$0x11]
        %v1337 = vld [vmem:[%s957 + $0x878] sm:$0x11]
        %v1338 = vld [vmem:[%s957 + $0x880] sm:$0x11]
        %v1339 = vld [vmem:[%s957 + $0x888] sm:$0x11]
        %v1340 = vld [vmem:[%s957 + $0x890] sm:$0x11]
        %v1341 = vld [vmem:[%s957 + $0x898] sm:$0x11]
        %v1342 = vld [vmem:[%s957 + $0x8a0] sm:$0x11]
        %v1343 = vld [vmem:[%s957 + $0x8a8] sm:$0x11]
        %v1344 = vld [vmem:[%s957 + $0x8b0] sm:$0x11]
        %v1345 = vld [vmem:[%s957 + $0x8b8] sm:$0x11]
        %v1346 = vld [vmem:[%s957 + $0x8c0] sm:$0x11]
        %v1347 = vld [vmem:[%s957 + $0x8c8] sm:$0x11]
        %v1348 = vld [vmem:[%s957 + $0x8d0] sm:$0x11]
        %v1349 = vld [vmem:[%s957 + $0x8d8] sm:$0x11]
        %v1350 = vld [vmem:[%s957 + $0x8e0] sm:$0x11]
        %v1351 = vld [vmem:[%s957 + $0x8e8] sm:$0x11]
        %v1352 = vld [vmem:[%s957 + $0x8f0] sm:$0x11]
        %v1353 = vld [vmem:[%s957 + $0x8f8] sm:$0x11]
        %v1354 = vld [vmem:[%s957 + $0x900] sm:$0x11]
        %v1355 = vld [vmem:[%s957 + $0x908] sm:$0x11]
        %v1356 = vld [vmem:[%s957 + $0x910] sm:$0x11]
        %v1357 = vld [vmem:[%s957 + $0x918] sm:$0x11]
        %v1358 = vld [vmem:[%s957 + $0x920] sm:$0x11]
        %v1359 = vld [vmem:[%s957 + $0x928] sm:$0x11]
        %v1360 = vld [vmem:[%s957 + $0x930] sm:$0x11]
        %v1361 = vld [vmem:[%s957 + $0x938] sm:$0x11]
        %v1362 = vld [vmem:[%s957 + $0x940] sm:$0x11]
        %v1363 = vld [vmem:[%s957 + $0x948] sm:$0x11]
        %v1364 = vld [vmem:[%s957 + $0x950] sm:$0x11]
        %v1365 = vld [vmem:[%s957 + $0x958] sm:$0x11]
        %v1366 = vld [vmem:[%s957 + $0x960] sm:$0x11]
        %v1367 = vld [vmem:[%s957 + $0x968] sm:$0x11]
        %v1368 = vld [vmem:[%s957 + $0x970] sm:$0x11]
        %v1369 = vld [vmem:[%s957 + $0x978] sm:$0x11]
        %v1370 = vld [vmem:[%s957 + $0x980] sm:$0x11]
        %v1371 = vld [vmem:[%s957 + $0x988] sm:$0x11]
        %v1372 = vld [vmem:[%s957 + $0x990] sm:$0x11]
        %v1373 = vld [vmem:[%s957 + $0x998] sm:$0x11]
        %v1374 = vld [vmem:[%s957 + $0x9a0] sm:$0x11]
        %v1375 = vld [vmem:[%s957 + $0x9a8] sm:$0x11]
        %v1376 = vld [vmem:[%s957 + $0x9b0] sm:$0x11]
        %v1377 = vld [vmem:[%s957 + $0x9b8] sm:$0x11]
        %v1378 = vld [vmem:[%s957 + $0x9c0] sm:$0x11]
        %v1379 = vld [vmem:[%s957 + $0x9c8] sm:$0x11]
        %v1380 = vld [vmem:[%s957 + $0x9d0] sm:$0x11]
        %v1381 = vld [vmem:[%s957 + $0x9d8] sm:$0x11]
        %v1382 = vld [vmem:[%s957 + $0x9e0] sm:$0x11]
        %v1383 = vld [vmem:[%s957 + $0x9e8] sm:$0x11]
        %v1384 = vld [vmem:[%s957 + $0x9f0] sm:$0x11]
        %v1385 = vld [vmem:[%s957 + $0x9f8] sm:$0x11]
        %v1386 = vld [vmem:[%s957 + $0xa00] sm:$0x11]
        %v1387 = vld [vmem:[%s957 + $0xa08] sm:$0x11]
        %v1388 = vld [vmem:[%s957 + $0xa10] sm:$0x11]
        %v1389 = vld [vmem:[%s957 + $0xa18] sm:$0x11]
        %v1390 = vld [vmem:[%s957 + $0xa20] sm:$0x11]
        %v1391 = vld [vmem:[%s957 + $0xa28] sm:$0x11]
        %v1392 = vld [vmem:[%s957 + $0xa30] sm:$0x11]
        %v1393 = vld [vmem:[%s957 + $0xa38] sm:$0x11]
        %v1394 = vld [vmem:[%s957 + $0xa40] sm:$0x11]
        %v1395 = vld [vmem:[%s957 + $0xa48] sm:$0x11]
        %v1396 = vld [vmem:[%s957 + $0xa50] sm:$0x11]
        %v1397 = vld [vmem:[%s957 + $0xa58] sm:$0x11]
        %v1398 = vld [vmem:[%s957 + $0xa60] sm:$0x11]
        %v1399 = vld [vmem:[%s957 + $0xa68] sm:$0x11]
        %v1400 = vld [vmem:[%s957 + $0xa70] sm:$0x11]
        %v1401 = vld [vmem:[%s957 + $0xa78] sm:$0x11]
        %v1402 = vld [vmem:[%s957 + $0xa80] sm:$0x11]
        %v1403 = vld [vmem:[%s957 + $0xa88] sm:$0x11]
        %v1404 = vld [vmem:[%s957 + $0xa90] sm:$0x11]
        %v1405 = vld [vmem:[%s957 + $0xa98] sm:$0x11]
        %v1406 = vld [vmem:[%s957 + $0xaa0] sm:$0x11]
        %v1407 = vld [vmem:[%s957 + $0xaa8] sm:$0x11]
        %v1408 = vld [vmem:[%s957 + $0xab0] sm:$0x11]
        %v1409 = vld [vmem:[%s957 + $0xab8] sm:$0x11]
        %v1410 = vld [vmem:[%s957 + $0xac0] sm:$0x11]
        %v1411 = vld [vmem:[%s957 + $0xac8] sm:$0x11]
        %v1412 = vld [vmem:[%s957 + $0xad0] sm:$0x11]
        %v1413 = vld [vmem:[%s957 + $0xad8] sm:$0x11]
        %v1414 = vld [vmem:[%s957 + $0xae0] sm:$0x11]
        %v1415 = vld [vmem:[%s957 + $0xae8] sm:$0x11]
        %v1416 = vld [vmem:[%s957 + $0xaf0] sm:$0x11]
        %v1417 = vld [vmem:[%s957 + $0xaf8] sm:$0x11]
        %v1418 = vld [vmem:[%s957 + $0xb00] sm:$0x11]
        %v1419 = vld [vmem:[%s957 + $0xb08] sm:$0x11]
        %v1420 = vld [vmem:[%s957 + $0xb10] sm:$0x11]
        %v1421 = vld [vmem:[%s957 + $0xb18] sm:$0x11]
        %v1422 = vld [vmem:[%s957 + $0xb20] sm:$0x11]
        %v1423 = vld [vmem:[%s957 + $0xb28] sm:$0x11]
        %v1424 = vld [vmem:[%s957 + $0xb30] sm:$0x11]
        %v1425 = vld [vmem:[%s957 + $0xb38] sm:$0x11]
        %v1426 = vld [vmem:[%s957 + $0xb40] sm:$0x11]
        %v1427 = vld [vmem:[%s957 + $0xb48] sm:$0x11]
        %v1428 = vld [vmem:[%s957 + $0xb50] sm:$0x11]
        %v1429 = vld [vmem:[%s957 + $0xb58] sm:$0x11]
        %v1430 = vld [vmem:[%s957 + $0xb60] sm:$0x11]
        %v1431 = vld [vmem:[%s957 + $0xb68] sm:$0x11]
        %v1432 = vld [vmem:[%s957 + $0xb70] sm:$0x11]
        %v1433 = vld [vmem:[%s957 + $0xb78] sm:$0x11]
        %v1434 = vld [vmem:[%s957 + $0xb80] sm:$0x11]
        %v1435 = vld [vmem:[%s957 + $0xb88] sm:$0x11]
        %v1436 = vld [vmem:[%s957 + $0xb90] sm:$0x11]
        %v1437 = vld [vmem:[%s957 + $0xb98] sm:$0x11]
        %v1438 = vld [vmem:[%s957 + $0xba0] sm:$0x11]
        %v1439 = vld [vmem:[%s957 + $0xba8] sm:$0x11]
        %v1440 = vld [vmem:[%s957 + $0xbb0] sm:$0x11]
        %v1441 = vld [vmem:[%s957 + $0xbb8] sm:$0x11]
        %v1442 = vld [vmem:[%s957 + $0xbc0] sm:$0x11]
        %v1443 = vld [vmem:[%s957 + $0xbc8] sm:$0x11]
        %v1444 = vld [vmem:[%s957 + $0xbd0] sm:$0x11]
        %v1445 = vld [vmem:[%s957 + $0xbd8] sm:$0x11]
        %v1446 = vld [vmem:[%s957 + $0xbe0] sm:$0x11]
        %v1447 = vld [vmem:[%s957 + $0xbe8] sm:$0x11]
        %v1448 = vld [vmem:[%s957 + $0xbf0] sm:$0x11]
        %v1449 = vld [vmem:[%s957 + $0xbf8] sm:$0x11]
        %1451 = vst [vmem:[#allocation1] ss:$9 sm:$0xff] %v1018
        %v1452 = vld [vmem:[#allocation1] sm:$0xff]
        %v1453 = vld [vmem:[#allocation1 + $0x9] sm:$0xff]
        %v1454 = vld [vmem:[#allocation1 + $0x12] sm:$0xff]
        %v1455 = vld [vmem:[#allocation1 + $0x1b] sm:$0xff]
        %v1456 = vld [vmem:[#allocation1 + $0x24] sm:$0xff]
        %v1457 = vld [vmem:[#allocation1 + $0x2d] sm:$0xff]
        %v1458 = vld [vmem:[#allocation1 + $0x36] sm:$0xff]
        %v1459 = vld [vmem:[#allocation1 + $0x3f] sm:$0xff]
        %1461 = vst [vmem:[#allocation1] ss:$9 sm:$0xff] %v1019
        %v1462 = vld [vmem:[#allocation1] sm:$0xff]
        %v1463 = vld [vmem:[#allocation1 + $0x9] sm:$0xff]
        %v1464 = vld [vmem:[#allocation1 + $0x12] sm:$0xff]
        %v1465 = vld [vmem:[#allocation1 + $0x1b] sm:$0xff]
        %v1466 = vld [vmem:[#allocation1 + $0x24] sm:$0xff]
        %v1467 = vld [vmem:[#allocation1 + $0x2d] sm:$0xff]
        %v1468 = vld [vmem:[#allocation1 + $0x36] sm:$0xff]
        %v1469 = vld [vmem:[#allocation1 + $0x3f] sm:$0xff]
        %1471 = vst [vmem:[#allocation1] ss:$9 sm:$0xff] %v1020
        %v1472 = vld [vmem:[#allocation1] sm:$0xff]
        %v1473 = vld [vmem:[#allocation1 + $0x9] sm:$0xff]
        %v1474 = vld [vmem:[#allocation1 + $0x12] sm:$0xff]
        %v1475 = vld [vmem:[#allocation1 + $0x1b] sm:$0xff]
        %v1476 = vld [vmem:[#allocation1 + $0x24] sm:$0xff]
        %v1477 = vld [vmem:[#allocation1 + $0x2d] sm:$0xff]
        %v1478 = vld [vmem:[#allocation1 + $0x36] sm:$0xff]
        %v1479 = vld [vmem:[#allocation1 + $0x3f] sm:$0xff]
        %1481 = vst [vmem:[#allocation1] ss:$9 sm:$0xff] %v1021
        %v1482 = vld [vmem:[#allocation1] sm:$0xff]
        %v1483 = vld [vmem:[#allocation1 + $0x9] sm:$0xff]
        %v1484 = vld [vmem:[#allocation1 + $0x12] sm:$0xff]
        %v1485 = vld [vmem:[#allocation1 + $0x1b] sm:$0xff]
        %v1486 = vld [vmem:[#allocation1 + $0x24] sm:$0xff]
        %v1487 = vld [vmem:[#allocation1 + $0x2d] sm:$0xff]
        %v1488 = vld [vmem:[#allocation1 + $0x36] sm:$0xff]
        %v1489 = vld [vmem:[#allocation1 + $0x3f] sm:$0xff]
        %1491 = vst [vmem:[#allocation1] ss:$9 sm:$0xff] %v1022
        %v1492 = vld [vmem:[#allocation1] sm:$0xff]
        %v1493 = vld [vmem:[#allocation1 + $0x9] sm:$0xff]
        %v1494 = vld [vmem:[#allocation1 + $0x12] sm:$0xff]
        %v1495 = vld [vmem:[#allocation1 + $0x1b] sm:$0xff]
        %v1496 = vld [vmem:[#allocation1 + $0x24] sm:$0xff]
        %v1497 = vld [vmem:[#allocation1 + $0x2d] sm:$0xff]
        %v1498 = vld [vmem:[#allocation1 + $0x36] sm:$0xff]
        %v1499 = vld [vmem:[#allocation1 + $0x3f] sm:$0xff]
        %1501 = vst [vmem:[#allocation1] ss:$9 sm:$0xff] %v1023
        %v1502 = vld [vmem:[#allocation1] sm:$0xff]
        %v1503 = vld [vmem:[#allocation1 + $0x9] sm:$0xff]
        %v1504 = vld [vmem:[#allocation1 + $0x12] sm:$0xff]
        %v1505 = vld [vmem:[#allocation1 + $0x1b] sm:$0xff]
        %v1506 = vld [vmem:[#allocation1 + $0x24] sm:$0xff]
        %v1507 = vld [vmem:[#allocation1 + $0x2d] sm:$0xff]
        %v1508 = vld [vmem:[#allocation1 + $0x36] sm:$0xff]
        %v1509 = vld [vmem:[#allocation1 + $0x3f] sm:$0xff]
        %1511 = vst [vmem:[#allocation1] ss:$9 sm:$0xff] %v1024
        %v1512 = vld [vmem:[#allocation1] sm:$0xff]
        %v1513 = vld [vmem:[#allocation1 + $0x9] sm:$0xff]
        %v1514 = vld [vmem:[#allocation1 + $0x12] sm:$0xff]
        %v1515 = vld [vmem:[#allocation1 + $0x1b] sm:$0xff]
        %v1516 = vld [vmem:[#allocation1 + $0x24] sm:$0xff]
        %v1517 = vld [vmem:[#allocation1 + $0x2d] sm:$0xff]
        %v1518 = vld [vmem:[#allocation1 + $0x36] sm:$0xff]
        %v1519 = vld [vmem:[#allocation1 + $0x3f] sm:$0xff]
        %1521 = vst [vmem:[#allocation1] ss:$9 sm:$0xff] %v1025
        %v1522 = vld [vmem:[#allocation1] sm:$0xff]
        %v1523 = vld [vmem:[#allocation1 + $0x9] sm:$0xff]
        %v1524 = vld [vmem:[#allocation1 + $0x12] sm:$0xff]
        %v1525 = vld [vmem:[#allocation1 + $0x1b] sm:$0xff]
        %v1526 = vld [vmem:[#allocation1 + $0x24] sm:$0xff]
        %v1527 = vld [vmem:[#allocation1 + $0x2d] sm:$0xff]
        %v1528 = vld [vmem:[#allocation1 + $0x36] sm:$0xff]
        %v1529 = vld [vmem:[#allocation1 + $0x3f] sm:$0xff]
        %1531 = vst [vmem:[#allocation1] ss:$9 sm:$0xff] %v1026
        %v1532 = vld [vmem:[#allocation1] sm:$0xff]
        %v1533 = vld [vmem:[#allocation1 + $0x9] sm:$0xff]
        %v1534 = vld [vmem:[#allocation1 + $0x12] sm:$0xff]
        %v1535 = vld [vmem:[#allocation1 + $0x1b] sm:$0xff]
        %v1536 = vld [vmem:[#allocation1 + $0x24] sm:$0xff]
        %v1537 = vld [vmem:[#allocation1 + $0x2d] sm:$0xff]
        %v1538 = vld [vmem:[#allocation1 + $0x36] sm:$0xff]
        %v1539 = vld [vmem:[#allocation1 + $0x3f] sm:$0xff]
        %1541 = vst [vmem:[#allocation1] ss:$9 sm:$0xff] %v1027
        %v1542 = vld [vmem:[#allocation1] sm:$0xff]
        %v1543 = vld [vmem:[#allocation1 + $0x9] sm:$0xff]
        %v1544 = vld [vmem:[#allocation1 + $0x12] sm:$0xff]
        %v1545 = vld [vmem:[#allocation1 + $0x1b] sm:$0xff]
        %v1546 = vld [vmem:[#allocation1 + $0x24] sm:$0xff]
        %v1547 = vld [vmem:[#allocation1 + $0x2d] sm:$0xff]
        %v1548 = vld [vmem:[#allocation1 + $0x36] sm:$0xff]
        %v1549 = vld [vmem:[#allocation1 + $0x3f] sm:$0xff]
        %1551 = vst [vmem:[#allocation1] ss:$9 sm:$0xff] %v1028
        %v1552 = vld [vmem:[#allocation1] sm:$0xff]
        %v1553 = vld [vmem:[#allocation1 + $0x9] sm:$0xff]
        %v1554 = vld [vmem:[#allocation1 + $0x12] sm:$0xff]
        %v1555 = vld [vmem:[#allocation1 + $0x1b] sm:$0xff]
        %v1556 = vld [vmem:[#allocation1 + $0x24] sm:$0xff]
        %v1557 = vld [vmem:[#allocation1 + $0x2d] sm:$0xff]
        %v1558 = vld [vmem:[#allocation1 + $0x36] sm:$0xff]
        %v1559 = vld [vmem:[#allocation1 + $0x3f] sm:$0xff]
        %1561 = vst [vmem:[#allocation1] ss:$9 sm:$0xff] %v1029
        %v1562 = vld [vmem:[#allocation1] sm:$0xff]
        %v1563 = vld [vmem:[#allocation1 + $0x9] sm:$0xff]
        %v1564 = vld [vmem:[#allocation1 + $0x12] sm:$0xff]
        %v1565 = vld [vmem:[#allocation1 + $0x1b] sm:$0xff]
        %v1566 = vld [vmem:[#allocation1 + $0x24] sm:$0xff]
        %v1567 = vld [vmem:[#allocation1 + $0x2d] sm:$0xff]
        %v1568 = vld [vmem:[#allocation1 + $0x36] sm:$0xff]
        %v1569 = vld [vmem:[#allocation1 + $0x3f] sm:$0xff]
        %1571 = vst [vmem:[#allocation1] ss:$9 sm:$0xff] %v1030
        %v1572 = vld [vmem:[#allocation1] sm:$0xff]
        %v1573 = vld [vmem:[#allocation1 + $0x9] sm:$0xff]
        %v1574 = vld [vmem:[#allocation1 + $0x12] sm:$0xff]
        %v1575 = vld [vmem:[#allocation1 + $0x1b] sm:$0xff]
        %v1576 = vld [vmem:[#allocation1 + $0x24] sm:$0xff]
        %v1577 = vld [vmem:[#allocation1 + $0x2d] sm:$0xff]
        %v1578 = vld [vmem:[#allocation1 + $0x36] sm:$0xff]
        %v1579 = vld [vmem:[#allocation1 + $0x3f] sm:$0xff]
        %1581 = vst [vmem:[#allocation1] ss:$9 sm:$0xff] %v1031
        %v1582 = vld [vmem:[#allocation1] sm:$0xff]
        %v1583 = vld [vmem:[#allocation1 + $0x9] sm:$0xff]
        %v1584 = vld [vmem:[#allocation1 + $0x12] sm:$0xff]
        %v1585 = vld [vmem:[#allocation1 + $0x1b] sm:$0xff]
        %v1586 = vld [vmem:[#allocation1 + $0x24] sm:$0xff]
        %v1587 = vld [vmem:[#allocation1 + $0x2d] sm:$0xff]
        %v1588 = vld [vmem:[#allocation1 + $0x36] sm:$0xff]
        %v1589 = vld [vmem:[#allocation1 + $0x3f] sm:$0xff]
        %1591 = vst [vmem:[#allocation1] ss:$9 sm:$0xff] %v1032
        %v1592 = vld [vmem:[#allocation1] sm:$0xff]
        %v1593 = vld [vmem:[#allocation1 + $0x9] sm:$0xff]
        %v1594 = vld [vmem:[#allocation1 + $0x12] sm:$0xff]
        %v1595 = vld [vmem:[#allocation1 + $0x1b] sm:$0xff]
        %v1596 = vld [vmem:[#allocation1 + $0x24] sm:$0xff]
        %v1597 = vld [vmem:[#allocation1 + $0x2d] sm:$0xff]
        %v1598 = vld [vmem:[#allocation1 + $0x36] sm:$0xff]
        %v1599 = vld [vmem:[#allocation1 + $0x3f] sm:$0xff]
        %1601 = vst [vmem:[#allocation1] ss:$9 sm:$0xff] %v1033
        %v1602 = vld [vmem:[#allocation1] sm:$0xff]
        %v1603 = vld [vmem:[#allocation1 + $0x9] sm:$0xff]
        %v1604 = vld [vmem:[#allocation1 + $0x12] sm:$0xff]
        %v1605 = vld [vmem:[#allocation1 + $0x1b] sm:$0xff]
        %v1606 = vld [vmem:[#allocation1 + $0x24] sm:$0xff]
        %v1607 = vld [vmem:[#allocation1 + $0x2d] sm:$0xff]
        %v1608 = vld [vmem:[#allocation1 + $0x36] sm:$0xff]
        %v1609 = vld [vmem:[#allocation1 + $0x3f] sm:$0xff]
        %1611 = vst [vmem:[#allocation1] ss:$9 sm:$0xff] %v1034
        %v1612 = vld [vmem:[#allocation1] sm:$0xff]
        %v1613 = vld [vmem:[#allocation1 + $0x9] sm:$0xff]
        %v1614 = vld [vmem:[#allocation1 + $0x12] sm:$0xff]
        %v1615 = vld [vmem:[#allocation1 + $0x1b] sm:$0xff]
        %v1616 = vld [vmem:[#allocation1 + $0x24] sm:$0xff]
        %v1617 = vld [vmem:[#allocation1 + $0x2d] sm:$0xff]
        %v1618 = vld [vmem:[#allocation1 + $0x36] sm:$0xff]
        %v1619 = vld [vmem:[#allocation1 + $0x3f] sm:$0xff]
        %1621 = vst [vmem:[#allocation1] ss:$9 sm:$0xff] %v1035
        %v1622 = vld [vmem:[#allocation1] sm:$0xff]
        %v1623 = vld [vmem:[#allocation1 + $0x9] sm:$0xff]
        %v1624 = vld [vmem:[#allocation1 + $0x12] sm:$0xff]
        %v1625 = vld [vmem:[#allocation1 + $0x1b] sm:$0xff]
        %v1626 = vld [vmem:[#allocation1 + $0x24] sm:$0xff]
        %v1627 = vld [vmem:[#allocation1 + $0x2d] sm:$0xff]
        %v1628 = vld [vmem:[#allocation1 + $0x36] sm:$0xff]
        %v1629 = vld [vmem:[#allocation1 + $0x3f] sm:$0xff]
        %1631 = vst [vmem:[#allocation1] ss:$9 sm:$0xff] %v1036
        %v1632 = vld [vmem:[#allocation1] sm:$0xff]
        %v1633 = vld [vmem:[#allocation1 + $0x9] sm:$0xff]
        %v1634 = vld [vmem:[#allocation1 + $0x12] sm:$0xff]
        %v1635 = vld [vmem:[#allocation1 + $0x1b] sm:$0xff]
        %v1636 = vld [vmem:[#allocation1 + $0x24] sm:$0xff]
        %v1637 = vld [vmem:[#allocation1 + $0x2d] sm:$0xff]
        %v1638 = vld [vmem:[#allocation1 + $0x36] sm:$0xff]
        %v1639 = vld [vmem:[#allocation1 + $0x3f] sm:$0xff]
        %1641 = vst [vmem:[#allocation1] ss:$9 sm:$0xff] %v1037
        %v1642 = vld [vmem:[#allocation1] sm:$0xff]
        %v1643 = vld [vmem:[#allocation1 + $0x9] sm:$0xff]
        %v1644 = vld [vmem:[#allocation1 + $0x12] sm:$0xff]
        %v1645 = vld [vmem:[#allocation1 + $0x1b] sm:$0xff]
        %v1646 = vld [vmem:[#allocation1 + $0x24] sm:$0xff]
        %v1647 = vld [vmem:[#allocation1 + $0x2d] sm:$0xff]
        %v1648 = vld [vmem:[#allocation1 + $0x36] sm:$0xff]
        %v1649 = vld [vmem:[#allocation1 + $0x3f] sm:$0xff]
        %1651 = vst [vmem:[#allocation1] ss:$9 sm:$0xff] %v1038
        %v1652 = vld [vmem:[#allocation1] sm:$0xff]
        %v1653 = vld [vmem:[#allocation1 + $0x9] sm:$0xff]
        %v1654 = vld [vmem:[#allocation1 + $0x12] sm:$0xff]
        %v1655 = vld [vmem:[#allocation1 + $0x1b] sm:$0xff]
        %v1656 = vld [vmem:[#allocation1 + $0x24] sm:$0xff]
        %v1657 = vld [vmem:[#allocation1 + $0x2d] sm:$0xff]
        %v1658 = vld [vmem:[#allocation1 + $0x36] sm:$0xff]
        %v1659 = vld [vmem:[#allocation1 + $0x3f] sm:$0xff]
        %1661 = vst [vmem:[#allocation1] ss:$9 sm:$0xff] %v1039
        %v1662 = vld [vmem:[#allocation1] sm:$0xff]
        %v1663 = vld [vmem:[#allocation1 + $0x9] sm:$0xff]
        %v1664 = vld [vmem:[#allocation1 + $0x12] sm:$0xff]
        %v1665 = vld [vmem:[#allocation1 + $0x1b] sm:$0xff]
        %v1666 = vld [vmem:[#allocation1 + $0x24] sm:$0xff]
        %v1667 = vld [vmem:[#allocation1 + $0x2d] sm:$0xff]
        %v1668 = vld [vmem:[#allocation1 + $0x36] sm:$0xff]
        %v1669 = vld [vmem:[#allocation1 + $0x3f] sm:$0xff]
        %1671 = vst [vmem:[#allocation1] ss:$9 sm:$0xff] %v1040
        %v1672 = vld [vmem:[#allocation1] sm:$0xff]
        %v1673 = vld [vmem:[#allocation1 + $0x9] sm:$0xff]
        %v1674 = vld [vmem:[#allocation1 + $0x12] sm:$0xff]
        %v1675 = vld [vmem:[#allocation1 + $0x1b] sm:$0xff]
        %v1676 = vld [vmem:[#allocation1 + $0x24] sm:$0xff]
        %v1677 = vld [vmem:[#allocation1 + $0x2d] sm:$0xff]
        %v1678 = vld [vmem:[#allocation1 + $0x36] sm:$0xff]
        %v1679 = vld [vmem:[#allocation1 + $0x3f] sm:$0xff]
        %1681 = vst [vmem:[#allocation1] ss:$9 sm:$0xff] %v1041
        %v1682 = vld [vmem:[#allocation1] sm:$0xff]
        %v1683 = vld [vmem:[#allocation1 + $0x9] sm:$0xff]
        %v1684 = vld [vmem:[#allocation1 + $0x12] sm:$0xff]
        %v1685 = vld [vmem:[#allocation1 + $0x1b] sm:$0xff]
        %v1686 = vld [vmem:[#allocation1 + $0x24] sm:$0xff]
        %v1687 = vld [vmem:[#allocation1 + $0x2d] sm:$0xff]
        %v1688 = vld [vmem:[#allocation1 + $0x36] sm:$0xff]
        %v1689 = vld [vmem:[#allocation1 + $0x3f] sm:$0xff]
        %1691 = vst [vmem:[#allocation1] ss:$9 sm:$0xff] %v1042
        %v1692 = vld [vmem:[#allocation1] sm:$0xff]
        %v1693 = vld [vmem:[#allocation1 + $0x9] sm:$0xff]
        %v1694 = vld [vmem:[#allocation1 + $0x12] sm:$0xff]
        %v1695 = vld [vmem:[#allocation1 + $0x1b] sm:$0xff]
        %v1696 = vld [vmem:[#allocation1 + $0x24] sm:$0xff]
        %v1697 = vld [vmem:[#allocation1 + $0x2d] sm:$0xff]
        %v1698 = vld [vmem:[#allocation1 + $0x36] sm:$0xff]
        %v1699 = vld [vmem:[#allocation1 + $0x3f] sm:$0xff]
        %1701 = vst [vmem:[#allocation1] ss:$9 sm:$0xff] %v1043
        %v1702 = vld [vmem:[#allocation1] sm:$0xff]
        %v1703 = vld [vmem:[#allocation1 + $0x9] sm:$0xff]
        %v1704 = vld [vmem:[#allocation1 + $0x12] sm:$0xff]
        %v1705 = vld [vmem:[#allocation1 + $0x1b] sm:$0xff]
        %v1706 = vld [vmem:[#allocation1 + $0x24] sm:$0xff]
        %v1707 = vld [vmem:[#allocation1 + $0x2d] sm:$0xff]
        %v1708 = vld [vmem:[#allocation1 + $0x36] sm:$0xff]
        %v1709 = vld [vmem:[#allocation1 + $0x3f] sm:$0xff]
        %1711 = vst [vmem:[#allocation1] ss:$9 sm:$0xff] %v1044
        %v1712 = vld [vmem:[#allocation1] sm:$0xff]
        %v1713 = vld [vmem:[#allocation1 + $0x9] sm:$0xff]
        %v1714 = vld [vmem:[#allocation1 + $0x12] sm:$0xff]
        %v1715 = vld [vmem:[#allocation1 + $0x1b] sm:$0xff]
        %v1716 = vld [vmem:[#allocation1 + $0x24] sm:$0xff]
        %v1717 = vld [vmem:[#allocation1 + $0x2d] sm:$0xff]
        %v1718 = vld [vmem:[#allocation1 + $0x36] sm:$0xff]
        %v1719 = vld [vmem:[#allocation1 + $0x3f] sm:$0xff]
        %1721 = vst [vmem:[#allocation1] ss:$9 sm:$0xff] %v1045
        %v1722 = vld [vmem:[#allocation1] sm:$0xff]
        %v1723 = vld [vmem:[#allocation1 + $0x9] sm:$0xff]
        %v1724 = vld [vmem:[#allocation1 + $0x12] sm:$0xff]
        %v1725 = vld [vmem:[#allocation1 + $0x1b] sm:$0xff]
        %v1726 = vld [vmem:[#allocation1 + $0x24] sm:$0xff]
        %v1727 = vld [vmem:[#allocation1 + $0x2d] sm:$0xff]
        %v1728 = vld [vmem:[#allocation1 + $0x36] sm:$0xff]
        %v1729 = vld [vmem:[#allocation1 + $0x3f] sm:$0xff]
        %1731 = vst [vmem:[#allocation1] ss:$9 sm:$0xff] %v1046
        %v1732 = vld [vmem:[#allocation1] sm:$0xff]
        %v1733 = vld [vmem:[#allocation1 + $0x9] sm:$0xff]
        %v1734 = vld [vmem:[#allocation1 + $0x12] sm:$0xff]
        %v1735 = vld [vmem:[#allocation1 + $0x1b] sm:$0xff]
        %v1736 = vld [vmem:[#allocation1 + $0x24] sm:$0xff]
        %v1737 = vld [vmem:[#allocation1 + $0x2d] sm:$0xff]
        %v1738 = vld [vmem:[#allocation1 + $0x36] sm:$0xff]
        %v1739 = vld [vmem:[#allocation1 + $0x3f] sm:$0xff]
        %1741 = vst [vmem:[#allocation1] ss:$9 sm:$0xff] %v1047
        %v1742 = vld [vmem:[#allocation1] sm:$0xff]
        %v1743 = vld [vmem:[#allocation1 + $0x9] sm:$0xff]
        %v1744 = vld [vmem:[#allocation1 + $0x12] sm:$0xff]
        %v1745 = vld [vmem:[#allocation1 + $0x1b] sm:$0xff]
        %v1746 = vld [vmem:[#allocation1 + $0x24] sm:$0xff]
        %v1747 = vld [vmem:[#allocation1 + $0x2d] sm:$0xff]
        %v1748 = vld [vmem:[#allocation1 + $0x36] sm:$0xff]
        %v1749 = vld [vmem:[#allocation1 + $0x3f] sm:$0xff]
        %1751 = vst [vmem:[#allocation1] ss:$9 sm:$0xff] %v1048
        %v1752 = vld [vmem:[#allocation1] sm:$0xff]
        %v1753 = vld [vmem:[#allocation1 + $0x9] sm:$0xff]
        %v1754 = vld [vmem:[#allocation1 + $0x12] sm:$0xff]
        %v1755 = vld [vmem:[#allocation1 + $0x1b] sm:$0xff]
        %v1756 = vld [vmem:[#allocation1 + $0x24] sm:$0xff]
        %v1757 = vld [vmem:[#allocation1 + $0x2d] sm:$0xff]
        %v1758 = vld [vmem:[#allocation1 + $0x36] sm:$0xff]
        %v1759 = vld [vmem:[#allocation1 + $0x3f] sm:$0xff]
        %1761 = vst [vmem:[#allocation1] ss:$9 sm:$0xff] %v1049
        %v1762 = vld [vmem:[#allocation1] sm:$0xff]
        %v1763 = vld [vmem:[#allocation1 + $0x9] sm:$0xff]
        %v1764 = vld [vmem:[#allocation1 + $0x12] sm:$0xff]
        %v1765 = vld [vmem:[#allocation1 + $0x1b] sm:$0xff]
        %v1766 = vld [vmem:[#allocation1 + $0x24] sm:$0xff]
        %v1767 = vld [vmem:[#allocation1 + $0x2d] sm:$0xff]
        %v1768 = vld [vmem:[#allocation1 + $0x36] sm:$0xff]
        %v1769 = vld [vmem:[#allocation1 + $0x3f] sm:$0xff]
        %1771 = vst [vmem:[#allocation1] ss:$9 sm:$0xff] %v1050
        %v1772 = vld [vmem:[#allocation1] sm:$0xff]
        %v1773 = vld [vmem:[#allocation1 + $0x9] sm:$0xff]
        %v1774 = vld [vmem:[#allocation1 + $0x12] sm:$0xff]
        %v1775 = vld [vmem:[#allocation1 + $0x1b] sm:$0xff]
        %v1776 = vld [vmem:[#allocation1 + $0x24] sm:$0xff]
        %v1777 = vld [vmem:[#allocation1 + $0x2d] sm:$0xff]
        %v1778 = vld [vmem:[#allocation1 + $0x36] sm:$0xff]
        %v1779 = vld [vmem:[#allocation1 + $0x3f] sm:$0xff]
        %1781 = vst [vmem:[#allocation1] ss:$9 sm:$0xff] %v1051
        %v1782 = vld [vmem:[#allocation1] sm:$0xff]
        %v1783 = vld [vmem:[#allocation1 + $0x9] sm:$0xff]
        %v1784 = vld [vmem:[#allocation1 + $0x12] sm:$0xff]
        %v1785 = vld [vmem:[#allocation1 + $0x1b] sm:$0xff]
        %v1786 = vld [vmem:[#allocation1 + $0x24] sm:$0xff]
        %v1787 = vld [vmem:[#allocation1 + $0x2d] sm:$0xff]
        %v1788 = vld [vmem:[#allocation1 + $0x36] sm:$0xff]
        %v1789 = vld [vmem:[#allocation1 + $0x3f] sm:$0xff]
        %1791 = vst [vmem:[#allocation1] ss:$9 sm:$0xff] %v1052
        %v1792 = vld [vmem:[#allocation1] sm:$0xff]
        %v1793 = vld [vmem:[#allocation1 + $0x9] sm:$0xff]
        %v1794 = vld [vmem:[#allocation1 + $0x12] sm:$0xff]
        %v1795 = vld [vmem:[#allocation1 + $0x1b] sm:$0xff]
        %v1796 = vld [vmem:[#allocation1 + $0x24] sm:$0xff]
        %v1797 = vld [vmem:[#allocation1 + $0x2d] sm:$0xff]
        %v1798 = vld [vmem:[#allocation1 + $0x36] sm:$0xff]
        %v1799 = vld [vmem:[#allocation1 + $0x3f] sm:$0xff]
        %1801 = vst [vmem:[#allocation1] ss:$9 sm:$0xff] %v1053
        %v1802 = vld [vmem:[#allocation1] sm:$0xff]
        %v1803 = vld [vmem:[#allocation1 + $0x9] sm:$0xff]
        %v1804 = vld [vmem:[#allocation1 + $0x12] sm:$0xff]
        %v1805 = vld [vmem:[#allocation1 + $0x1b] sm:$0xff]
        %v1806 = vld [vmem:[#allocation1 + $0x24] sm:$0xff]
        %v1807 = vld [vmem:[#allocation1 + $0x2d] sm:$0xff]
        %v1808 = vld [vmem:[#allocation1 + $0x36] sm:$0xff]
        %v1809 = vld [vmem:[#allocation1 + $0x3f] sm:$0xff]
        %1811 = vst [vmem:[#allocation1] ss:$9 sm:$0xff] %v1054
        %v1812 = vld [vmem:[#allocation1] sm:$0xff]
        %v1813 = vld [vmem:[#allocation1 + $0x9] sm:$0xff]
        %v1814 = vld [vmem:[#allocation1 + $0x12] sm:$0xff]
        %v1815 = vld [vmem:[#allocation1 + $0x1b] sm:$0xff]
        %v1816 = vld [vmem:[#allocation1 + $0x24] sm:$0xff]
        %v1817 = vld [vmem:[#allocation1 + $0x2d] sm:$0xff]
        %v1818 = vld [vmem:[#allocation1 + $0x36] sm:$0xff]
        %v1819 = vld [vmem:[#allocation1 + $0x3f] sm:$0xff]
        %1821 = vst [vmem:[#allocation1] ss:$9 sm:$0xff] %v1055
        %v1822 = vld [vmem:[#allocation1] sm:$0xff]
        %v1823 = vld [vmem:[#allocation1 + $0x9] sm:$0xff]
        %v1824 = vld [vmem:[#allocation1 + $0x12] sm:$0xff]
        %v1825 = vld [vmem:[#allocation1 + $0x1b] sm:$0xff]
        %v1826 = vld [vmem:[#allocation1 + $0x24] sm:$0xff]
        %v1827 = vld [vmem:[#allocation1 + $0x2d] sm:$0xff]
        %v1828 = vld [vmem:[#allocation1 + $0x36] sm:$0xff]
        %v1829 = vld [vmem:[#allocation1 + $0x3f] sm:$0xff]
        %1831 = vst [vmem:[#allocation1] ss:$9 sm:$0xff] %v1056
        %v1832 = vld [vmem:[#allocation1] sm:$0xff]
        %v1833 = vld [vmem:[#allocation1 + $0x9] sm:$0xff]
        %v1834 = vld [vmem:[#allocation1 + $0x12] sm:$0xff]
        %v1835 = vld [vmem:[#allocation1 + $0x1b] sm:$0xff]
        %v1836 = vld [vmem:[#allocation1 + $0x24] sm:$0xff]
        %v1837 = vld [vmem:[#allocation1 + $0x2d] sm:$0xff]
        %v1838 = vld [vmem:[#allocation1 + $0x36] sm:$0xff]
        %v1839 = vld [vmem:[#allocation1 + $0x3f] sm:$0xff]
        %1841 = vst [vmem:[#allocation1] ss:$9 sm:$0xff] %v1057
        %v1842 = vld [vmem:[#allocation1] sm:$0xff]
        %v1843 = vld [vmem:[#allocation1 + $0x9] sm:$0xff]
        %v1844 = vld [vmem:[#allocation1 + $0x12] sm:$0xff]
        %v1845 = vld [vmem:[#allocation1 + $0x1b] sm:$0xff]
        %v1846 = vld [vmem:[#allocation1 + $0x24] sm:$0xff]
        %v1847 = vld [vmem:[#allocation1 + $0x2d] sm:$0xff]
        %v1848 = vld [vmem:[#allocation1 + $0x36] sm:$0xff]
        %v1849 = vld [vmem:[#allocation1 + $0x3f] sm:$0xff]
        %1851 = vst [vmem:[#allocation1] ss:$9 sm:$0xff] %v1058
        %v1852 = vld [vmem:[#allocation1] sm:$0xff]
        %v1853 = vld [vmem:[#allocation1 + $0x9] sm:$0xff]
        %v1854 = vld [vmem:[#allocation1 + $0x12] sm:$0xff]
        %v1855 = vld [vmem:[#allocation1 + $0x1b] sm:$0xff]
        %v1856 = vld [vmem:[#allocation1 + $0x24] sm:$0xff]
        %v1857 = vld [vmem:[#allocation1 + $0x2d] sm:$0xff]
        %v1858 = vld [vmem:[#allocation1 + $0x36] sm:$0xff]
        %v1859 = vld [vmem:[#allocation1 + $0x3f] sm:$0xff]
        %1861 = vst [vmem:[#allocation1] ss:$9 sm:$0xff] %v1059
        %v1862 = vld [vmem:[#allocation1] sm:$0xff]
        %v1863 = vld [vmem:[#allocation1 + $0x9] sm:$0xff]
        %v1864 = vld [vmem:[#allocation1 + $0x12] sm:$0xff]
        %v1865 = vld [vmem:[#allocation1 + $0x1b] sm:$0xff]
        %v1866 = vld [vmem:[#allocation1 + $0x24] sm:$0xff]
        %v1867 = vld [vmem:[#allocation1 + $0x2d] sm:$0xff]
        %v1868 = vld [vmem:[#allocation1 + $0x36] sm:$0xff]
        %v1869 = vld [vmem:[#allocation1 + $0x3f] sm:$0xff]
        %1871 = vst [vmem:[#allocation1] ss:$9 sm:$0xff] %v1060
        %v1872 = vld [vmem:[#allocation1] sm:$0xff]
        %v1873 = vld [vmem:[#allocation1 + $0x9] sm:$0xff]
        %v1874 = vld [vmem:[#allocation1 + $0x12] sm:$0xff]
        %v1875 = vld [vmem:[#allocation1 + $0x1b] sm:$0xff]
        %v1876 = vld [vmem:[#allocation1 + $0x24] sm:$0xff]
        %v1877 = vld [vmem:[#allocation1 + $0x2d] sm:$0xff]
        %v1878 = vld [vmem:[#allocation1 + $0x36] sm:$0xff]
        %v1879 = vld [vmem:[#allocation1 + $0x3f] sm:$0xff]
        %1881 = vst [vmem:[#allocation1] ss:$9 sm:$0xff] %v1061
        %v1882 = vld [vmem:[#allocation1] sm:$0xff]
        %v1883 = vld [vmem:[#allocation1 + $0x9] sm:$0xff]
        %v1884 = vld [vmem:[#allocation1 + $0x12] sm:$0xff]
        %v1885 = vld [vmem:[#allocation1 + $0x1b] sm:$0xff]
        %v1886 = vld [vmem:[#allocation1 + $0x24] sm:$0xff]
        %v1887 = vld [vmem:[#allocation1 + $0x2d] sm:$0xff]
        %v1888 = vld [vmem:[#allocation1 + $0x36] sm:$0xff]
        %v1889 = vld [vmem:[#allocation1 + $0x3f] sm:$0xff]
        %1891 = vst [vmem:[#allocation1] ss:$9 sm:$0xff] %v1062
        %v1892 = vld [vmem:[#allocation1] sm:$0xff]
        %v1893 = vld [vmem:[#allocation1 + $0x9] sm:$0xff]
        %v1894 = vld [vmem:[#allocation1 + $0x12] sm:$0xff]
        %v1895 = vld [vmem:[#allocation1 + $0x1b] sm:$0xff]
        %v1896 = vld [vmem:[#allocation1 + $0x24] sm:$0xff]
        %v1897 = vld [vmem:[#allocation1 + $0x2d] sm:$0xff]
        %v1898 = vld [vmem:[#allocation1 + $0x36] sm:$0xff]
        %v1899 = vld [vmem:[#allocation1 + $0x3f] sm:$0xff]
        %1901 = vst [vmem:[#allocation1] ss:$9 sm:$0xff] %v1063
        %v1902 = vld [vmem:[#allocation1] sm:$0xff]
        %v1903 = vld [vmem:[#allocation1 + $0x9] sm:$0xff]
        %v1904 = vld [vmem:[#allocation1 + $0x12] sm:$0xff]
        %v1905 = vld [vmem:[#allocation1 + $0x1b] sm:$0xff]
        %v1906 = vld [vmem:[#allocation1 + $0x24] sm:$0xff]
        %v1907 = vld [vmem:[#allocation1 + $0x2d] sm:$0xff]
        %v1908 = vld [vmem:[#allocation1 + $0x36] sm:$0xff]
        %v1909 = vld [vmem:[#allocation1 + $0x3f] sm:$0xff]
        %1911 = vst [vmem:[#allocation1] ss:$9 sm:$0xff] %v1064
        %v1912 = vld [vmem:[#allocation1] sm:$0xff]
        %v1913 = vld [vmem:[#allocation1 + $0x9] sm:$0xff]
        %v1914 = vld [vmem:[#allocation1 + $0x12] sm:$0xff]
        %v1915 = vld [vmem:[#allocation1 + $0x1b] sm:$0xff]
        %v1916 = vld [vmem:[#allocation1 + $0x24] sm:$0xff]
        %v1917 = vld [vmem:[#allocation1 + $0x2d] sm:$0xff]
        %v1918 = vld [vmem:[#allocation1 + $0x36] sm:$0xff]
        %v1919 = vld [vmem:[#allocation1 + $0x3f] sm:$0xff]
        %1921 = vst [vmem:[#allocation1] ss:$9 sm:$0xff] %v1065
        %v1922 = vld [vmem:[#allocation1] sm:$0xff]
        %v1923 = vld [vmem:[#allocation1 + $0x9] sm:$0xff]
        %v1924 = vld [vmem:[#allocation1 + $0x12] sm:$0xff]
        %v1925 = vld [vmem:[#allocation1 + $0x1b] sm:$0xff]
        %v1926 = vld [vmem:[#allocation1 + $0x24] sm:$0xff]
        %v1927 = vld [vmem:[#allocation1 + $0x2d] sm:$0xff]
        %v1928 = vld [vmem:[#allocation1 + $0x36] sm:$0xff]
        %v1929 = vld [vmem:[#allocation1 + $0x3f] sm:$0xff]
        %v2698 = vunpack.c.l.b16 %v1066
        %v2699 = vunpack.c.h.b16 %v1066
        %v2700 = vunpack.c.l.b16 %v1067
        %v2701 = vunpack.c.h.b16 %v1067
        %v2702 = vunpack.c.l.b16 %v1068
        %v2703 = vunpack.c.h.b16 %v1068
        %v2704 = vunpack.c.l.b16 %v1069
        %v2705 = vunpack.c.h.b16 %v1069
        %v2706 = vunpack.c.l.b16 %v1070
        %v2707 = vunpack.c.h.b16 %v1070
        %v2708 = vunpack.c.l.b16 %v1071
        %v2709 = vunpack.c.h.b16 %v1071
        %v2710 = vunpack.c.l.b16 %v1072
        %v2711 = vunpack.c.h.b16 %v1072
        %v2712 = vunpack.c.l.b16 %v1073
        %v2713 = vunpack.c.h.b16 %v1073
        %v2714 = vunpack.c.l.b16 %v1074
        %v2715 = vunpack.c.h.b16 %v1074
        %v2716 = vunpack.c.l.b16 %v1075
        %v2717 = vunpack.c.h.b16 %v1075
        %v2718 = vunpack.c.l.b16 %v1076
        %v2719 = vunpack.c.h.b16 %v1076
        %v2720 = vunpack.c.l.b16 %v1077
        %v2721 = vunpack.c.h.b16 %v1077
        %v2722 = vunpack.c.l.b16 %v1078
        %v2723 = vunpack.c.h.b16 %v1078
        %v2724 = vunpack.c.l.b16 %v1079
        %v2725 = vunpack.c.h.b16 %v1079
        %v2726 = vunpack.c.l.b16 %v1080
        %v2727 = vunpack.c.h.b16 %v1080
        %v2728 = vunpack.c.l.b16 %v1081
        %v2729 = vunpack.c.h.b16 %v1081
        %v2730 = vunpack.c.l.b16 %v1082
        %v2731 = vunpack.c.h.b16 %v1082
        %v2732 = vunpack.c.l.b16 %v1083
        %v2733 = vunpack.c.h.b16 %v1083
        %v2734 = vunpack.c.l.b16 %v1084
        %v2735 = vunpack.c.h.b16 %v1084
        %v2736 = vunpack.c.l.b16 %v1085
        %v2737 = vunpack.c.h.b16 %v1085
        %v2738 = vunpack.c.l.b16 %v1086
        %v2739 = vunpack.c.h.b16 %v1086
        %v2740 = vunpack.c.l.b16 %v1087
        %v2741 = vunpack.c.h.b16 %v1087
        %v2742 = vunpack.c.l.b16 %v1088
        %v2743 = vunpack.c.h.b16 %v1088
        %v2744 = vunpack.c.l.b16 %v1089
        %v2745 = vunpack.c.h.b16 %v1089
        %v2746 = vunpack.c.l.b16 %v1090
        %v2747 = vunpack.c.h.b16 %v1090
        %v2748 = vunpack.c.l.b16 %v1091
        %v2749 = vunpack.c.h.b16 %v1091
        %v2750 = vunpack.c.l.b16 %v1092
        %v2751 = vunpack.c.h.b16 %v1092
        %v2752 = vunpack.c.l.b16 %v1093
        %v2753 = vunpack.c.h.b16 %v1093
        %v2754 = vunpack.c.l.b16 %v1094
        %v2755 = vunpack.c.h.b16 %v1094
        %v2756 = vunpack.c.l.b16 %v1095
        %v2757 = vunpack.c.h.b16 %v1095
        %v2758 = vunpack.c.l.b16 %v1096
        %v2759 = vunpack.c.h.b16 %v1096
        %v2760 = vunpack.c.l.b16 %v1097
        %v2761 = vunpack.c.h.b16 %v1097
        %v2762 = vunpack.c.l.b16 %v1098
        %v2763 = vunpack.c.h.b16 %v1098
        %v2764 = vunpack.c.l.b16 %v1099
        %v2765 = vunpack.c.h.b16 %v1099
        %v2766 = vunpack.c.l.b16 %v1100
        %v2767 = vunpack.c.h.b16 %v1100
        %v2768 = vunpack.c.l.b16 %v1101
        %v2769 = vunpack.c.h.b16 %v1101
        %v2770 = vunpack.c.l.b16 %v1102
        %v2771 = vunpack.c.h.b16 %v1102
        %v2772 = vunpack.c.l.b16 %v1103
        %v2773 = vunpack.c.h.b16 %v1103
        %v2774 = vunpack.c.l.b16 %v1104
        %v2775 = vunpack.c.h.b16 %v1104
        %v2776 = vunpack.c.l.b16 %v1105
        %v2777 = vunpack.c.h.b16 %v1105
        %v2778 = vunpack.c.l.b16 %v1106
        %v2779 = vunpack.c.h.b16 %v1106
        %v2780 = vunpack.c.l.b16 %v1107
        %v2781 = vunpack.c.h.b16 %v1107
        %v2782 = vunpack.c.l.b16 %v1108
        %v2783 = vunpack.c.h.b16 %v1108
        %v2784 = vunpack.c.l.b16 %v1109
        %v2785 = vunpack.c.h.b16 %v1109
        %v2786 = vunpack.c.l.b16 %v1110
        %v2787 = vunpack.c.h.b16 %v1110
        %v2788 = vunpack.c.l.b16 %v1111
        %v2789 = vunpack.c.h.b16 %v1111
        %v2790 = vunpack.c.l.b16 %v1112
        %v2791 = vunpack.c.h.b16 %v1112
        %v2792 = vunpack.c.l.b16 %v1113
        %v2793 = vunpack.c.h.b16 %v1113
        %v2794 = vunpack.c.l.b16 %v1114
        %v2795 = vunpack.c.h.b16 %v1114
        %v2796 = vunpack.c.l.b16 %v1115
        %v2797 = vunpack.c.h.b16 %v1115
        %v2798 = vunpack.c.l.b16 %v1116
        %v2799 = vunpack.c.h.b16 %v1116
        %v2800 = vunpack.c.l.b16 %v1117
        %v2801 = vunpack.c.h.b16 %v1117
        %v2802 = vunpack.c.l.b16 %v1118
        %v2803 = vunpack.c.h.b16 %v1118
        %v2804 = vunpack.c.l.b16 %v1119
        %v2805 = vunpack.c.h.b16 %v1119
        %v2806 = vunpack.c.l.b16 %v1120
        %v2807 = vunpack.c.h.b16 %v1120
        %v2808 = vunpack.c.l.b16 %v1121
        %v2809 = vunpack.c.h.b16 %v1121
        %v2810 = vunpack.c.l.b16 %v1122
        %v2811 = vunpack.c.h.b16 %v1122
        %v2812 = vunpack.c.l.b16 %v1123
        %v2813 = vunpack.c.h.b16 %v1123
        %v2814 = vunpack.c.l.b16 %v1124
        %v2815 = vunpack.c.h.b16 %v1124
        %v2816 = vunpack.c.l.b16 %v1125
        %v2817 = vunpack.c.h.b16 %v1125
        %v2818 = vunpack.c.l.b16 %v1126
        %v2819 = vunpack.c.h.b16 %v1126
        %v2820 = vunpack.c.l.b16 %v1127
        %v2821 = vunpack.c.h.b16 %v1127
        %v2822 = vunpack.c.l.b16 %v1128
        %v2823 = vunpack.c.h.b16 %v1128
        %v2824 = vunpack.c.l.b16 %v1129
        %v2825 = vunpack.c.h.b16 %v1129
        %v2826 = vunpack.c.l.b16 %v1130
        %v2827 = vunpack.c.h.b16 %v1130
        %v2828 = vunpack.c.l.b16 %v1131
        %v2829 = vunpack.c.h.b16 %v1131
        %v2830 = vunpack.c.l.b16 %v1132
        %v2831 = vunpack.c.h.b16 %v1132
        %v2832 = vunpack.c.l.b16 %v1133
        %v2833 = vunpack.c.h.b16 %v1133
        %v2834 = vunpack.c.l.b16 %v1134
        %v2835 = vunpack.c.h.b16 %v1134
        %v2836 = vunpack.c.l.b16 %v1135
        %v2837 = vunpack.c.h.b16 %v1135
        %v2838 = vunpack.c.l.b16 %v1136
        %v2839 = vunpack.c.h.b16 %v1136
        %v2840 = vunpack.c.l.b16 %v1137
        %v2841 = vunpack.c.h.b16 %v1137
        %v2842 = vunpack.c.l.b16 %v1138
        %v2843 = vunpack.c.h.b16 %v1138
        %v2844 = vunpack.c.l.b16 %v1139
        %v2845 = vunpack.c.h.b16 %v1139
        %v2846 = vunpack.c.l.b16 %v1140
        %v2847 = vunpack.c.h.b16 %v1140
        %v2848 = vunpack.c.l.b16 %v1141
        %v2849 = vunpack.c.h.b16 %v1141
        %v2850 = vunpack.c.l.b16 %v1142
        %v2851 = vunpack.c.h.b16 %v1142
        %v2852 = vunpack.c.l.b16 %v1143
        %v2853 = vunpack.c.h.b16 %v1143
        %v2854 = vunpack.c.l.b16 %v1144
        %v2855 = vunpack.c.h.b16 %v1144
        %v2856 = vunpack.c.l.b16 %v1145
        %v2857 = vunpack.c.h.b16 %v1145
        %v2858 = vunpack.c.l.b16 %v1146
        %v2859 = vunpack.c.h.b16 %v1146
        %v2860 = vunpack.c.l.b16 %v1147
        %v2861 = vunpack.c.h.b16 %v1147
        %v2862 = vunpack.c.l.b16 %v1148
        %v2863 = vunpack.c.h.b16 %v1148
        %v2864 = vunpack.c.l.b16 %v1149
        %v2865 = vunpack.c.h.b16 %v1149
        %v2866 = vunpack.c.l.b16 %v1150
        %v2867 = vunpack.c.h.b16 %v1150
        %v2868 = vunpack.c.l.b16 %v1151
        %v2869 = vunpack.c.h.b16 %v1151
        %v2870 = vunpack.c.l.b16 %v1152
        %v2871 = vunpack.c.h.b16 %v1152
        %v2872 = vunpack.c.l.b16 %v1153
        %v2873 = vunpack.c.h.b16 %v1153
        %v2874 = vunpack.c.l.b16 %v1154
        %v2875 = vunpack.c.h.b16 %v1154
        %v2876 = vunpack.c.l.b16 %v1155
        %v2877 = vunpack.c.h.b16 %v1155
        %v2878 = vunpack.c.l.b16 %v1156
        %v2879 = vunpack.c.h.b16 %v1156
        %v2880 = vunpack.c.l.b16 %v1157
        %v2881 = vunpack.c.h.b16 %v1157
        %v2882 = vunpack.c.l.b16 %v1158
        %v2883 = vunpack.c.h.b16 %v1158
        %v2884 = vunpack.c.l.b16 %v1159
        %v2885 = vunpack.c.h.b16 %v1159
        %v2886 = vunpack.c.l.b16 %v1160
        %v2887 = vunpack.c.h.b16 %v1160
        %v2888 = vunpack.c.l.b16 %v1161
        %v2889 = vunpack.c.h.b16 %v1161
        %v2890 = vunpack.c.l.b16 %v1162
        %v2891 = vunpack.c.h.b16 %v1162
        %v2892 = vunpack.c.l.b16 %v1163
        %v2893 = vunpack.c.h.b16 %v1163
        %v2894 = vunpack.c.l.b16 %v1164
        %v2895 = vunpack.c.h.b16 %v1164
        %v2896 = vunpack.c.l.b16 %v1165
        %v2897 = vunpack.c.h.b16 %v1165
        %v2898 = vunpack.c.l.b16 %v1166
        %v2899 = vunpack.c.h.b16 %v1166
        %v2900 = vunpack.c.l.b16 %v1167
        %v2901 = vunpack.c.h.b16 %v1167
        %v2902 = vunpack.c.l.b16 %v1168
        %v2903 = vunpack.c.h.b16 %v1168
        %v2904 = vunpack.c.l.b16 %v1169
        %v2905 = vunpack.c.h.b16 %v1169
        %v2906 = vunpack.c.l.b16 %v1170
        %v2907 = vunpack.c.h.b16 %v1170
        %v2908 = vunpack.c.l.b16 %v1171
        %v2909 = vunpack.c.h.b16 %v1171
        %v2910 = vunpack.c.l.b16 %v1172
        %v2911 = vunpack.c.h.b16 %v1172
        %v2912 = vunpack.c.l.b16 %v1173
        %v2913 = vunpack.c.h.b16 %v1173
        %v2914 = vunpack.c.l.b16 %v1174
        %v2915 = vunpack.c.h.b16 %v1174
        %v2916 = vunpack.c.l.b16 %v1175
        %v2917 = vunpack.c.h.b16 %v1175
        %v2918 = vunpack.c.l.b16 %v1176
        %v2919 = vunpack.c.h.b16 %v1176
        %v2920 = vunpack.c.l.b16 %v1177
        %v2921 = vunpack.c.h.b16 %v1177
        %v2922 = vunpack.c.l.b16 %v1178
        %v2923 = vunpack.c.h.b16 %v1178
        %v2924 = vunpack.c.l.b16 %v1179
        %v2925 = vunpack.c.h.b16 %v1179
        %v2926 = vunpack.c.l.b16 %v1180
        %v2927 = vunpack.c.h.b16 %v1180
        %v2928 = vunpack.c.l.b16 %v1181
        %v2929 = vunpack.c.h.b16 %v1181
        %v2930 = vunpack.c.l.b16 %v1182
        %v2931 = vunpack.c.h.b16 %v1182
        %v2932 = vunpack.c.l.b16 %v1183
        %v2933 = vunpack.c.h.b16 %v1183
        %v2934 = vunpack.c.l.b16 %v1184
        %v2935 = vunpack.c.h.b16 %v1184
        %v2936 = vunpack.c.l.b16 %v1185
        %v2937 = vunpack.c.h.b16 %v1185
        %v2938 = vunpack.c.l.b16 %v1186
        %v2939 = vunpack.c.h.b16 %v1186
        %v2940 = vunpack.c.l.b16 %v1187
        %v2941 = vunpack.c.h.b16 %v1187
        %v2942 = vunpack.c.l.b16 %v1188
        %v2943 = vunpack.c.h.b16 %v1188
        %v2944 = vunpack.c.l.b16 %v1189
        %v2945 = vunpack.c.h.b16 %v1189
        %v2946 = vunpack.c.l.b16 %v1190
        %v2947 = vunpack.c.h.b16 %v1190
        %v2948 = vunpack.c.l.b16 %v1191
        %v2949 = vunpack.c.h.b16 %v1191
        %v2950 = vunpack.c.l.b16 %v1192
        %v2951 = vunpack.c.h.b16 %v1192
        %v2952 = vunpack.c.l.b16 %v1193
        %v2953 = vunpack.c.h.b16 %v1193
        %v2954 = vunpack.c.l.b16 %v1194
        %v2955 = vunpack.c.h.b16 %v1194
        %v2956 = vunpack.c.l.b16 %v1195
        %v2957 = vunpack.c.h.b16 %v1195
        %v2958 = vunpack.c.l.b16 %v1196
        %v2959 = vunpack.c.h.b16 %v1196
        %v2960 = vunpack.c.l.b16 %v1197
        %v2961 = vunpack.c.h.b16 %v1197
        %v2962 = vunpack.c.l.b16 %v1198
        %v2963 = vunpack.c.h.b16 %v1198
        %v2964 = vunpack.c.l.b16 %v1199
        %v2965 = vunpack.c.h.b16 %v1199
        %v2966 = vunpack.c.l.b16 %v1200
        %v2967 = vunpack.c.h.b16 %v1200
        %v2968 = vunpack.c.l.b16 %v1201
        %v2969 = vunpack.c.h.b16 %v1201
        %v2970 = vunpack.c.l.b16 %v1202
        %v2971 = vunpack.c.h.b16 %v1202
        %v2972 = vunpack.c.l.b16 %v1203
        %v2973 = vunpack.c.h.b16 %v1203
        %v2974 = vunpack.c.l.b16 %v1204
        %v2975 = vunpack.c.h.b16 %v1204
        %v2976 = vunpack.c.l.b16 %v1205
        %v2977 = vunpack.c.h.b16 %v1205
        %v2978 = vunpack.c.l.b16 %v1206
        %v2979 = vunpack.c.h.b16 %v1206
        %v2980 = vunpack.c.l.b16 %v1207
        %v2981 = vunpack.c.h.b16 %v1207
        %v2982 = vunpack.c.l.b16 %v1208
        %v2983 = vunpack.c.h.b16 %v1208
        %v2984 = vunpack.c.l.b16 %v1209
        %v2985 = vunpack.c.h.b16 %v1209
        %v2986 = vunpack.c.l.b16 %v1210
        %v2987 = vunpack.c.h.b16 %v1210
        %v2988 = vunpack.c.l.b16 %v1211
        %v2989 = vunpack.c.h.b16 %v1211
        %v2990 = vunpack.c.l.b16 %v1212
        %v2991 = vunpack.c.h.b16 %v1212
        %v2992 = vunpack.c.l.b16 %v1213
        %v2993 = vunpack.c.h.b16 %v1213
        %v2994 = vunpack.c.l.b16 %v1214
        %v2995 = vunpack.c.h.b16 %v1214
        %v2996 = vunpack.c.l.b16 %v1215
        %v2997 = vunpack.c.h.b16 %v1215
        %v2998 = vunpack.c.l.b16 %v1216
        %v2999 = vunpack.c.h.b16 %v1216
        %v3000 = vunpack.c.l.b16 %v1217
        %v3001 = vunpack.c.h.b16 %v1217
        %v3002 = vunpack.c.l.b16 %v1218
        %v3003 = vunpack.c.h.b16 %v1218
        %v3004 = vunpack.c.l.b16 %v1219
        %v3005 = vunpack.c.h.b16 %v1219
        %v3006 = vunpack.c.l.b16 %v1220
        %v3007 = vunpack.c.h.b16 %v1220
        %v3008 = vunpack.c.l.b16 %v1221
        %v3009 = vunpack.c.h.b16 %v1221
        %v3010 = vunpack.c.l.b16 %v1222
        %v3011 = vunpack.c.h.b16 %v1222
        %v3012 = vunpack.c.l.b16 %v1223
        %v3013 = vunpack.c.h.b16 %v1223
        %v3014 = vunpack.c.l.b16 %v1224
        %v3015 = vunpack.c.h.b16 %v1224
        %v3016 = vunpack.c.l.b16 %v1225
        %v3017 = vunpack.c.h.b16 %v1225
        %v3018 = vunpack.c.l.b16 %v1226
        %v3019 = vunpack.c.h.b16 %v1226
        %v3020 = vunpack.c.l.b16 %v1227
        %v3021 = vunpack.c.h.b16 %v1227
        %v3022 = vunpack.c.l.b16 %v1228
        %v3023 = vunpack.c.h.b16 %v1228
        %v3024 = vunpack.c.l.b16 %v1229
        %v3025 = vunpack.c.h.b16 %v1229
        %v3026 = vunpack.c.l.b16 %v1230
        %v3027 = vunpack.c.h.b16 %v1230
        %v3028 = vunpack.c.l.b16 %v1231
        %v3029 = vunpack.c.h.b16 %v1231
        %v3030 = vunpack.c.l.b16 %v1232
        %v3031 = vunpack.c.h.b16 %v1232
        %v3032 = vunpack.c.l.b16 %v1233
        %v3033 = vunpack.c.h.b16 %v1233
        %v3034 = vunpack.c.l.b16 %v1234
        %v3035 = vunpack.c.h.b16 %v1234
        %v3036 = vunpack.c.l.b16 %v1235
        %v3037 = vunpack.c.h.b16 %v1235
        %v3038 = vunpack.c.l.b16 %v1236
        %v3039 = vunpack.c.h.b16 %v1236
        %v3040 = vunpack.c.l.b16 %v1237
        %v3041 = vunpack.c.h.b16 %v1237
        %v3042 = vunpack.c.l.b16 %v1238
        %v3043 = vunpack.c.h.b16 %v1238
        %v3044 = vunpack.c.l.b16 %v1239
        %v3045 = vunpack.c.h.b16 %v1239
        %v3046 = vunpack.c.l.b16 %v1240
        %v3047 = vunpack.c.h.b16 %v1240
        %v3048 = vunpack.c.l.b16 %v1241
        %v3049 = vunpack.c.h.b16 %v1241
        %v3050 = vunpack.c.l.b16 %v1242
        %v3051 = vunpack.c.h.b16 %v1242
        %v3052 = vunpack.c.l.b16 %v1243
        %v3053 = vunpack.c.h.b16 %v1243
        %v3054 = vunpack.c.l.b16 %v1244
        %v3055 = vunpack.c.h.b16 %v1244
        %v3056 = vunpack.c.l.b16 %v1245
        %v3057 = vunpack.c.h.b16 %v1245
        %v3058 = vunpack.c.l.b16 %v1246
        %v3059 = vunpack.c.h.b16 %v1246
        %v3060 = vunpack.c.l.b16 %v1247
        %v3061 = vunpack.c.h.b16 %v1247
        %v3062 = vunpack.c.l.b16 %v1248
        %v3063 = vunpack.c.h.b16 %v1248
        %v3064 = vunpack.c.l.b16 %v1249
        %v3065 = vunpack.c.h.b16 %v1249
        %v3066 = vunpack.c.l.b16 %v1250
        %v3067 = vunpack.c.h.b16 %v1250
        %v3068 = vunpack.c.l.b16 %v1251
        %v3069 = vunpack.c.h.b16 %v1251
        %v3070 = vunpack.c.l.b16 %v1252
        %v3071 = vunpack.c.h.b16 %v1252
        %v3072 = vunpack.c.l.b16 %v1253
        %v3073 = vunpack.c.h.b16 %v1253
        %v3074 = vunpack.c.l.b16 %v1254
        %v3075 = vunpack.c.h.b16 %v1254
        %v3076 = vunpack.c.l.b16 %v1255
        %v3077 = vunpack.c.h.b16 %v1255
        %v3078 = vunpack.c.l.b16 %v1256
        %v3079 = vunpack.c.h.b16 %v1256
        %v3080 = vunpack.c.l.b16 %v1257
        %v3081 = vunpack.c.h.b16 %v1257
        %v3082 = vunpack.c.l.b16 %v1258
        %v3083 = vunpack.c.h.b16 %v1258
        %v3084 = vunpack.c.l.b16 %v1259
        %v3085 = vunpack.c.h.b16 %v1259
        %v3086 = vunpack.c.l.b16 %v1260
        %v3087 = vunpack.c.h.b16 %v1260
        %v3088 = vunpack.c.l.b16 %v1261
        %v3089 = vunpack.c.h.b16 %v1261
        %v3090 = vunpack.c.l.b16 %v1262
        %v3091 = vunpack.c.h.b16 %v1262
        %v3092 = vunpack.c.l.b16 %v1263
        %v3093 = vunpack.c.h.b16 %v1263
        %v3094 = vunpack.c.l.b16 %v1264
        %v3095 = vunpack.c.h.b16 %v1264
        %v3096 = vunpack.c.l.b16 %v1265
        %v3097 = vunpack.c.h.b16 %v1265
        %v3098 = vunpack.c.l.b16 %v1266
        %v3099 = vunpack.c.h.b16 %v1266
        %v3100 = vunpack.c.l.b16 %v1267
        %v3101 = vunpack.c.h.b16 %v1267
        %v3102 = vunpack.c.l.b16 %v1268
        %v3103 = vunpack.c.h.b16 %v1268
        %v3104 = vunpack.c.l.b16 %v1269
        %v3105 = vunpack.c.h.b16 %v1269
        %v3106 = vunpack.c.l.b16 %v1270
        %v3107 = vunpack.c.h.b16 %v1270
        %v3108 = vunpack.c.l.b16 %v1271
        %v3109 = vunpack.c.h.b16 %v1271
        %v3110 = vunpack.c.l.b16 %v1272
        %v3111 = vunpack.c.h.b16 %v1272
        %v3112 = vunpack.c.l.b16 %v1273
        %v3113 = vunpack.c.h.b16 %v1273
        %v3114 = vunpack.c.l.b16 %v1274
        %v3115 = vunpack.c.h.b16 %v1274
        %v3116 = vunpack.c.l.b16 %v1275
        %v3117 = vunpack.c.h.b16 %v1275
        %v3118 = vunpack.c.l.b16 %v1276
        %v3119 = vunpack.c.h.b16 %v1276
        %v3120 = vunpack.c.l.b16 %v1277
        %v3121 = vunpack.c.h.b16 %v1277
        %v3122 = vunpack.c.l.b16 %v1278
        %v3123 = vunpack.c.h.b16 %v1278
        %v3124 = vunpack.c.l.b16 %v1279
        %v3125 = vunpack.c.h.b16 %v1279
        %v3126 = vunpack.c.l.b16 %v1280
        %v3127 = vunpack.c.h.b16 %v1280
        %v3128 = vunpack.c.l.b16 %v1281
        %v3129 = vunpack.c.h.b16 %v1281
        %v3130 = vunpack.c.l.b16 %v1282
        %v3131 = vunpack.c.h.b16 %v1282
        %v3132 = vunpack.c.l.b16 %v1283
        %v3133 = vunpack.c.h.b16 %v1283
        %v3134 = vunpack.c.l.b16 %v1284
        %v3135 = vunpack.c.h.b16 %v1284
        %v3136 = vunpack.c.l.b16 %v1285
        %v3137 = vunpack.c.h.b16 %v1285
        %v3138 = vunpack.c.l.b16 %v1286
        %v3139 = vunpack.c.h.b16 %v1286
        %v3140 = vunpack.c.l.b16 %v1287
        %v3141 = vunpack.c.h.b16 %v1287
        %v3142 = vunpack.c.l.b16 %v1288
        %v3143 = vunpack.c.h.b16 %v1288
        %v3144 = vunpack.c.l.b16 %v1289
        %v3145 = vunpack.c.h.b16 %v1289
        %v3146 = vunpack.c.l.b16 %v1290
        %v3147 = vunpack.c.h.b16 %v1290
        %v3148 = vunpack.c.l.b16 %v1291
        %v3149 = vunpack.c.h.b16 %v1291
        %v3150 = vunpack.c.l.b16 %v1292
        %v3151 = vunpack.c.h.b16 %v1292
        %v3152 = vunpack.c.l.b16 %v1293
        %v3153 = vunpack.c.h.b16 %v1293
        %v3154 = vunpack.c.l.b16 %v1294
        %v3155 = vunpack.c.h.b16 %v1294
        %v3156 = vunpack.c.l.b16 %v1295
        %v3157 = vunpack.c.h.b16 %v1295
        %v3158 = vunpack.c.l.b16 %v1296
        %v3159 = vunpack.c.h.b16 %v1296
        %v3160 = vunpack.c.l.b16 %v1297
        %v3161 = vunpack.c.h.b16 %v1297
        %v3162 = vunpack.c.l.b16 %v1298
        %v3163 = vunpack.c.h.b16 %v1298
        %v3164 = vunpack.c.l.b16 %v1299
        %v3165 = vunpack.c.h.b16 %v1299
        %v3166 = vunpack.c.l.b16 %v1300
        %v3167 = vunpack.c.h.b16 %v1300
        %v3168 = vunpack.c.l.b16 %v1301
        %v3169 = vunpack.c.h.b16 %v1301
        %v3170 = vunpack.c.l.b16 %v1302
        %v3171 = vunpack.c.h.b16 %v1302
        %v3172 = vunpack.c.l.b16 %v1303
        %v3173 = vunpack.c.h.b16 %v1303
        %v3174 = vunpack.c.l.b16 %v1304
        %v3175 = vunpack.c.h.b16 %v1304
        %v3176 = vunpack.c.l.b16 %v1305
        %v3177 = vunpack.c.h.b16 %v1305
        %v3178 = vunpack.c.l.b16 %v1306
        %v3179 = vunpack.c.h.b16 %v1306
        %v3180 = vunpack.c.l.b16 %v1307
        %v3181 = vunpack.c.h.b16 %v1307
        %v3182 = vunpack.c.l.b16 %v1308
        %v3183 = vunpack.c.h.b16 %v1308
        %v3184 = vunpack.c.l.b16 %v1309
        %v3185 = vunpack.c.h.b16 %v1309
        %v3186 = vunpack.c.l.b16 %v1310
        %v3187 = vunpack.c.h.b16 %v1310
        %v3188 = vunpack.c.l.b16 %v1311
        %v3189 = vunpack.c.h.b16 %v1311
        %v3190 = vunpack.c.l.b16 %v1312
        %v3191 = vunpack.c.h.b16 %v1312
        %v3192 = vunpack.c.l.b16 %v1313
        %v3193 = vunpack.c.h.b16 %v1313
        %v3194 = vunpack.c.l.b16 %v1314
        %v3195 = vunpack.c.h.b16 %v1314
        %v3196 = vunpack.c.l.b16 %v1315
        %v3197 = vunpack.c.h.b16 %v1315
        %v3198 = vunpack.c.l.b16 %v1316
        %v3199 = vunpack.c.h.b16 %v1316
        %v3200 = vunpack.c.l.b16 %v1317
        %v3201 = vunpack.c.h.b16 %v1317
        %v3202 = vunpack.c.l.b16 %v1318
        %v3203 = vunpack.c.h.b16 %v1318
        %v3204 = vunpack.c.l.b16 %v1319
        %v3205 = vunpack.c.h.b16 %v1319
        %v3206 = vunpack.c.l.b16 %v1320
        %v3207 = vunpack.c.h.b16 %v1320
        %v3208 = vunpack.c.l.b16 %v1321
        %v3209 = vunpack.c.h.b16 %v1321
        %v3210 = vunpack.c.l.b16 %v1322
        %v3211 = vunpack.c.h.b16 %v1322
        %v3212 = vunpack.c.l.b16 %v1323
        %v3213 = vunpack.c.h.b16 %v1323
        %v3214 = vunpack.c.l.b16 %v1324
        %v3215 = vunpack.c.h.b16 %v1324
        %v3216 = vunpack.c.l.b16 %v1325
        %v3217 = vunpack.c.h.b16 %v1325
        %v3218 = vunpack.c.l.b16 %v1326
        %v3219 = vunpack.c.h.b16 %v1326
        %v3220 = vunpack.c.l.b16 %v1327
        %v3221 = vunpack.c.h.b16 %v1327
        %v3222 = vunpack.c.l.b16 %v1328
        %v3223 = vunpack.c.h.b16 %v1328
        %v3224 = vunpack.c.l.b16 %v1329
        %v3225 = vunpack.c.h.b16 %v1329
        %v3226 = vunpack.c.l.b16 %v1330
        %v3227 = vunpack.c.h.b16 %v1330
        %v3228 = vunpack.c.l.b16 %v1331
        %v3229 = vunpack.c.h.b16 %v1331
        %v3230 = vunpack.c.l.b16 %v1332
        %v3231 = vunpack.c.h.b16 %v1332
        %v3232 = vunpack.c.l.b16 %v1333
        %v3233 = vunpack.c.h.b16 %v1333
        %v3234 = vunpack.c.l.b16 %v1334
        %v3235 = vunpack.c.h.b16 %v1334
        %v3236 = vunpack.c.l.b16 %v1335
        %v3237 = vunpack.c.h.b16 %v1335
        %v3238 = vunpack.c.l.b16 %v1336
        %v3239 = vunpack.c.h.b16 %v1336
        %v3240 = vunpack.c.l.b16 %v1337
        %v3241 = vunpack.c.h.b16 %v1337
        %v3242 = vunpack.c.l.b16 %v1338
        %v3243 = vunpack.c.h.b16 %v1338
        %v3244 = vunpack.c.l.b16 %v1339
        %v3245 = vunpack.c.h.b16 %v1339
        %v3246 = vunpack.c.l.b16 %v1340
        %v3247 = vunpack.c.h.b16 %v1340
        %v3248 = vunpack.c.l.b16 %v1341
        %v3249 = vunpack.c.h.b16 %v1341
        %v3250 = vunpack.c.l.b16 %v1342
        %v3251 = vunpack.c.h.b16 %v1342
        %v3252 = vunpack.c.l.b16 %v1343
        %v3253 = vunpack.c.h.b16 %v1343
        %v3254 = vunpack.c.l.b16 %v1344
        %v3255 = vunpack.c.h.b16 %v1344
        %v3256 = vunpack.c.l.b16 %v1345
        %v3257 = vunpack.c.h.b16 %v1345
        %v3258 = vunpack.c.l.b16 %v1346
        %v3259 = vunpack.c.h.b16 %v1346
        %v3260 = vunpack.c.l.b16 %v1347
        %v3261 = vunpack.c.h.b16 %v1347
        %v3262 = vunpack.c.l.b16 %v1348
        %v3263 = vunpack.c.h.b16 %v1348
        %v3264 = vunpack.c.l.b16 %v1349
        %v3265 = vunpack.c.h.b16 %v1349
        %v3266 = vunpack.c.l.b16 %v1350
        %v3267 = vunpack.c.h.b16 %v1350
        %v3268 = vunpack.c.l.b16 %v1351
        %v3269 = vunpack.c.h.b16 %v1351
        %v3270 = vunpack.c.l.b16 %v1352
        %v3271 = vunpack.c.h.b16 %v1352
        %v3272 = vunpack.c.l.b16 %v1353
        %v3273 = vunpack.c.h.b16 %v1353
        %v3274 = vunpack.c.l.b16 %v1354
        %v3275 = vunpack.c.h.b16 %v1354
        %v3276 = vunpack.c.l.b16 %v1355
        %v3277 = vunpack.c.h.b16 %v1355
        %v3278 = vunpack.c.l.b16 %v1356
        %v3279 = vunpack.c.h.b16 %v1356
        %v3280 = vunpack.c.l.b16 %v1357
        %v3281 = vunpack.c.h.b16 %v1357
        %v3282 = vunpack.c.l.b16 %v1358
        %v3283 = vunpack.c.h.b16 %v1358
        %v3284 = vunpack.c.l.b16 %v1359
        %v3285 = vunpack.c.h.b16 %v1359
        %v3286 = vunpack.c.l.b16 %v1360
        %v3287 = vunpack.c.h.b16 %v1360
        %v3288 = vunpack.c.l.b16 %v1361
        %v3289 = vunpack.c.h.b16 %v1361
        %v3290 = vunpack.c.l.b16 %v1362
        %v3291 = vunpack.c.h.b16 %v1362
        %v3292 = vunpack.c.l.b16 %v1363
        %v3293 = vunpack.c.h.b16 %v1363
        %v3294 = vunpack.c.l.b16 %v1364
        %v3295 = vunpack.c.h.b16 %v1364
        %v3296 = vunpack.c.l.b16 %v1365
        %v3297 = vunpack.c.h.b16 %v1365
        %v3298 = vunpack.c.l.b16 %v1366
        %v3299 = vunpack.c.h.b16 %v1366
        %v3300 = vunpack.c.l.b16 %v1367
        %v3301 = vunpack.c.h.b16 %v1367
        %v3302 = vunpack.c.l.b16 %v1368
        %v3303 = vunpack.c.h.b16 %v1368
        %v3304 = vunpack.c.l.b16 %v1369
        %v3305 = vunpack.c.h.b16 %v1369
        %v3306 = vunpack.c.l.b16 %v1370
        %v3307 = vunpack.c.h.b16 %v1370
        %v3308 = vunpack.c.l.b16 %v1371
        %v3309 = vunpack.c.h.b16 %v1371
        %v3310 = vunpack.c.l.b16 %v1372
        %v3311 = vunpack.c.h.b16 %v1372
        %v3312 = vunpack.c.l.b16 %v1373
        %v3313 = vunpack.c.h.b16 %v1373
        %v3314 = vunpack.c.l.b16 %v1374
        %v3315 = vunpack.c.h.b16 %v1374
        %v3316 = vunpack.c.l.b16 %v1375
        %v3317 = vunpack.c.h.b16 %v1375
        %v3318 = vunpack.c.l.b16 %v1376
        %v3319 = vunpack.c.h.b16 %v1376
        %v3320 = vunpack.c.l.b16 %v1377
        %v3321 = vunpack.c.h.b16 %v1377
        %v3322 = vunpack.c.l.b16 %v1378
        %v3323 = vunpack.c.h.b16 %v1378
        %v3324 = vunpack.c.l.b16 %v1379
        %v3325 = vunpack.c.h.b16 %v1379
        %v3326 = vunpack.c.l.b16 %v1380
        %v3327 = vunpack.c.h.b16 %v1380
        %v3328 = vunpack.c.l.b16 %v1381
        %v3329 = vunpack.c.h.b16 %v1381
        %v3330 = vunpack.c.l.b16 %v1382
        %v3331 = vunpack.c.h.b16 %v1382
        %v3332 = vunpack.c.l.b16 %v1383
        %v3333 = vunpack.c.h.b16 %v1383
        %v3334 = vunpack.c.l.b16 %v1384
        %v3335 = vunpack.c.h.b16 %v1384
        %v3336 = vunpack.c.l.b16 %v1385
        %v3337 = vunpack.c.h.b16 %v1385
        %v3338 = vunpack.c.l.b16 %v1386
        %v3339 = vunpack.c.h.b16 %v1386
        %v3340 = vunpack.c.l.b16 %v1387
        %v3341 = vunpack.c.h.b16 %v1387
        %v3342 = vunpack.c.l.b16 %v1388
        %v3343 = vunpack.c.h.b16 %v1388
        %v3344 = vunpack.c.l.b16 %v1389
        %v3345 = vunpack.c.h.b16 %v1389
        %v3346 = vunpack.c.l.b16 %v1390
        %v3347 = vunpack.c.h.b16 %v1390
        %v3348 = vunpack.c.l.b16 %v1391
        %v3349 = vunpack.c.h.b16 %v1391
        %v3350 = vunpack.c.l.b16 %v1392
        %v3351 = vunpack.c.h.b16 %v1392
        %v3352 = vunpack.c.l.b16 %v1393
        %v3353 = vunpack.c.h.b16 %v1393
        %v3354 = vunpack.c.l.b16 %v1394
        %v3355 = vunpack.c.h.b16 %v1394
        %v3356 = vunpack.c.l.b16 %v1395
        %v3357 = vunpack.c.h.b16 %v1395
        %v3358 = vunpack.c.l.b16 %v1396
        %v3359 = vunpack.c.h.b16 %v1396
        %v3360 = vunpack.c.l.b16 %v1397
        %v3361 = vunpack.c.h.b16 %v1397
        %v3362 = vunpack.c.l.b16 %v1398
        %v3363 = vunpack.c.h.b16 %v1398
        %v3364 = vunpack.c.l.b16 %v1399
        %v3365 = vunpack.c.h.b16 %v1399
        %v3366 = vunpack.c.l.b16 %v1400
        %v3367 = vunpack.c.h.b16 %v1400
        %v3368 = vunpack.c.l.b16 %v1401
        %v3369 = vunpack.c.h.b16 %v1401
        %v3370 = vunpack.c.l.b16 %v1402
        %v3371 = vunpack.c.h.b16 %v1402
        %v3372 = vunpack.c.l.b16 %v1403
        %v3373 = vunpack.c.h.b16 %v1403
        %v3374 = vunpack.c.l.b16 %v1404
        %v3375 = vunpack.c.h.b16 %v1404
        %v3376 = vunpack.c.l.b16 %v1405
        %v3377 = vunpack.c.h.b16 %v1405
        %v3378 = vunpack.c.l.b16 %v1406
        %v3379 = vunpack.c.h.b16 %v1406
        %v3380 = vunpack.c.l.b16 %v1407
        %v3381 = vunpack.c.h.b16 %v1407
        %v3382 = vunpack.c.l.b16 %v1408
        %v3383 = vunpack.c.h.b16 %v1408
        %v3384 = vunpack.c.l.b16 %v1409
        %v3385 = vunpack.c.h.b16 %v1409
        %v3386 = vunpack.c.l.b16 %v1410
        %v3387 = vunpack.c.h.b16 %v1410
        %v3388 = vunpack.c.l.b16 %v1411
        %v3389 = vunpack.c.h.b16 %v1411
        %v3390 = vunpack.c.l.b16 %v1412
        %v3391 = vunpack.c.h.b16 %v1412
        %v3392 = vunpack.c.l.b16 %v1413
        %v3393 = vunpack.c.h.b16 %v1413
        %v3394 = vunpack.c.l.b16 %v1414
        %v3395 = vunpack.c.h.b16 %v1414
        %v3396 = vunpack.c.l.b16 %v1415
        %v3397 = vunpack.c.h.b16 %v1415
        %v3398 = vunpack.c.l.b16 %v1416
        %v3399 = vunpack.c.h.b16 %v1416
        %v3400 = vunpack.c.l.b16 %v1417
        %v3401 = vunpack.c.h.b16 %v1417
        %v3402 = vunpack.c.l.b16 %v1418
        %v3403 = vunpack.c.h.b16 %v1418
        %v3404 = vunpack.c.l.b16 %v1419
        %v3405 = vunpack.c.h.b16 %v1419
        %v3406 = vunpack.c.l.b16 %v1420
        %v3407 = vunpack.c.h.b16 %v1420
        %v3408 = vunpack.c.l.b16 %v1421
        %v3409 = vunpack.c.h.b16 %v1421
        %v3410 = vunpack.c.l.b16 %v1422
        %v3411 = vunpack.c.h.b16 %v1422
        %v3412 = vunpack.c.l.b16 %v1423
        %v3413 = vunpack.c.h.b16 %v1423
        %v3414 = vunpack.c.l.b16 %v1424
        %v3415 = vunpack.c.h.b16 %v1424
        %v3416 = vunpack.c.l.b16 %v1425
        %v3417 = vunpack.c.h.b16 %v1425
        %v3418 = vunpack.c.l.b16 %v1426
        %v3419 = vunpack.c.h.b16 %v1426
        %v3420 = vunpack.c.l.b16 %v1427
        %v3421 = vunpack.c.h.b16 %v1427
        %v3422 = vunpack.c.l.b16 %v1428
        %v3423 = vunpack.c.h.b16 %v1428
        %v3424 = vunpack.c.l.b16 %v1429
        %v3425 = vunpack.c.h.b16 %v1429
        %v3426 = vunpack.c.l.b16 %v1430
        %v3427 = vunpack.c.h.b16 %v1430
        %v3428 = vunpack.c.l.b16 %v1431
        %v3429 = vunpack.c.h.b16 %v1431
        %v3430 = vunpack.c.l.b16 %v1432
        %v3431 = vunpack.c.h.b16 %v1432
        %v3432 = vunpack.c.l.b16 %v1433
        %v3433 = vunpack.c.h.b16 %v1433
        %v3434 = vunpack.c.l.b16 %v1434
        %v3435 = vunpack.c.h.b16 %v1434
        %v3436 = vunpack.c.l.b16 %v1435
        %v3437 = vunpack.c.h.b16 %v1435
        %v3438 = vunpack.c.l.b16 %v1436
        %v3439 = vunpack.c.h.b16 %v1436
        %v3440 = vunpack.c.l.b16 %v1437
        %v3441 = vunpack.c.h.b16 %v1437
        %v3442 = vunpack.c.l.b16 %v1438
        %v3443 = vunpack.c.h.b16 %v1438
        %v3444 = vunpack.c.l.b16 %v1439
        %v3445 = vunpack.c.h.b16 %v1439
        %v3446 = vunpack.c.l.b16 %v1440
        %v3447 = vunpack.c.h.b16 %v1440
        %v3448 = vunpack.c.l.b16 %v1441
        %v3449 = vunpack.c.h.b16 %v1441
        %v3450 = vunpack.c.l.b16 %v1442
        %v3451 = vunpack.c.h.b16 %v1442
        %v3452 = vunpack.c.l.b16 %v1443
        %v3453 = vunpack.c.h.b16 %v1443
        %v3454 = vunpack.c.l.b16 %v1444
        %v3455 = vunpack.c.h.b16 %v1444
        %v3456 = vunpack.c.l.b16 %v1445
        %v3457 = vunpack.c.h.b16 %v1445
        %v3458 = vunpack.c.l.b16 %v1446
        %v3459 = vunpack.c.h.b16 %v1446
        %v3460 = vunpack.c.l.b16 %v1447
        %v3461 = vunpack.c.h.b16 %v1447
        %v3462 = vunpack.c.l.b16 %v1448
        %v3463 = vunpack.c.h.b16 %v1448
        %v3464 = vunpack.c.l.b16 %v1449
        %v3465 = vunpack.c.h.b16 %v1449
        %v3466 = vpack.c.b16 %v3082, %v2698
        %v3467 = vpack.c.b16 %v3083, %v2699
        %v3468 = vpack.c.b16 %v3084, %v2700
        %v3469 = vpack.c.b16 %v3085, %v2701
        %v3470 = vpack.c.b16 %v3086, %v2702
        %v3471 = vpack.c.b16 %v3087, %v2703
        %v3472 = vpack.c.b16 %v3088, %v2704
        %v3473 = vpack.c.b16 %v3089, %v2705
        %v3474 = vpack.c.b16 %v3090, %v2706
        %v3475 = vpack.c.b16 %v3091, %v2707
        %v3476 = vpack.c.b16 %v3092, %v2708
        %v3477 = vpack.c.b16 %v3093, %v2709
        %v3478 = vpack.c.b16 %v3094, %v2710
        %v3479 = vpack.c.b16 %v3095, %v2711
        %v3480 = vpack.c.b16 %v3096, %v2712
        %v3481 = vpack.c.b16 %v3097, %v2713
        %v3482 = vpack.c.b16 %v3098, %v2714
        %v3483 = vpack.c.b16 %v3099, %v2715
        %v3484 = vpack.c.b16 %v3100, %v2716
        %v3485 = vpack.c.b16 %v3101, %v2717
        %v3486 = vpack.c.b16 %v3102, %v2718
        %v3487 = vpack.c.b16 %v3103, %v2719
        %v3488 = vpack.c.b16 %v3104, %v2720
        %v3489 = vpack.c.b16 %v3105, %v2721
        %v3490 = vpack.c.b16 %v3106, %v2722
        %v3491 = vpack.c.b16 %v3107, %v2723
        %v3492 = vpack.c.b16 %v3108, %v2724
        %v3493 = vpack.c.b16 %v3109, %v2725
        %v3494 = vpack.c.b16 %v3110, %v2726
        %v3495 = vpack.c.b16 %v3111, %v2727
        %v3496 = vpack.c.b16 %v3112, %v2728
        %v3497 = vpack.c.b16 %v3113, %v2729
        %v3498 = vpack.c.b16 %v3114, %v2730
        %v3499 = vpack.c.b16 %v3115, %v2731
        %v3500 = vpack.c.b16 %v3116, %v2732
        %v3501 = vpack.c.b16 %v3117, %v2733
        %v3502 = vpack.c.b16 %v3118, %v2734
        %v3503 = vpack.c.b16 %v3119, %v2735
        %v3504 = vpack.c.b16 %v3120, %v2736
        %v3505 = vpack.c.b16 %v3121, %v2737
        %v3506 = vpack.c.b16 %v3122, %v2738
        %v3507 = vpack.c.b16 %v3123, %v2739
        %v3508 = vpack.c.b16 %v3124, %v2740
        %v3509 = vpack.c.b16 %v3125, %v2741
        %v3510 = vpack.c.b16 %v3126, %v2742
        %v3511 = vpack.c.b16 %v3127, %v2743
        %v3512 = vpack.c.b16 %v3128, %v2744
        %v3513 = vpack.c.b16 %v3129, %v2745
        %v3514 = vpack.c.b16 %v3130, %v2746
        %v3515 = vpack.c.b16 %v3131, %v2747
        %v3516 = vpack.c.b16 %v3132, %v2748
        %v3517 = vpack.c.b16 %v3133, %v2749
        %v3518 = vpack.c.b16 %v3134, %v2750
        %v3519 = vpack.c.b16 %v3135, %v2751
        %v3520 = vpack.c.b16 %v3136, %v2752
        %v3521 = vpack.c.b16 %v3137, %v2753
        %v3522 = vpack.c.b16 %v3138, %v2754
        %v3523 = vpack.c.b16 %v3139, %v2755
        %v3524 = vpack.c.b16 %v3140, %v2756
        %v3525 = vpack.c.b16 %v3141, %v2757
        %v3526 = vpack.c.b16 %v3142, %v2758
        %v3527 = vpack.c.b16 %v3143, %v2759
        %v3528 = vpack.c.b16 %v3144, %v2760
        %v3529 = vpack.c.b16 %v3145, %v2761
        %v3530 = vpack.c.b16 %v3146, %v2762
        %v3531 = vpack.c.b16 %v3147, %v2763
        %v3532 = vpack.c.b16 %v3148, %v2764
        %v3533 = vpack.c.b16 %v3149, %v2765
        %v3534 = vpack.c.b16 %v3150, %v2766
        %v3535 = vpack.c.b16 %v3151, %v2767
        %v3536 = vpack.c.b16 %v3152, %v2768
        %v3537 = vpack.c.b16 %v3153, %v2769
        %v3538 = vpack.c.b16 %v3154, %v2770
        %v3539 = vpack.c.b16 %v3155, %v2771
        %v3540 = vpack.c.b16 %v3156, %v2772
        %v3541 = vpack.c.b16 %v3157, %v2773
        %v3542 = vpack.c.b16 %v3158, %v2774
        %v3543 = vpack.c.b16 %v3159, %v2775
        %v3544 = vpack.c.b16 %v3160, %v2776
        %v3545 = vpack.c.b16 %v3161, %v2777
        %v3546 = vpack.c.b16 %v3162, %v2778
        %v3547 = vpack.c.b16 %v3163, %v2779
        %v3548 = vpack.c.b16 %v3164, %v2780
        %v3549 = vpack.c.b16 %v3165, %v2781
        %v3550 = vpack.c.b16 %v3166, %v2782
        %v3551 = vpack.c.b16 %v3167, %v2783
        %v3552 = vpack.c.b16 %v3168, %v2784
        %v3553 = vpack.c.b16 %v3169, %v2785
        %v3554 = vpack.c.b16 %v3170, %v2786
        %v3555 = vpack.c.b16 %v3171, %v2787
        %v3556 = vpack.c.b16 %v3172, %v2788
        %v3557 = vpack.c.b16 %v3173, %v2789
        %v3558 = vpack.c.b16 %v3174, %v2790
        %v3559 = vpack.c.b16 %v3175, %v2791
        %v3560 = vpack.c.b16 %v3176, %v2792
        %v3561 = vpack.c.b16 %v3177, %v2793
        %v3562 = vpack.c.b16 %v3178, %v2794
        %v3563 = vpack.c.b16 %v3179, %v2795
        %v3564 = vpack.c.b16 %v3180, %v2796
        %v3565 = vpack.c.b16 %v3181, %v2797
        %v3566 = vpack.c.b16 %v3182, %v2798
        %v3567 = vpack.c.b16 %v3183, %v2799
        %v3568 = vpack.c.b16 %v3184, %v2800
        %v3569 = vpack.c.b16 %v3185, %v2801
        %v3570 = vpack.c.b16 %v3186, %v2802
        %v3571 = vpack.c.b16 %v3187, %v2803
        %v3572 = vpack.c.b16 %v3188, %v2804
        %v3573 = vpack.c.b16 %v3189, %v2805
        %v3574 = vpack.c.b16 %v3190, %v2806
        %v3575 = vpack.c.b16 %v3191, %v2807
        %v3576 = vpack.c.b16 %v3192, %v2808
        %v3577 = vpack.c.b16 %v3193, %v2809
        %v3578 = vpack.c.b16 %v3194, %v2810
        %v3579 = vpack.c.b16 %v3195, %v2811
        %v3580 = vpack.c.b16 %v3196, %v2812
        %v3581 = vpack.c.b16 %v3197, %v2813
        %v3582 = vpack.c.b16 %v3198, %v2814
        %v3583 = vpack.c.b16 %v3199, %v2815
        %v3584 = vpack.c.b16 %v3200, %v2816
        %v3585 = vpack.c.b16 %v3201, %v2817
        %v3586 = vpack.c.b16 %v3202, %v2818
        %v3587 = vpack.c.b16 %v3203, %v2819
        %v3588 = vpack.c.b16 %v3204, %v2820
        %v3589 = vpack.c.b16 %v3205, %v2821
        %v3590 = vpack.c.b16 %v3206, %v2822
        %v3591 = vpack.c.b16 %v3207, %v2823
        %v3592 = vpack.c.b16 %v3208, %v2824
        %v3593 = vpack.c.b16 %v3209, %v2825
        %v3594 = vpack.c.b16 %v3210, %v2826
        %v3595 = vpack.c.b16 %v3211, %v2827
        %v3596 = vpack.c.b16 %v3212, %v2828
        %v3597 = vpack.c.b16 %v3213, %v2829
        %v3598 = vpack.c.b16 %v3214, %v2830
        %v3599 = vpack.c.b16 %v3215, %v2831
        %v3600 = vpack.c.b16 %v3216, %v2832
        %v3601 = vpack.c.b16 %v3217, %v2833
        %v3602 = vpack.c.b16 %v3218, %v2834
        %v3603 = vpack.c.b16 %v3219, %v2835
        %v3604 = vpack.c.b16 %v3220, %v2836
        %v3605 = vpack.c.b16 %v3221, %v2837
        %v3606 = vpack.c.b16 %v3222, %v2838
        %v3607 = vpack.c.b16 %v3223, %v2839
        %v3608 = vpack.c.b16 %v3224, %v2840
        %v3609 = vpack.c.b16 %v3225, %v2841
        %v3610 = vpack.c.b16 %v3226, %v2842
        %v3611 = vpack.c.b16 %v3227, %v2843
        %v3612 = vpack.c.b16 %v3228, %v2844
        %v3613 = vpack.c.b16 %v3229, %v2845
        %v3614 = vpack.c.b16 %v3230, %v2846
        %v3615 = vpack.c.b16 %v3231, %v2847
        %v3616 = vpack.c.b16 %v3232, %v2848
        %v3617 = vpack.c.b16 %v3233, %v2849
        %v3618 = vpack.c.b16 %v3234, %v2850
        %v3619 = vpack.c.b16 %v3235, %v2851
        %v3620 = vpack.c.b16 %v3236, %v2852
        %v3621 = vpack.c.b16 %v3237, %v2853
        %v3622 = vpack.c.b16 %v3238, %v2854
        %v3623 = vpack.c.b16 %v3239, %v2855
        %v3624 = vpack.c.b16 %v3240, %v2856
        %v3625 = vpack.c.b16 %v3241, %v2857
        %v3626 = vpack.c.b16 %v3242, %v2858
        %v3627 = vpack.c.b16 %v3243, %v2859
        %v3628 = vpack.c.b16 %v3244, %v2860
        %v3629 = vpack.c.b16 %v3245, %v2861
        %v3630 = vpack.c.b16 %v3246, %v2862
        %v3631 = vpack.c.b16 %v3247, %v2863
        %v3632 = vpack.c.b16 %v3248, %v2864
        %v3633 = vpack.c.b16 %v3249, %v2865
        %v3634 = vpack.c.b16 %v3250, %v2866
        %v3635 = vpack.c.b16 %v3251, %v2867
        %v3636 = vpack.c.b16 %v3252, %v2868
        %v3637 = vpack.c.b16 %v3253, %v2869
        %v3638 = vpack.c.b16 %v3254, %v2870
        %v3639 = vpack.c.b16 %v3255, %v2871
        %v3640 = vpack.c.b16 %v3256, %v2872
        %v3641 = vpack.c.b16 %v3257, %v2873
        %v3642 = vpack.c.b16 %v3258, %v2874
        %v3643 = vpack.c.b16 %v3259, %v2875
        %v3644 = vpack.c.b16 %v3260, %v2876
        %v3645 = vpack.c.b16 %v3261, %v2877
        %v3646 = vpack.c.b16 %v3262, %v2878
        %v3647 = vpack.c.b16 %v3263, %v2879
        %v3648 = vpack.c.b16 %v3264, %v2880
        %v3649 = vpack.c.b16 %v3265, %v2881
        %v3650 = vpack.c.b16 %v3266, %v2882
        %v3651 = vpack.c.b16 %v3267, %v2883
        %v3652 = vpack.c.b16 %v3268, %v2884
        %v3653 = vpack.c.b16 %v3269, %v2885
        %v3654 = vpack.c.b16 %v3270, %v2886
        %v3655 = vpack.c.b16 %v3271, %v2887
        %v3656 = vpack.c.b16 %v3272, %v2888
        %v3657 = vpack.c.b16 %v3273, %v2889
        %v3658 = vpack.c.b16 %v3274, %v2890
        %v3659 = vpack.c.b16 %v3275, %v2891
        %v3660 = vpack.c.b16 %v3276, %v2892
        %v3661 = vpack.c.b16 %v3277, %v2893
        %v3662 = vpack.c.b16 %v3278, %v2894
        %v3663 = vpack.c.b16 %v3279, %v2895
        %v3664 = vpack.c.b16 %v3280, %v2896
        %v3665 = vpack.c.b16 %v3281, %v2897
        %v3666 = vpack.c.b16 %v3282, %v2898
        %v3667 = vpack.c.b16 %v3283, %v2899
        %v3668 = vpack.c.b16 %v3284, %v2900
        %v3669 = vpack.c.b16 %v3285, %v2901
        %v3670 = vpack.c.b16 %v3286, %v2902
        %v3671 = vpack.c.b16 %v3287, %v2903
        %v3672 = vpack.c.b16 %v3288, %v2904
        %v3673 = vpack.c.b16 %v3289, %v2905
        %v3674 = vpack.c.b16 %v3290, %v2906
        %v3675 = vpack.c.b16 %v3291, %v2907
        %v3676 = vpack.c.b16 %v3292, %v2908
        %v3677 = vpack.c.b16 %v3293, %v2909
        %v3678 = vpack.c.b16 %v3294, %v2910
        %v3679 = vpack.c.b16 %v3295, %v2911
        %v3680 = vpack.c.b16 %v3296, %v2912
        %v3681 = vpack.c.b16 %v3297, %v2913
        %v3682 = vpack.c.b16 %v3298, %v2914
        %v3683 = vpack.c.b16 %v3299, %v2915
        %v3684 = vpack.c.b16 %v3300, %v2916
        %v3685 = vpack.c.b16 %v3301, %v2917
        %v3686 = vpack.c.b16 %v3302, %v2918
        %v3687 = vpack.c.b16 %v3303, %v2919
        %v3688 = vpack.c.b16 %v3304, %v2920
        %v3689 = vpack.c.b16 %v3305, %v2921
        %v3690 = vpack.c.b16 %v3306, %v2922
        %v3691 = vpack.c.b16 %v3307, %v2923
        %v3692 = vpack.c.b16 %v3308, %v2924
        %v3693 = vpack.c.b16 %v3309, %v2925
        %v3694 = vpack.c.b16 %v3310, %v2926
        %v3695 = vpack.c.b16 %v3311, %v2927
        %v3696 = vpack.c.b16 %v3312, %v2928
        %v3697 = vpack.c.b16 %v3313, %v2929
        %v3698 = vpack.c.b16 %v3314, %v2930
        %v3699 = vpack.c.b16 %v3315, %v2931
        %v3700 = vpack.c.b16 %v3316, %v2932
        %v3701 = vpack.c.b16 %v3317, %v2933
        %v3702 = vpack.c.b16 %v3318, %v2934
        %v3703 = vpack.c.b16 %v3319, %v2935
        %v3704 = vpack.c.b16 %v3320, %v2936
        %v3705 = vpack.c.b16 %v3321, %v2937
        %v3706 = vpack.c.b16 %v3322, %v2938
        %v3707 = vpack.c.b16 %v3323, %v2939
        %v3708 = vpack.c.b16 %v3324, %v2940
        %v3709 = vpack.c.b16 %v3325, %v2941
        %v3710 = vpack.c.b16 %v3326, %v2942
        %v3711 = vpack.c.b16 %v3327, %v2943
        %v3712 = vpack.c.b16 %v3328, %v2944
        %v3713 = vpack.c.b16 %v3329, %v2945
        %v3714 = vpack.c.b16 %v3330, %v2946
        %v3715 = vpack.c.b16 %v3331, %v2947
        %v3716 = vpack.c.b16 %v3332, %v2948
        %v3717 = vpack.c.b16 %v3333, %v2949
        %v3718 = vpack.c.b16 %v3334, %v2950
        %v3719 = vpack.c.b16 %v3335, %v2951
        %v3720 = vpack.c.b16 %v3336, %v2952
        %v3721 = vpack.c.b16 %v3337, %v2953
        %v3722 = vpack.c.b16 %v3338, %v2954
        %v3723 = vpack.c.b16 %v3339, %v2955
        %v3724 = vpack.c.b16 %v3340, %v2956
        %v3725 = vpack.c.b16 %v3341, %v2957
        %v3726 = vpack.c.b16 %v3342, %v2958
        %v3727 = vpack.c.b16 %v3343, %v2959
        %v3728 = vpack.c.b16 %v3344, %v2960
        %v3729 = vpack.c.b16 %v3345, %v2961
        %v3730 = vpack.c.b16 %v3346, %v2962
        %v3731 = vpack.c.b16 %v3347, %v2963
        %v3732 = vpack.c.b16 %v3348, %v2964
        %v3733 = vpack.c.b16 %v3349, %v2965
        %v3734 = vpack.c.b16 %v3350, %v2966
        %v3735 = vpack.c.b16 %v3351, %v2967
        %v3736 = vpack.c.b16 %v3352, %v2968
        %v3737 = vpack.c.b16 %v3353, %v2969
        %v3738 = vpack.c.b16 %v3354, %v2970
        %v3739 = vpack.c.b16 %v3355, %v2971
        %v3740 = vpack.c.b16 %v3356, %v2972
        %v3741 = vpack.c.b16 %v3357, %v2973
        %v3742 = vpack.c.b16 %v3358, %v2974
        %v3743 = vpack.c.b16 %v3359, %v2975
        %v3744 = vpack.c.b16 %v3360, %v2976
        %v3745 = vpack.c.b16 %v3361, %v2977
        %v3746 = vpack.c.b16 %v3362, %v2978
        %v3747 = vpack.c.b16 %v3363, %v2979
        %v3748 = vpack.c.b16 %v3364, %v2980
        %v3749 = vpack.c.b16 %v3365, %v2981
        %v3750 = vpack.c.b16 %v3366, %v2982
        %v3751 = vpack.c.b16 %v3367, %v2983
        %v3752 = vpack.c.b16 %v3368, %v2984
        %v3753 = vpack.c.b16 %v3369, %v2985
        %v3754 = vpack.c.b16 %v3370, %v2986
        %v3755 = vpack.c.b16 %v3371, %v2987
        %v3756 = vpack.c.b16 %v3372, %v2988
        %v3757 = vpack.c.b16 %v3373, %v2989
        %v3758 = vpack.c.b16 %v3374, %v2990
        %v3759 = vpack.c.b16 %v3375, %v2991
        %v3760 = vpack.c.b16 %v3376, %v2992
        %v3761 = vpack.c.b16 %v3377, %v2993
        %v3762 = vpack.c.b16 %v3378, %v2994
        %v3763 = vpack.c.b16 %v3379, %v2995
        %v3764 = vpack.c.b16 %v3380, %v2996
        %v3765 = vpack.c.b16 %v3381, %v2997
        %v3766 = vpack.c.b16 %v3382, %v2998
        %v3767 = vpack.c.b16 %v3383, %v2999
        %v3768 = vpack.c.b16 %v3384, %v3000
        %v3769 = vpack.c.b16 %v3385, %v3001
        %v3770 = vpack.c.b16 %v3386, %v3002
        %v3771 = vpack.c.b16 %v3387, %v3003
        %v3772 = vpack.c.b16 %v3388, %v3004
        %v3773 = vpack.c.b16 %v3389, %v3005
        %v3774 = vpack.c.b16 %v3390, %v3006
        %v3775 = vpack.c.b16 %v3391, %v3007
        %v3776 = vpack.c.b16 %v3392, %v3008
        %v3777 = vpack.c.b16 %v3393, %v3009
        %v3778 = vpack.c.b16 %v3394, %v3010
        %v3779 = vpack.c.b16 %v3395, %v3011
        %v3780 = vpack.c.b16 %v3396, %v3012
        %v3781 = vpack.c.b16 %v3397, %v3013
        %v3782 = vpack.c.b16 %v3398, %v3014
        %v3783 = vpack.c.b16 %v3399, %v3015
        %v3784 = vpack.c.b16 %v3400, %v3016
        %v3785 = vpack.c.b16 %v3401, %v3017
        %v3786 = vpack.c.b16 %v3402, %v3018
        %v3787 = vpack.c.b16 %v3403, %v3019
        %v3788 = vpack.c.b16 %v3404, %v3020
        %v3789 = vpack.c.b16 %v3405, %v3021
        %v3790 = vpack.c.b16 %v3406, %v3022
        %v3791 = vpack.c.b16 %v3407, %v3023
        %v3792 = vpack.c.b16 %v3408, %v3024
        %v3793 = vpack.c.b16 %v3409, %v3025
        %v3794 = vpack.c.b16 %v3410, %v3026
        %v3795 = vpack.c.b16 %v3411, %v3027
        %v3796 = vpack.c.b16 %v3412, %v3028
        %v3797 = vpack.c.b16 %v3413, %v3029
        %v3798 = vpack.c.b16 %v3414, %v3030
        %v3799 = vpack.c.b16 %v3415, %v3031
        %v3800 = vpack.c.b16 %v3416, %v3032
        %v3801 = vpack.c.b16 %v3417, %v3033
        %v3802 = vpack.c.b16 %v3418, %v3034
        %v3803 = vpack.c.b16 %v3419, %v3035
        %v3804 = vpack.c.b16 %v3420, %v3036
        %v3805 = vpack.c.b16 %v3421, %v3037
        %v3806 = vpack.c.b16 %v3422, %v3038
        %v3807 = vpack.c.b16 %v3423, %v3039
        %v3808 = vpack.c.b16 %v3424, %v3040
        %v3809 = vpack.c.b16 %v3425, %v3041
        %v3810 = vpack.c.b16 %v3426, %v3042
        %v3811 = vpack.c.b16 %v3427, %v3043
        %v3812 = vpack.c.b16 %v3428, %v3044
        %v3813 = vpack.c.b16 %v3429, %v3045
        %v3814 = vpack.c.b16 %v3430, %v3046
        %v3815 = vpack.c.b16 %v3431, %v3047
        %v3816 = vpack.c.b16 %v3432, %v3048
        %v3817 = vpack.c.b16 %v3433, %v3049
        %v3818 = vpack.c.b16 %v3434, %v3050
        %v3819 = vpack.c.b16 %v3435, %v3051
        %v3820 = vpack.c.b16 %v3436, %v3052
        %v3821 = vpack.c.b16 %v3437, %v3053
        %v3822 = vpack.c.b16 %v3438, %v3054
        %v3823 = vpack.c.b16 %v3439, %v3055
        %v3824 = vpack.c.b16 %v3440, %v3056
        %v3825 = vpack.c.b16 %v3441, %v3057
        %v3826 = vpack.c.b16 %v3442, %v3058
        %v3827 = vpack.c.b16 %v3443, %v3059
        %v3828 = vpack.c.b16 %v3444, %v3060
        %v3829 = vpack.c.b16 %v3445, %v3061
        %v3830 = vpack.c.b16 %v3446, %v3062
        %v3831 = vpack.c.b16 %v3447, %v3063
        %v3832 = vpack.c.b16 %v3448, %v3064
        %v3833 = vpack.c.b16 %v3449, %v3065
        %v3834 = vpack.c.b16 %v3450, %v3066
        %v3835 = vpack.c.b16 %v3451, %v3067
        %v3836 = vpack.c.b16 %v3452, %v3068
        %v3837 = vpack.c.b16 %v3453, %v3069
        %v3838 = vpack.c.b16 %v3454, %v3070
        %v3839 = vpack.c.b16 %v3455, %v3071
        %v3840 = vpack.c.b16 %v3456, %v3072
        %v3841 = vpack.c.b16 %v3457, %v3073
        %v3842 = vpack.c.b16 %v3458, %v3074
        %v3843 = vpack.c.b16 %v3459, %v3075
        %v3844 = vpack.c.b16 %v3460, %v3076
        %v3845 = vpack.c.b16 %v3461, %v3077
        %v3846 = vpack.c.b16 %v3462, %v3078
        %v3847 = vpack.c.b16 %v3463, %v3079
        %v3848 = vpack.c.b16 %v3464, %v3080
        %v3849 = vpack.c.b16 %v3465, %v3081
        %4234 = vmatpush.bf16.xpose.msra.mxu0 0
        %4235 = vmatpush.bf16.xpose.msra.mxu0 0
        %4236 = vmatpush.bf16.xpose.msra.mxu0 0
        %4237 = vmatpush.bf16.xpose.msra.mxu0 0
        %4238 = vmatpush.bf16.xpose.msra.mxu0 0
        %4239 = vmatpush.bf16.xpose.msra.mxu0 0
        %4240 = vmatpush.bf16.xpose.msra.mxu0 0
        %4241 = vmatpush.bf16.xpose.msra.mxu0 %v3466
        %4242 = vmatmul.bf16.gmra.mxu0 %v1452
        %v4243 = vpop.f32.mrf.mxu0
        %v4244 = vadd.f32 0.0, %v4243
        %v4245 = vpop.f32.mrf.mxu0
        %4246 = vdwg.mxu0
        %4247 = vmatpush.bf16.xpose.msra.mxu0 0
        %4248 = vmatpush.bf16.xpose.msra.mxu0 0
        %4249 = vmatpush.bf16.xpose.msra.mxu0 0
        %4250 = vmatpush.bf16.xpose.msra.mxu0 0
        %4251 = vmatpush.bf16.xpose.msra.mxu0 0
        %4252 = vmatpush.bf16.xpose.msra.mxu0 0
        %4253 = vmatpush.bf16.xpose.msra.mxu0 0
        %4254 = vmatpush.bf16.xpose.msra.mxu0 %v3467
        %4255 = vmatmul.bf16.gmra.mxu0 %v1453
        %v4256 = vpop.f32.mrf.mxu0
        %v4257 = vadd.f32 %v4244, %v4256
        %v4258 = vpop.f32.mrf.mxu0
        %4259 = vdwg.mxu0
        %4260 = vmatpush.bf16.xpose.msra.mxu0 0
        %4261 = vmatpush.bf16.xpose.msra.mxu0 0
        %4262 = vmatpush.bf16.xpose.msra.mxu0 0
        %4263 = vmatpush.bf16.xpose.msra.mxu0 0
        %4264 = vmatpush.bf16.xpose.msra.mxu0 0
        %4265 = vmatpush.bf16.xpose.msra.mxu0 0
        %4266 = vmatpush.bf16.xpose.msra.mxu0 0
        %4267 = vmatpush.bf16.xpose.msra.mxu0 %v3468
        %4268 = vmatmul.bf16.gmra.mxu0 %v1454
        %v4269 = vpop.f32.mrf.mxu0
        %v4270 = vadd.f32 %v4257, %v4269
        %v4271 = vpop.f32.mrf.mxu0
        %4272 = vdwg.mxu0
        %4273 = vmatpush.bf16.xpose.msra.mxu0 0
        %4274 = vmatpush.bf16.xpose.msra.mxu0 0
        %4275 = vmatpush.bf16.xpose.msra.mxu0 0
        %4276 = vmatpush.bf16.xpose.msra.mxu0 0
        %4277 = vmatpush.bf16.xpose.msra.mxu0 0
        %4278 = vmatpush.bf16.xpose.msra.mxu0 0
        %4279 = vmatpush.bf16.xpose.msra.mxu0 0
        %4280 = vmatpush.bf16.xpose.msra.mxu0 %v3469
        %4281 = vmatmul.bf16.gmra.mxu0 %v1455
        %v4282 = vpop.f32.mrf.mxu0
        %v4283 = vadd.f32 %v4270, %v4282
        %v4284 = vpop.f32.mrf.mxu0
        %4285 = vdwg.mxu0
        %4286 = vmatpush.bf16.xpose.msra.mxu0 0
        %4287 = vmatpush.bf16.xpose.msra.mxu0 0
        %4288 = vmatpush.bf16.xpose.msra.mxu0 0
        %4289 = vmatpush.bf16.xpose.msra.mxu0 0
        %4290 = vmatpush.bf16.xpose.msra.mxu0 0
        %4291 = vmatpush.bf16.xpose.msra.mxu0 0
        %4292 = vmatpush.bf16.xpose.msra.mxu0 0
        %4293 = vmatpush.bf16.xpose.msra.mxu0 %v3470
        %4294 = vmatmul.bf16.gmra.mxu0 %v1456
        %v4295 = vpop.f32.mrf.mxu0
        %v4296 = vadd.f32 %v4283, %v4295
        %v4297 = vpop.f32.mrf.mxu0
        %4298 = vdwg.mxu0
        %4299 = vmatpush.bf16.xpose.msra.mxu0 0
        %4300 = vmatpush.bf16.xpose.msra.mxu0 0
        %4301 = vmatpush.bf16.xpose.msra.mxu0 0
        %4302 = vmatpush.bf16.xpose.msra.mxu0 0
        %4303 = vmatpush.bf16.xpose.msra.mxu0 0
        %4304 = vmatpush.bf16.xpose.msra.mxu0 0
        %4305 = vmatpush.bf16.xpose.msra.mxu0 0
        %4306 = vmatpush.bf16.xpose.msra.mxu0 %v3471
        %4307 = vmatmul.bf16.gmra.mxu0 %v1457
        %v4308 = vpop.f32.mrf.mxu0
        %v4309 = vadd.f32 %v4296, %v4308
        %v4310 = vpop.f32.mrf.mxu0
        %4311 = vdwg.mxu0
        %4312 = vmatpush.bf16.xpose.msra.mxu0 0
        %4313 = vmatpush.bf16.xpose.msra.mxu0 0
        %4314 = vmatpush.bf16.xpose.msra.mxu0 0
        %4315 = vmatpush.bf16.xpose.msra.mxu0 0
        %4316 = vmatpush.bf16.xpose.msra.mxu0 0
        %4317 = vmatpush.bf16.xpose.msra.mxu0 0
        %4318 = vmatpush.bf16.xpose.msra.mxu0 0
        %4319 = vmatpush.bf16.xpose.msra.mxu0 %v3472
        %4320 = vmatmul.bf16.gmra.mxu0 %v1458
        %v4321 = vpop.f32.mrf.mxu0
        %v4322 = vadd.f32 %v4309, %v4321
        %v4323 = vpop.f32.mrf.mxu0
        %4324 = vdwg.mxu0
        %4325 = vmatpush.bf16.xpose.msra.mxu0 0
        %4326 = vmatpush.bf16.xpose.msra.mxu0 0
        %4327 = vmatpush.bf16.xpose.msra.mxu0 0
        %4328 = vmatpush.bf16.xpose.msra.mxu0 0
        %4329 = vmatpush.bf16.xpose.msra.mxu0 0
        %4330 = vmatpush.bf16.xpose.msra.mxu0 0
        %4331 = vmatpush.bf16.xpose.msra.mxu0 0
        %4332 = vmatpush.bf16.xpose.msra.mxu0 %v3473
        %4333 = vmatmul.bf16.gmra.mxu0 %v1459
        %v4334 = vpop.f32.mrf.mxu0
        %v4335 = vadd.f32 %v4322, %v4334
        %v4336 = vpop.f32.mrf.mxu0
        %4337 = vdwg.mxu0
        %4338 = vmatpush.bf16.xpose.msra.mxu0 0
        %4339 = vmatpush.bf16.xpose.msra.mxu0 0
        %4340 = vmatpush.bf16.xpose.msra.mxu0 0
        %4341 = vmatpush.bf16.xpose.msra.mxu0 0
        %4342 = vmatpush.bf16.xpose.msra.mxu0 0
        %4343 = vmatpush.bf16.xpose.msra.mxu0 0
        %4344 = vmatpush.bf16.xpose.msra.mxu0 0
        %4345 = vmatpush.bf16.xpose.msra.mxu0 %v3474
        %4346 = vmatmul.bf16.gmra.mxu0 %v1462
        %v4347 = vpop.f32.mrf.mxu0
        %v4348 = vadd.f32 %v4335, %v4347
        %v4349 = vpop.f32.mrf.mxu0
        %4350 = vdwg.mxu0
        %4351 = vmatpush.bf16.xpose.msra.mxu0 0
        %4352 = vmatpush.bf16.xpose.msra.mxu0 0
        %4353 = vmatpush.bf16.xpose.msra.mxu0 0
        %4354 = vmatpush.bf16.xpose.msra.mxu0 0
        %4355 = vmatpush.bf16.xpose.msra.mxu0 0
        %4356 = vmatpush.bf16.xpose.msra.mxu0 0
        %4357 = vmatpush.bf16.xpose.msra.mxu0 0
        %4358 = vmatpush.bf16.xpose.msra.mxu0 %v3475
        %4359 = vmatmul.bf16.gmra.mxu0 %v1463
        %v4360 = vpop.f32.mrf.mxu0
        %v4361 = vadd.f32 %v4348, %v4360
        %v4362 = vpop.f32.mrf.mxu0
        %4363 = vdwg.mxu0
        %4364 = vmatpush.bf16.xpose.msra.mxu0 0
        %4365 = vmatpush.bf16.xpose.msra.mxu0 0
        %4366 = vmatpush.bf16.xpose.msra.mxu0 0
        %4367 = vmatpush.bf16.xpose.msra.mxu0 0
        %4368 = vmatpush.bf16.xpose.msra.mxu0 0
        %4369 = vmatpush.bf16.xpose.msra.mxu0 0
        %4370 = vmatpush.bf16.xpose.msra.mxu0 0
        %4371 = vmatpush.bf16.xpose.msra.mxu0 %v3476
        %4372 = vmatmul.bf16.gmra.mxu0 %v1464
        %v4373 = vpop.f32.mrf.mxu0
        %v4374 = vadd.f32 %v4361, %v4373
        %v4375 = vpop.f32.mrf.mxu0
        %4376 = vdwg.mxu0
        %4377 = vmatpush.bf16.xpose.msra.mxu0 0
        %4378 = vmatpush.bf16.xpose.msra.mxu0 0
        %4379 = vmatpush.bf16.xpose.msra.mxu0 0
        %4380 = vmatpush.bf16.xpose.msra.mxu0 0
        %4381 = vmatpush.bf16.xpose.msra.mxu0 0
        %4382 = vmatpush.bf16.xpose.msra.mxu0 0
        %4383 = vmatpush.bf16.xpose.msra.mxu0 0
        %4384 = vmatpush.bf16.xpose.msra.mxu0 %v3477
        %4385 = vmatmul.bf16.gmra.mxu0 %v1465
        %v4386 = vpop.f32.mrf.mxu0
        %v4387 = vadd.f32 %v4374, %v4386
        %v4388 = vpop.f32.mrf.mxu0
        %4389 = vdwg.mxu0
        %4390 = vmatpush.bf16.xpose.msra.mxu0 0
        %4391 = vmatpush.bf16.xpose.msra.mxu0 0
        %4392 = vmatpush.bf16.xpose.msra.mxu0 0
        %4393 = vmatpush.bf16.xpose.msra.mxu0 0
        %4394 = vmatpush.bf16.xpose.msra.mxu0 0
        %4395 = vmatpush.bf16.xpose.msra.mxu0 0
        %4396 = vmatpush.bf16.xpose.msra.mxu0 0
        %4397 = vmatpush.bf16.xpose.msra.mxu0 %v3478
        %4398 = vmatmul.bf16.gmra.mxu0 %v1466
        %v4399 = vpop.f32.mrf.mxu0
        %v4400 = vadd.f32 %v4387, %v4399
        %v4401 = vpop.f32.mrf.mxu0
        %4402 = vdwg.mxu0
        %4403 = vmatpush.bf16.xpose.msra.mxu0 0
        %4404 = vmatpush.bf16.xpose.msra.mxu0 0
        %4405 = vmatpush.bf16.xpose.msra.mxu0 0
        %4406 = vmatpush.bf16.xpose.msra.mxu0 0
        %4407 = vmatpush.bf16.xpose.msra.mxu0 0
        %4408 = vmatpush.bf16.xpose.msra.mxu0 0
        %4409 = vmatpush.bf16.xpose.msra.mxu0 0
        %4410 = vmatpush.bf16.xpose.msra.mxu0 %v3479
        %4411 = vmatmul.bf16.gmra.mxu0 %v1467
        %v4412 = vpop.f32.mrf.mxu0
        %v4413 = vadd.f32 %v4400, %v4412
        %v4414 = vpop.f32.mrf.mxu0
        %4415 = vdwg.mxu0
        %4416 = vmatpush.bf16.xpose.msra.mxu0 0
        %4417 = vmatpush.bf16.xpose.msra.mxu0 0
        %4418 = vmatpush.bf16.xpose.msra.mxu0 0
        %4419 = vmatpush.bf16.xpose.msra.mxu0 0
        %4420 = vmatpush.bf16.xpose.msra.mxu0 0
        %4421 = vmatpush.bf16.xpose.msra.mxu0 0
        %4422 = vmatpush.bf16.xpose.msra.mxu0 0
        %4423 = vmatpush.bf16.xpose.msra.mxu0 %v3480
        %4424 = vmatmul.bf16.gmra.mxu0 %v1468
        %v4425 = vpop.f32.mrf.mxu0
        %v4426 = vadd.f32 %v4413, %v4425
        %v4427 = vpop.f32.mrf.mxu0
        %4428 = vdwg.mxu0
        %4429 = vmatpush.bf16.xpose.msra.mxu0 0
        %4430 = vmatpush.bf16.xpose.msra.mxu0 0
        %4431 = vmatpush.bf16.xpose.msra.mxu0 0
        %4432 = vmatpush.bf16.xpose.msra.mxu0 0
        %4433 = vmatpush.bf16.xpose.msra.mxu0 0
        %4434 = vmatpush.bf16.xpose.msra.mxu0 0
        %4435 = vmatpush.bf16.xpose.msra.mxu0 0
        %4436 = vmatpush.bf16.xpose.msra.mxu0 %v3481
        %4437 = vmatmul.bf16.gmra.mxu0 %v1469
        %v4438 = vpop.f32.mrf.mxu0
        %v4439 = vadd.f32 %v4426, %v4438
        %v4440 = vpop.f32.mrf.mxu0
        %4441 = vdwg.mxu0
        %4442 = vmatpush.bf16.xpose.msra.mxu0 0
        %4443 = vmatpush.bf16.xpose.msra.mxu0 0
        %4444 = vmatpush.bf16.xpose.msra.mxu0 0
        %4445 = vmatpush.bf16.xpose.msra.mxu0 0
        %4446 = vmatpush.bf16.xpose.msra.mxu0 0
        %4447 = vmatpush.bf16.xpose.msra.mxu0 0
        %4448 = vmatpush.bf16.xpose.msra.mxu0 0
        %4449 = vmatpush.bf16.xpose.msra.mxu0 %v3482
        %4450 = vmatmul.bf16.gmra.mxu0 %v1472
        %v4451 = vpop.f32.mrf.mxu0
        %v4452 = vadd.f32 %v4439, %v4451
        %v4453 = vpop.f32.mrf.mxu0
        %4454 = vdwg.mxu0
        %4455 = vmatpush.bf16.xpose.msra.mxu0 0
        %4456 = vmatpush.bf16.xpose.msra.mxu0 0
        %4457 = vmatpush.bf16.xpose.msra.mxu0 0
        %4458 = vmatpush.bf16.xpose.msra.mxu0 0
        %4459 = vmatpush.bf16.xpose.msra.mxu0 0
        %4460 = vmatpush.bf16.xpose.msra.mxu0 0
        %4461 = vmatpush.bf16.xpose.msra.mxu0 0
        %4462 = vmatpush.bf16.xpose.msra.mxu0 %v3483
        %4463 = vmatmul.bf16.gmra.mxu0 %v1473
        %v4464 = vpop.f32.mrf.mxu0
        %v4465 = vadd.f32 %v4452, %v4464
        %v4466 = vpop.f32.mrf.mxu0
        %4467 = vdwg.mxu0
        %4468 = vmatpush.bf16.xpose.msra.mxu0 0
        %4469 = vmatpush.bf16.xpose.msra.mxu0 0
        %4470 = vmatpush.bf16.xpose.msra.mxu0 0
        %4471 = vmatpush.bf16.xpose.msra.mxu0 0
        %4472 = vmatpush.bf16.xpose.msra.mxu0 0
        %4473 = vmatpush.bf16.xpose.msra.mxu0 0
        %4474 = vmatpush.bf16.xpose.msra.mxu0 0
        %4475 = vmatpush.bf16.xpose.msra.mxu0 %v3484
        %4476 = vmatmul.bf16.gmra.mxu0 %v1474
        %v4477 = vpop.f32.mrf.mxu0
        %v4478 = vadd.f32 %v4465, %v4477
        %v4479 = vpop.f32.mrf.mxu0
        %4480 = vdwg.mxu0
        %4481 = vmatpush.bf16.xpose.msra.mxu0 0
        %4482 = vmatpush.bf16.xpose.msra.mxu0 0
        %4483 = vmatpush.bf16.xpose.msra.mxu0 0
        %4484 = vmatpush.bf16.xpose.msra.mxu0 0
        %4485 = vmatpush.bf16.xpose.msra.mxu0 0
        %4486 = vmatpush.bf16.xpose.msra.mxu0 0
        %4487 = vmatpush.bf16.xpose.msra.mxu0 0
        %4488 = vmatpush.bf16.xpose.msra.mxu0 %v3485
        %4489 = vmatmul.bf16.gmra.mxu0 %v1475
        %v4490 = vpop.f32.mrf.mxu0
        %v4491 = vadd.f32 %v4478, %v4490
        %v4492 = vpop.f32.mrf.mxu0
        %4493 = vdwg.mxu0
        %4494 = vmatpush.bf16.xpose.msra.mxu0 0
        %4495 = vmatpush.bf16.xpose.msra.mxu0 0
        %4496 = vmatpush.bf16.xpose.msra.mxu0 0
        %4497 = vmatpush.bf16.xpose.msra.mxu0 0
        %4498 = vmatpush.bf16.xpose.msra.mxu0 0
        %4499 = vmatpush.bf16.xpose.msra.mxu0 0
        %4500 = vmatpush.bf16.xpose.msra.mxu0 0
        %4501 = vmatpush.bf16.xpose.msra.mxu0 %v3486
        %4502 = vmatmul.bf16.gmra.mxu0 %v1476
        %v4503 = vpop.f32.mrf.mxu0
        %v4504 = vadd.f32 %v4491, %v4503
        %v4505 = vpop.f32.mrf.mxu0
        %4506 = vdwg.mxu0
        %4507 = vmatpush.bf16.xpose.msra.mxu0 0
        %4508 = vmatpush.bf16.xpose.msra.mxu0 0
        %4509 = vmatpush.bf16.xpose.msra.mxu0 0
        %4510 = vmatpush.bf16.xpose.msra.mxu0 0
        %4511 = vmatpush.bf16.xpose.msra.mxu0 0
        %4512 = vmatpush.bf16.xpose.msra.mxu0 0
        %4513 = vmatpush.bf16.xpose.msra.mxu0 0
        %4514 = vmatpush.bf16.xpose.msra.mxu0 %v3487
        %4515 = vmatmul.bf16.gmra.mxu0 %v1477
        %v4516 = vpop.f32.mrf.mxu0
        %v4517 = vadd.f32 %v4504, %v4516
        %v4518 = vpop.f32.mrf.mxu0
        %4519 = vdwg.mxu0
        %4520 = vmatpush.bf16.xpose.msra.mxu0 0
        %4521 = vmatpush.bf16.xpose.msra.mxu0 0
        %4522 = vmatpush.bf16.xpose.msra.mxu0 0
        %4523 = vmatpush.bf16.xpose.msra.mxu0 0
        %4524 = vmatpush.bf16.xpose.msra.mxu0 0
        %4525 = vmatpush.bf16.xpose.msra.mxu0 0
        %4526 = vmatpush.bf16.xpose.msra.mxu0 0
        %4527 = vmatpush.bf16.xpose.msra.mxu0 %v3488
        %4528 = vmatmul.bf16.gmra.mxu0 %v1478
        %v4529 = vpop.f32.mrf.mxu0
        %v4530 = vadd.f32 %v4517, %v4529
        %v4531 = vpop.f32.mrf.mxu0
        %4532 = vdwg.mxu0
        %4533 = vmatpush.bf16.xpose.msra.mxu0 0
        %4534 = vmatpush.bf16.xpose.msra.mxu0 0
        %4535 = vmatpush.bf16.xpose.msra.mxu0 0
        %4536 = vmatpush.bf16.xpose.msra.mxu0 0
        %4537 = vmatpush.bf16.xpose.msra.mxu0 0
        %4538 = vmatpush.bf16.xpose.msra.mxu0 0
        %4539 = vmatpush.bf16.xpose.msra.mxu0 0
        %4540 = vmatpush.bf16.xpose.msra.mxu0 %v3489
        %4541 = vmatmul.bf16.gmra.mxu0 %v1479
        %v4542 = vpop.f32.mrf.mxu0
        %v4543 = vadd.f32 %v4530, %v4542
        %v4544 = vpop.f32.mrf.mxu0
        %4545 = vdwg.mxu0
        %4546 = vmatpush.bf16.xpose.msra.mxu0 0
        %4547 = vmatpush.bf16.xpose.msra.mxu0 0
        %4548 = vmatpush.bf16.xpose.msra.mxu0 0
        %4549 = vmatpush.bf16.xpose.msra.mxu0 0
        %4550 = vmatpush.bf16.xpose.msra.mxu0 0
        %4551 = vmatpush.bf16.xpose.msra.mxu0 0
        %4552 = vmatpush.bf16.xpose.msra.mxu0 0
        %4553 = vmatpush.bf16.xpose.msra.mxu0 %v3490
        %4554 = vmatmul.bf16.gmra.mxu0 %v1482
        %v4555 = vpop.f32.mrf.mxu0
        %v4556 = vadd.f32 %v4543, %v4555
        %v4557 = vpop.f32.mrf.mxu0
        %4558 = vdwg.mxu0
        %4559 = vmatpush.bf16.xpose.msra.mxu0 0
        %4560 = vmatpush.bf16.xpose.msra.mxu0 0
        %4561 = vmatpush.bf16.xpose.msra.mxu0 0
        %4562 = vmatpush.bf16.xpose.msra.mxu0 0
        %4563 = vmatpush.bf16.xpose.msra.mxu0 0
        %4564 = vmatpush.bf16.xpose.msra.mxu0 0
        %4565 = vmatpush.bf16.xpose.msra.mxu0 0
        %4566 = vmatpush.bf16.xpose.msra.mxu0 %v3491
        %4567 = vmatmul.bf16.gmra.mxu0 %v1483
        %v4568 = vpop.f32.mrf.mxu0
        %v4569 = vadd.f32 %v4556, %v4568
        %v4570 = vpop.f32.mrf.mxu0
        %4571 = vdwg.mxu0
        %4572 = vmatpush.bf16.xpose.msra.mxu0 0
        %4573 = vmatpush.bf16.xpose.msra.mxu0 0
        %4574 = vmatpush.bf16.xpose.msra.mxu0 0
        %4575 = vmatpush.bf16.xpose.msra.mxu0 0
        %4576 = vmatpush.bf16.xpose.msra.mxu0 0
        %4577 = vmatpush.bf16.xpose.msra.mxu0 0
        %4578 = vmatpush.bf16.xpose.msra.mxu0 0
        %4579 = vmatpush.bf16.xpose.msra.mxu0 %v3492
        %4580 = vmatmul.bf16.gmra.mxu0 %v1484
        %v4581 = vpop.f32.mrf.mxu0
        %v4582 = vadd.f32 %v4569, %v4581
        %v4583 = vpop.f32.mrf.mxu0
        %4584 = vdwg.mxu0
        %4585 = vmatpush.bf16.xpose.msra.mxu0 0
        %4586 = vmatpush.bf16.xpose.msra.mxu0 0
        %4587 = vmatpush.bf16.xpose.msra.mxu0 0
        %4588 = vmatpush.bf16.xpose.msra.mxu0 0
        %4589 = vmatpush.bf16.xpose.msra.mxu0 0
        %4590 = vmatpush.bf16.xpose.msra.mxu0 0
        %4591 = vmatpush.bf16.xpose.msra.mxu0 0
        %4592 = vmatpush.bf16.xpose.msra.mxu0 %v3493
        %4593 = vmatmul.bf16.gmra.mxu0 %v1485
        %v4594 = vpop.f32.mrf.mxu0
        %v4595 = vadd.f32 %v4582, %v4594
        %v4596 = vpop.f32.mrf.mxu0
        %4597 = vdwg.mxu0
        %4598 = vmatpush.bf16.xpose.msra.mxu0 0
        %4599 = vmatpush.bf16.xpose.msra.mxu0 0
        %4600 = vmatpush.bf16.xpose.msra.mxu0 0
        %4601 = vmatpush.bf16.xpose.msra.mxu0 0
        %4602 = vmatpush.bf16.xpose.msra.mxu0 0
        %4603 = vmatpush.bf16.xpose.msra.mxu0 0
        %4604 = vmatpush.bf16.xpose.msra.mxu0 0
        %4605 = vmatpush.bf16.xpose.msra.mxu0 %v3494
        %4606 = vmatmul.bf16.gmra.mxu0 %v1486
        %v4607 = vpop.f32.mrf.mxu0
        %v4608 = vadd.f32 %v4595, %v4607
        %v4609 = vpop.f32.mrf.mxu0
        %4610 = vdwg.mxu0
        %4611 = vmatpush.bf16.xpose.msra.mxu0 0
        %4612 = vmatpush.bf16.xpose.msra.mxu0 0
        %4613 = vmatpush.bf16.xpose.msra.mxu0 0
        %4614 = vmatpush.bf16.xpose.msra.mxu0 0
        %4615 = vmatpush.bf16.xpose.msra.mxu0 0
        %4616 = vmatpush.bf16.xpose.msra.mxu0 0
        %4617 = vmatpush.bf16.xpose.msra.mxu0 0
        %4618 = vmatpush.bf16.xpose.msra.mxu0 %v3495
        %4619 = vmatmul.bf16.gmra.mxu0 %v1487
        %v4620 = vpop.f32.mrf.mxu0
        %v4621 = vadd.f32 %v4608, %v4620
        %v4622 = vpop.f32.mrf.mxu0
        %4623 = vdwg.mxu0
        %4624 = vmatpush.bf16.xpose.msra.mxu0 0
        %4625 = vmatpush.bf16.xpose.msra.mxu0 0
        %4626 = vmatpush.bf16.xpose.msra.mxu0 0
        %4627 = vmatpush.bf16.xpose.msra.mxu0 0
        %4628 = vmatpush.bf16.xpose.msra.mxu0 0
        %4629 = vmatpush.bf16.xpose.msra.mxu0 0
        %4630 = vmatpush.bf16.xpose.msra.mxu0 0
        %4631 = vmatpush.bf16.xpose.msra.mxu0 %v3496
        %4632 = vmatmul.bf16.gmra.mxu0 %v1488
        %v4633 = vpop.f32.mrf.mxu0
        %v4634 = vadd.f32 %v4621, %v4633
        %v4635 = vpop.f32.mrf.mxu0
        %4636 = vdwg.mxu0
        %4637 = vmatpush.bf16.xpose.msra.mxu0 0
        %4638 = vmatpush.bf16.xpose.msra.mxu0 0
        %4639 = vmatpush.bf16.xpose.msra.mxu0 0
        %4640 = vmatpush.bf16.xpose.msra.mxu0 0
        %4641 = vmatpush.bf16.xpose.msra.mxu0 0
        %4642 = vmatpush.bf16.xpose.msra.mxu0 0
        %4643 = vmatpush.bf16.xpose.msra.mxu0 0
        %4644 = vmatpush.bf16.xpose.msra.mxu0 %v3497
        %4645 = vmatmul.bf16.gmra.mxu0 %v1489
        %v4646 = vpop.f32.mrf.mxu0
        %v4647 = vadd.f32 %v4634, %v4646
        %v4648 = vpop.f32.mrf.mxu0
        %4649 = vdwg.mxu0
        %4650 = vmatpush.bf16.xpose.msra.mxu0 0
        %4651 = vmatpush.bf16.xpose.msra.mxu0 0
        %4652 = vmatpush.bf16.xpose.msra.mxu0 0
        %4653 = vmatpush.bf16.xpose.msra.mxu0 0
        %4654 = vmatpush.bf16.xpose.msra.mxu0 0
        %4655 = vmatpush.bf16.xpose.msra.mxu0 0
        %4656 = vmatpush.bf16.xpose.msra.mxu0 0
        %4657 = vmatpush.bf16.xpose.msra.mxu0 %v3498
        %4658 = vmatmul.bf16.gmra.mxu0 %v1492
        %v4659 = vpop.f32.mrf.mxu0
        %v4660 = vadd.f32 %v4647, %v4659
        %v4661 = vpop.f32.mrf.mxu0
        %4662 = vdwg.mxu0
        %4663 = vmatpush.bf16.xpose.msra.mxu0 0
        %4664 = vmatpush.bf16.xpose.msra.mxu0 0
        %4665 = vmatpush.bf16.xpose.msra.mxu0 0
        %4666 = vmatpush.bf16.xpose.msra.mxu0 0
        %4667 = vmatpush.bf16.xpose.msra.mxu0 0
        %4668 = vmatpush.bf16.xpose.msra.mxu0 0
        %4669 = vmatpush.bf16.xpose.msra.mxu0 0
        %4670 = vmatpush.bf16.xpose.msra.mxu0 %v3499
        %4671 = vmatmul.bf16.gmra.mxu0 %v1493
        %v4672 = vpop.f32.mrf.mxu0
        %v4673 = vadd.f32 %v4660, %v4672
        %v4674 = vpop.f32.mrf.mxu0
        %4675 = vdwg.mxu0
        %4676 = vmatpush.bf16.xpose.msra.mxu0 0
        %4677 = vmatpush.bf16.xpose.msra.mxu0 0
        %4678 = vmatpush.bf16.xpose.msra.mxu0 0
        %4679 = vmatpush.bf16.xpose.msra.mxu0 0
        %4680 = vmatpush.bf16.xpose.msra.mxu0 0
        %4681 = vmatpush.bf16.xpose.msra.mxu0 0
        %4682 = vmatpush.bf16.xpose.msra.mxu0 0
        %4683 = vmatpush.bf16.xpose.msra.mxu0 %v3500
        %4684 = vmatmul.bf16.gmra.mxu0 %v1494
        %v4685 = vpop.f32.mrf.mxu0
        %v4686 = vadd.f32 %v4673, %v4685
        %v4687 = vpop.f32.mrf.mxu0
        %4688 = vdwg.mxu0
        %4689 = vmatpush.bf16.xpose.msra.mxu0 0
        %4690 = vmatpush.bf16.xpose.msra.mxu0 0
        %4691 = vmatpush.bf16.xpose.msra.mxu0 0
        %4692 = vmatpush.bf16.xpose.msra.mxu0 0
        %4693 = vmatpush.bf16.xpose.msra.mxu0 0
        %4694 = vmatpush.bf16.xpose.msra.mxu0 0
        %4695 = vmatpush.bf16.xpose.msra.mxu0 0
        %4696 = vmatpush.bf16.xpose.msra.mxu0 %v3501
        %4697 = vmatmul.bf16.gmra.mxu0 %v1495
        %v4698 = vpop.f32.mrf.mxu0
        %v4699 = vadd.f32 %v4686, %v4698
        %v4700 = vpop.f32.mrf.mxu0
        %4701 = vdwg.mxu0
        %4702 = vmatpush.bf16.xpose.msra.mxu0 0
        %4703 = vmatpush.bf16.xpose.msra.mxu0 0
        %4704 = vmatpush.bf16.xpose.msra.mxu0 0
        %4705 = vmatpush.bf16.xpose.msra.mxu0 0
        %4706 = vmatpush.bf16.xpose.msra.mxu0 0
        %4707 = vmatpush.bf16.xpose.msra.mxu0 0
        %4708 = vmatpush.bf16.xpose.msra.mxu0 0
        %4709 = vmatpush.bf16.xpose.msra.mxu0 %v3502
        %4710 = vmatmul.bf16.gmra.mxu0 %v1496
        %v4711 = vpop.f32.mrf.mxu0
        %v4712 = vadd.f32 %v4699, %v4711
        %v4713 = vpop.f32.mrf.mxu0
        %4714 = vdwg.mxu0
        %4715 = vmatpush.bf16.xpose.msra.mxu0 0
        %4716 = vmatpush.bf16.xpose.msra.mxu0 0
        %4717 = vmatpush.bf16.xpose.msra.mxu0 0
        %4718 = vmatpush.bf16.xpose.msra.mxu0 0
        %4719 = vmatpush.bf16.xpose.msra.mxu0 0
        %4720 = vmatpush.bf16.xpose.msra.mxu0 0
        %4721 = vmatpush.bf16.xpose.msra.mxu0 0
        %4722 = vmatpush.bf16.xpose.msra.mxu0 %v3503
        %4723 = vmatmul.bf16.gmra.mxu0 %v1497
        %v4724 = vpop.f32.mrf.mxu0
        %v4725 = vadd.f32 %v4712, %v4724
        %v4726 = vpop.f32.mrf.mxu0
        %4727 = vdwg.mxu0
        %4728 = vmatpush.bf16.xpose.msra.mxu0 0
        %4729 = vmatpush.bf16.xpose.msra.mxu0 0
        %4730 = vmatpush.bf16.xpose.msra.mxu0 0
        %4731 = vmatpush.bf16.xpose.msra.mxu0 0
        %4732 = vmatpush.bf16.xpose.msra.mxu0 0
        %4733 = vmatpush.bf16.xpose.msra.mxu0 0
        %4734 = vmatpush.bf16.xpose.msra.mxu0 0
        %4735 = vmatpush.bf16.xpose.msra.mxu0 %v3504
        %4736 = vmatmul.bf16.gmra.mxu0 %v1498
        %v4737 = vpop.f32.mrf.mxu0
        %v4738 = vadd.f32 %v4725, %v4737
        %v4739 = vpop.f32.mrf.mxu0
        %4740 = vdwg.mxu0
        %4741 = vmatpush.bf16.xpose.msra.mxu0 0
        %4742 = vmatpush.bf16.xpose.msra.mxu0 0
        %4743 = vmatpush.bf16.xpose.msra.mxu0 0
        %4744 = vmatpush.bf16.xpose.msra.mxu0 0
        %4745 = vmatpush.bf16.xpose.msra.mxu0 0
        %4746 = vmatpush.bf16.xpose.msra.mxu0 0
        %4747 = vmatpush.bf16.xpose.msra.mxu0 0
        %4748 = vmatpush.bf16.xpose.msra.mxu0 %v3505
        %4749 = vmatmul.bf16.gmra.mxu0 %v1499
        %v4750 = vpop.f32.mrf.mxu0
        %v4751 = vadd.f32 %v4738, %v4750
        %v4752 = vpop.f32.mrf.mxu0
        %4753 = vdwg.mxu0
        %4754 = vmatpush.bf16.xpose.msra.mxu0 0
        %4755 = vmatpush.bf16.xpose.msra.mxu0 0
        %4756 = vmatpush.bf16.xpose.msra.mxu0 0
        %4757 = vmatpush.bf16.xpose.msra.mxu0 0
        %4758 = vmatpush.bf16.xpose.msra.mxu0 0
        %4759 = vmatpush.bf16.xpose.msra.mxu0 0
        %4760 = vmatpush.bf16.xpose.msra.mxu0 0
        %4761 = vmatpush.bf16.xpose.msra.mxu0 %v3506
        %4762 = vmatmul.bf16.gmra.mxu0 %v1502
        %v4763 = vpop.f32.mrf.mxu0
        %v4764 = vadd.f32 %v4751, %v4763
        %v4765 = vpop.f32.mrf.mxu0
        %4766 = vdwg.mxu0
        %4767 = vmatpush.bf16.xpose.msra.mxu0 0
        %4768 = vmatpush.bf16.xpose.msra.mxu0 0
        %4769 = vmatpush.bf16.xpose.msra.mxu0 0
        %4770 = vmatpush.bf16.xpose.msra.mxu0 0
        %4771 = vmatpush.bf16.xpose.msra.mxu0 0
        %4772 = vmatpush.bf16.xpose.msra.mxu0 0
        %4773 = vmatpush.bf16.xpose.msra.mxu0 0
        %4774 = vmatpush.bf16.xpose.msra.mxu0 %v3507
        %4775 = vmatmul.bf16.gmra.mxu0 %v1503
        %v4776 = vpop.f32.mrf.mxu0
        %v4777 = vadd.f32 %v4764, %v4776
        %v4778 = vpop.f32.mrf.mxu0
        %4779 = vdwg.mxu0
        %4780 = vmatpush.bf16.xpose.msra.mxu0 0
        %4781 = vmatpush.bf16.xpose.msra.mxu0 0
        %4782 = vmatpush.bf16.xpose.msra.mxu0 0
        %4783 = vmatpush.bf16.xpose.msra.mxu0 0
        %4784 = vmatpush.bf16.xpose.msra.mxu0 0
        %4785 = vmatpush.bf16.xpose.msra.mxu0 0
        %4786 = vmatpush.bf16.xpose.msra.mxu0 0
        %4787 = vmatpush.bf16.xpose.msra.mxu0 %v3508
        %4788 = vmatmul.bf16.gmra.mxu0 %v1504
        %v4789 = vpop.f32.mrf.mxu0
        %v4790 = vadd.f32 %v4777, %v4789
        %v4791 = vpop.f32.mrf.mxu0
        %4792 = vdwg.mxu0
        %4793 = vmatpush.bf16.xpose.msra.mxu0 0
        %4794 = vmatpush.bf16.xpose.msra.mxu0 0
        %4795 = vmatpush.bf16.xpose.msra.mxu0 0
        %4796 = vmatpush.bf16.xpose.msra.mxu0 0
        %4797 = vmatpush.bf16.xpose.msra.mxu0 0
        %4798 = vmatpush.bf16.xpose.msra.mxu0 0
        %4799 = vmatpush.bf16.xpose.msra.mxu0 0
        %4800 = vmatpush.bf16.xpose.msra.mxu0 %v3509
        %4801 = vmatmul.bf16.gmra.mxu0 %v1505
        %v4802 = vpop.f32.mrf.mxu0
        %v4803 = vadd.f32 %v4790, %v4802
        %v4804 = vpop.f32.mrf.mxu0
        %4805 = vdwg.mxu0
        %4806 = vmatpush.bf16.xpose.msra.mxu0 0
        %4807 = vmatpush.bf16.xpose.msra.mxu0 0
        %4808 = vmatpush.bf16.xpose.msra.mxu0 0
        %4809 = vmatpush.bf16.xpose.msra.mxu0 0
        %4810 = vmatpush.bf16.xpose.msra.mxu0 0
        %4811 = vmatpush.bf16.xpose.msra.mxu0 0
        %4812 = vmatpush.bf16.xpose.msra.mxu0 0
        %4813 = vmatpush.bf16.xpose.msra.mxu0 %v3510
        %4814 = vmatmul.bf16.gmra.mxu0 %v1506
        %v4815 = vpop.f32.mrf.mxu0
        %v4816 = vadd.f32 %v4803, %v4815
        %v4817 = vpop.f32.mrf.mxu0
        %4818 = vdwg.mxu0
        %4819 = vmatpush.bf16.xpose.msra.mxu0 0
        %4820 = vmatpush.bf16.xpose.msra.mxu0 0
        %4821 = vmatpush.bf16.xpose.msra.mxu0 0
        %4822 = vmatpush.bf16.xpose.msra.mxu0 0
        %4823 = vmatpush.bf16.xpose.msra.mxu0 0
        %4824 = vmatpush.bf16.xpose.msra.mxu0 0
        %4825 = vmatpush.bf16.xpose.msra.mxu0 0
        %4826 = vmatpush.bf16.xpose.msra.mxu0 %v3511
        %4827 = vmatmul.bf16.gmra.mxu0 %v1507
        %v4828 = vpop.f32.mrf.mxu0
        %v4829 = vadd.f32 %v4816, %v4828
        %v4830 = vpop.f32.mrf.mxu0
        %4831 = vdwg.mxu0
        %4832 = vmatpush.bf16.xpose.msra.mxu0 0
        %4833 = vmatpush.bf16.xpose.msra.mxu0 0
        %4834 = vmatpush.bf16.xpose.msra.mxu0 0
        %4835 = vmatpush.bf16.xpose.msra.mxu0 0
        %4836 = vmatpush.bf16.xpose.msra.mxu0 0
        %4837 = vmatpush.bf16.xpose.msra.mxu0 0
        %4838 = vmatpush.bf16.xpose.msra.mxu0 0
        %4839 = vmatpush.bf16.xpose.msra.mxu0 %v3512
        %4840 = vmatmul.bf16.gmra.mxu0 %v1508
        %v4841 = vpop.f32.mrf.mxu0
        %v4842 = vadd.f32 %v4829, %v4841
        %v4843 = vpop.f32.mrf.mxu0
        %4844 = vdwg.mxu0
        %4845 = vmatpush.bf16.xpose.msra.mxu0 0
        %4846 = vmatpush.bf16.xpose.msra.mxu0 0
        %4847 = vmatpush.bf16.xpose.msra.mxu0 0
        %4848 = vmatpush.bf16.xpose.msra.mxu0 0
        %4849 = vmatpush.bf16.xpose.msra.mxu0 0
        %4850 = vmatpush.bf16.xpose.msra.mxu0 0
        %4851 = vmatpush.bf16.xpose.msra.mxu0 0
        %4852 = vmatpush.bf16.xpose.msra.mxu0 %v3513
        %4853 = vmatmul.bf16.gmra.mxu0 %v1509
        %v4854 = vpop.f32.mrf.mxu0
        %v4855 = vadd.f32 %v4842, %v4854
        %v4856 = vpop.f32.mrf.mxu0
        %4857 = vdwg.mxu0
        %4858 = vmatpush.bf16.xpose.msra.mxu0 0
        %4859 = vmatpush.bf16.xpose.msra.mxu0 0
        %4860 = vmatpush.bf16.xpose.msra.mxu0 0
        %4861 = vmatpush.bf16.xpose.msra.mxu0 0
        %4862 = vmatpush.bf16.xpose.msra.mxu0 0
        %4863 = vmatpush.bf16.xpose.msra.mxu0 0
        %4864 = vmatpush.bf16.xpose.msra.mxu0 0
        %4865 = vmatpush.bf16.xpose.msra.mxu0 %v3514
        %4866 = vmatmul.bf16.gmra.mxu0 %v1512
        %v4867 = vpop.f32.mrf.mxu0
        %v4868 = vadd.f32 %v4855, %v4867
        %v4869 = vpop.f32.mrf.mxu0
        %4870 = vdwg.mxu0
        %4871 = vmatpush.bf16.xpose.msra.mxu0 0
        %4872 = vmatpush.bf16.xpose.msra.mxu0 0
        %4873 = vmatpush.bf16.xpose.msra.mxu0 0
        %4874 = vmatpush.bf16.xpose.msra.mxu0 0
        %4875 = vmatpush.bf16.xpose.msra.mxu0 0
        %4876 = vmatpush.bf16.xpose.msra.mxu0 0
        %4877 = vmatpush.bf16.xpose.msra.mxu0 0
        %4878 = vmatpush.bf16.xpose.msra.mxu0 %v3515
        %4879 = vmatmul.bf16.gmra.mxu0 %v1513
        %v4880 = vpop.f32.mrf.mxu0
        %v4881 = vadd.f32 %v4868, %v4880
        %v4882 = vpop.f32.mrf.mxu0
        %4883 = vdwg.mxu0
        %4884 = vmatpush.bf16.xpose.msra.mxu0 0
        %4885 = vmatpush.bf16.xpose.msra.mxu0 0
        %4886 = vmatpush.bf16.xpose.msra.mxu0 0
        %4887 = vmatpush.bf16.xpose.msra.mxu0 0
        %4888 = vmatpush.bf16.xpose.msra.mxu0 0
        %4889 = vmatpush.bf16.xpose.msra.mxu0 0
        %4890 = vmatpush.bf16.xpose.msra.mxu0 0
        %4891 = vmatpush.bf16.xpose.msra.mxu0 %v3516
        %4892 = vmatmul.bf16.gmra.mxu0 %v1514
        %v4893 = vpop.f32.mrf.mxu0
        %v4894 = vadd.f32 %v4881, %v4893
        %v4895 = vpop.f32.mrf.mxu0
        %4896 = vdwg.mxu0
        %4897 = vmatpush.bf16.xpose.msra.mxu0 0
        %4898 = vmatpush.bf16.xpose.msra.mxu0 0
        %4899 = vmatpush.bf16.xpose.msra.mxu0 0
        %4900 = vmatpush.bf16.xpose.msra.mxu0 0
        %4901 = vmatpush.bf16.xpose.msra.mxu0 0
        %4902 = vmatpush.bf16.xpose.msra.mxu0 0
        %4903 = vmatpush.bf16.xpose.msra.mxu0 0
        %4904 = vmatpush.bf16.xpose.msra.mxu0 %v3517
        %4905 = vmatmul.bf16.gmra.mxu0 %v1515
        %v4906 = vpop.f32.mrf.mxu0
        %v4907 = vadd.f32 %v4894, %v4906
        %v4908 = vpop.f32.mrf.mxu0
        %4909 = vdwg.mxu0
        %4910 = vmatpush.bf16.xpose.msra.mxu0 0
        %4911 = vmatpush.bf16.xpose.msra.mxu0 0
        %4912 = vmatpush.bf16.xpose.msra.mxu0 0
        %4913 = vmatpush.bf16.xpose.msra.mxu0 0
        %4914 = vmatpush.bf16.xpose.msra.mxu0 0
        %4915 = vmatpush.bf16.xpose.msra.mxu0 0
        %4916 = vmatpush.bf16.xpose.msra.mxu0 0
        %4917 = vmatpush.bf16.xpose.msra.mxu0 %v3518
        %4918 = vmatmul.bf16.gmra.mxu0 %v1516
        %v4919 = vpop.f32.mrf.mxu0
        %v4920 = vadd.f32 %v4907, %v4919
        %v4921 = vpop.f32.mrf.mxu0
        %4922 = vdwg.mxu0
        %4923 = vmatpush.bf16.xpose.msra.mxu0 0
        %4924 = vmatpush.bf16.xpose.msra.mxu0 0
        %4925 = vmatpush.bf16.xpose.msra.mxu0 0
        %4926 = vmatpush.bf16.xpose.msra.mxu0 0
        %4927 = vmatpush.bf16.xpose.msra.mxu0 0
        %4928 = vmatpush.bf16.xpose.msra.mxu0 0
        %4929 = vmatpush.bf16.xpose.msra.mxu0 0
        %4930 = vmatpush.bf16.xpose.msra.mxu0 %v3519
        %4931 = vmatmul.bf16.gmra.mxu0 %v1517
        %v4932 = vpop.f32.mrf.mxu0
        %v4933 = vadd.f32 %v4920, %v4932
        %v4934 = vpop.f32.mrf.mxu0
        %4935 = vdwg.mxu0
        %4936 = vmatpush.bf16.xpose.msra.mxu0 0
        %4937 = vmatpush.bf16.xpose.msra.mxu0 0
        %4938 = vmatpush.bf16.xpose.msra.mxu0 0
        %4939 = vmatpush.bf16.xpose.msra.mxu0 0
        %4940 = vmatpush.bf16.xpose.msra.mxu0 0
        %4941 = vmatpush.bf16.xpose.msra.mxu0 0
        %4942 = vmatpush.bf16.xpose.msra.mxu0 0
        %4943 = vmatpush.bf16.xpose.msra.mxu0 %v3520
        %4944 = vmatmul.bf16.gmra.mxu0 %v1518
        %v4945 = vpop.f32.mrf.mxu0
        %v4946 = vadd.f32 %v4933, %v4945
        %v4947 = vpop.f32.mrf.mxu0
        %4948 = vdwg.mxu0
        %4949 = vmatpush.bf16.xpose.msra.mxu0 0
        %4950 = vmatpush.bf16.xpose.msra.mxu0 0
        %4951 = vmatpush.bf16.xpose.msra.mxu0 0
        %4952 = vmatpush.bf16.xpose.msra.mxu0 0
        %4953 = vmatpush.bf16.xpose.msra.mxu0 0
        %4954 = vmatpush.bf16.xpose.msra.mxu0 0
        %4955 = vmatpush.bf16.xpose.msra.mxu0 0
        %4956 = vmatpush.bf16.xpose.msra.mxu0 %v3521
        %4957 = vmatmul.bf16.gmra.mxu0 %v1519
        %v4958 = vpop.f32.mrf.mxu0
        %v4959 = vadd.f32 %v4946, %v4958
        %v4960 = vpop.f32.mrf.mxu0
        %4961 = vdwg.mxu0
        %4962 = vmatpush.bf16.xpose.msra.mxu0 0
        %4963 = vmatpush.bf16.xpose.msra.mxu0 0
        %4964 = vmatpush.bf16.xpose.msra.mxu0 0
        %4965 = vmatpush.bf16.xpose.msra.mxu0 0
        %4966 = vmatpush.bf16.xpose.msra.mxu0 0
        %4967 = vmatpush.bf16.xpose.msra.mxu0 0
        %4968 = vmatpush.bf16.xpose.msra.mxu0 0
        %4969 = vmatpush.bf16.xpose.msra.mxu0 %v3522
        %4970 = vmatmul.bf16.gmra.mxu0 %v1522
        %v4971 = vpop.f32.mrf.mxu0
        %v4972 = vadd.f32 %v4959, %v4971
        %v4973 = vpop.f32.mrf.mxu0
        %4974 = vdwg.mxu0
        %4975 = vmatpush.bf16.xpose.msra.mxu0 0
        %4976 = vmatpush.bf16.xpose.msra.mxu0 0
        %4977 = vmatpush.bf16.xpose.msra.mxu0 0
        %4978 = vmatpush.bf16.xpose.msra.mxu0 0
        %4979 = vmatpush.bf16.xpose.msra.mxu0 0
        %4980 = vmatpush.bf16.xpose.msra.mxu0 0
        %4981 = vmatpush.bf16.xpose.msra.mxu0 0
        %4982 = vmatpush.bf16.xpose.msra.mxu0 %v3523
        %4983 = vmatmul.bf16.gmra.mxu0 %v1523
        %v4984 = vpop.f32.mrf.mxu0
        %v4985 = vadd.f32 %v4972, %v4984
        %v4986 = vpop.f32.mrf.mxu0
        %4987 = vdwg.mxu0
        %4988 = vmatpush.bf16.xpose.msra.mxu0 0
        %4989 = vmatpush.bf16.xpose.msra.mxu0 0
        %4990 = vmatpush.bf16.xpose.msra.mxu0 0
        %4991 = vmatpush.bf16.xpose.msra.mxu0 0
        %4992 = vmatpush.bf16.xpose.msra.mxu0 0
        %4993 = vmatpush.bf16.xpose.msra.mxu0 0
        %4994 = vmatpush.bf16.xpose.msra.mxu0 0
        %4995 = vmatpush.bf16.xpose.msra.mxu0 %v3524
        %4996 = vmatmul.bf16.gmra.mxu0 %v1524
        %v4997 = vpop.f32.mrf.mxu0
        %v4998 = vadd.f32 %v4985, %v4997
        %v4999 = vpop.f32.mrf.mxu0
        %5000 = vdwg.mxu0
        %5001 = vmatpush.bf16.xpose.msra.mxu0 0
        %5002 = vmatpush.bf16.xpose.msra.mxu0 0
        %5003 = vmatpush.bf16.xpose.msra.mxu0 0
        %5004 = vmatpush.bf16.xpose.msra.mxu0 0
        %5005 = vmatpush.bf16.xpose.msra.mxu0 0
        %5006 = vmatpush.bf16.xpose.msra.mxu0 0
        %5007 = vmatpush.bf16.xpose.msra.mxu0 0
        %5008 = vmatpush.bf16.xpose.msra.mxu0 %v3525
        %5009 = vmatmul.bf16.gmra.mxu0 %v1525
        %v5010 = vpop.f32.mrf.mxu0
        %v5011 = vadd.f32 %v4998, %v5010
        %v5012 = vpop.f32.mrf.mxu0
        %5013 = vdwg.mxu0
        %5014 = vmatpush.bf16.xpose.msra.mxu0 0
        %5015 = vmatpush.bf16.xpose.msra.mxu0 0
        %5016 = vmatpush.bf16.xpose.msra.mxu0 0
        %5017 = vmatpush.bf16.xpose.msra.mxu0 0
        %5018 = vmatpush.bf16.xpose.msra.mxu0 0
        %5019 = vmatpush.bf16.xpose.msra.mxu0 0
        %5020 = vmatpush.bf16.xpose.msra.mxu0 0
        %5021 = vmatpush.bf16.xpose.msra.mxu0 %v3526
        %5022 = vmatmul.bf16.gmra.mxu0 %v1526
        %v5023 = vpop.f32.mrf.mxu0
        %v5024 = vadd.f32 %v5011, %v5023
        %v5025 = vpop.f32.mrf.mxu0
        %5026 = vdwg.mxu0
        %5027 = vmatpush.bf16.xpose.msra.mxu0 0
        %5028 = vmatpush.bf16.xpose.msra.mxu0 0
        %5029 = vmatpush.bf16.xpose.msra.mxu0 0
        %5030 = vmatpush.bf16.xpose.msra.mxu0 0
        %5031 = vmatpush.bf16.xpose.msra.mxu0 0
        %5032 = vmatpush.bf16.xpose.msra.mxu0 0
        %5033 = vmatpush.bf16.xpose.msra.mxu0 0
        %5034 = vmatpush.bf16.xpose.msra.mxu0 %v3527
        %5035 = vmatmul.bf16.gmra.mxu0 %v1527
        %v5036 = vpop.f32.mrf.mxu0
        %v5037 = vadd.f32 %v5024, %v5036
        %v5038 = vpop.f32.mrf.mxu0
        %5039 = vdwg.mxu0
        %5040 = vmatpush.bf16.xpose.msra.mxu0 0
        %5041 = vmatpush.bf16.xpose.msra.mxu0 0
        %5042 = vmatpush.bf16.xpose.msra.mxu0 0
        %5043 = vmatpush.bf16.xpose.msra.mxu0 0
        %5044 = vmatpush.bf16.xpose.msra.mxu0 0
        %5045 = vmatpush.bf16.xpose.msra.mxu0 0
        %5046 = vmatpush.bf16.xpose.msra.mxu0 0
        %5047 = vmatpush.bf16.xpose.msra.mxu0 %v3528
        %5048 = vmatmul.bf16.gmra.mxu0 %v1528
        %v5049 = vpop.f32.mrf.mxu0
        %v5050 = vadd.f32 %v5037, %v5049
        %v5051 = vpop.f32.mrf.mxu0
        %5052 = vdwg.mxu0
        %5053 = vmatpush.bf16.xpose.msra.mxu0 0
        %5054 = vmatpush.bf16.xpose.msra.mxu0 0
        %5055 = vmatpush.bf16.xpose.msra.mxu0 0
        %5056 = vmatpush.bf16.xpose.msra.mxu0 0
        %5057 = vmatpush.bf16.xpose.msra.mxu0 0
        %5058 = vmatpush.bf16.xpose.msra.mxu0 0
        %5059 = vmatpush.bf16.xpose.msra.mxu0 0
        %5060 = vmatpush.bf16.xpose.msra.mxu0 %v3529
        %5061 = vmatmul.bf16.gmra.mxu0 %v1529
        %v5062 = vpop.f32.mrf.mxu0
        %v5063 = vadd.f32 %v5050, %v5062
        %v5064 = vpop.f32.mrf.mxu0
        %5065 = vdwg.mxu0
        %5066 = vmatpush.bf16.xpose.msra.mxu0 0
        %5067 = vmatpush.bf16.xpose.msra.mxu0 0
        %5068 = vmatpush.bf16.xpose.msra.mxu0 0
        %5069 = vmatpush.bf16.xpose.msra.mxu0 0
        %5070 = vmatpush.bf16.xpose.msra.mxu0 0
        %5071 = vmatpush.bf16.xpose.msra.mxu0 0
        %5072 = vmatpush.bf16.xpose.msra.mxu0 0
        %5073 = vmatpush.bf16.xpose.msra.mxu0 %v3530
        %5074 = vmatmul.bf16.gmra.mxu0 %v1532
        %v5075 = vpop.f32.mrf.mxu0
        %v5076 = vadd.f32 %v5063, %v5075
        %v5077 = vpop.f32.mrf.mxu0
        %5078 = vdwg.mxu0
        %5079 = vmatpush.bf16.xpose.msra.mxu0 0
        %5080 = vmatpush.bf16.xpose.msra.mxu0 0
        %5081 = vmatpush.bf16.xpose.msra.mxu0 0
        %5082 = vmatpush.bf16.xpose.msra.mxu0 0
        %5083 = vmatpush.bf16.xpose.msra.mxu0 0
        %5084 = vmatpush.bf16.xpose.msra.mxu0 0
        %5085 = vmatpush.bf16.xpose.msra.mxu0 0
        %5086 = vmatpush.bf16.xpose.msra.mxu0 %v3531
        %5087 = vmatmul.bf16.gmra.mxu0 %v1533
        %v5088 = vpop.f32.mrf.mxu0
        %v5089 = vadd.f32 %v5076, %v5088
        %v5090 = vpop.f32.mrf.mxu0
        %5091 = vdwg.mxu0
        %5092 = vmatpush.bf16.xpose.msra.mxu0 0
        %5093 = vmatpush.bf16.xpose.msra.mxu0 0
        %5094 = vmatpush.bf16.xpose.msra.mxu0 0
        %5095 = vmatpush.bf16.xpose.msra.mxu0 0
        %5096 = vmatpush.bf16.xpose.msra.mxu0 0
        %5097 = vmatpush.bf16.xpose.msra.mxu0 0
        %5098 = vmatpush.bf16.xpose.msra.mxu0 0
        %5099 = vmatpush.bf16.xpose.msra.mxu0 %v3532
        %5100 = vmatmul.bf16.gmra.mxu0 %v1534
        %v5101 = vpop.f32.mrf.mxu0
        %v5102 = vadd.f32 %v5089, %v5101
        %v5103 = vpop.f32.mrf.mxu0
        %5104 = vdwg.mxu0
        %5105 = vmatpush.bf16.xpose.msra.mxu0 0
        %5106 = vmatpush.bf16.xpose.msra.mxu0 0
        %5107 = vmatpush.bf16.xpose.msra.mxu0 0
        %5108 = vmatpush.bf16.xpose.msra.mxu0 0
        %5109 = vmatpush.bf16.xpose.msra.mxu0 0
        %5110 = vmatpush.bf16.xpose.msra.mxu0 0
        %5111 = vmatpush.bf16.xpose.msra.mxu0 0
        %5112 = vmatpush.bf16.xpose.msra.mxu0 %v3533
        %5113 = vmatmul.bf16.gmra.mxu0 %v1535
        %v5114 = vpop.f32.mrf.mxu0
        %v5115 = vadd.f32 %v5102, %v5114
        %v5116 = vpop.f32.mrf.mxu0
        %5117 = vdwg.mxu0
        %5118 = vmatpush.bf16.xpose.msra.mxu0 0
        %5119 = vmatpush.bf16.xpose.msra.mxu0 0
        %5120 = vmatpush.bf16.xpose.msra.mxu0 0
        %5121 = vmatpush.bf16.xpose.msra.mxu0 0
        %5122 = vmatpush.bf16.xpose.msra.mxu0 0
        %5123 = vmatpush.bf16.xpose.msra.mxu0 0
        %5124 = vmatpush.bf16.xpose.msra.mxu0 0
        %5125 = vmatpush.bf16.xpose.msra.mxu0 %v3534
        %5126 = vmatmul.bf16.gmra.mxu0 %v1536
        %v5127 = vpop.f32.mrf.mxu0
        %v5128 = vadd.f32 %v5115, %v5127
        %v5129 = vpop.f32.mrf.mxu0
        %5130 = vdwg.mxu0
        %5131 = vmatpush.bf16.xpose.msra.mxu0 0
        %5132 = vmatpush.bf16.xpose.msra.mxu0 0
        %5133 = vmatpush.bf16.xpose.msra.mxu0 0
        %5134 = vmatpush.bf16.xpose.msra.mxu0 0
        %5135 = vmatpush.bf16.xpose.msra.mxu0 0
        %5136 = vmatpush.bf16.xpose.msra.mxu0 0
        %5137 = vmatpush.bf16.xpose.msra.mxu0 0
        %5138 = vmatpush.bf16.xpose.msra.mxu0 %v3535
        %5139 = vmatmul.bf16.gmra.mxu0 %v1537
        %v5140 = vpop.f32.mrf.mxu0
        %v5141 = vadd.f32 %v5128, %v5140
        %v5142 = vpop.f32.mrf.mxu0
        %5143 = vdwg.mxu0
        %5144 = vmatpush.bf16.xpose.msra.mxu0 0
        %5145 = vmatpush.bf16.xpose.msra.mxu0 0
        %5146 = vmatpush.bf16.xpose.msra.mxu0 0
        %5147 = vmatpush.bf16.xpose.msra.mxu0 0
        %5148 = vmatpush.bf16.xpose.msra.mxu0 0
        %5149 = vmatpush.bf16.xpose.msra.mxu0 0
        %5150 = vmatpush.bf16.xpose.msra.mxu0 0
        %5151 = vmatpush.bf16.xpose.msra.mxu0 %v3536
        %5152 = vmatmul.bf16.gmra.mxu0 %v1538
        %v5153 = vpop.f32.mrf.mxu0
        %v5154 = vadd.f32 %v5141, %v5153
        %v5155 = vpop.f32.mrf.mxu0
        %5156 = vdwg.mxu0
        %5157 = vmatpush.bf16.xpose.msra.mxu0 0
        %5158 = vmatpush.bf16.xpose.msra.mxu0 0
        %5159 = vmatpush.bf16.xpose.msra.mxu0 0
        %5160 = vmatpush.bf16.xpose.msra.mxu0 0
        %5161 = vmatpush.bf16.xpose.msra.mxu0 0
        %5162 = vmatpush.bf16.xpose.msra.mxu0 0
        %5163 = vmatpush.bf16.xpose.msra.mxu0 0
        %5164 = vmatpush.bf16.xpose.msra.mxu0 %v3537
        %5165 = vmatmul.bf16.gmra.mxu0 %v1539
        %v5166 = vpop.f32.mrf.mxu0
        %v5167 = vadd.f32 %v5154, %v5166
        %v5168 = vpop.f32.mrf.mxu0
        %5169 = vdwg.mxu0
        %5170 = vmatpush.bf16.xpose.msra.mxu0 0
        %5171 = vmatpush.bf16.xpose.msra.mxu0 0
        %5172 = vmatpush.bf16.xpose.msra.mxu0 0
        %5173 = vmatpush.bf16.xpose.msra.mxu0 0
        %5174 = vmatpush.bf16.xpose.msra.mxu0 0
        %5175 = vmatpush.bf16.xpose.msra.mxu0 0
        %5176 = vmatpush.bf16.xpose.msra.mxu0 0
        %5177 = vmatpush.bf16.xpose.msra.mxu0 %v3538
        %5178 = vmatmul.bf16.gmra.mxu0 %v1542
        %v5179 = vpop.f32.mrf.mxu0
        %v5180 = vadd.f32 %v5167, %v5179
        %v5181 = vpop.f32.mrf.mxu0
        %5182 = vdwg.mxu0
        %5183 = vmatpush.bf16.xpose.msra.mxu0 0
        %5184 = vmatpush.bf16.xpose.msra.mxu0 0
        %5185 = vmatpush.bf16.xpose.msra.mxu0 0
        %5186 = vmatpush.bf16.xpose.msra.mxu0 0
        %5187 = vmatpush.bf16.xpose.msra.mxu0 0
        %5188 = vmatpush.bf16.xpose.msra.mxu0 0
        %5189 = vmatpush.bf16.xpose.msra.mxu0 0
        %5190 = vmatpush.bf16.xpose.msra.mxu0 %v3539
        %5191 = vmatmul.bf16.gmra.mxu0 %v1543
        %v5192 = vpop.f32.mrf.mxu0
        %v5193 = vadd.f32 %v5180, %v5192
        %v5194 = vpop.f32.mrf.mxu0
        %5195 = vdwg.mxu0
        %5196 = vmatpush.bf16.xpose.msra.mxu0 0
        %5197 = vmatpush.bf16.xpose.msra.mxu0 0
        %5198 = vmatpush.bf16.xpose.msra.mxu0 0
        %5199 = vmatpush.bf16.xpose.msra.mxu0 0
        %5200 = vmatpush.bf16.xpose.msra.mxu0 0
        %5201 = vmatpush.bf16.xpose.msra.mxu0 0
        %5202 = vmatpush.bf16.xpose.msra.mxu0 0
        %5203 = vmatpush.bf16.xpose.msra.mxu0 %v3540
        %5204 = vmatmul.bf16.gmra.mxu0 %v1544
        %v5205 = vpop.f32.mrf.mxu0
        %v5206 = vadd.f32 %v5193, %v5205
        %v5207 = vpop.f32.mrf.mxu0
        %5208 = vdwg.mxu0
        %5209 = vmatpush.bf16.xpose.msra.mxu0 0
        %5210 = vmatpush.bf16.xpose.msra.mxu0 0
        %5211 = vmatpush.bf16.xpose.msra.mxu0 0
        %5212 = vmatpush.bf16.xpose.msra.mxu0 0
        %5213 = vmatpush.bf16.xpose.msra.mxu0 0
        %5214 = vmatpush.bf16.xpose.msra.mxu0 0
        %5215 = vmatpush.bf16.xpose.msra.mxu0 0
        %5216 = vmatpush.bf16.xpose.msra.mxu0 %v3541
        %5217 = vmatmul.bf16.gmra.mxu0 %v1545
        %v5218 = vpop.f32.mrf.mxu0
        %v5219 = vadd.f32 %v5206, %v5218
        %v5220 = vpop.f32.mrf.mxu0
        %5221 = vdwg.mxu0
        %5222 = vmatpush.bf16.xpose.msra.mxu0 0
        %5223 = vmatpush.bf16.xpose.msra.mxu0 0
        %5224 = vmatpush.bf16.xpose.msra.mxu0 0
        %5225 = vmatpush.bf16.xpose.msra.mxu0 0
        %5226 = vmatpush.bf16.xpose.msra.mxu0 0
        %5227 = vmatpush.bf16.xpose.msra.mxu0 0
        %5228 = vmatpush.bf16.xpose.msra.mxu0 0
        %5229 = vmatpush.bf16.xpose.msra.mxu0 %v3542
        %5230 = vmatmul.bf16.gmra.mxu0 %v1546
        %v5231 = vpop.f32.mrf.mxu0
        %v5232 = vadd.f32 %v5219, %v5231
        %v5233 = vpop.f32.mrf.mxu0
        %5234 = vdwg.mxu0
        %5235 = vmatpush.bf16.xpose.msra.mxu0 0
        %5236 = vmatpush.bf16.xpose.msra.mxu0 0
        %5237 = vmatpush.bf16.xpose.msra.mxu0 0
        %5238 = vmatpush.bf16.xpose.msra.mxu0 0
        %5239 = vmatpush.bf16.xpose.msra.mxu0 0
        %5240 = vmatpush.bf16.xpose.msra.mxu0 0
        %5241 = vmatpush.bf16.xpose.msra.mxu0 0
        %5242 = vmatpush.bf16.xpose.msra.mxu0 %v3543
        %5243 = vmatmul.bf16.gmra.mxu0 %v1547
        %v5244 = vpop.f32.mrf.mxu0
        %v5245 = vadd.f32 %v5232, %v5244
        %v5246 = vpop.f32.mrf.mxu0
        %5247 = vdwg.mxu0
        %5248 = vmatpush.bf16.xpose.msra.mxu0 0
        %5249 = vmatpush.bf16.xpose.msra.mxu0 0
        %5250 = vmatpush.bf16.xpose.msra.mxu0 0
        %5251 = vmatpush.bf16.xpose.msra.mxu0 0
        %5252 = vmatpush.bf16.xpose.msra.mxu0 0
        %5253 = vmatpush.bf16.xpose.msra.mxu0 0
        %5254 = vmatpush.bf16.xpose.msra.mxu0 0
        %5255 = vmatpush.bf16.xpose.msra.mxu0 %v3544
        %5256 = vmatmul.bf16.gmra.mxu0 %v1548
        %v5257 = vpop.f32.mrf.mxu0
        %v5258 = vadd.f32 %v5245, %v5257
        %v5259 = vpop.f32.mrf.mxu0
        %5260 = vdwg.mxu0
        %5261 = vmatpush.bf16.xpose.msra.mxu0 0
        %5262 = vmatpush.bf16.xpose.msra.mxu0 0
        %5263 = vmatpush.bf16.xpose.msra.mxu0 0
        %5264 = vmatpush.bf16.xpose.msra.mxu0 0
        %5265 = vmatpush.bf16.xpose.msra.mxu0 0
        %5266 = vmatpush.bf16.xpose.msra.mxu0 0
        %5267 = vmatpush.bf16.xpose.msra.mxu0 0
        %5268 = vmatpush.bf16.xpose.msra.mxu0 %v3545
        %5269 = vmatmul.bf16.gmra.mxu0 %v1549
        %v5270 = vpop.f32.mrf.mxu0
        %v5271 = vadd.f32 %v5258, %v5270
        %v5272 = vpop.f32.mrf.mxu0
        %5273 = vdwg.mxu0
        %5274 = vmatpush.bf16.xpose.msra.mxu0 0
        %5275 = vmatpush.bf16.xpose.msra.mxu0 0
        %5276 = vmatpush.bf16.xpose.msra.mxu0 0
        %5277 = vmatpush.bf16.xpose.msra.mxu0 0
        %5278 = vmatpush.bf16.xpose.msra.mxu0 0
        %5279 = vmatpush.bf16.xpose.msra.mxu0 0
        %5280 = vmatpush.bf16.xpose.msra.mxu0 0
        %5281 = vmatpush.bf16.xpose.msra.mxu0 %v3546
        %5282 = vmatmul.bf16.gmra.mxu0 %v1552
        %v5283 = vpop.f32.mrf.mxu0
        %v5284 = vadd.f32 %v5271, %v5283
        %v5285 = vpop.f32.mrf.mxu0
        %5286 = vdwg.mxu0
        %5287 = vmatpush.bf16.xpose.msra.mxu0 0
        %5288 = vmatpush.bf16.xpose.msra.mxu0 0
        %5289 = vmatpush.bf16.xpose.msra.mxu0 0
        %5290 = vmatpush.bf16.xpose.msra.mxu0 0
        %5291 = vmatpush.bf16.xpose.msra.mxu0 0
        %5292 = vmatpush.bf16.xpose.msra.mxu0 0
        %5293 = vmatpush.bf16.xpose.msra.mxu0 0
        %5294 = vmatpush.bf16.xpose.msra.mxu0 %v3547
        %5295 = vmatmul.bf16.gmra.mxu0 %v1553
        %v5296 = vpop.f32.mrf.mxu0
        %v5297 = vadd.f32 %v5284, %v5296
        %v5298 = vpop.f32.mrf.mxu0
        %5299 = vdwg.mxu0
        %5300 = vmatpush.bf16.xpose.msra.mxu0 0
        %5301 = vmatpush.bf16.xpose.msra.mxu0 0
        %5302 = vmatpush.bf16.xpose.msra.mxu0 0
        %5303 = vmatpush.bf16.xpose.msra.mxu0 0
        %5304 = vmatpush.bf16.xpose.msra.mxu0 0
        %5305 = vmatpush.bf16.xpose.msra.mxu0 0
        %5306 = vmatpush.bf16.xpose.msra.mxu0 0
        %5307 = vmatpush.bf16.xpose.msra.mxu0 %v3548
        %5308 = vmatmul.bf16.gmra.mxu0 %v1554
        %v5309 = vpop.f32.mrf.mxu0
        %v5310 = vadd.f32 %v5297, %v5309
        %v5311 = vpop.f32.mrf.mxu0
        %5312 = vdwg.mxu0
        %5313 = vmatpush.bf16.xpose.msra.mxu0 0
        %5314 = vmatpush.bf16.xpose.msra.mxu0 0
        %5315 = vmatpush.bf16.xpose.msra.mxu0 0
        %5316 = vmatpush.bf16.xpose.msra.mxu0 0
        %5317 = vmatpush.bf16.xpose.msra.mxu0 0
        %5318 = vmatpush.bf16.xpose.msra.mxu0 0
        %5319 = vmatpush.bf16.xpose.msra.mxu0 0
        %5320 = vmatpush.bf16.xpose.msra.mxu0 %v3549
        %5321 = vmatmul.bf16.gmra.mxu0 %v1555
        %v5322 = vpop.f32.mrf.mxu0
        %v5323 = vadd.f32 %v5310, %v5322
        %v5324 = vpop.f32.mrf.mxu0
        %5325 = vdwg.mxu0
        %5326 = vmatpush.bf16.xpose.msra.mxu0 0
        %5327 = vmatpush.bf16.xpose.msra.mxu0 0
        %5328 = vmatpush.bf16.xpose.msra.mxu0 0
        %5329 = vmatpush.bf16.xpose.msra.mxu0 0
        %5330 = vmatpush.bf16.xpose.msra.mxu0 0
        %5331 = vmatpush.bf16.xpose.msra.mxu0 0
        %5332 = vmatpush.bf16.xpose.msra.mxu0 0
        %5333 = vmatpush.bf16.xpose.msra.mxu0 %v3550
        %5334 = vmatmul.bf16.gmra.mxu0 %v1556
        %v5335 = vpop.f32.mrf.mxu0
        %v5336 = vadd.f32 %v5323, %v5335
        %v5337 = vpop.f32.mrf.mxu0
        %5338 = vdwg.mxu0
        %5339 = vmatpush.bf16.xpose.msra.mxu0 0
        %5340 = vmatpush.bf16.xpose.msra.mxu0 0
        %5341 = vmatpush.bf16.xpose.msra.mxu0 0
        %5342 = vmatpush.bf16.xpose.msra.mxu0 0
        %5343 = vmatpush.bf16.xpose.msra.mxu0 0
        %5344 = vmatpush.bf16.xpose.msra.mxu0 0
        %5345 = vmatpush.bf16.xpose.msra.mxu0 0
        %5346 = vmatpush.bf16.xpose.msra.mxu0 %v3551
        %5347 = vmatmul.bf16.gmra.mxu0 %v1557
        %v5348 = vpop.f32.mrf.mxu0
        %v5349 = vadd.f32 %v5336, %v5348
        %v5350 = vpop.f32.mrf.mxu0
        %5351 = vdwg.mxu0
        %5352 = vmatpush.bf16.xpose.msra.mxu0 0
        %5353 = vmatpush.bf16.xpose.msra.mxu0 0
        %5354 = vmatpush.bf16.xpose.msra.mxu0 0
        %5355 = vmatpush.bf16.xpose.msra.mxu0 0
        %5356 = vmatpush.bf16.xpose.msra.mxu0 0
        %5357 = vmatpush.bf16.xpose.msra.mxu0 0
        %5358 = vmatpush.bf16.xpose.msra.mxu0 0
        %5359 = vmatpush.bf16.xpose.msra.mxu0 %v3552
        %5360 = vmatmul.bf16.gmra.mxu0 %v1558
        %v5361 = vpop.f32.mrf.mxu0
        %v5362 = vadd.f32 %v5349, %v5361
        %v5363 = vpop.f32.mrf.mxu0
        %5364 = vdwg.mxu0
        %5365 = vmatpush.bf16.xpose.msra.mxu0 0
        %5366 = vmatpush.bf16.xpose.msra.mxu0 0
        %5367 = vmatpush.bf16.xpose.msra.mxu0 0
        %5368 = vmatpush.bf16.xpose.msra.mxu0 0
        %5369 = vmatpush.bf16.xpose.msra.mxu0 0
        %5370 = vmatpush.bf16.xpose.msra.mxu0 0
        %5371 = vmatpush.bf16.xpose.msra.mxu0 0
        %5372 = vmatpush.bf16.xpose.msra.mxu0 %v3553
        %5373 = vmatmul.bf16.gmra.mxu0 %v1559
        %v5374 = vpop.f32.mrf.mxu0
        %v5375 = vadd.f32 %v5362, %v5374
        %v5376 = vpop.f32.mrf.mxu0
        %5377 = vdwg.mxu0
        %5378 = vmatpush.bf16.xpose.msra.mxu0 0
        %5379 = vmatpush.bf16.xpose.msra.mxu0 0
        %5380 = vmatpush.bf16.xpose.msra.mxu0 0
        %5381 = vmatpush.bf16.xpose.msra.mxu0 0
        %5382 = vmatpush.bf16.xpose.msra.mxu0 0
        %5383 = vmatpush.bf16.xpose.msra.mxu0 0
        %5384 = vmatpush.bf16.xpose.msra.mxu0 0
        %5385 = vmatpush.bf16.xpose.msra.mxu0 %v3554
        %5386 = vmatmul.bf16.gmra.mxu0 %v1562
        %v5387 = vpop.f32.mrf.mxu0
        %v5388 = vadd.f32 %v5375, %v5387
        %v5389 = vpop.f32.mrf.mxu0
        %5390 = vdwg.mxu0
        %5391 = vmatpush.bf16.xpose.msra.mxu0 0
        %5392 = vmatpush.bf16.xpose.msra.mxu0 0
        %5393 = vmatpush.bf16.xpose.msra.mxu0 0
        %5394 = vmatpush.bf16.xpose.msra.mxu0 0
        %5395 = vmatpush.bf16.xpose.msra.mxu0 0
        %5396 = vmatpush.bf16.xpose.msra.mxu0 0
        %5397 = vmatpush.bf16.xpose.msra.mxu0 0
        %5398 = vmatpush.bf16.xpose.msra.mxu0 %v3555
        %5399 = vmatmul.bf16.gmra.mxu0 %v1563
        %v5400 = vpop.f32.mrf.mxu0
        %v5401 = vadd.f32 %v5388, %v5400
        %v5402 = vpop.f32.mrf.mxu0
        %5403 = vdwg.mxu0
        %5404 = vmatpush.bf16.xpose.msra.mxu0 0
        %5405 = vmatpush.bf16.xpose.msra.mxu0 0
        %5406 = vmatpush.bf16.xpose.msra.mxu0 0
        %5407 = vmatpush.bf16.xpose.msra.mxu0 0
        %5408 = vmatpush.bf16.xpose.msra.mxu0 0
        %5409 = vmatpush.bf16.xpose.msra.mxu0 0
        %5410 = vmatpush.bf16.xpose.msra.mxu0 0
        %5411 = vmatpush.bf16.xpose.msra.mxu0 %v3556
        %5412 = vmatmul.bf16.gmra.mxu0 %v1564
        %v5413 = vpop.f32.mrf.mxu0
        %v5414 = vadd.f32 %v5401, %v5413
        %v5415 = vpop.f32.mrf.mxu0
        %5416 = vdwg.mxu0
        %5417 = vmatpush.bf16.xpose.msra.mxu0 0
        %5418 = vmatpush.bf16.xpose.msra.mxu0 0
        %5419 = vmatpush.bf16.xpose.msra.mxu0 0
        %5420 = vmatpush.bf16.xpose.msra.mxu0 0
        %5421 = vmatpush.bf16.xpose.msra.mxu0 0
        %5422 = vmatpush.bf16.xpose.msra.mxu0 0
        %5423 = vmatpush.bf16.xpose.msra.mxu0 0
        %5424 = vmatpush.bf16.xpose.msra.mxu0 %v3557
        %5425 = vmatmul.bf16.gmra.mxu0 %v1565
        %v5426 = vpop.f32.mrf.mxu0
        %v5427 = vadd.f32 %v5414, %v5426
        %v5428 = vpop.f32.mrf.mxu0
        %5429 = vdwg.mxu0
        %5430 = vmatpush.bf16.xpose.msra.mxu0 0
        %5431 = vmatpush.bf16.xpose.msra.mxu0 0
        %5432 = vmatpush.bf16.xpose.msra.mxu0 0
        %5433 = vmatpush.bf16.xpose.msra.mxu0 0
        %5434 = vmatpush.bf16.xpose.msra.mxu0 0
        %5435 = vmatpush.bf16.xpose.msra.mxu0 0
        %5436 = vmatpush.bf16.xpose.msra.mxu0 0
        %5437 = vmatpush.bf16.xpose.msra.mxu0 %v3558
        %5438 = vmatmul.bf16.gmra.mxu0 %v1566
        %v5439 = vpop.f32.mrf.mxu0
        %v5440 = vadd.f32 %v5427, %v5439
        %v5441 = vpop.f32.mrf.mxu0
        %5442 = vdwg.mxu0
        %5443 = vmatpush.bf16.xpose.msra.mxu0 0
        %5444 = vmatpush.bf16.xpose.msra.mxu0 0
        %5445 = vmatpush.bf16.xpose.msra.mxu0 0
        %5446 = vmatpush.bf16.xpose.msra.mxu0 0
        %5447 = vmatpush.bf16.xpose.msra.mxu0 0
        %5448 = vmatpush.bf16.xpose.msra.mxu0 0
        %5449 = vmatpush.bf16.xpose.msra.mxu0 0
        %5450 = vmatpush.bf16.xpose.msra.mxu0 %v3559
        %5451 = vmatmul.bf16.gmra.mxu0 %v1567
        %v5452 = vpop.f32.mrf.mxu0
        %v5453 = vadd.f32 %v5440, %v5452
        %v5454 = vpop.f32.mrf.mxu0
        %5455 = vdwg.mxu0
        %5456 = vmatpush.bf16.xpose.msra.mxu0 0
        %5457 = vmatpush.bf16.xpose.msra.mxu0 0
        %5458 = vmatpush.bf16.xpose.msra.mxu0 0
        %5459 = vmatpush.bf16.xpose.msra.mxu0 0
        %5460 = vmatpush.bf16.xpose.msra.mxu0 0
        %5461 = vmatpush.bf16.xpose.msra.mxu0 0
        %5462 = vmatpush.bf16.xpose.msra.mxu0 0
        %5463 = vmatpush.bf16.xpose.msra.mxu0 %v3560
        %5464 = vmatmul.bf16.gmra.mxu0 %v1568
        %v5465 = vpop.f32.mrf.mxu0
        %v5466 = vadd.f32 %v5453, %v5465
        %v5467 = vpop.f32.mrf.mxu0
        %5468 = vdwg.mxu0
        %5469 = vmatpush.bf16.xpose.msra.mxu0 0
        %5470 = vmatpush.bf16.xpose.msra.mxu0 0
        %5471 = vmatpush.bf16.xpose.msra.mxu0 0
        %5472 = vmatpush.bf16.xpose.msra.mxu0 0
        %5473 = vmatpush.bf16.xpose.msra.mxu0 0
        %5474 = vmatpush.bf16.xpose.msra.mxu0 0
        %5475 = vmatpush.bf16.xpose.msra.mxu0 0
        %5476 = vmatpush.bf16.xpose.msra.mxu0 %v3561
        %5477 = vmatmul.bf16.gmra.mxu0 %v1569
        %v5478 = vpop.f32.mrf.mxu0
        %v5479 = vadd.f32 %v5466, %v5478
        %v5480 = vpop.f32.mrf.mxu0
        %5481 = vdwg.mxu0
        %5482 = vmatpush.bf16.xpose.msra.mxu0 0
        %5483 = vmatpush.bf16.xpose.msra.mxu0 0
        %5484 = vmatpush.bf16.xpose.msra.mxu0 0
        %5485 = vmatpush.bf16.xpose.msra.mxu0 0
        %5486 = vmatpush.bf16.xpose.msra.mxu0 0
        %5487 = vmatpush.bf16.xpose.msra.mxu0 0
        %5488 = vmatpush.bf16.xpose.msra.mxu0 0
        %5489 = vmatpush.bf16.xpose.msra.mxu0 %v3562
        %5490 = vmatmul.bf16.gmra.mxu0 %v1572
        %v5491 = vpop.f32.mrf.mxu0
        %v5492 = vadd.f32 %v5479, %v5491
        %v5493 = vpop.f32.mrf.mxu0
        %5494 = vdwg.mxu0
        %5495 = vmatpush.bf16.xpose.msra.mxu0 0
        %5496 = vmatpush.bf16.xpose.msra.mxu0 0
        %5497 = vmatpush.bf16.xpose.msra.mxu0 0
        %5498 = vmatpush.bf16.xpose.msra.mxu0 0
        %5499 = vmatpush.bf16.xpose.msra.mxu0 0
        %5500 = vmatpush.bf16.xpose.msra.mxu0 0
        %5501 = vmatpush.bf16.xpose.msra.mxu0 0
        %5502 = vmatpush.bf16.xpose.msra.mxu0 %v3563
        %5503 = vmatmul.bf16.gmra.mxu0 %v1573
        %v5504 = vpop.f32.mrf.mxu0
        %v5505 = vadd.f32 %v5492, %v5504
        %v5506 = vpop.f32.mrf.mxu0
        %5507 = vdwg.mxu0
        %5508 = vmatpush.bf16.xpose.msra.mxu0 0
        %5509 = vmatpush.bf16.xpose.msra.mxu0 0
        %5510 = vmatpush.bf16.xpose.msra.mxu0 0
        %5511 = vmatpush.bf16.xpose.msra.mxu0 0
        %5512 = vmatpush.bf16.xpose.msra.mxu0 0
        %5513 = vmatpush.bf16.xpose.msra.mxu0 0
        %5514 = vmatpush.bf16.xpose.msra.mxu0 0
        %5515 = vmatpush.bf16.xpose.msra.mxu0 %v3564
        %5516 = vmatmul.bf16.gmra.mxu0 %v1574
        %v5517 = vpop.f32.mrf.mxu0
        %v5518 = vadd.f32 %v5505, %v5517
        %v5519 = vpop.f32.mrf.mxu0
        %5520 = vdwg.mxu0
        %5521 = vmatpush.bf16.xpose.msra.mxu0 0
        %5522 = vmatpush.bf16.xpose.msra.mxu0 0
        %5523 = vmatpush.bf16.xpose.msra.mxu0 0
        %5524 = vmatpush.bf16.xpose.msra.mxu0 0
        %5525 = vmatpush.bf16.xpose.msra.mxu0 0
        %5526 = vmatpush.bf16.xpose.msra.mxu0 0
        %5527 = vmatpush.bf16.xpose.msra.mxu0 0
        %5528 = vmatpush.bf16.xpose.msra.mxu0 %v3565
        %5529 = vmatmul.bf16.gmra.mxu0 %v1575
        %v5530 = vpop.f32.mrf.mxu0
        %v5531 = vadd.f32 %v5518, %v5530
        %v5532 = vpop.f32.mrf.mxu0
        %5533 = vdwg.mxu0
        %5534 = vmatpush.bf16.xpose.msra.mxu0 0
        %5535 = vmatpush.bf16.xpose.msra.mxu0 0
        %5536 = vmatpush.bf16.xpose.msra.mxu0 0
        %5537 = vmatpush.bf16.xpose.msra.mxu0 0
        %5538 = vmatpush.bf16.xpose.msra.mxu0 0
        %5539 = vmatpush.bf16.xpose.msra.mxu0 0
        %5540 = vmatpush.bf16.xpose.msra.mxu0 0
        %5541 = vmatpush.bf16.xpose.msra.mxu0 %v3566
        %5542 = vmatmul.bf16.gmra.mxu0 %v1576
        %v5543 = vpop.f32.mrf.mxu0
        %v5544 = vadd.f32 %v5531, %v5543
        %v5545 = vpop.f32.mrf.mxu0
        %5546 = vdwg.mxu0
        %5547 = vmatpush.bf16.xpose.msra.mxu0 0
        %5548 = vmatpush.bf16.xpose.msra.mxu0 0
        %5549 = vmatpush.bf16.xpose.msra.mxu0 0
        %5550 = vmatpush.bf16.xpose.msra.mxu0 0
        %5551 = vmatpush.bf16.xpose.msra.mxu0 0
        %5552 = vmatpush.bf16.xpose.msra.mxu0 0
        %5553 = vmatpush.bf16.xpose.msra.mxu0 0
        %5554 = vmatpush.bf16.xpose.msra.mxu0 %v3567
        %5555 = vmatmul.bf16.gmra.mxu0 %v1577
        %v5556 = vpop.f32.mrf.mxu0
        %v5557 = vadd.f32 %v5544, %v5556
        %v5558 = vpop.f32.mrf.mxu0
        %5559 = vdwg.mxu0
        %5560 = vmatpush.bf16.xpose.msra.mxu0 0
        %5561 = vmatpush.bf16.xpose.msra.mxu0 0
        %5562 = vmatpush.bf16.xpose.msra.mxu0 0
        %5563 = vmatpush.bf16.xpose.msra.mxu0 0
        %5564 = vmatpush.bf16.xpose.msra.mxu0 0
        %5565 = vmatpush.bf16.xpose.msra.mxu0 0
        %5566 = vmatpush.bf16.xpose.msra.mxu0 0
        %5567 = vmatpush.bf16.xpose.msra.mxu0 %v3568
        %5568 = vmatmul.bf16.gmra.mxu0 %v1578
        %v5569 = vpop.f32.mrf.mxu0
        %v5570 = vadd.f32 %v5557, %v5569
        %v5571 = vpop.f32.mrf.mxu0
        %5572 = vdwg.mxu0
        %5573 = vmatpush.bf16.xpose.msra.mxu0 0
        %5574 = vmatpush.bf16.xpose.msra.mxu0 0
        %5575 = vmatpush.bf16.xpose.msra.mxu0 0
        %5576 = vmatpush.bf16.xpose.msra.mxu0 0
        %5577 = vmatpush.bf16.xpose.msra.mxu0 0
        %5578 = vmatpush.bf16.xpose.msra.mxu0 0
        %5579 = vmatpush.bf16.xpose.msra.mxu0 0
        %5580 = vmatpush.bf16.xpose.msra.mxu0 %v3569
        %5581 = vmatmul.bf16.gmra.mxu0 %v1579
        %v5582 = vpop.f32.mrf.mxu0
        %v5583 = vadd.f32 %v5570, %v5582
        %v5584 = vpop.f32.mrf.mxu0
        %5585 = vdwg.mxu0
        %5586 = vmatpush.bf16.xpose.msra.mxu0 0
        %5587 = vmatpush.bf16.xpose.msra.mxu0 0
        %5588 = vmatpush.bf16.xpose.msra.mxu0 0
        %5589 = vmatpush.bf16.xpose.msra.mxu0 0
        %5590 = vmatpush.bf16.xpose.msra.mxu0 0
        %5591 = vmatpush.bf16.xpose.msra.mxu0 0
        %5592 = vmatpush.bf16.xpose.msra.mxu0 0
        %5593 = vmatpush.bf16.xpose.msra.mxu0 %v3570
        %5594 = vmatmul.bf16.gmra.mxu0 %v1582
        %v5595 = vpop.f32.mrf.mxu0
        %v5596 = vadd.f32 %v5583, %v5595
        %v5597 = vpop.f32.mrf.mxu0
        %5598 = vdwg.mxu0
        %5599 = vmatpush.bf16.xpose.msra.mxu0 0
        %5600 = vmatpush.bf16.xpose.msra.mxu0 0
        %5601 = vmatpush.bf16.xpose.msra.mxu0 0
        %5602 = vmatpush.bf16.xpose.msra.mxu0 0
        %5603 = vmatpush.bf16.xpose.msra.mxu0 0
        %5604 = vmatpush.bf16.xpose.msra.mxu0 0
        %5605 = vmatpush.bf16.xpose.msra.mxu0 0
        %5606 = vmatpush.bf16.xpose.msra.mxu0 %v3571
        %5607 = vmatmul.bf16.gmra.mxu0 %v1583
        %v5608 = vpop.f32.mrf.mxu0
        %v5609 = vadd.f32 %v5596, %v5608
        %v5610 = vpop.f32.mrf.mxu0
        %5611 = vdwg.mxu0
        %5612 = vmatpush.bf16.xpose.msra.mxu0 0
        %5613 = vmatpush.bf16.xpose.msra.mxu0 0
        %5614 = vmatpush.bf16.xpose.msra.mxu0 0
        %5615 = vmatpush.bf16.xpose.msra.mxu0 0
        %5616 = vmatpush.bf16.xpose.msra.mxu0 0
        %5617 = vmatpush.bf16.xpose.msra.mxu0 0
        %5618 = vmatpush.bf16.xpose.msra.mxu0 0
        %5619 = vmatpush.bf16.xpose.msra.mxu0 %v3572
        %5620 = vmatmul.bf16.gmra.mxu0 %v1584
        %v5621 = vpop.f32.mrf.mxu0
        %v5622 = vadd.f32 %v5609, %v5621
        %v5623 = vpop.f32.mrf.mxu0
        %5624 = vdwg.mxu0
        %5625 = vmatpush.bf16.xpose.msra.mxu0 0
        %5626 = vmatpush.bf16.xpose.msra.mxu0 0
        %5627 = vmatpush.bf16.xpose.msra.mxu0 0
        %5628 = vmatpush.bf16.xpose.msra.mxu0 0
        %5629 = vmatpush.bf16.xpose.msra.mxu0 0
        %5630 = vmatpush.bf16.xpose.msra.mxu0 0
        %5631 = vmatpush.bf16.xpose.msra.mxu0 0
        %5632 = vmatpush.bf16.xpose.msra.mxu0 %v3573
        %5633 = vmatmul.bf16.gmra.mxu0 %v1585
        %v5634 = vpop.f32.mrf.mxu0
        %v5635 = vadd.f32 %v5622, %v5634
        %v5636 = vpop.f32.mrf.mxu0
        %5637 = vdwg.mxu0
        %5638 = vmatpush.bf16.xpose.msra.mxu0 0
        %5639 = vmatpush.bf16.xpose.msra.mxu0 0
        %5640 = vmatpush.bf16.xpose.msra.mxu0 0
        %5641 = vmatpush.bf16.xpose.msra.mxu0 0
        %5642 = vmatpush.bf16.xpose.msra.mxu0 0
        %5643 = vmatpush.bf16.xpose.msra.mxu0 0
        %5644 = vmatpush.bf16.xpose.msra.mxu0 0
        %5645 = vmatpush.bf16.xpose.msra.mxu0 %v3574
        %5646 = vmatmul.bf16.gmra.mxu0 %v1586
        %v5647 = vpop.f32.mrf.mxu0
        %v5648 = vadd.f32 %v5635, %v5647
        %v5649 = vpop.f32.mrf.mxu0
        %5650 = vdwg.mxu0
        %5651 = vmatpush.bf16.xpose.msra.mxu0 0
        %5652 = vmatpush.bf16.xpose.msra.mxu0 0
        %5653 = vmatpush.bf16.xpose.msra.mxu0 0
        %5654 = vmatpush.bf16.xpose.msra.mxu0 0
        %5655 = vmatpush.bf16.xpose.msra.mxu0 0
        %5656 = vmatpush.bf16.xpose.msra.mxu0 0
        %5657 = vmatpush.bf16.xpose.msra.mxu0 0
        %5658 = vmatpush.bf16.xpose.msra.mxu0 %v3575
        %5659 = vmatmul.bf16.gmra.mxu0 %v1587
        %v5660 = vpop.f32.mrf.mxu0
        %v5661 = vadd.f32 %v5648, %v5660
        %v5662 = vpop.f32.mrf.mxu0
        %5663 = vdwg.mxu0
        %5664 = vmatpush.bf16.xpose.msra.mxu0 0
        %5665 = vmatpush.bf16.xpose.msra.mxu0 0
        %5666 = vmatpush.bf16.xpose.msra.mxu0 0
        %5667 = vmatpush.bf16.xpose.msra.mxu0 0
        %5668 = vmatpush.bf16.xpose.msra.mxu0 0
        %5669 = vmatpush.bf16.xpose.msra.mxu0 0
        %5670 = vmatpush.bf16.xpose.msra.mxu0 0
        %5671 = vmatpush.bf16.xpose.msra.mxu0 %v3576
        %5672 = vmatmul.bf16.gmra.mxu0 %v1588
        %v5673 = vpop.f32.mrf.mxu0
        %v5674 = vadd.f32 %v5661, %v5673
        %v5675 = vpop.f32.mrf.mxu0
        %5676 = vdwg.mxu0
        %5677 = vmatpush.bf16.xpose.msra.mxu0 0
        %5678 = vmatpush.bf16.xpose.msra.mxu0 0
        %5679 = vmatpush.bf16.xpose.msra.mxu0 0
        %5680 = vmatpush.bf16.xpose.msra.mxu0 0
        %5681 = vmatpush.bf16.xpose.msra.mxu0 0
        %5682 = vmatpush.bf16.xpose.msra.mxu0 0
        %5683 = vmatpush.bf16.xpose.msra.mxu0 0
        %5684 = vmatpush.bf16.xpose.msra.mxu0 %v3577
        %5685 = vmatmul.bf16.gmra.mxu0 %v1589
        %v5686 = vpop.f32.mrf.mxu0
        %v5687 = vadd.f32 %v5674, %v5686
        %v5688 = vpop.f32.mrf.mxu0
        %5689 = vdwg.mxu0
        %5690 = vmatpush.bf16.xpose.msra.mxu0 0
        %5691 = vmatpush.bf16.xpose.msra.mxu0 0
        %5692 = vmatpush.bf16.xpose.msra.mxu0 0
        %5693 = vmatpush.bf16.xpose.msra.mxu0 0
        %5694 = vmatpush.bf16.xpose.msra.mxu0 0
        %5695 = vmatpush.bf16.xpose.msra.mxu0 0
        %5696 = vmatpush.bf16.xpose.msra.mxu0 0
        %5697 = vmatpush.bf16.xpose.msra.mxu0 %v3578
        %5698 = vmatmul.bf16.gmra.mxu0 %v1592
        %v5699 = vpop.f32.mrf.mxu0
        %v5700 = vadd.f32 %v5687, %v5699
        %v5701 = vpop.f32.mrf.mxu0
        %5702 = vdwg.mxu0
        %5703 = vmatpush.bf16.xpose.msra.mxu0 0
        %5704 = vmatpush.bf16.xpose.msra.mxu0 0
        %5705 = vmatpush.bf16.xpose.msra.mxu0 0
        %5706 = vmatpush.bf16.xpose.msra.mxu0 0
        %5707 = vmatpush.bf16.xpose.msra.mxu0 0
        %5708 = vmatpush.bf16.xpose.msra.mxu0 0
        %5709 = vmatpush.bf16.xpose.msra.mxu0 0
        %5710 = vmatpush.bf16.xpose.msra.mxu0 %v3579
        %5711 = vmatmul.bf16.gmra.mxu0 %v1593
        %v5712 = vpop.f32.mrf.mxu0
        %v5713 = vadd.f32 %v5700, %v5712
        %v5714 = vpop.f32.mrf.mxu0
        %5715 = vdwg.mxu0
        %5716 = vmatpush.bf16.xpose.msra.mxu0 0
        %5717 = vmatpush.bf16.xpose.msra.mxu0 0
        %5718 = vmatpush.bf16.xpose.msra.mxu0 0
        %5719 = vmatpush.bf16.xpose.msra.mxu0 0
        %5720 = vmatpush.bf16.xpose.msra.mxu0 0
        %5721 = vmatpush.bf16.xpose.msra.mxu0 0
        %5722 = vmatpush.bf16.xpose.msra.mxu0 0
        %5723 = vmatpush.bf16.xpose.msra.mxu0 %v3580
        %5724 = vmatmul.bf16.gmra.mxu0 %v1594
        %v5725 = vpop.f32.mrf.mxu0
        %v5726 = vadd.f32 %v5713, %v5725
        %v5727 = vpop.f32.mrf.mxu0
        %5728 = vdwg.mxu0
        %5729 = vmatpush.bf16.xpose.msra.mxu0 0
        %5730 = vmatpush.bf16.xpose.msra.mxu0 0
        %5731 = vmatpush.bf16.xpose.msra.mxu0 0
        %5732 = vmatpush.bf16.xpose.msra.mxu0 0
        %5733 = vmatpush.bf16.xpose.msra.mxu0 0
        %5734 = vmatpush.bf16.xpose.msra.mxu0 0
        %5735 = vmatpush.bf16.xpose.msra.mxu0 0
        %5736 = vmatpush.bf16.xpose.msra.mxu0 %v3581
        %5737 = vmatmul.bf16.gmra.mxu0 %v1595
        %v5738 = vpop.f32.mrf.mxu0
        %v5739 = vadd.f32 %v5726, %v5738
        %v5740 = vpop.f32.mrf.mxu0
        %5741 = vdwg.mxu0
        %5742 = vmatpush.bf16.xpose.msra.mxu0 0
        %5743 = vmatpush.bf16.xpose.msra.mxu0 0
        %5744 = vmatpush.bf16.xpose.msra.mxu0 0
        %5745 = vmatpush.bf16.xpose.msra.mxu0 0
        %5746 = vmatpush.bf16.xpose.msra.mxu0 0
        %5747 = vmatpush.bf16.xpose.msra.mxu0 0
        %5748 = vmatpush.bf16.xpose.msra.mxu0 0
        %5749 = vmatpush.bf16.xpose.msra.mxu0 %v3582
        %5750 = vmatmul.bf16.gmra.mxu0 %v1596
        %v5751 = vpop.f32.mrf.mxu0
        %v5752 = vadd.f32 %v5739, %v5751
        %v5753 = vpop.f32.mrf.mxu0
        %5754 = vdwg.mxu0
        %5755 = vmatpush.bf16.xpose.msra.mxu0 0
        %5756 = vmatpush.bf16.xpose.msra.mxu0 0
        %5757 = vmatpush.bf16.xpose.msra.mxu0 0
        %5758 = vmatpush.bf16.xpose.msra.mxu0 0
        %5759 = vmatpush.bf16.xpose.msra.mxu0 0
        %5760 = vmatpush.bf16.xpose.msra.mxu0 0
        %5761 = vmatpush.bf16.xpose.msra.mxu0 0
        %5762 = vmatpush.bf16.xpose.msra.mxu0 %v3583
        %5763 = vmatmul.bf16.gmra.mxu0 %v1597
        %v5764 = vpop.f32.mrf.mxu0
        %v5765 = vadd.f32 %v5752, %v5764
        %v5766 = vpop.f32.mrf.mxu0
        %5767 = vdwg.mxu0
        %5768 = vmatpush.bf16.xpose.msra.mxu0 0
        %5769 = vmatpush.bf16.xpose.msra.mxu0 0
        %5770 = vmatpush.bf16.xpose.msra.mxu0 0
        %5771 = vmatpush.bf16.xpose.msra.mxu0 0
        %5772 = vmatpush.bf16.xpose.msra.mxu0 0
        %5773 = vmatpush.bf16.xpose.msra.mxu0 0
        %5774 = vmatpush.bf16.xpose.msra.mxu0 0
        %5775 = vmatpush.bf16.xpose.msra.mxu0 %v3584
        %5776 = vmatmul.bf16.gmra.mxu0 %v1598
        %v5777 = vpop.f32.mrf.mxu0
        %v5778 = vadd.f32 %v5765, %v5777
        %v5779 = vpop.f32.mrf.mxu0
        %5780 = vdwg.mxu0
        %5781 = vmatpush.bf16.xpose.msra.mxu0 0
        %5782 = vmatpush.bf16.xpose.msra.mxu0 0
        %5783 = vmatpush.bf16.xpose.msra.mxu0 0
        %5784 = vmatpush.bf16.xpose.msra.mxu0 0
        %5785 = vmatpush.bf16.xpose.msra.mxu0 0
        %5786 = vmatpush.bf16.xpose.msra.mxu0 0
        %5787 = vmatpush.bf16.xpose.msra.mxu0 0
        %5788 = vmatpush.bf16.xpose.msra.mxu0 %v3585
        %5789 = vmatmul.bf16.gmra.mxu0 %v1599
        %v5790 = vpop.f32.mrf.mxu0
        %v5791 = vadd.f32 %v5778, %v5790
        %v5792 = vpop.f32.mrf.mxu0
        %5793 = vdwg.mxu0
        %5794 = vmatpush.bf16.xpose.msra.mxu0 0
        %5795 = vmatpush.bf16.xpose.msra.mxu0 0
        %5796 = vmatpush.bf16.xpose.msra.mxu0 0
        %5797 = vmatpush.bf16.xpose.msra.mxu0 0
        %5798 = vmatpush.bf16.xpose.msra.mxu0 0
        %5799 = vmatpush.bf16.xpose.msra.mxu0 0
        %5800 = vmatpush.bf16.xpose.msra.mxu0 0
        %5801 = vmatpush.bf16.xpose.msra.mxu0 %v3586
        %5802 = vmatmul.bf16.gmra.mxu0 %v1602
        %v5803 = vpop.f32.mrf.mxu0
        %v5804 = vadd.f32 %v5791, %v5803
        %v5805 = vpop.f32.mrf.mxu0
        %5806 = vdwg.mxu0
        %5807 = vmatpush.bf16.xpose.msra.mxu0 0
        %5808 = vmatpush.bf16.xpose.msra.mxu0 0
        %5809 = vmatpush.bf16.xpose.msra.mxu0 0
        %5810 = vmatpush.bf16.xpose.msra.mxu0 0
        %5811 = vmatpush.bf16.xpose.msra.mxu0 0
        %5812 = vmatpush.bf16.xpose.msra.mxu0 0
        %5813 = vmatpush.bf16.xpose.msra.mxu0 0
        %5814 = vmatpush.bf16.xpose.msra.mxu0 %v3587
        %5815 = vmatmul.bf16.gmra.mxu0 %v1603
        %v5816 = vpop.f32.mrf.mxu0
        %v5817 = vadd.f32 %v5804, %v5816
        %v5818 = vpop.f32.mrf.mxu0
        %5819 = vdwg.mxu0
        %5820 = vmatpush.bf16.xpose.msra.mxu0 0
        %5821 = vmatpush.bf16.xpose.msra.mxu0 0
        %5822 = vmatpush.bf16.xpose.msra.mxu0 0
        %5823 = vmatpush.bf16.xpose.msra.mxu0 0
        %5824 = vmatpush.bf16.xpose.msra.mxu0 0
        %5825 = vmatpush.bf16.xpose.msra.mxu0 0
        %5826 = vmatpush.bf16.xpose.msra.mxu0 0
        %5827 = vmatpush.bf16.xpose.msra.mxu0 %v3588
        %5828 = vmatmul.bf16.gmra.mxu0 %v1604
        %v5829 = vpop.f32.mrf.mxu0
        %v5830 = vadd.f32 %v5817, %v5829
        %v5831 = vpop.f32.mrf.mxu0
        %5832 = vdwg.mxu0
        %5833 = vmatpush.bf16.xpose.msra.mxu0 0
        %5834 = vmatpush.bf16.xpose.msra.mxu0 0
        %5835 = vmatpush.bf16.xpose.msra.mxu0 0
        %5836 = vmatpush.bf16.xpose.msra.mxu0 0
        %5837 = vmatpush.bf16.xpose.msra.mxu0 0
        %5838 = vmatpush.bf16.xpose.msra.mxu0 0
        %5839 = vmatpush.bf16.xpose.msra.mxu0 0
        %5840 = vmatpush.bf16.xpose.msra.mxu0 %v3589
        %5841 = vmatmul.bf16.gmra.mxu0 %v1605
        %v5842 = vpop.f32.mrf.mxu0
        %v5843 = vadd.f32 %v5830, %v5842
        %v5844 = vpop.f32.mrf.mxu0
        %5845 = vdwg.mxu0
        %5846 = vmatpush.bf16.xpose.msra.mxu0 0
        %5847 = vmatpush.bf16.xpose.msra.mxu0 0
        %5848 = vmatpush.bf16.xpose.msra.mxu0 0
        %5849 = vmatpush.bf16.xpose.msra.mxu0 0
        %5850 = vmatpush.bf16.xpose.msra.mxu0 0
        %5851 = vmatpush.bf16.xpose.msra.mxu0 0
        %5852 = vmatpush.bf16.xpose.msra.mxu0 0
        %5853 = vmatpush.bf16.xpose.msra.mxu0 %v3590
        %5854 = vmatmul.bf16.gmra.mxu0 %v1606
        %v5855 = vpop.f32.mrf.mxu0
        %v5856 = vadd.f32 %v5843, %v5855
        %v5857 = vpop.f32.mrf.mxu0
        %5858 = vdwg.mxu0
        %5859 = vmatpush.bf16.xpose.msra.mxu0 0
        %5860 = vmatpush.bf16.xpose.msra.mxu0 0
        %5861 = vmatpush.bf16.xpose.msra.mxu0 0
        %5862 = vmatpush.bf16.xpose.msra.mxu0 0
        %5863 = vmatpush.bf16.xpose.msra.mxu0 0
        %5864 = vmatpush.bf16.xpose.msra.mxu0 0
        %5865 = vmatpush.bf16.xpose.msra.mxu0 0
        %5866 = vmatpush.bf16.xpose.msra.mxu0 %v3591
        %5867 = vmatmul.bf16.gmra.mxu0 %v1607
        %v5868 = vpop.f32.mrf.mxu0
        %v5869 = vadd.f32 %v5856, %v5868
        %v5870 = vpop.f32.mrf.mxu0
        %5871 = vdwg.mxu0
        %5872 = vmatpush.bf16.xpose.msra.mxu0 0
        %5873 = vmatpush.bf16.xpose.msra.mxu0 0
        %5874 = vmatpush.bf16.xpose.msra.mxu0 0
        %5875 = vmatpush.bf16.xpose.msra.mxu0 0
        %5876 = vmatpush.bf16.xpose.msra.mxu0 0
        %5877 = vmatpush.bf16.xpose.msra.mxu0 0
        %5878 = vmatpush.bf16.xpose.msra.mxu0 0
        %5879 = vmatpush.bf16.xpose.msra.mxu0 %v3592
        %5880 = vmatmul.bf16.gmra.mxu0 %v1608
        %v5881 = vpop.f32.mrf.mxu0
        %v5882 = vadd.f32 %v5869, %v5881
        %v5883 = vpop.f32.mrf.mxu0
        %5884 = vdwg.mxu0
        %5885 = vmatpush.bf16.xpose.msra.mxu0 0
        %5886 = vmatpush.bf16.xpose.msra.mxu0 0
        %5887 = vmatpush.bf16.xpose.msra.mxu0 0
        %5888 = vmatpush.bf16.xpose.msra.mxu0 0
        %5889 = vmatpush.bf16.xpose.msra.mxu0 0
        %5890 = vmatpush.bf16.xpose.msra.mxu0 0
        %5891 = vmatpush.bf16.xpose.msra.mxu0 0
        %5892 = vmatpush.bf16.xpose.msra.mxu0 %v3593
        %5893 = vmatmul.bf16.gmra.mxu0 %v1609
        %v5894 = vpop.f32.mrf.mxu0
        %v5895 = vadd.f32 %v5882, %v5894
        %v5896 = vpop.f32.mrf.mxu0
        %5897 = vdwg.mxu0
        %5898 = vmatpush.bf16.xpose.msra.mxu0 0
        %5899 = vmatpush.bf16.xpose.msra.mxu0 0
        %5900 = vmatpush.bf16.xpose.msra.mxu0 0
        %5901 = vmatpush.bf16.xpose.msra.mxu0 0
        %5902 = vmatpush.bf16.xpose.msra.mxu0 0
        %5903 = vmatpush.bf16.xpose.msra.mxu0 0
        %5904 = vmatpush.bf16.xpose.msra.mxu0 0
        %5905 = vmatpush.bf16.xpose.msra.mxu0 %v3594
        %5906 = vmatmul.bf16.gmra.mxu0 %v1612
        %v5907 = vpop.f32.mrf.mxu0
        %v5908 = vadd.f32 %v5895, %v5907
        %v5909 = vpop.f32.mrf.mxu0
        %5910 = vdwg.mxu0
        %5911 = vmatpush.bf16.xpose.msra.mxu0 0
        %5912 = vmatpush.bf16.xpose.msra.mxu0 0
        %5913 = vmatpush.bf16.xpose.msra.mxu0 0
        %5914 = vmatpush.bf16.xpose.msra.mxu0 0
        %5915 = vmatpush.bf16.xpose.msra.mxu0 0
        %5916 = vmatpush.bf16.xpose.msra.mxu0 0
        %5917 = vmatpush.bf16.xpose.msra.mxu0 0
        %5918 = vmatpush.bf16.xpose.msra.mxu0 %v3595
        %5919 = vmatmul.bf16.gmra.mxu0 %v1613
        %v5920 = vpop.f32.mrf.mxu0
        %v5921 = vadd.f32 %v5908, %v5920
        %v5922 = vpop.f32.mrf.mxu0
        %5923 = vdwg.mxu0
        %5924 = vmatpush.bf16.xpose.msra.mxu0 0
        %5925 = vmatpush.bf16.xpose.msra.mxu0 0
        %5926 = vmatpush.bf16.xpose.msra.mxu0 0
        %5927 = vmatpush.bf16.xpose.msra.mxu0 0
        %5928 = vmatpush.bf16.xpose.msra.mxu0 0
        %5929 = vmatpush.bf16.xpose.msra.mxu0 0
        %5930 = vmatpush.bf16.xpose.msra.mxu0 0
        %5931 = vmatpush.bf16.xpose.msra.mxu0 %v3596
        %5932 = vmatmul.bf16.gmra.mxu0 %v1614
        %v5933 = vpop.f32.mrf.mxu0
        %v5934 = vadd.f32 %v5921, %v5933
        %v5935 = vpop.f32.mrf.mxu0
        %5936 = vdwg.mxu0
        %5937 = vmatpush.bf16.xpose.msra.mxu0 0
        %5938 = vmatpush.bf16.xpose.msra.mxu0 0
        %5939 = vmatpush.bf16.xpose.msra.mxu0 0
        %5940 = vmatpush.bf16.xpose.msra.mxu0 0
        %5941 = vmatpush.bf16.xpose.msra.mxu0 0
        %5942 = vmatpush.bf16.xpose.msra.mxu0 0
        %5943 = vmatpush.bf16.xpose.msra.mxu0 0
        %5944 = vmatpush.bf16.xpose.msra.mxu0 %v3597
        %5945 = vmatmul.bf16.gmra.mxu0 %v1615
        %v5946 = vpop.f32.mrf.mxu0
        %v5947 = vadd.f32 %v5934, %v5946
        %v5948 = vpop.f32.mrf.mxu0
        %5949 = vdwg.mxu0
        %5950 = vmatpush.bf16.xpose.msra.mxu0 0
        %5951 = vmatpush.bf16.xpose.msra.mxu0 0
        %5952 = vmatpush.bf16.xpose.msra.mxu0 0
        %5953 = vmatpush.bf16.xpose.msra.mxu0 0
        %5954 = vmatpush.bf16.xpose.msra.mxu0 0
        %5955 = vmatpush.bf16.xpose.msra.mxu0 0
        %5956 = vmatpush.bf16.xpose.msra.mxu0 0
        %5957 = vmatpush.bf16.xpose.msra.mxu0 %v3598
        %5958 = vmatmul.bf16.gmra.mxu0 %v1616
        %v5959 = vpop.f32.mrf.mxu0
        %v5960 = vadd.f32 %v5947, %v5959
        %v5961 = vpop.f32.mrf.mxu0
        %5962 = vdwg.mxu0
        %5963 = vmatpush.bf16.xpose.msra.mxu0 0
        %5964 = vmatpush.bf16.xpose.msra.mxu0 0
        %5965 = vmatpush.bf16.xpose.msra.mxu0 0
        %5966 = vmatpush.bf16.xpose.msra.mxu0 0
        %5967 = vmatpush.bf16.xpose.msra.mxu0 0
        %5968 = vmatpush.bf16.xpose.msra.mxu0 0
        %5969 = vmatpush.bf16.xpose.msra.mxu0 0
        %5970 = vmatpush.bf16.xpose.msra.mxu0 %v3599
        %5971 = vmatmul.bf16.gmra.mxu0 %v1617
        %v5972 = vpop.f32.mrf.mxu0
        %v5973 = vadd.f32 %v5960, %v5972
        %v5974 = vpop.f32.mrf.mxu0
        %5975 = vdwg.mxu0
        %5976 = vmatpush.bf16.xpose.msra.mxu0 0
        %5977 = vmatpush.bf16.xpose.msra.mxu0 0
        %5978 = vmatpush.bf16.xpose.msra.mxu0 0
        %5979 = vmatpush.bf16.xpose.msra.mxu0 0
        %5980 = vmatpush.bf16.xpose.msra.mxu0 0
        %5981 = vmatpush.bf16.xpose.msra.mxu0 0
        %5982 = vmatpush.bf16.xpose.msra.mxu0 0
        %5983 = vmatpush.bf16.xpose.msra.mxu0 %v3600
        %5984 = vmatmul.bf16.gmra.mxu0 %v1618
        %v5985 = vpop.f32.mrf.mxu0
        %v5986 = vadd.f32 %v5973, %v5985
        %v5987 = vpop.f32.mrf.mxu0
        %5988 = vdwg.mxu0
        %5989 = vmatpush.bf16.xpose.msra.mxu0 0
        %5990 = vmatpush.bf16.xpose.msra.mxu0 0
        %5991 = vmatpush.bf16.xpose.msra.mxu0 0
        %5992 = vmatpush.bf16.xpose.msra.mxu0 0
        %5993 = vmatpush.bf16.xpose.msra.mxu0 0
        %5994 = vmatpush.bf16.xpose.msra.mxu0 0
        %5995 = vmatpush.bf16.xpose.msra.mxu0 0
        %5996 = vmatpush.bf16.xpose.msra.mxu0 %v3601
        %5997 = vmatmul.bf16.gmra.mxu0 %v1619
        %v5998 = vpop.f32.mrf.mxu0
        %v5999 = vadd.f32 %v5986, %v5998
        %v6000 = vpop.f32.mrf.mxu0
        %6001 = vdwg.mxu0
        %6002 = vmatpush.bf16.xpose.msra.mxu0 0
        %6003 = vmatpush.bf16.xpose.msra.mxu0 0
        %6004 = vmatpush.bf16.xpose.msra.mxu0 0
        %6005 = vmatpush.bf16.xpose.msra.mxu0 0
        %6006 = vmatpush.bf16.xpose.msra.mxu0 0
        %6007 = vmatpush.bf16.xpose.msra.mxu0 0
        %6008 = vmatpush.bf16.xpose.msra.mxu0 0
        %6009 = vmatpush.bf16.xpose.msra.mxu0 %v3602
        %6010 = vmatmul.bf16.gmra.mxu0 %v1622
        %v6011 = vpop.f32.mrf.mxu0
        %v6012 = vadd.f32 %v5999, %v6011
        %v6013 = vpop.f32.mrf.mxu0
        %6014 = vdwg.mxu0
        %6015 = vmatpush.bf16.xpose.msra.mxu0 0
        %6016 = vmatpush.bf16.xpose.msra.mxu0 0
        %6017 = vmatpush.bf16.xpose.msra.mxu0 0
        %6018 = vmatpush.bf16.xpose.msra.mxu0 0
        %6019 = vmatpush.bf16.xpose.msra.mxu0 0
        %6020 = vmatpush.bf16.xpose.msra.mxu0 0
        %6021 = vmatpush.bf16.xpose.msra.mxu0 0
        %6022 = vmatpush.bf16.xpose.msra.mxu0 %v3603
        %6023 = vmatmul.bf16.gmra.mxu0 %v1623
        %v6024 = vpop.f32.mrf.mxu0
        %v6025 = vadd.f32 %v6012, %v6024
        %v6026 = vpop.f32.mrf.mxu0
        %6027 = vdwg.mxu0
        %6028 = vmatpush.bf16.xpose.msra.mxu0 0
        %6029 = vmatpush.bf16.xpose.msra.mxu0 0
        %6030 = vmatpush.bf16.xpose.msra.mxu0 0
        %6031 = vmatpush.bf16.xpose.msra.mxu0 0
        %6032 = vmatpush.bf16.xpose.msra.mxu0 0
        %6033 = vmatpush.bf16.xpose.msra.mxu0 0
        %6034 = vmatpush.bf16.xpose.msra.mxu0 0
        %6035 = vmatpush.bf16.xpose.msra.mxu0 %v3604
        %6036 = vmatmul.bf16.gmra.mxu0 %v1624
        %v6037 = vpop.f32.mrf.mxu0
        %v6038 = vadd.f32 %v6025, %v6037
        %v6039 = vpop.f32.mrf.mxu0
        %6040 = vdwg.mxu0
        %6041 = vmatpush.bf16.xpose.msra.mxu0 0
        %6042 = vmatpush.bf16.xpose.msra.mxu0 0
        %6043 = vmatpush.bf16.xpose.msra.mxu0 0
        %6044 = vmatpush.bf16.xpose.msra.mxu0 0
        %6045 = vmatpush.bf16.xpose.msra.mxu0 0
        %6046 = vmatpush.bf16.xpose.msra.mxu0 0
        %6047 = vmatpush.bf16.xpose.msra.mxu0 0
        %6048 = vmatpush.bf16.xpose.msra.mxu0 %v3605
        %6049 = vmatmul.bf16.gmra.mxu0 %v1625
        %v6050 = vpop.f32.mrf.mxu0
        %v6051 = vadd.f32 %v6038, %v6050
        %v6052 = vpop.f32.mrf.mxu0
        %6053 = vdwg.mxu0
        %6054 = vmatpush.bf16.xpose.msra.mxu0 0
        %6055 = vmatpush.bf16.xpose.msra.mxu0 0
        %6056 = vmatpush.bf16.xpose.msra.mxu0 0
        %6057 = vmatpush.bf16.xpose.msra.mxu0 0
        %6058 = vmatpush.bf16.xpose.msra.mxu0 0
        %6059 = vmatpush.bf16.xpose.msra.mxu0 0
        %6060 = vmatpush.bf16.xpose.msra.mxu0 0
        %6061 = vmatpush.bf16.xpose.msra.mxu0 %v3606
        %6062 = vmatmul.bf16.gmra.mxu0 %v1626
        %v6063 = vpop.f32.mrf.mxu0
        %v6064 = vadd.f32 %v6051, %v6063
        %v6065 = vpop.f32.mrf.mxu0
        %6066 = vdwg.mxu0
        %6067 = vmatpush.bf16.xpose.msra.mxu0 0
        %6068 = vmatpush.bf16.xpose.msra.mxu0 0
        %6069 = vmatpush.bf16.xpose.msra.mxu0 0
        %6070 = vmatpush.bf16.xpose.msra.mxu0 0
        %6071 = vmatpush.bf16.xpose.msra.mxu0 0
        %6072 = vmatpush.bf16.xpose.msra.mxu0 0
        %6073 = vmatpush.bf16.xpose.msra.mxu0 0
        %6074 = vmatpush.bf16.xpose.msra.mxu0 %v3607
        %6075 = vmatmul.bf16.gmra.mxu0 %v1627
        %v6076 = vpop.f32.mrf.mxu0
        %v6077 = vadd.f32 %v6064, %v6076
        %v6078 = vpop.f32.mrf.mxu0
        %6079 = vdwg.mxu0
        %6080 = vmatpush.bf16.xpose.msra.mxu0 0
        %6081 = vmatpush.bf16.xpose.msra.mxu0 0
        %6082 = vmatpush.bf16.xpose.msra.mxu0 0
        %6083 = vmatpush.bf16.xpose.msra.mxu0 0
        %6084 = vmatpush.bf16.xpose.msra.mxu0 0
        %6085 = vmatpush.bf16.xpose.msra.mxu0 0
        %6086 = vmatpush.bf16.xpose.msra.mxu0 0
        %6087 = vmatpush.bf16.xpose.msra.mxu0 %v3608
        %6088 = vmatmul.bf16.gmra.mxu0 %v1628
        %v6089 = vpop.f32.mrf.mxu0
        %v6090 = vadd.f32 %v6077, %v6089
        %v6091 = vpop.f32.mrf.mxu0
        %6092 = vdwg.mxu0
        %6093 = vmatpush.bf16.xpose.msra.mxu0 0
        %6094 = vmatpush.bf16.xpose.msra.mxu0 0
        %6095 = vmatpush.bf16.xpose.msra.mxu0 0
        %6096 = vmatpush.bf16.xpose.msra.mxu0 0
        %6097 = vmatpush.bf16.xpose.msra.mxu0 0
        %6098 = vmatpush.bf16.xpose.msra.mxu0 0
        %6099 = vmatpush.bf16.xpose.msra.mxu0 0
        %6100 = vmatpush.bf16.xpose.msra.mxu0 %v3609
        %6101 = vmatmul.bf16.gmra.mxu0 %v1629
        %v6102 = vpop.f32.mrf.mxu0
        %v6103 = vadd.f32 %v6090, %v6102
        %v6104 = vpop.f32.mrf.mxu0
        %6105 = vdwg.mxu0
        %6106 = vmatpush.bf16.xpose.msra.mxu0 0
        %6107 = vmatpush.bf16.xpose.msra.mxu0 0
        %6108 = vmatpush.bf16.xpose.msra.mxu0 0
        %6109 = vmatpush.bf16.xpose.msra.mxu0 0
        %6110 = vmatpush.bf16.xpose.msra.mxu0 0
        %6111 = vmatpush.bf16.xpose.msra.mxu0 0
        %6112 = vmatpush.bf16.xpose.msra.mxu0 0
        %6113 = vmatpush.bf16.xpose.msra.mxu0 %v3610
        %6114 = vmatmul.bf16.gmra.mxu0 %v1632
        %v6115 = vpop.f32.mrf.mxu0
        %v6116 = vadd.f32 %v6103, %v6115
        %v6117 = vpop.f32.mrf.mxu0
        %6118 = vdwg.mxu0
        %6119 = vmatpush.bf16.xpose.msra.mxu0 0
        %6120 = vmatpush.bf16.xpose.msra.mxu0 0
        %6121 = vmatpush.bf16.xpose.msra.mxu0 0
        %6122 = vmatpush.bf16.xpose.msra.mxu0 0
        %6123 = vmatpush.bf16.xpose.msra.mxu0 0
        %6124 = vmatpush.bf16.xpose.msra.mxu0 0
        %6125 = vmatpush.bf16.xpose.msra.mxu0 0
        %6126 = vmatpush.bf16.xpose.msra.mxu0 %v3611
        %6127 = vmatmul.bf16.gmra.mxu0 %v1633
        %v6128 = vpop.f32.mrf.mxu0
        %v6129 = vadd.f32 %v6116, %v6128
        %v6130 = vpop.f32.mrf.mxu0
        %6131 = vdwg.mxu0
        %6132 = vmatpush.bf16.xpose.msra.mxu0 0
        %6133 = vmatpush.bf16.xpose.msra.mxu0 0
        %6134 = vmatpush.bf16.xpose.msra.mxu0 0
        %6135 = vmatpush.bf16.xpose.msra.mxu0 0
        %6136 = vmatpush.bf16.xpose.msra.mxu0 0
        %6137 = vmatpush.bf16.xpose.msra.mxu0 0
        %6138 = vmatpush.bf16.xpose.msra.mxu0 0
        %6139 = vmatpush.bf16.xpose.msra.mxu0 %v3612
        %6140 = vmatmul.bf16.gmra.mxu0 %v1634
        %v6141 = vpop.f32.mrf.mxu0
        %v6142 = vadd.f32 %v6129, %v6141
        %v6143 = vpop.f32.mrf.mxu0
        %6144 = vdwg.mxu0
        %6145 = vmatpush.bf16.xpose.msra.mxu0 0
        %6146 = vmatpush.bf16.xpose.msra.mxu0 0
        %6147 = vmatpush.bf16.xpose.msra.mxu0 0
        %6148 = vmatpush.bf16.xpose.msra.mxu0 0
        %6149 = vmatpush.bf16.xpose.msra.mxu0 0
        %6150 = vmatpush.bf16.xpose.msra.mxu0 0
        %6151 = vmatpush.bf16.xpose.msra.mxu0 0
        %6152 = vmatpush.bf16.xpose.msra.mxu0 %v3613
        %6153 = vmatmul.bf16.gmra.mxu0 %v1635
        %v6154 = vpop.f32.mrf.mxu0
        %v6155 = vadd.f32 %v6142, %v6154
        %v6156 = vpop.f32.mrf.mxu0
        %6157 = vdwg.mxu0
        %6158 = vmatpush.bf16.xpose.msra.mxu0 0
        %6159 = vmatpush.bf16.xpose.msra.mxu0 0
        %6160 = vmatpush.bf16.xpose.msra.mxu0 0
        %6161 = vmatpush.bf16.xpose.msra.mxu0 0
        %6162 = vmatpush.bf16.xpose.msra.mxu0 0
        %6163 = vmatpush.bf16.xpose.msra.mxu0 0
        %6164 = vmatpush.bf16.xpose.msra.mxu0 0
        %6165 = vmatpush.bf16.xpose.msra.mxu0 %v3614
        %6166 = vmatmul.bf16.gmra.mxu0 %v1636
        %v6167 = vpop.f32.mrf.mxu0
        %v6168 = vadd.f32 %v6155, %v6167
        %v6169 = vpop.f32.mrf.mxu0
        %6170 = vdwg.mxu0
        %6171 = vmatpush.bf16.xpose.msra.mxu0 0
        %6172 = vmatpush.bf16.xpose.msra.mxu0 0
        %6173 = vmatpush.bf16.xpose.msra.mxu0 0
        %6174 = vmatpush.bf16.xpose.msra.mxu0 0
        %6175 = vmatpush.bf16.xpose.msra.mxu0 0
        %6176 = vmatpush.bf16.xpose.msra.mxu0 0
        %6177 = vmatpush.bf16.xpose.msra.mxu0 0
        %6178 = vmatpush.bf16.xpose.msra.mxu0 %v3615
        %6179 = vmatmul.bf16.gmra.mxu0 %v1637
        %v6180 = vpop.f32.mrf.mxu0
        %v6181 = vadd.f32 %v6168, %v6180
        %v6182 = vpop.f32.mrf.mxu0
        %6183 = vdwg.mxu0
        %6184 = vmatpush.bf16.xpose.msra.mxu0 0
        %6185 = vmatpush.bf16.xpose.msra.mxu0 0
        %6186 = vmatpush.bf16.xpose.msra.mxu0 0
        %6187 = vmatpush.bf16.xpose.msra.mxu0 0
        %6188 = vmatpush.bf16.xpose.msra.mxu0 0
        %6189 = vmatpush.bf16.xpose.msra.mxu0 0
        %6190 = vmatpush.bf16.xpose.msra.mxu0 0
        %6191 = vmatpush.bf16.xpose.msra.mxu0 %v3616
        %6192 = vmatmul.bf16.gmra.mxu0 %v1638
        %v6193 = vpop.f32.mrf.mxu0
        %v6194 = vadd.f32 %v6181, %v6193
        %v6195 = vpop.f32.mrf.mxu0
        %6196 = vdwg.mxu0
        %6197 = vmatpush.bf16.xpose.msra.mxu0 0
        %6198 = vmatpush.bf16.xpose.msra.mxu0 0
        %6199 = vmatpush.bf16.xpose.msra.mxu0 0
        %6200 = vmatpush.bf16.xpose.msra.mxu0 0
        %6201 = vmatpush.bf16.xpose.msra.mxu0 0
        %6202 = vmatpush.bf16.xpose.msra.mxu0 0
        %6203 = vmatpush.bf16.xpose.msra.mxu0 0
        %6204 = vmatpush.bf16.xpose.msra.mxu0 %v3617
        %6205 = vmatmul.bf16.gmra.mxu0 %v1639
        %v6206 = vpop.f32.mrf.mxu0
        %v6207 = vadd.f32 %v6194, %v6206
        %v6208 = vpop.f32.mrf.mxu0
        %6209 = vdwg.mxu0
        %6210 = vmatpush.bf16.xpose.msra.mxu0 0
        %6211 = vmatpush.bf16.xpose.msra.mxu0 0
        %6212 = vmatpush.bf16.xpose.msra.mxu0 0
        %6213 = vmatpush.bf16.xpose.msra.mxu0 0
        %6214 = vmatpush.bf16.xpose.msra.mxu0 0
        %6215 = vmatpush.bf16.xpose.msra.mxu0 0
        %6216 = vmatpush.bf16.xpose.msra.mxu0 0
        %6217 = vmatpush.bf16.xpose.msra.mxu0 %v3618
        %6218 = vmatmul.bf16.gmra.mxu0 %v1642
        %v6219 = vpop.f32.mrf.mxu0
        %v6220 = vadd.f32 %v6207, %v6219
        %v6221 = vpop.f32.mrf.mxu0
        %6222 = vdwg.mxu0
        %6223 = vmatpush.bf16.xpose.msra.mxu0 0
        %6224 = vmatpush.bf16.xpose.msra.mxu0 0
        %6225 = vmatpush.bf16.xpose.msra.mxu0 0
        %6226 = vmatpush.bf16.xpose.msra.mxu0 0
        %6227 = vmatpush.bf16.xpose.msra.mxu0 0
        %6228 = vmatpush.bf16.xpose.msra.mxu0 0
        %6229 = vmatpush.bf16.xpose.msra.mxu0 0
        %6230 = vmatpush.bf16.xpose.msra.mxu0 %v3619
        %6231 = vmatmul.bf16.gmra.mxu0 %v1643
        %v6232 = vpop.f32.mrf.mxu0
        %v6233 = vadd.f32 %v6220, %v6232
        %v6234 = vpop.f32.mrf.mxu0
        %6235 = vdwg.mxu0
        %6236 = vmatpush.bf16.xpose.msra.mxu0 0
        %6237 = vmatpush.bf16.xpose.msra.mxu0 0
        %6238 = vmatpush.bf16.xpose.msra.mxu0 0
        %6239 = vmatpush.bf16.xpose.msra.mxu0 0
        %6240 = vmatpush.bf16.xpose.msra.mxu0 0
        %6241 = vmatpush.bf16.xpose.msra.mxu0 0
        %6242 = vmatpush.bf16.xpose.msra.mxu0 0
        %6243 = vmatpush.bf16.xpose.msra.mxu0 %v3620
        %6244 = vmatmul.bf16.gmra.mxu0 %v1644
        %v6245 = vpop.f32.mrf.mxu0
        %v6246 = vadd.f32 %v6233, %v6245
        %v6247 = vpop.f32.mrf.mxu0
        %6248 = vdwg.mxu0
        %6249 = vmatpush.bf16.xpose.msra.mxu0 0
        %6250 = vmatpush.bf16.xpose.msra.mxu0 0
        %6251 = vmatpush.bf16.xpose.msra.mxu0 0
        %6252 = vmatpush.bf16.xpose.msra.mxu0 0
        %6253 = vmatpush.bf16.xpose.msra.mxu0 0
        %6254 = vmatpush.bf16.xpose.msra.mxu0 0
        %6255 = vmatpush.bf16.xpose.msra.mxu0 0
        %6256 = vmatpush.bf16.xpose.msra.mxu0 %v3621
        %6257 = vmatmul.bf16.gmra.mxu0 %v1645
        %v6258 = vpop.f32.mrf.mxu0
        %v6259 = vadd.f32 %v6246, %v6258
        %v6260 = vpop.f32.mrf.mxu0
        %6261 = vdwg.mxu0
        %6262 = vmatpush.bf16.xpose.msra.mxu0 0
        %6263 = vmatpush.bf16.xpose.msra.mxu0 0
        %6264 = vmatpush.bf16.xpose.msra.mxu0 0
        %6265 = vmatpush.bf16.xpose.msra.mxu0 0
        %6266 = vmatpush.bf16.xpose.msra.mxu0 0
        %6267 = vmatpush.bf16.xpose.msra.mxu0 0
        %6268 = vmatpush.bf16.xpose.msra.mxu0 0
        %6269 = vmatpush.bf16.xpose.msra.mxu0 %v3622
        %6270 = vmatmul.bf16.gmra.mxu0 %v1646
        %v6271 = vpop.f32.mrf.mxu0
        %v6272 = vadd.f32 %v6259, %v6271
        %v6273 = vpop.f32.mrf.mxu0
        %6274 = vdwg.mxu0
        %6275 = vmatpush.bf16.xpose.msra.mxu0 0
        %6276 = vmatpush.bf16.xpose.msra.mxu0 0
        %6277 = vmatpush.bf16.xpose.msra.mxu0 0
        %6278 = vmatpush.bf16.xpose.msra.mxu0 0
        %6279 = vmatpush.bf16.xpose.msra.mxu0 0
        %6280 = vmatpush.bf16.xpose.msra.mxu0 0
        %6281 = vmatpush.bf16.xpose.msra.mxu0 0
        %6282 = vmatpush.bf16.xpose.msra.mxu0 %v3623
        %6283 = vmatmul.bf16.gmra.mxu0 %v1647
        %v6284 = vpop.f32.mrf.mxu0
        %v6285 = vadd.f32 %v6272, %v6284
        %v6286 = vpop.f32.mrf.mxu0
        %6287 = vdwg.mxu0
        %6288 = vmatpush.bf16.xpose.msra.mxu0 0
        %6289 = vmatpush.bf16.xpose.msra.mxu0 0
        %6290 = vmatpush.bf16.xpose.msra.mxu0 0
        %6291 = vmatpush.bf16.xpose.msra.mxu0 0
        %6292 = vmatpush.bf16.xpose.msra.mxu0 0
        %6293 = vmatpush.bf16.xpose.msra.mxu0 0
        %6294 = vmatpush.bf16.xpose.msra.mxu0 0
        %6295 = vmatpush.bf16.xpose.msra.mxu0 %v3624
        %6296 = vmatmul.bf16.gmra.mxu0 %v1648
        %v6297 = vpop.f32.mrf.mxu0
        %v6298 = vadd.f32 %v6285, %v6297
        %v6299 = vpop.f32.mrf.mxu0
        %6300 = vdwg.mxu0
        %6301 = vmatpush.bf16.xpose.msra.mxu0 0
        %6302 = vmatpush.bf16.xpose.msra.mxu0 0
        %6303 = vmatpush.bf16.xpose.msra.mxu0 0
        %6304 = vmatpush.bf16.xpose.msra.mxu0 0
        %6305 = vmatpush.bf16.xpose.msra.mxu0 0
        %6306 = vmatpush.bf16.xpose.msra.mxu0 0
        %6307 = vmatpush.bf16.xpose.msra.mxu0 0
        %6308 = vmatpush.bf16.xpose.msra.mxu0 %v3625
        %6309 = vmatmul.bf16.gmra.mxu0 %v1649
        %v6310 = vpop.f32.mrf.mxu0
        %v6311 = vadd.f32 %v6298, %v6310
        %v6312 = vpop.f32.mrf.mxu0
        %6313 = vdwg.mxu0
        %6314 = vmatpush.bf16.xpose.msra.mxu0 0
        %6315 = vmatpush.bf16.xpose.msra.mxu0 0
        %6316 = vmatpush.bf16.xpose.msra.mxu0 0
        %6317 = vmatpush.bf16.xpose.msra.mxu0 0
        %6318 = vmatpush.bf16.xpose.msra.mxu0 0
        %6319 = vmatpush.bf16.xpose.msra.mxu0 0
        %6320 = vmatpush.bf16.xpose.msra.mxu0 0
        %6321 = vmatpush.bf16.xpose.msra.mxu0 %v3626
        %6322 = vmatmul.bf16.gmra.mxu0 %v1652
        %v6323 = vpop.f32.mrf.mxu0
        %v6324 = vadd.f32 %v6311, %v6323
        %v6325 = vpop.f32.mrf.mxu0
        %6326 = vdwg.mxu0
        %6327 = vmatpush.bf16.xpose.msra.mxu0 0
        %6328 = vmatpush.bf16.xpose.msra.mxu0 0
        %6329 = vmatpush.bf16.xpose.msra.mxu0 0
        %6330 = vmatpush.bf16.xpose.msra.mxu0 0
        %6331 = vmatpush.bf16.xpose.msra.mxu0 0
        %6332 = vmatpush.bf16.xpose.msra.mxu0 0
        %6333 = vmatpush.bf16.xpose.msra.mxu0 0
        %6334 = vmatpush.bf16.xpose.msra.mxu0 %v3627
        %6335 = vmatmul.bf16.gmra.mxu0 %v1653
        %v6336 = vpop.f32.mrf.mxu0
        %v6337 = vadd.f32 %v6324, %v6336
        %v6338 = vpop.f32.mrf.mxu0
        %6339 = vdwg.mxu0
        %6340 = vmatpush.bf16.xpose.msra.mxu0 0
        %6341 = vmatpush.bf16.xpose.msra.mxu0 0
        %6342 = vmatpush.bf16.xpose.msra.mxu0 0
        %6343 = vmatpush.bf16.xpose.msra.mxu0 0
        %6344 = vmatpush.bf16.xpose.msra.mxu0 0
        %6345 = vmatpush.bf16.xpose.msra.mxu0 0
        %6346 = vmatpush.bf16.xpose.msra.mxu0 0
        %6347 = vmatpush.bf16.xpose.msra.mxu0 %v3628
        %6348 = vmatmul.bf16.gmra.mxu0 %v1654
        %v6349 = vpop.f32.mrf.mxu0
        %v6350 = vadd.f32 %v6337, %v6349
        %v6351 = vpop.f32.mrf.mxu0
        %6352 = vdwg.mxu0
        %6353 = vmatpush.bf16.xpose.msra.mxu0 0
        %6354 = vmatpush.bf16.xpose.msra.mxu0 0
        %6355 = vmatpush.bf16.xpose.msra.mxu0 0
        %6356 = vmatpush.bf16.xpose.msra.mxu0 0
        %6357 = vmatpush.bf16.xpose.msra.mxu0 0
        %6358 = vmatpush.bf16.xpose.msra.mxu0 0
        %6359 = vmatpush.bf16.xpose.msra.mxu0 0
        %6360 = vmatpush.bf16.xpose.msra.mxu0 %v3629
        %6361 = vmatmul.bf16.gmra.mxu0 %v1655
        %v6362 = vpop.f32.mrf.mxu0
        %v6363 = vadd.f32 %v6350, %v6362
        %v6364 = vpop.f32.mrf.mxu0
        %6365 = vdwg.mxu0
        %6366 = vmatpush.bf16.xpose.msra.mxu0 0
        %6367 = vmatpush.bf16.xpose.msra.mxu0 0
        %6368 = vmatpush.bf16.xpose.msra.mxu0 0
        %6369 = vmatpush.bf16.xpose.msra.mxu0 0
        %6370 = vmatpush.bf16.xpose.msra.mxu0 0
        %6371 = vmatpush.bf16.xpose.msra.mxu0 0
        %6372 = vmatpush.bf16.xpose.msra.mxu0 0
        %6373 = vmatpush.bf16.xpose.msra.mxu0 %v3630
        %6374 = vmatmul.bf16.gmra.mxu0 %v1656
        %v6375 = vpop.f32.mrf.mxu0
        %v6376 = vadd.f32 %v6363, %v6375
        %v6377 = vpop.f32.mrf.mxu0
        %6378 = vdwg.mxu0
        %6379 = vmatpush.bf16.xpose.msra.mxu0 0
        %6380 = vmatpush.bf16.xpose.msra.mxu0 0
        %6381 = vmatpush.bf16.xpose.msra.mxu0 0
        %6382 = vmatpush.bf16.xpose.msra.mxu0 0
        %6383 = vmatpush.bf16.xpose.msra.mxu0 0
        %6384 = vmatpush.bf16.xpose.msra.mxu0 0
        %6385 = vmatpush.bf16.xpose.msra.mxu0 0
        %6386 = vmatpush.bf16.xpose.msra.mxu0 %v3631
        %6387 = vmatmul.bf16.gmra.mxu0 %v1657
        %v6388 = vpop.f32.mrf.mxu0
        %v6389 = vadd.f32 %v6376, %v6388
        %v6390 = vpop.f32.mrf.mxu0
        %6391 = vdwg.mxu0
        %6392 = vmatpush.bf16.xpose.msra.mxu0 0
        %6393 = vmatpush.bf16.xpose.msra.mxu0 0
        %6394 = vmatpush.bf16.xpose.msra.mxu0 0
        %6395 = vmatpush.bf16.xpose.msra.mxu0 0
        %6396 = vmatpush.bf16.xpose.msra.mxu0 0
        %6397 = vmatpush.bf16.xpose.msra.mxu0 0
        %6398 = vmatpush.bf16.xpose.msra.mxu0 0
        %6399 = vmatpush.bf16.xpose.msra.mxu0 %v3632
        %6400 = vmatmul.bf16.gmra.mxu0 %v1658
        %v6401 = vpop.f32.mrf.mxu0
        %v6402 = vadd.f32 %v6389, %v6401
        %v6403 = vpop.f32.mrf.mxu0
        %6404 = vdwg.mxu0
        %6405 = vmatpush.bf16.xpose.msra.mxu0 0
        %6406 = vmatpush.bf16.xpose.msra.mxu0 0
        %6407 = vmatpush.bf16.xpose.msra.mxu0 0
        %6408 = vmatpush.bf16.xpose.msra.mxu0 0
        %6409 = vmatpush.bf16.xpose.msra.mxu0 0
        %6410 = vmatpush.bf16.xpose.msra.mxu0 0
        %6411 = vmatpush.bf16.xpose.msra.mxu0 0
        %6412 = vmatpush.bf16.xpose.msra.mxu0 %v3633
        %6413 = vmatmul.bf16.gmra.mxu0 %v1659
        %v6414 = vpop.f32.mrf.mxu0
        %v6415 = vadd.f32 %v6402, %v6414
        %v6416 = vpop.f32.mrf.mxu0
        %6417 = vdwg.mxu0
        %6418 = vmatpush.bf16.xpose.msra.mxu0 0
        %6419 = vmatpush.bf16.xpose.msra.mxu0 0
        %6420 = vmatpush.bf16.xpose.msra.mxu0 0
        %6421 = vmatpush.bf16.xpose.msra.mxu0 0
        %6422 = vmatpush.bf16.xpose.msra.mxu0 0
        %6423 = vmatpush.bf16.xpose.msra.mxu0 0
        %6424 = vmatpush.bf16.xpose.msra.mxu0 0
        %6425 = vmatpush.bf16.xpose.msra.mxu0 %v3634
        %6426 = vmatmul.bf16.gmra.mxu0 %v1662
        %v6427 = vpop.f32.mrf.mxu0
        %v6428 = vadd.f32 %v6415, %v6427
        %v6429 = vpop.f32.mrf.mxu0
        %6430 = vdwg.mxu0
        %6431 = vmatpush.bf16.xpose.msra.mxu0 0
        %6432 = vmatpush.bf16.xpose.msra.mxu0 0
        %6433 = vmatpush.bf16.xpose.msra.mxu0 0
        %6434 = vmatpush.bf16.xpose.msra.mxu0 0
        %6435 = vmatpush.bf16.xpose.msra.mxu0 0
        %6436 = vmatpush.bf16.xpose.msra.mxu0 0
        %6437 = vmatpush.bf16.xpose.msra.mxu0 0
        %6438 = vmatpush.bf16.xpose.msra.mxu0 %v3635
        %6439 = vmatmul.bf16.gmra.mxu0 %v1663
        %v6440 = vpop.f32.mrf.mxu0
        %v6441 = vadd.f32 %v6428, %v6440
        %v6442 = vpop.f32.mrf.mxu0
        %6443 = vdwg.mxu0
        %6444 = vmatpush.bf16.xpose.msra.mxu0 0
        %6445 = vmatpush.bf16.xpose.msra.mxu0 0
        %6446 = vmatpush.bf16.xpose.msra.mxu0 0
        %6447 = vmatpush.bf16.xpose.msra.mxu0 0
        %6448 = vmatpush.bf16.xpose.msra.mxu0 0
        %6449 = vmatpush.bf16.xpose.msra.mxu0 0
        %6450 = vmatpush.bf16.xpose.msra.mxu0 0
        %6451 = vmatpush.bf16.xpose.msra.mxu0 %v3636
        %6452 = vmatmul.bf16.gmra.mxu0 %v1664
        %v6453 = vpop.f32.mrf.mxu0
        %v6454 = vadd.f32 %v6441, %v6453
        %v6455 = vpop.f32.mrf.mxu0
        %6456 = vdwg.mxu0
        %6457 = vmatpush.bf16.xpose.msra.mxu0 0
        %6458 = vmatpush.bf16.xpose.msra.mxu0 0
        %6459 = vmatpush.bf16.xpose.msra.mxu0 0
        %6460 = vmatpush.bf16.xpose.msra.mxu0 0
        %6461 = vmatpush.bf16.xpose.msra.mxu0 0
        %6462 = vmatpush.bf16.xpose.msra.mxu0 0
        %6463 = vmatpush.bf16.xpose.msra.mxu0 0
        %6464 = vmatpush.bf16.xpose.msra.mxu0 %v3637
        %6465 = vmatmul.bf16.gmra.mxu0 %v1665
        %v6466 = vpop.f32.mrf.mxu0
        %v6467 = vadd.f32 %v6454, %v6466
        %v6468 = vpop.f32.mrf.mxu0
        %6469 = vdwg.mxu0
        %6470 = vmatpush.bf16.xpose.msra.mxu0 0
        %6471 = vmatpush.bf16.xpose.msra.mxu0 0
        %6472 = vmatpush.bf16.xpose.msra.mxu0 0
        %6473 = vmatpush.bf16.xpose.msra.mxu0 0
        %6474 = vmatpush.bf16.xpose.msra.mxu0 0
        %6475 = vmatpush.bf16.xpose.msra.mxu0 0
        %6476 = vmatpush.bf16.xpose.msra.mxu0 0
        %6477 = vmatpush.bf16.xpose.msra.mxu0 %v3638
        %6478 = vmatmul.bf16.gmra.mxu0 %v1666
        %v6479 = vpop.f32.mrf.mxu0
        %v6480 = vadd.f32 %v6467, %v6479
        %v6481 = vpop.f32.mrf.mxu0
        %6482 = vdwg.mxu0
        %6483 = vmatpush.bf16.xpose.msra.mxu0 0
        %6484 = vmatpush.bf16.xpose.msra.mxu0 0
        %6485 = vmatpush.bf16.xpose.msra.mxu0 0
        %6486 = vmatpush.bf16.xpose.msra.mxu0 0
        %6487 = vmatpush.bf16.xpose.msra.mxu0 0
        %6488 = vmatpush.bf16.xpose.msra.mxu0 0
        %6489 = vmatpush.bf16.xpose.msra.mxu0 0
        %6490 = vmatpush.bf16.xpose.msra.mxu0 %v3639
        %6491 = vmatmul.bf16.gmra.mxu0 %v1667
        %v6492 = vpop.f32.mrf.mxu0
        %v6493 = vadd.f32 %v6480, %v6492
        %v6494 = vpop.f32.mrf.mxu0
        %6495 = vdwg.mxu0
        %6496 = vmatpush.bf16.xpose.msra.mxu0 0
        %6497 = vmatpush.bf16.xpose.msra.mxu0 0
        %6498 = vmatpush.bf16.xpose.msra.mxu0 0
        %6499 = vmatpush.bf16.xpose.msra.mxu0 0
        %6500 = vmatpush.bf16.xpose.msra.mxu0 0
        %6501 = vmatpush.bf16.xpose.msra.mxu0 0
        %6502 = vmatpush.bf16.xpose.msra.mxu0 0
        %6503 = vmatpush.bf16.xpose.msra.mxu0 %v3640
        %6504 = vmatmul.bf16.gmra.mxu0 %v1668
        %v6505 = vpop.f32.mrf.mxu0
        %v6506 = vadd.f32 %v6493, %v6505
        %v6507 = vpop.f32.mrf.mxu0
        %6508 = vdwg.mxu0
        %6509 = vmatpush.bf16.xpose.msra.mxu0 0
        %6510 = vmatpush.bf16.xpose.msra.mxu0 0
        %6511 = vmatpush.bf16.xpose.msra.mxu0 0
        %6512 = vmatpush.bf16.xpose.msra.mxu0 0
        %6513 = vmatpush.bf16.xpose.msra.mxu0 0
        %6514 = vmatpush.bf16.xpose.msra.mxu0 0
        %6515 = vmatpush.bf16.xpose.msra.mxu0 0
        %6516 = vmatpush.bf16.xpose.msra.mxu0 %v3641
        %6517 = vmatmul.bf16.gmra.mxu0 %v1669
        %v6518 = vpop.f32.mrf.mxu0
        %v6519 = vadd.f32 %v6506, %v6518
        %v6520 = vpop.f32.mrf.mxu0
        %6521 = vdwg.mxu0
        %6522 = vmatpush.bf16.xpose.msra.mxu0 0
        %6523 = vmatpush.bf16.xpose.msra.mxu0 0
        %6524 = vmatpush.bf16.xpose.msra.mxu0 0
        %6525 = vmatpush.bf16.xpose.msra.mxu0 0
        %6526 = vmatpush.bf16.xpose.msra.mxu0 0
        %6527 = vmatpush.bf16.xpose.msra.mxu0 0
        %6528 = vmatpush.bf16.xpose.msra.mxu0 0
        %6529 = vmatpush.bf16.xpose.msra.mxu0 %v3642
        %6530 = vmatmul.bf16.gmra.mxu0 %v1672
        %v6531 = vpop.f32.mrf.mxu0
        %v6532 = vadd.f32 %v6519, %v6531
        %v6533 = vpop.f32.mrf.mxu0
        %6534 = vdwg.mxu0
        %6535 = vmatpush.bf16.xpose.msra.mxu0 0
        %6536 = vmatpush.bf16.xpose.msra.mxu0 0
        %6537 = vmatpush.bf16.xpose.msra.mxu0 0
        %6538 = vmatpush.bf16.xpose.msra.mxu0 0
        %6539 = vmatpush.bf16.xpose.msra.mxu0 0
        %6540 = vmatpush.bf16.xpose.msra.mxu0 0
        %6541 = vmatpush.bf16.xpose.msra.mxu0 0
        %6542 = vmatpush.bf16.xpose.msra.mxu0 %v3643
        %6543 = vmatmul.bf16.gmra.mxu0 %v1673
        %v6544 = vpop.f32.mrf.mxu0
        %v6545 = vadd.f32 %v6532, %v6544
        %v6546 = vpop.f32.mrf.mxu0
        %6547 = vdwg.mxu0
        %6548 = vmatpush.bf16.xpose.msra.mxu0 0
        %6549 = vmatpush.bf16.xpose.msra.mxu0 0
        %6550 = vmatpush.bf16.xpose.msra.mxu0 0
        %6551 = vmatpush.bf16.xpose.msra.mxu0 0
        %6552 = vmatpush.bf16.xpose.msra.mxu0 0
        %6553 = vmatpush.bf16.xpose.msra.mxu0 0
        %6554 = vmatpush.bf16.xpose.msra.mxu0 0
        %6555 = vmatpush.bf16.xpose.msra.mxu0 %v3644
        %6556 = vmatmul.bf16.gmra.mxu0 %v1674
        %v6557 = vpop.f32.mrf.mxu0
        %v6558 = vadd.f32 %v6545, %v6557
        %v6559 = vpop.f32.mrf.mxu0
        %6560 = vdwg.mxu0
        %6561 = vmatpush.bf16.xpose.msra.mxu0 0
        %6562 = vmatpush.bf16.xpose.msra.mxu0 0
        %6563 = vmatpush.bf16.xpose.msra.mxu0 0
        %6564 = vmatpush.bf16.xpose.msra.mxu0 0
        %6565 = vmatpush.bf16.xpose.msra.mxu0 0
        %6566 = vmatpush.bf16.xpose.msra.mxu0 0
        %6567 = vmatpush.bf16.xpose.msra.mxu0 0
        %6568 = vmatpush.bf16.xpose.msra.mxu0 %v3645
        %6569 = vmatmul.bf16.gmra.mxu0 %v1675
        %v6570 = vpop.f32.mrf.mxu0
        %v6571 = vadd.f32 %v6558, %v6570
        %v6572 = vpop.f32.mrf.mxu0
        %6573 = vdwg.mxu0
        %6574 = vmatpush.bf16.xpose.msra.mxu0 0
        %6575 = vmatpush.bf16.xpose.msra.mxu0 0
        %6576 = vmatpush.bf16.xpose.msra.mxu0 0
        %6577 = vmatpush.bf16.xpose.msra.mxu0 0
        %6578 = vmatpush.bf16.xpose.msra.mxu0 0
        %6579 = vmatpush.bf16.xpose.msra.mxu0 0
        %6580 = vmatpush.bf16.xpose.msra.mxu0 0
        %6581 = vmatpush.bf16.xpose.msra.mxu0 %v3646
        %6582 = vmatmul.bf16.gmra.mxu0 %v1676
        %v6583 = vpop.f32.mrf.mxu0
        %v6584 = vadd.f32 %v6571, %v6583
        %v6585 = vpop.f32.mrf.mxu0
        %6586 = vdwg.mxu0
        %6587 = vmatpush.bf16.xpose.msra.mxu0 0
        %6588 = vmatpush.bf16.xpose.msra.mxu0 0
        %6589 = vmatpush.bf16.xpose.msra.mxu0 0
        %6590 = vmatpush.bf16.xpose.msra.mxu0 0
        %6591 = vmatpush.bf16.xpose.msra.mxu0 0
        %6592 = vmatpush.bf16.xpose.msra.mxu0 0
        %6593 = vmatpush.bf16.xpose.msra.mxu0 0
        %6594 = vmatpush.bf16.xpose.msra.mxu0 %v3647
        %6595 = vmatmul.bf16.gmra.mxu0 %v1677
        %v6596 = vpop.f32.mrf.mxu0
        %v6597 = vadd.f32 %v6584, %v6596
        %v6598 = vpop.f32.mrf.mxu0
        %6599 = vdwg.mxu0
        %6600 = vmatpush.bf16.xpose.msra.mxu0 0
        %6601 = vmatpush.bf16.xpose.msra.mxu0 0
        %6602 = vmatpush.bf16.xpose.msra.mxu0 0
        %6603 = vmatpush.bf16.xpose.msra.mxu0 0
        %6604 = vmatpush.bf16.xpose.msra.mxu0 0
        %6605 = vmatpush.bf16.xpose.msra.mxu0 0
        %6606 = vmatpush.bf16.xpose.msra.mxu0 0
        %6607 = vmatpush.bf16.xpose.msra.mxu0 %v3648
        %6608 = vmatmul.bf16.gmra.mxu0 %v1678
        %v6609 = vpop.f32.mrf.mxu0
        %v6610 = vadd.f32 %v6597, %v6609
        %v6611 = vpop.f32.mrf.mxu0
        %6612 = vdwg.mxu0
        %6613 = vmatpush.bf16.xpose.msra.mxu0 0
        %6614 = vmatpush.bf16.xpose.msra.mxu0 0
        %6615 = vmatpush.bf16.xpose.msra.mxu0 0
        %6616 = vmatpush.bf16.xpose.msra.mxu0 0
        %6617 = vmatpush.bf16.xpose.msra.mxu0 0
        %6618 = vmatpush.bf16.xpose.msra.mxu0 0
        %6619 = vmatpush.bf16.xpose.msra.mxu0 0
        %6620 = vmatpush.bf16.xpose.msra.mxu0 %v3649
        %6621 = vmatmul.bf16.gmra.mxu0 %v1679
        %v6622 = vpop.f32.mrf.mxu0
        %v6623 = vadd.f32 %v6610, %v6622
        %v6624 = vpop.f32.mrf.mxu0
        %6625 = vdwg.mxu0
        %6626 = vmatpush.bf16.xpose.msra.mxu0 0
        %6627 = vmatpush.bf16.xpose.msra.mxu0 0
        %6628 = vmatpush.bf16.xpose.msra.mxu0 0
        %6629 = vmatpush.bf16.xpose.msra.mxu0 0
        %6630 = vmatpush.bf16.xpose.msra.mxu0 0
        %6631 = vmatpush.bf16.xpose.msra.mxu0 0
        %6632 = vmatpush.bf16.xpose.msra.mxu0 0
        %6633 = vmatpush.bf16.xpose.msra.mxu0 %v3650
        %6634 = vmatmul.bf16.gmra.mxu0 %v1682
        %v6635 = vpop.f32.mrf.mxu0
        %v6636 = vadd.f32 %v6623, %v6635
        %v6637 = vpop.f32.mrf.mxu0
        %6638 = vdwg.mxu0
        %6639 = vmatpush.bf16.xpose.msra.mxu0 0
        %6640 = vmatpush.bf16.xpose.msra.mxu0 0
        %6641 = vmatpush.bf16.xpose.msra.mxu0 0
        %6642 = vmatpush.bf16.xpose.msra.mxu0 0
        %6643 = vmatpush.bf16.xpose.msra.mxu0 0
        %6644 = vmatpush.bf16.xpose.msra.mxu0 0
        %6645 = vmatpush.bf16.xpose.msra.mxu0 0
        %6646 = vmatpush.bf16.xpose.msra.mxu0 %v3651
        %6647 = vmatmul.bf16.gmra.mxu0 %v1683
        %v6648 = vpop.f32.mrf.mxu0
        %v6649 = vadd.f32 %v6636, %v6648
        %v6650 = vpop.f32.mrf.mxu0
        %6651 = vdwg.mxu0
        %6652 = vmatpush.bf16.xpose.msra.mxu0 0
        %6653 = vmatpush.bf16.xpose.msra.mxu0 0
        %6654 = vmatpush.bf16.xpose.msra.mxu0 0
        %6655 = vmatpush.bf16.xpose.msra.mxu0 0
        %6656 = vmatpush.bf16.xpose.msra.mxu0 0
        %6657 = vmatpush.bf16.xpose.msra.mxu0 0
        %6658 = vmatpush.bf16.xpose.msra.mxu0 0
        %6659 = vmatpush.bf16.xpose.msra.mxu0 %v3652
        %6660 = vmatmul.bf16.gmra.mxu0 %v1684
        %v6661 = vpop.f32.mrf.mxu0
        %v6662 = vadd.f32 %v6649, %v6661
        %v6663 = vpop.f32.mrf.mxu0
        %6664 = vdwg.mxu0
        %6665 = vmatpush.bf16.xpose.msra.mxu0 0
        %6666 = vmatpush.bf16.xpose.msra.mxu0 0
        %6667 = vmatpush.bf16.xpose.msra.mxu0 0
        %6668 = vmatpush.bf16.xpose.msra.mxu0 0
        %6669 = vmatpush.bf16.xpose.msra.mxu0 0
        %6670 = vmatpush.bf16.xpose.msra.mxu0 0
        %6671 = vmatpush.bf16.xpose.msra.mxu0 0
        %6672 = vmatpush.bf16.xpose.msra.mxu0 %v3653
        %6673 = vmatmul.bf16.gmra.mxu0 %v1685
        %v6674 = vpop.f32.mrf.mxu0
        %v6675 = vadd.f32 %v6662, %v6674
        %v6676 = vpop.f32.mrf.mxu0
        %6677 = vdwg.mxu0
        %6678 = vmatpush.bf16.xpose.msra.mxu0 0
        %6679 = vmatpush.bf16.xpose.msra.mxu0 0
        %6680 = vmatpush.bf16.xpose.msra.mxu0 0
        %6681 = vmatpush.bf16.xpose.msra.mxu0 0
        %6682 = vmatpush.bf16.xpose.msra.mxu0 0
        %6683 = vmatpush.bf16.xpose.msra.mxu0 0
        %6684 = vmatpush.bf16.xpose.msra.mxu0 0
        %6685 = vmatpush.bf16.xpose.msra.mxu0 %v3654
        %6686 = vmatmul.bf16.gmra.mxu0 %v1686
        %v6687 = vpop.f32.mrf.mxu0
        %v6688 = vadd.f32 %v6675, %v6687
        %v6689 = vpop.f32.mrf.mxu0
        %6690 = vdwg.mxu0
        %6691 = vmatpush.bf16.xpose.msra.mxu0 0
        %6692 = vmatpush.bf16.xpose.msra.mxu0 0
        %6693 = vmatpush.bf16.xpose.msra.mxu0 0
        %6694 = vmatpush.bf16.xpose.msra.mxu0 0
        %6695 = vmatpush.bf16.xpose.msra.mxu0 0
        %6696 = vmatpush.bf16.xpose.msra.mxu0 0
        %6697 = vmatpush.bf16.xpose.msra.mxu0 0
        %6698 = vmatpush.bf16.xpose.msra.mxu0 %v3655
        %6699 = vmatmul.bf16.gmra.mxu0 %v1687
        %v6700 = vpop.f32.mrf.mxu0
        %v6701 = vadd.f32 %v6688, %v6700
        %v6702 = vpop.f32.mrf.mxu0
        %6703 = vdwg.mxu0
        %6704 = vmatpush.bf16.xpose.msra.mxu0 0
        %6705 = vmatpush.bf16.xpose.msra.mxu0 0
        %6706 = vmatpush.bf16.xpose.msra.mxu0 0
        %6707 = vmatpush.bf16.xpose.msra.mxu0 0
        %6708 = vmatpush.bf16.xpose.msra.mxu0 0
        %6709 = vmatpush.bf16.xpose.msra.mxu0 0
        %6710 = vmatpush.bf16.xpose.msra.mxu0 0
        %6711 = vmatpush.bf16.xpose.msra.mxu0 %v3656
        %6712 = vmatmul.bf16.gmra.mxu0 %v1688
        %v6713 = vpop.f32.mrf.mxu0
        %v6714 = vadd.f32 %v6701, %v6713
        %v6715 = vpop.f32.mrf.mxu0
        %6716 = vdwg.mxu0
        %6717 = vmatpush.bf16.xpose.msra.mxu0 0
        %6718 = vmatpush.bf16.xpose.msra.mxu0 0
        %6719 = vmatpush.bf16.xpose.msra.mxu0 0
        %6720 = vmatpush.bf16.xpose.msra.mxu0 0
        %6721 = vmatpush.bf16.xpose.msra.mxu0 0
        %6722 = vmatpush.bf16.xpose.msra.mxu0 0
        %6723 = vmatpush.bf16.xpose.msra.mxu0 0
        %6724 = vmatpush.bf16.xpose.msra.mxu0 %v3657
        %6725 = vmatmul.bf16.gmra.mxu0 %v1689
        %v6726 = vpop.f32.mrf.mxu0
        %v6727 = vadd.f32 %v6714, %v6726
        %v6728 = vpop.f32.mrf.mxu0
        %6729 = vdwg.mxu0
        %6730 = vmatpush.bf16.xpose.msra.mxu0 0
        %6731 = vmatpush.bf16.xpose.msra.mxu0 0
        %6732 = vmatpush.bf16.xpose.msra.mxu0 0
        %6733 = vmatpush.bf16.xpose.msra.mxu0 0
        %6734 = vmatpush.bf16.xpose.msra.mxu0 0
        %6735 = vmatpush.bf16.xpose.msra.mxu0 0
        %6736 = vmatpush.bf16.xpose.msra.mxu0 0
        %6737 = vmatpush.bf16.xpose.msra.mxu0 %v3658
        %6738 = vmatmul.bf16.gmra.mxu0 %v1692
        %v6739 = vpop.f32.mrf.mxu0
        %v6740 = vadd.f32 %v6727, %v6739
        %v6741 = vpop.f32.mrf.mxu0
        %6742 = vdwg.mxu0
        %6743 = vmatpush.bf16.xpose.msra.mxu0 0
        %6744 = vmatpush.bf16.xpose.msra.mxu0 0
        %6745 = vmatpush.bf16.xpose.msra.mxu0 0
        %6746 = vmatpush.bf16.xpose.msra.mxu0 0
        %6747 = vmatpush.bf16.xpose.msra.mxu0 0
        %6748 = vmatpush.bf16.xpose.msra.mxu0 0
        %6749 = vmatpush.bf16.xpose.msra.mxu0 0
        %6750 = vmatpush.bf16.xpose.msra.mxu0 %v3659
        %6751 = vmatmul.bf16.gmra.mxu0 %v1693
        %v6752 = vpop.f32.mrf.mxu0
        %v6753 = vadd.f32 %v6740, %v6752
        %v6754 = vpop.f32.mrf.mxu0
        %6755 = vdwg.mxu0
        %6756 = vmatpush.bf16.xpose.msra.mxu0 0
        %6757 = vmatpush.bf16.xpose.msra.mxu0 0
        %6758 = vmatpush.bf16.xpose.msra.mxu0 0
        %6759 = vmatpush.bf16.xpose.msra.mxu0 0
        %6760 = vmatpush.bf16.xpose.msra.mxu0 0
        %6761 = vmatpush.bf16.xpose.msra.mxu0 0
        %6762 = vmatpush.bf16.xpose.msra.mxu0 0
        %6763 = vmatpush.bf16.xpose.msra.mxu0 %v3660
        %6764 = vmatmul.bf16.gmra.mxu0 %v1694
        %v6765 = vpop.f32.mrf.mxu0
        %v6766 = vadd.f32 %v6753, %v6765
        %v6767 = vpop.f32.mrf.mxu0
        %6768 = vdwg.mxu0
        %6769 = vmatpush.bf16.xpose.msra.mxu0 0
        %6770 = vmatpush.bf16.xpose.msra.mxu0 0
        %6771 = vmatpush.bf16.xpose.msra.mxu0 0
        %6772 = vmatpush.bf16.xpose.msra.mxu0 0
        %6773 = vmatpush.bf16.xpose.msra.mxu0 0
        %6774 = vmatpush.bf16.xpose.msra.mxu0 0
        %6775 = vmatpush.bf16.xpose.msra.mxu0 0
        %6776 = vmatpush.bf16.xpose.msra.mxu0 %v3661
        %6777 = vmatmul.bf16.gmra.mxu0 %v1695
        %v6778 = vpop.f32.mrf.mxu0
        %v6779 = vadd.f32 %v6766, %v6778
        %v6780 = vpop.f32.mrf.mxu0
        %6781 = vdwg.mxu0
        %6782 = vmatpush.bf16.xpose.msra.mxu0 0
        %6783 = vmatpush.bf16.xpose.msra.mxu0 0
        %6784 = vmatpush.bf16.xpose.msra.mxu0 0
        %6785 = vmatpush.bf16.xpose.msra.mxu0 0
        %6786 = vmatpush.bf16.xpose.msra.mxu0 0
        %6787 = vmatpush.bf16.xpose.msra.mxu0 0
        %6788 = vmatpush.bf16.xpose.msra.mxu0 0
        %6789 = vmatpush.bf16.xpose.msra.mxu0 %v3662
        %6790 = vmatmul.bf16.gmra.mxu0 %v1696
        %v6791 = vpop.f32.mrf.mxu0
        %v6792 = vadd.f32 %v6779, %v6791
        %v6793 = vpop.f32.mrf.mxu0
        %6794 = vdwg.mxu0
        %6795 = vmatpush.bf16.xpose.msra.mxu0 0
        %6796 = vmatpush.bf16.xpose.msra.mxu0 0
        %6797 = vmatpush.bf16.xpose.msra.mxu0 0
        %6798 = vmatpush.bf16.xpose.msra.mxu0 0
        %6799 = vmatpush.bf16.xpose.msra.mxu0 0
        %6800 = vmatpush.bf16.xpose.msra.mxu0 0
        %6801 = vmatpush.bf16.xpose.msra.mxu0 0
        %6802 = vmatpush.bf16.xpose.msra.mxu0 %v3663
        %6803 = vmatmul.bf16.gmra.mxu0 %v1697
        %v6804 = vpop.f32.mrf.mxu0
        %v6805 = vadd.f32 %v6792, %v6804
        %v6806 = vpop.f32.mrf.mxu0
        %6807 = vdwg.mxu0
        %6808 = vmatpush.bf16.xpose.msra.mxu0 0
        %6809 = vmatpush.bf16.xpose.msra.mxu0 0
        %6810 = vmatpush.bf16.xpose.msra.mxu0 0
        %6811 = vmatpush.bf16.xpose.msra.mxu0 0
        %6812 = vmatpush.bf16.xpose.msra.mxu0 0
        %6813 = vmatpush.bf16.xpose.msra.mxu0 0
        %6814 = vmatpush.bf16.xpose.msra.mxu0 0
        %6815 = vmatpush.bf16.xpose.msra.mxu0 %v3664
        %6816 = vmatmul.bf16.gmra.mxu0 %v1698
        %v6817 = vpop.f32.mrf.mxu0
        %v6818 = vadd.f32 %v6805, %v6817
        %v6819 = vpop.f32.mrf.mxu0
        %6820 = vdwg.mxu0
        %6821 = vmatpush.bf16.xpose.msra.mxu0 0
        %6822 = vmatpush.bf16.xpose.msra.mxu0 0
        %6823 = vmatpush.bf16.xpose.msra.mxu0 0
        %6824 = vmatpush.bf16.xpose.msra.mxu0 0
        %6825 = vmatpush.bf16.xpose.msra.mxu0 0
        %6826 = vmatpush.bf16.xpose.msra.mxu0 0
        %6827 = vmatpush.bf16.xpose.msra.mxu0 0
        %6828 = vmatpush.bf16.xpose.msra.mxu0 %v3665
        %6829 = vmatmul.bf16.gmra.mxu0 %v1699
        %v6830 = vpop.f32.mrf.mxu0
        %v6831 = vadd.f32 %v6818, %v6830
        %v6832 = vpop.f32.mrf.mxu0
        %6833 = vdwg.mxu0
        %6834 = vmatpush.bf16.xpose.msra.mxu0 0
        %6835 = vmatpush.bf16.xpose.msra.mxu0 0
        %6836 = vmatpush.bf16.xpose.msra.mxu0 0
        %6837 = vmatpush.bf16.xpose.msra.mxu0 0
        %6838 = vmatpush.bf16.xpose.msra.mxu0 0
        %6839 = vmatpush.bf16.xpose.msra.mxu0 0
        %6840 = vmatpush.bf16.xpose.msra.mxu0 0
        %6841 = vmatpush.bf16.xpose.msra.mxu0 %v3666
        %6842 = vmatmul.bf16.gmra.mxu0 %v1702
        %v6843 = vpop.f32.mrf.mxu0
        %v6844 = vadd.f32 %v6831, %v6843
        %v6845 = vpop.f32.mrf.mxu0
        %6846 = vdwg.mxu0
        %6847 = vmatpush.bf16.xpose.msra.mxu0 0
        %6848 = vmatpush.bf16.xpose.msra.mxu0 0
        %6849 = vmatpush.bf16.xpose.msra.mxu0 0
        %6850 = vmatpush.bf16.xpose.msra.mxu0 0
        %6851 = vmatpush.bf16.xpose.msra.mxu0 0
        %6852 = vmatpush.bf16.xpose.msra.mxu0 0
        %6853 = vmatpush.bf16.xpose.msra.mxu0 0
        %6854 = vmatpush.bf16.xpose.msra.mxu0 %v3667
        %6855 = vmatmul.bf16.gmra.mxu0 %v1703
        %v6856 = vpop.f32.mrf.mxu0
        %v6857 = vadd.f32 %v6844, %v6856
        %v6858 = vpop.f32.mrf.mxu0
        %6859 = vdwg.mxu0
        %6860 = vmatpush.bf16.xpose.msra.mxu0 0
        %6861 = vmatpush.bf16.xpose.msra.mxu0 0
        %6862 = vmatpush.bf16.xpose.msra.mxu0 0
        %6863 = vmatpush.bf16.xpose.msra.mxu0 0
        %6864 = vmatpush.bf16.xpose.msra.mxu0 0
        %6865 = vmatpush.bf16.xpose.msra.mxu0 0
        %6866 = vmatpush.bf16.xpose.msra.mxu0 0
        %6867 = vmatpush.bf16.xpose.msra.mxu0 %v3668
        %6868 = vmatmul.bf16.gmra.mxu0 %v1704
        %v6869 = vpop.f32.mrf.mxu0
        %v6870 = vadd.f32 %v6857, %v6869
        %v6871 = vpop.f32.mrf.mxu0
        %6872 = vdwg.mxu0
        %6873 = vmatpush.bf16.xpose.msra.mxu0 0
        %6874 = vmatpush.bf16.xpose.msra.mxu0 0
        %6875 = vmatpush.bf16.xpose.msra.mxu0 0
        %6876 = vmatpush.bf16.xpose.msra.mxu0 0
        %6877 = vmatpush.bf16.xpose.msra.mxu0 0
        %6878 = vmatpush.bf16.xpose.msra.mxu0 0
        %6879 = vmatpush.bf16.xpose.msra.mxu0 0
        %6880 = vmatpush.bf16.xpose.msra.mxu0 %v3669
        %6881 = vmatmul.bf16.gmra.mxu0 %v1705
        %v6882 = vpop.f32.mrf.mxu0
        %v6883 = vadd.f32 %v6870, %v6882
        %v6884 = vpop.f32.mrf.mxu0
        %6885 = vdwg.mxu0
        %6886 = vmatpush.bf16.xpose.msra.mxu0 0
        %6887 = vmatpush.bf16.xpose.msra.mxu0 0
        %6888 = vmatpush.bf16.xpose.msra.mxu0 0
        %6889 = vmatpush.bf16.xpose.msra.mxu0 0
        %6890 = vmatpush.bf16.xpose.msra.mxu0 0
        %6891 = vmatpush.bf16.xpose.msra.mxu0 0
        %6892 = vmatpush.bf16.xpose.msra.mxu0 0
        %6893 = vmatpush.bf16.xpose.msra.mxu0 %v3670
        %6894 = vmatmul.bf16.gmra.mxu0 %v1706
        %v6895 = vpop.f32.mrf.mxu0
        %v6896 = vadd.f32 %v6883, %v6895
        %v6897 = vpop.f32.mrf.mxu0
        %6898 = vdwg.mxu0
        %6899 = vmatpush.bf16.xpose.msra.mxu0 0
        %6900 = vmatpush.bf16.xpose.msra.mxu0 0
        %6901 = vmatpush.bf16.xpose.msra.mxu0 0
        %6902 = vmatpush.bf16.xpose.msra.mxu0 0
        %6903 = vmatpush.bf16.xpose.msra.mxu0 0
        %6904 = vmatpush.bf16.xpose.msra.mxu0 0
        %6905 = vmatpush.bf16.xpose.msra.mxu0 0
        %6906 = vmatpush.bf16.xpose.msra.mxu0 %v3671
        %6907 = vmatmul.bf16.gmra.mxu0 %v1707
        %v6908 = vpop.f32.mrf.mxu0
        %v6909 = vadd.f32 %v6896, %v6908
        %v6910 = vpop.f32.mrf.mxu0
        %6911 = vdwg.mxu0
        %6912 = vmatpush.bf16.xpose.msra.mxu0 0
        %6913 = vmatpush.bf16.xpose.msra.mxu0 0
        %6914 = vmatpush.bf16.xpose.msra.mxu0 0
        %6915 = vmatpush.bf16.xpose.msra.mxu0 0
        %6916 = vmatpush.bf16.xpose.msra.mxu0 0
        %6917 = vmatpush.bf16.xpose.msra.mxu0 0
        %6918 = vmatpush.bf16.xpose.msra.mxu0 0
        %6919 = vmatpush.bf16.xpose.msra.mxu0 %v3672
        %6920 = vmatmul.bf16.gmra.mxu0 %v1708
        %v6921 = vpop.f32.mrf.mxu0
        %v6922 = vadd.f32 %v6909, %v6921
        %v6923 = vpop.f32.mrf.mxu0
        %6924 = vdwg.mxu0
        %6925 = vmatpush.bf16.xpose.msra.mxu0 0
        %6926 = vmatpush.bf16.xpose.msra.mxu0 0
        %6927 = vmatpush.bf16.xpose.msra.mxu0 0
        %6928 = vmatpush.bf16.xpose.msra.mxu0 0
        %6929 = vmatpush.bf16.xpose.msra.mxu0 0
        %6930 = vmatpush.bf16.xpose.msra.mxu0 0
        %6931 = vmatpush.bf16.xpose.msra.mxu0 0
        %6932 = vmatpush.bf16.xpose.msra.mxu0 %v3673
        %6933 = vmatmul.bf16.gmra.mxu0 %v1709
        %v6934 = vpop.f32.mrf.mxu0
        %v6935 = vadd.f32 %v6922, %v6934
        %v6936 = vpop.f32.mrf.mxu0
        %6937 = vdwg.mxu0
        %6938 = vmatpush.bf16.xpose.msra.mxu0 0
        %6939 = vmatpush.bf16.xpose.msra.mxu0 0
        %6940 = vmatpush.bf16.xpose.msra.mxu0 0
        %6941 = vmatpush.bf16.xpose.msra.mxu0 0
        %6942 = vmatpush.bf16.xpose.msra.mxu0 0
        %6943 = vmatpush.bf16.xpose.msra.mxu0 0
        %6944 = vmatpush.bf16.xpose.msra.mxu0 0
        %6945 = vmatpush.bf16.xpose.msra.mxu0 %v3674
        %6946 = vmatmul.bf16.gmra.mxu0 %v1712
        %v6947 = vpop.f32.mrf.mxu0
        %v6948 = vadd.f32 %v6935, %v6947
        %v6949 = vpop.f32.mrf.mxu0
        %6950 = vdwg.mxu0
        %6951 = vmatpush.bf16.xpose.msra.mxu0 0
        %6952 = vmatpush.bf16.xpose.msra.mxu0 0
        %6953 = vmatpush.bf16.xpose.msra.mxu0 0
        %6954 = vmatpush.bf16.xpose.msra.mxu0 0
        %6955 = vmatpush.bf16.xpose.msra.mxu0 0
        %6956 = vmatpush.bf16.xpose.msra.mxu0 0
        %6957 = vmatpush.bf16.xpose.msra.mxu0 0
        %6958 = vmatpush.bf16.xpose.msra.mxu0 %v3675
        %6959 = vmatmul.bf16.gmra.mxu0 %v1713
        %v6960 = vpop.f32.mrf.mxu0
        %v6961 = vadd.f32 %v6948, %v6960
        %v6962 = vpop.f32.mrf.mxu0
        %6963 = vdwg.mxu0
        %6964 = vmatpush.bf16.xpose.msra.mxu0 0
        %6965 = vmatpush.bf16.xpose.msra.mxu0 0
        %6966 = vmatpush.bf16.xpose.msra.mxu0 0
        %6967 = vmatpush.bf16.xpose.msra.mxu0 0
        %6968 = vmatpush.bf16.xpose.msra.mxu0 0
        %6969 = vmatpush.bf16.xpose.msra.mxu0 0
        %6970 = vmatpush.bf16.xpose.msra.mxu0 0
        %6971 = vmatpush.bf16.xpose.msra.mxu0 %v3676
        %6972 = vmatmul.bf16.gmra.mxu0 %v1714
        %v6973 = vpop.f32.mrf.mxu0
        %v6974 = vadd.f32 %v6961, %v6973
        %v6975 = vpop.f32.mrf.mxu0
        %6976 = vdwg.mxu0
        %6977 = vmatpush.bf16.xpose.msra.mxu0 0
        %6978 = vmatpush.bf16.xpose.msra.mxu0 0
        %6979 = vmatpush.bf16.xpose.msra.mxu0 0
        %6980 = vmatpush.bf16.xpose.msra.mxu0 0
        %6981 = vmatpush.bf16.xpose.msra.mxu0 0
        %6982 = vmatpush.bf16.xpose.msra.mxu0 0
        %6983 = vmatpush.bf16.xpose.msra.mxu0 0
        %6984 = vmatpush.bf16.xpose.msra.mxu0 %v3677
        %6985 = vmatmul.bf16.gmra.mxu0 %v1715
        %v6986 = vpop.f32.mrf.mxu0
        %v6987 = vadd.f32 %v6974, %v6986
        %v6988 = vpop.f32.mrf.mxu0
        %6989 = vdwg.mxu0
        %6990 = vmatpush.bf16.xpose.msra.mxu0 0
        %6991 = vmatpush.bf16.xpose.msra.mxu0 0
        %6992 = vmatpush.bf16.xpose.msra.mxu0 0
        %6993 = vmatpush.bf16.xpose.msra.mxu0 0
        %6994 = vmatpush.bf16.xpose.msra.mxu0 0
        %6995 = vmatpush.bf16.xpose.msra.mxu0 0
        %6996 = vmatpush.bf16.xpose.msra.mxu0 0
        %6997 = vmatpush.bf16.xpose.msra.mxu0 %v3678
        %6998 = vmatmul.bf16.gmra.mxu0 %v1716
        %v6999 = vpop.f32.mrf.mxu0
        %v7000 = vadd.f32 %v6987, %v6999
        %v7001 = vpop.f32.mrf.mxu0
        %7002 = vdwg.mxu0
        %7003 = vmatpush.bf16.xpose.msra.mxu0 0
        %7004 = vmatpush.bf16.xpose.msra.mxu0 0
        %7005 = vmatpush.bf16.xpose.msra.mxu0 0
        %7006 = vmatpush.bf16.xpose.msra.mxu0 0
        %7007 = vmatpush.bf16.xpose.msra.mxu0 0
        %7008 = vmatpush.bf16.xpose.msra.mxu0 0
        %7009 = vmatpush.bf16.xpose.msra.mxu0 0
        %7010 = vmatpush.bf16.xpose.msra.mxu0 %v3679
        %7011 = vmatmul.bf16.gmra.mxu0 %v1717
        %v7012 = vpop.f32.mrf.mxu0
        %v7013 = vadd.f32 %v7000, %v7012
        %v7014 = vpop.f32.mrf.mxu0
        %7015 = vdwg.mxu0
        %7016 = vmatpush.bf16.xpose.msra.mxu0 0
        %7017 = vmatpush.bf16.xpose.msra.mxu0 0
        %7018 = vmatpush.bf16.xpose.msra.mxu0 0
        %7019 = vmatpush.bf16.xpose.msra.mxu0 0
        %7020 = vmatpush.bf16.xpose.msra.mxu0 0
        %7021 = vmatpush.bf16.xpose.msra.mxu0 0
        %7022 = vmatpush.bf16.xpose.msra.mxu0 0
        %7023 = vmatpush.bf16.xpose.msra.mxu0 %v3680
        %7024 = vmatmul.bf16.gmra.mxu0 %v1718
        %v7025 = vpop.f32.mrf.mxu0
        %v7026 = vadd.f32 %v7013, %v7025
        %v7027 = vpop.f32.mrf.mxu0
        %7028 = vdwg.mxu0
        %7029 = vmatpush.bf16.xpose.msra.mxu0 0
        %7030 = vmatpush.bf16.xpose.msra.mxu0 0
        %7031 = vmatpush.bf16.xpose.msra.mxu0 0
        %7032 = vmatpush.bf16.xpose.msra.mxu0 0
        %7033 = vmatpush.bf16.xpose.msra.mxu0 0
        %7034 = vmatpush.bf16.xpose.msra.mxu0 0
        %7035 = vmatpush.bf16.xpose.msra.mxu0 0
        %7036 = vmatpush.bf16.xpose.msra.mxu0 %v3681
        %7037 = vmatmul.bf16.gmra.mxu0 %v1719
        %v7038 = vpop.f32.mrf.mxu0
        %v7039 = vadd.f32 %v7026, %v7038
        %v7040 = vpop.f32.mrf.mxu0
        %7041 = vdwg.mxu0
        %7042 = vmatpush.bf16.xpose.msra.mxu0 0
        %7043 = vmatpush.bf16.xpose.msra.mxu0 0
        %7044 = vmatpush.bf16.xpose.msra.mxu0 0
        %7045 = vmatpush.bf16.xpose.msra.mxu0 0
        %7046 = vmatpush.bf16.xpose.msra.mxu0 0
        %7047 = vmatpush.bf16.xpose.msra.mxu0 0
        %7048 = vmatpush.bf16.xpose.msra.mxu0 0
        %7049 = vmatpush.bf16.xpose.msra.mxu0 %v3682
        %7050 = vmatmul.bf16.gmra.mxu0 %v1722
        %v7051 = vpop.f32.mrf.mxu0
        %v7052 = vadd.f32 %v7039, %v7051
        %v7053 = vpop.f32.mrf.mxu0
        %7054 = vdwg.mxu0
        %7055 = vmatpush.bf16.xpose.msra.mxu0 0
        %7056 = vmatpush.bf16.xpose.msra.mxu0 0
        %7057 = vmatpush.bf16.xpose.msra.mxu0 0
        %7058 = vmatpush.bf16.xpose.msra.mxu0 0
        %7059 = vmatpush.bf16.xpose.msra.mxu0 0
        %7060 = vmatpush.bf16.xpose.msra.mxu0 0
        %7061 = vmatpush.bf16.xpose.msra.mxu0 0
        %7062 = vmatpush.bf16.xpose.msra.mxu0 %v3683
        %7063 = vmatmul.bf16.gmra.mxu0 %v1723
        %v7064 = vpop.f32.mrf.mxu0
        %v7065 = vadd.f32 %v7052, %v7064
        %v7066 = vpop.f32.mrf.mxu0
        %7067 = vdwg.mxu0
        %7068 = vmatpush.bf16.xpose.msra.mxu0 0
        %7069 = vmatpush.bf16.xpose.msra.mxu0 0
        %7070 = vmatpush.bf16.xpose.msra.mxu0 0
        %7071 = vmatpush.bf16.xpose.msra.mxu0 0
        %7072 = vmatpush.bf16.xpose.msra.mxu0 0
        %7073 = vmatpush.bf16.xpose.msra.mxu0 0
        %7074 = vmatpush.bf16.xpose.msra.mxu0 0
        %7075 = vmatpush.bf16.xpose.msra.mxu0 %v3684
        %7076 = vmatmul.bf16.gmra.mxu0 %v1724
        %v7077 = vpop.f32.mrf.mxu0
        %v7078 = vadd.f32 %v7065, %v7077
        %v7079 = vpop.f32.mrf.mxu0
        %7080 = vdwg.mxu0
        %7081 = vmatpush.bf16.xpose.msra.mxu0 0
        %7082 = vmatpush.bf16.xpose.msra.mxu0 0
        %7083 = vmatpush.bf16.xpose.msra.mxu0 0
        %7084 = vmatpush.bf16.xpose.msra.mxu0 0
        %7085 = vmatpush.bf16.xpose.msra.mxu0 0
        %7086 = vmatpush.bf16.xpose.msra.mxu0 0
        %7087 = vmatpush.bf16.xpose.msra.mxu0 0
        %7088 = vmatpush.bf16.xpose.msra.mxu0 %v3685
        %7089 = vmatmul.bf16.gmra.mxu0 %v1725
        %v7090 = vpop.f32.mrf.mxu0
        %v7091 = vadd.f32 %v7078, %v7090
        %v7092 = vpop.f32.mrf.mxu0
        %7093 = vdwg.mxu0
        %7094 = vmatpush.bf16.xpose.msra.mxu0 0
        %7095 = vmatpush.bf16.xpose.msra.mxu0 0
        %7096 = vmatpush.bf16.xpose.msra.mxu0 0
        %7097 = vmatpush.bf16.xpose.msra.mxu0 0
        %7098 = vmatpush.bf16.xpose.msra.mxu0 0
        %7099 = vmatpush.bf16.xpose.msra.mxu0 0
        %7100 = vmatpush.bf16.xpose.msra.mxu0 0
        %7101 = vmatpush.bf16.xpose.msra.mxu0 %v3686
        %7102 = vmatmul.bf16.gmra.mxu0 %v1726
        %v7103 = vpop.f32.mrf.mxu0
        %v7104 = vadd.f32 %v7091, %v7103
        %v7105 = vpop.f32.mrf.mxu0
        %7106 = vdwg.mxu0
        %7107 = vmatpush.bf16.xpose.msra.mxu0 0
        %7108 = vmatpush.bf16.xpose.msra.mxu0 0
        %7109 = vmatpush.bf16.xpose.msra.mxu0 0
        %7110 = vmatpush.bf16.xpose.msra.mxu0 0
        %7111 = vmatpush.bf16.xpose.msra.mxu0 0
        %7112 = vmatpush.bf16.xpose.msra.mxu0 0
        %7113 = vmatpush.bf16.xpose.msra.mxu0 0
        %7114 = vmatpush.bf16.xpose.msra.mxu0 %v3687
        %7115 = vmatmul.bf16.gmra.mxu0 %v1727
        %v7116 = vpop.f32.mrf.mxu0
        %v7117 = vadd.f32 %v7104, %v7116
        %v7118 = vpop.f32.mrf.mxu0
        %7119 = vdwg.mxu0
        %7120 = vmatpush.bf16.xpose.msra.mxu0 0
        %7121 = vmatpush.bf16.xpose.msra.mxu0 0
        %7122 = vmatpush.bf16.xpose.msra.mxu0 0
        %7123 = vmatpush.bf16.xpose.msra.mxu0 0
        %7124 = vmatpush.bf16.xpose.msra.mxu0 0
        %7125 = vmatpush.bf16.xpose.msra.mxu0 0
        %7126 = vmatpush.bf16.xpose.msra.mxu0 0
        %7127 = vmatpush.bf16.xpose.msra.mxu0 %v3688
        %7128 = vmatmul.bf16.gmra.mxu0 %v1728
        %v7129 = vpop.f32.mrf.mxu0
        %v7130 = vadd.f32 %v7117, %v7129
        %v7131 = vpop.f32.mrf.mxu0
        %7132 = vdwg.mxu0
        %7133 = vmatpush.bf16.xpose.msra.mxu0 0
        %7134 = vmatpush.bf16.xpose.msra.mxu0 0
        %7135 = vmatpush.bf16.xpose.msra.mxu0 0
        %7136 = vmatpush.bf16.xpose.msra.mxu0 0
        %7137 = vmatpush.bf16.xpose.msra.mxu0 0
        %7138 = vmatpush.bf16.xpose.msra.mxu0 0
        %7139 = vmatpush.bf16.xpose.msra.mxu0 0
        %7140 = vmatpush.bf16.xpose.msra.mxu0 %v3689
        %7141 = vmatmul.bf16.gmra.mxu0 %v1729
        %v7142 = vpop.f32.mrf.mxu0
        %v7143 = vadd.f32 %v7130, %v7142
        %v7144 = vpop.f32.mrf.mxu0
        %7145 = vdwg.mxu0
        %7146 = vmatpush.bf16.xpose.msra.mxu0 0
        %7147 = vmatpush.bf16.xpose.msra.mxu0 0
        %7148 = vmatpush.bf16.xpose.msra.mxu0 0
        %7149 = vmatpush.bf16.xpose.msra.mxu0 0
        %7150 = vmatpush.bf16.xpose.msra.mxu0 0
        %7151 = vmatpush.bf16.xpose.msra.mxu0 0
        %7152 = vmatpush.bf16.xpose.msra.mxu0 0
        %7153 = vmatpush.bf16.xpose.msra.mxu0 %v3690
        %7154 = vmatmul.bf16.gmra.mxu0 %v1732
        %v7155 = vpop.f32.mrf.mxu0
        %v7156 = vadd.f32 %v7143, %v7155
        %v7157 = vpop.f32.mrf.mxu0
        %7158 = vdwg.mxu0
        %7159 = vmatpush.bf16.xpose.msra.mxu0 0
        %7160 = vmatpush.bf16.xpose.msra.mxu0 0
        %7161 = vmatpush.bf16.xpose.msra.mxu0 0
        %7162 = vmatpush.bf16.xpose.msra.mxu0 0
        %7163 = vmatpush.bf16.xpose.msra.mxu0 0
        %7164 = vmatpush.bf16.xpose.msra.mxu0 0
        %7165 = vmatpush.bf16.xpose.msra.mxu0 0
        %7166 = vmatpush.bf16.xpose.msra.mxu0 %v3691
        %7167 = vmatmul.bf16.gmra.mxu0 %v1733
        %v7168 = vpop.f32.mrf.mxu0
        %v7169 = vadd.f32 %v7156, %v7168
        %v7170 = vpop.f32.mrf.mxu0
        %7171 = vdwg.mxu0
        %7172 = vmatpush.bf16.xpose.msra.mxu0 0
        %7173 = vmatpush.bf16.xpose.msra.mxu0 0
        %7174 = vmatpush.bf16.xpose.msra.mxu0 0
        %7175 = vmatpush.bf16.xpose.msra.mxu0 0
        %7176 = vmatpush.bf16.xpose.msra.mxu0 0
        %7177 = vmatpush.bf16.xpose.msra.mxu0 0
        %7178 = vmatpush.bf16.xpose.msra.mxu0 0
        %7179 = vmatpush.bf16.xpose.msra.mxu0 %v3692
        %7180 = vmatmul.bf16.gmra.mxu0 %v1734
        %v7181 = vpop.f32.mrf.mxu0
        %v7182 = vadd.f32 %v7169, %v7181
        %v7183 = vpop.f32.mrf.mxu0
        %7184 = vdwg.mxu0
        %7185 = vmatpush.bf16.xpose.msra.mxu0 0
        %7186 = vmatpush.bf16.xpose.msra.mxu0 0
        %7187 = vmatpush.bf16.xpose.msra.mxu0 0
        %7188 = vmatpush.bf16.xpose.msra.mxu0 0
        %7189 = vmatpush.bf16.xpose.msra.mxu0 0
        %7190 = vmatpush.bf16.xpose.msra.mxu0 0
        %7191 = vmatpush.bf16.xpose.msra.mxu0 0
        %7192 = vmatpush.bf16.xpose.msra.mxu0 %v3693
        %7193 = vmatmul.bf16.gmra.mxu0 %v1735
        %v7194 = vpop.f32.mrf.mxu0
        %v7195 = vadd.f32 %v7182, %v7194
        %v7196 = vpop.f32.mrf.mxu0
        %7197 = vdwg.mxu0
        %7198 = vmatpush.bf16.xpose.msra.mxu0 0
        %7199 = vmatpush.bf16.xpose.msra.mxu0 0
        %7200 = vmatpush.bf16.xpose.msra.mxu0 0
        %7201 = vmatpush.bf16.xpose.msra.mxu0 0
        %7202 = vmatpush.bf16.xpose.msra.mxu0 0
        %7203 = vmatpush.bf16.xpose.msra.mxu0 0
        %7204 = vmatpush.bf16.xpose.msra.mxu0 0
        %7205 = vmatpush.bf16.xpose.msra.mxu0 %v3694
        %7206 = vmatmul.bf16.gmra.mxu0 %v1736
        %v7207 = vpop.f32.mrf.mxu0
        %v7208 = vadd.f32 %v7195, %v7207
        %v7209 = vpop.f32.mrf.mxu0
        %7210 = vdwg.mxu0
        %7211 = vmatpush.bf16.xpose.msra.mxu0 0
        %7212 = vmatpush.bf16.xpose.msra.mxu0 0
        %7213 = vmatpush.bf16.xpose.msra.mxu0 0
        %7214 = vmatpush.bf16.xpose.msra.mxu0 0
        %7215 = vmatpush.bf16.xpose.msra.mxu0 0
        %7216 = vmatpush.bf16.xpose.msra.mxu0 0
        %7217 = vmatpush.bf16.xpose.msra.mxu0 0
        %7218 = vmatpush.bf16.xpose.msra.mxu0 %v3695
        %7219 = vmatmul.bf16.gmra.mxu0 %v1737
        %v7220 = vpop.f32.mrf.mxu0
        %v7221 = vadd.f32 %v7208, %v7220
        %v7222 = vpop.f32.mrf.mxu0
        %7223 = vdwg.mxu0
        %7224 = vmatpush.bf16.xpose.msra.mxu0 0
        %7225 = vmatpush.bf16.xpose.msra.mxu0 0
        %7226 = vmatpush.bf16.xpose.msra.mxu0 0
        %7227 = vmatpush.bf16.xpose.msra.mxu0 0
        %7228 = vmatpush.bf16.xpose.msra.mxu0 0
        %7229 = vmatpush.bf16.xpose.msra.mxu0 0
        %7230 = vmatpush.bf16.xpose.msra.mxu0 0
        %7231 = vmatpush.bf16.xpose.msra.mxu0 %v3696
        %7232 = vmatmul.bf16.gmra.mxu0 %v1738
        %v7233 = vpop.f32.mrf.mxu0
        %v7234 = vadd.f32 %v7221, %v7233
        %v7235 = vpop.f32.mrf.mxu0
        %7236 = vdwg.mxu0
        %7237 = vmatpush.bf16.xpose.msra.mxu0 0
        %7238 = vmatpush.bf16.xpose.msra.mxu0 0
        %7239 = vmatpush.bf16.xpose.msra.mxu0 0
        %7240 = vmatpush.bf16.xpose.msra.mxu0 0
        %7241 = vmatpush.bf16.xpose.msra.mxu0 0
        %7242 = vmatpush.bf16.xpose.msra.mxu0 0
        %7243 = vmatpush.bf16.xpose.msra.mxu0 0
        %7244 = vmatpush.bf16.xpose.msra.mxu0 %v3697
        %7245 = vmatmul.bf16.gmra.mxu0 %v1739
        %v7246 = vpop.f32.mrf.mxu0
        %v7247 = vadd.f32 %v7234, %v7246
        %v7248 = vpop.f32.mrf.mxu0
        %7249 = vdwg.mxu0
        %7250 = vmatpush.bf16.xpose.msra.mxu0 0
        %7251 = vmatpush.bf16.xpose.msra.mxu0 0
        %7252 = vmatpush.bf16.xpose.msra.mxu0 0
        %7253 = vmatpush.bf16.xpose.msra.mxu0 0
        %7254 = vmatpush.bf16.xpose.msra.mxu0 0
        %7255 = vmatpush.bf16.xpose.msra.mxu0 0
        %7256 = vmatpush.bf16.xpose.msra.mxu0 0
        %7257 = vmatpush.bf16.xpose.msra.mxu0 %v3698
        %7258 = vmatmul.bf16.gmra.mxu0 %v1742
        %v7259 = vpop.f32.mrf.mxu0
        %v7260 = vadd.f32 %v7247, %v7259
        %v7261 = vpop.f32.mrf.mxu0
        %7262 = vdwg.mxu0
        %7263 = vmatpush.bf16.xpose.msra.mxu0 0
        %7264 = vmatpush.bf16.xpose.msra.mxu0 0
        %7265 = vmatpush.bf16.xpose.msra.mxu0 0
        %7266 = vmatpush.bf16.xpose.msra.mxu0 0
        %7267 = vmatpush.bf16.xpose.msra.mxu0 0
        %7268 = vmatpush.bf16.xpose.msra.mxu0 0
        %7269 = vmatpush.bf16.xpose.msra.mxu0 0
        %7270 = vmatpush.bf16.xpose.msra.mxu0 %v3699
        %7271 = vmatmul.bf16.gmra.mxu0 %v1743
        %v7272 = vpop.f32.mrf.mxu0
        %v7273 = vadd.f32 %v7260, %v7272
        %v7274 = vpop.f32.mrf.mxu0
        %7275 = vdwg.mxu0
        %7276 = vmatpush.bf16.xpose.msra.mxu0 0
        %7277 = vmatpush.bf16.xpose.msra.mxu0 0
        %7278 = vmatpush.bf16.xpose.msra.mxu0 0
        %7279 = vmatpush.bf16.xpose.msra.mxu0 0
        %7280 = vmatpush.bf16.xpose.msra.mxu0 0
        %7281 = vmatpush.bf16.xpose.msra.mxu0 0
        %7282 = vmatpush.bf16.xpose.msra.mxu0 0
        %7283 = vmatpush.bf16.xpose.msra.mxu0 %v3700
        %7284 = vmatmul.bf16.gmra.mxu0 %v1744
        %v7285 = vpop.f32.mrf.mxu0
        %v7286 = vadd.f32 %v7273, %v7285
        %v7287 = vpop.f32.mrf.mxu0
        %7288 = vdwg.mxu0
        %7289 = vmatpush.bf16.xpose.msra.mxu0 0
        %7290 = vmatpush.bf16.xpose.msra.mxu0 0
        %7291 = vmatpush.bf16.xpose.msra.mxu0 0
        %7292 = vmatpush.bf16.xpose.msra.mxu0 0
        %7293 = vmatpush.bf16.xpose.msra.mxu0 0
        %7294 = vmatpush.bf16.xpose.msra.mxu0 0
        %7295 = vmatpush.bf16.xpose.msra.mxu0 0
        %7296 = vmatpush.bf16.xpose.msra.mxu0 %v3701
        %7297 = vmatmul.bf16.gmra.mxu0 %v1745
        %v7298 = vpop.f32.mrf.mxu0
        %v7299 = vadd.f32 %v7286, %v7298
        %v7300 = vpop.f32.mrf.mxu0
        %7301 = vdwg.mxu0
        %7302 = vmatpush.bf16.xpose.msra.mxu0 0
        %7303 = vmatpush.bf16.xpose.msra.mxu0 0
        %7304 = vmatpush.bf16.xpose.msra.mxu0 0
        %7305 = vmatpush.bf16.xpose.msra.mxu0 0
        %7306 = vmatpush.bf16.xpose.msra.mxu0 0
        %7307 = vmatpush.bf16.xpose.msra.mxu0 0
        %7308 = vmatpush.bf16.xpose.msra.mxu0 0
        %7309 = vmatpush.bf16.xpose.msra.mxu0 %v3702
        %7310 = vmatmul.bf16.gmra.mxu0 %v1746
        %v7311 = vpop.f32.mrf.mxu0
        %v7312 = vadd.f32 %v7299, %v7311
        %v7313 = vpop.f32.mrf.mxu0
        %7314 = vdwg.mxu0
        %7315 = vmatpush.bf16.xpose.msra.mxu0 0
        %7316 = vmatpush.bf16.xpose.msra.mxu0 0
        %7317 = vmatpush.bf16.xpose.msra.mxu0 0
        %7318 = vmatpush.bf16.xpose.msra.mxu0 0
        %7319 = vmatpush.bf16.xpose.msra.mxu0 0
        %7320 = vmatpush.bf16.xpose.msra.mxu0 0
        %7321 = vmatpush.bf16.xpose.msra.mxu0 0
        %7322 = vmatpush.bf16.xpose.msra.mxu0 %v3703
        %7323 = vmatmul.bf16.gmra.mxu0 %v1747
        %v7324 = vpop.f32.mrf.mxu0
        %v7325 = vadd.f32 %v7312, %v7324
        %v7326 = vpop.f32.mrf.mxu0
        %7327 = vdwg.mxu0
        %7328 = vmatpush.bf16.xpose.msra.mxu0 0
        %7329 = vmatpush.bf16.xpose.msra.mxu0 0
        %7330 = vmatpush.bf16.xpose.msra.mxu0 0
        %7331 = vmatpush.bf16.xpose.msra.mxu0 0
        %7332 = vmatpush.bf16.xpose.msra.mxu0 0
        %7333 = vmatpush.bf16.xpose.msra.mxu0 0
        %7334 = vmatpush.bf16.xpose.msra.mxu0 0
        %7335 = vmatpush.bf16.xpose.msra.mxu0 %v3704
        %7336 = vmatmul.bf16.gmra.mxu0 %v1748
        %v7337 = vpop.f32.mrf.mxu0
        %v7338 = vadd.f32 %v7325, %v7337
        %v7339 = vpop.f32.mrf.mxu0
        %7340 = vdwg.mxu0
        %7341 = vmatpush.bf16.xpose.msra.mxu0 0
        %7342 = vmatpush.bf16.xpose.msra.mxu0 0
        %7343 = vmatpush.bf16.xpose.msra.mxu0 0
        %7344 = vmatpush.bf16.xpose.msra.mxu0 0
        %7345 = vmatpush.bf16.xpose.msra.mxu0 0
        %7346 = vmatpush.bf16.xpose.msra.mxu0 0
        %7347 = vmatpush.bf16.xpose.msra.mxu0 0
        %7348 = vmatpush.bf16.xpose.msra.mxu0 %v3705
        %7349 = vmatmul.bf16.gmra.mxu0 %v1749
        %v7350 = vpop.f32.mrf.mxu0
        %v7351 = vadd.f32 %v7338, %v7350
        %v7352 = vpop.f32.mrf.mxu0
        %7353 = vdwg.mxu0
        %7354 = vmatpush.bf16.xpose.msra.mxu0 0
        %7355 = vmatpush.bf16.xpose.msra.mxu0 0
        %7356 = vmatpush.bf16.xpose.msra.mxu0 0
        %7357 = vmatpush.bf16.xpose.msra.mxu0 0
        %7358 = vmatpush.bf16.xpose.msra.mxu0 0
        %7359 = vmatpush.bf16.xpose.msra.mxu0 0
        %7360 = vmatpush.bf16.xpose.msra.mxu0 0
        %7361 = vmatpush.bf16.xpose.msra.mxu0 %v3706
        %7362 = vmatmul.bf16.gmra.mxu0 %v1752
        %v7363 = vpop.f32.mrf.mxu0
        %v7364 = vadd.f32 %v7351, %v7363
        %v7365 = vpop.f32.mrf.mxu0
        %7366 = vdwg.mxu0
        %7367 = vmatpush.bf16.xpose.msra.mxu0 0
        %7368 = vmatpush.bf16.xpose.msra.mxu0 0
        %7369 = vmatpush.bf16.xpose.msra.mxu0 0
        %7370 = vmatpush.bf16.xpose.msra.mxu0 0
        %7371 = vmatpush.bf16.xpose.msra.mxu0 0
        %7372 = vmatpush.bf16.xpose.msra.mxu0 0
        %7373 = vmatpush.bf16.xpose.msra.mxu0 0
        %7374 = vmatpush.bf16.xpose.msra.mxu0 %v3707
        %7375 = vmatmul.bf16.gmra.mxu0 %v1753
        %v7376 = vpop.f32.mrf.mxu0
        %v7377 = vadd.f32 %v7364, %v7376
        %v7378 = vpop.f32.mrf.mxu0
        %7379 = vdwg.mxu0
        %7380 = vmatpush.bf16.xpose.msra.mxu0 0
        %7381 = vmatpush.bf16.xpose.msra.mxu0 0
        %7382 = vmatpush.bf16.xpose.msra.mxu0 0
        %7383 = vmatpush.bf16.xpose.msra.mxu0 0
        %7384 = vmatpush.bf16.xpose.msra.mxu0 0
        %7385 = vmatpush.bf16.xpose.msra.mxu0 0
        %7386 = vmatpush.bf16.xpose.msra.mxu0 0
        %7387 = vmatpush.bf16.xpose.msra.mxu0 %v3708
        %7388 = vmatmul.bf16.gmra.mxu0 %v1754
        %v7389 = vpop.f32.mrf.mxu0
        %v7390 = vadd.f32 %v7377, %v7389
        %v7391 = vpop.f32.mrf.mxu0
        %7392 = vdwg.mxu0
        %7393 = vmatpush.bf16.xpose.msra.mxu0 0
        %7394 = vmatpush.bf16.xpose.msra.mxu0 0
        %7395 = vmatpush.bf16.xpose.msra.mxu0 0
        %7396 = vmatpush.bf16.xpose.msra.mxu0 0
        %7397 = vmatpush.bf16.xpose.msra.mxu0 0
        %7398 = vmatpush.bf16.xpose.msra.mxu0 0
        %7399 = vmatpush.bf16.xpose.msra.mxu0 0
        %7400 = vmatpush.bf16.xpose.msra.mxu0 %v3709
        %7401 = vmatmul.bf16.gmra.mxu0 %v1755
        %v7402 = vpop.f32.mrf.mxu0
        %v7403 = vadd.f32 %v7390, %v7402
        %v7404 = vpop.f32.mrf.mxu0
        %7405 = vdwg.mxu0
        %7406 = vmatpush.bf16.xpose.msra.mxu0 0
        %7407 = vmatpush.bf16.xpose.msra.mxu0 0
        %7408 = vmatpush.bf16.xpose.msra.mxu0 0
        %7409 = vmatpush.bf16.xpose.msra.mxu0 0
        %7410 = vmatpush.bf16.xpose.msra.mxu0 0
        %7411 = vmatpush.bf16.xpose.msra.mxu0 0
        %7412 = vmatpush.bf16.xpose.msra.mxu0 0
        %7413 = vmatpush.bf16.xpose.msra.mxu0 %v3710
        %7414 = vmatmul.bf16.gmra.mxu0 %v1756
        %v7415 = vpop.f32.mrf.mxu0
        %v7416 = vadd.f32 %v7403, %v7415
        %v7417 = vpop.f32.mrf.mxu0
        %7418 = vdwg.mxu0
        %7419 = vmatpush.bf16.xpose.msra.mxu0 0
        %7420 = vmatpush.bf16.xpose.msra.mxu0 0
        %7421 = vmatpush.bf16.xpose.msra.mxu0 0
        %7422 = vmatpush.bf16.xpose.msra.mxu0 0
        %7423 = vmatpush.bf16.xpose.msra.mxu0 0
        %7424 = vmatpush.bf16.xpose.msra.mxu0 0
        %7425 = vmatpush.bf16.xpose.msra.mxu0 0
        %7426 = vmatpush.bf16.xpose.msra.mxu0 %v3711
        %7427 = vmatmul.bf16.gmra.mxu0 %v1757
        %v7428 = vpop.f32.mrf.mxu0
        %v7429 = vadd.f32 %v7416, %v7428
        %v7430 = vpop.f32.mrf.mxu0
        %7431 = vdwg.mxu0
        %7432 = vmatpush.bf16.xpose.msra.mxu0 0
        %7433 = vmatpush.bf16.xpose.msra.mxu0 0
        %7434 = vmatpush.bf16.xpose.msra.mxu0 0
        %7435 = vmatpush.bf16.xpose.msra.mxu0 0
        %7436 = vmatpush.bf16.xpose.msra.mxu0 0
        %7437 = vmatpush.bf16.xpose.msra.mxu0 0
        %7438 = vmatpush.bf16.xpose.msra.mxu0 0
        %7439 = vmatpush.bf16.xpose.msra.mxu0 %v3712
        %7440 = vmatmul.bf16.gmra.mxu0 %v1758
        %v7441 = vpop.f32.mrf.mxu0
        %v7442 = vadd.f32 %v7429, %v7441
        %v7443 = vpop.f32.mrf.mxu0
        %7444 = vdwg.mxu0
        %7445 = vmatpush.bf16.xpose.msra.mxu0 0
        %7446 = vmatpush.bf16.xpose.msra.mxu0 0
        %7447 = vmatpush.bf16.xpose.msra.mxu0 0
        %7448 = vmatpush.bf16.xpose.msra.mxu0 0
        %7449 = vmatpush.bf16.xpose.msra.mxu0 0
        %7450 = vmatpush.bf16.xpose.msra.mxu0 0
        %7451 = vmatpush.bf16.xpose.msra.mxu0 0
        %7452 = vmatpush.bf16.xpose.msra.mxu0 %v3713
        %7453 = vmatmul.bf16.gmra.mxu0 %v1759
        %v7454 = vpop.f32.mrf.mxu0
        %v7455 = vadd.f32 %v7442, %v7454
        %v7456 = vpop.f32.mrf.mxu0
        %7457 = vdwg.mxu0
        %7458 = vmatpush.bf16.xpose.msra.mxu0 0
        %7459 = vmatpush.bf16.xpose.msra.mxu0 0
        %7460 = vmatpush.bf16.xpose.msra.mxu0 0
        %7461 = vmatpush.bf16.xpose.msra.mxu0 0
        %7462 = vmatpush.bf16.xpose.msra.mxu0 0
        %7463 = vmatpush.bf16.xpose.msra.mxu0 0
        %7464 = vmatpush.bf16.xpose.msra.mxu0 0
        %7465 = vmatpush.bf16.xpose.msra.mxu0 %v3714
        %7466 = vmatmul.bf16.gmra.mxu0 %v1762
        %v7467 = vpop.f32.mrf.mxu0
        %v7468 = vadd.f32 %v7455, %v7467
        %v7469 = vpop.f32.mrf.mxu0
        %7470 = vdwg.mxu0
        %7471 = vmatpush.bf16.xpose.msra.mxu0 0
        %7472 = vmatpush.bf16.xpose.msra.mxu0 0
        %7473 = vmatpush.bf16.xpose.msra.mxu0 0
        %7474 = vmatpush.bf16.xpose.msra.mxu0 0
        %7475 = vmatpush.bf16.xpose.msra.mxu0 0
        %7476 = vmatpush.bf16.xpose.msra.mxu0 0
        %7477 = vmatpush.bf16.xpose.msra.mxu0 0
        %7478 = vmatpush.bf16.xpose.msra.mxu0 %v3715
        %7479 = vmatmul.bf16.gmra.mxu0 %v1763
        %v7480 = vpop.f32.mrf.mxu0
        %v7481 = vadd.f32 %v7468, %v7480
        %v7482 = vpop.f32.mrf.mxu0
        %7483 = vdwg.mxu0
        %7484 = vmatpush.bf16.xpose.msra.mxu0 0
        %7485 = vmatpush.bf16.xpose.msra.mxu0 0
        %7486 = vmatpush.bf16.xpose.msra.mxu0 0
        %7487 = vmatpush.bf16.xpose.msra.mxu0 0
        %7488 = vmatpush.bf16.xpose.msra.mxu0 0
        %7489 = vmatpush.bf16.xpose.msra.mxu0 0
        %7490 = vmatpush.bf16.xpose.msra.mxu0 0
        %7491 = vmatpush.bf16.xpose.msra.mxu0 %v3716
        %7492 = vmatmul.bf16.gmra.mxu0 %v1764
        %v7493 = vpop.f32.mrf.mxu0
        %v7494 = vadd.f32 %v7481, %v7493
        %v7495 = vpop.f32.mrf.mxu0
        %7496 = vdwg.mxu0
        %7497 = vmatpush.bf16.xpose.msra.mxu0 0
        %7498 = vmatpush.bf16.xpose.msra.mxu0 0
        %7499 = vmatpush.bf16.xpose.msra.mxu0 0
        %7500 = vmatpush.bf16.xpose.msra.mxu0 0
        %7501 = vmatpush.bf16.xpose.msra.mxu0 0
        %7502 = vmatpush.bf16.xpose.msra.mxu0 0
        %7503 = vmatpush.bf16.xpose.msra.mxu0 0
        %7504 = vmatpush.bf16.xpose.msra.mxu0 %v3717
        %7505 = vmatmul.bf16.gmra.mxu0 %v1765
        %v7506 = vpop.f32.mrf.mxu0
        %v7507 = vadd.f32 %v7494, %v7506
        %v7508 = vpop.f32.mrf.mxu0
        %7509 = vdwg.mxu0
        %7510 = vmatpush.bf16.xpose.msra.mxu0 0
        %7511 = vmatpush.bf16.xpose.msra.mxu0 0
        %7512 = vmatpush.bf16.xpose.msra.mxu0 0
        %7513 = vmatpush.bf16.xpose.msra.mxu0 0
        %7514 = vmatpush.bf16.xpose.msra.mxu0 0
        %7515 = vmatpush.bf16.xpose.msra.mxu0 0
        %7516 = vmatpush.bf16.xpose.msra.mxu0 0
        %7517 = vmatpush.bf16.xpose.msra.mxu0 %v3718
        %7518 = vmatmul.bf16.gmra.mxu0 %v1766
        %v7519 = vpop.f32.mrf.mxu0
        %v7520 = vadd.f32 %v7507, %v7519
        %v7521 = vpop.f32.mrf.mxu0
        %7522 = vdwg.mxu0
        %7523 = vmatpush.bf16.xpose.msra.mxu0 0
        %7524 = vmatpush.bf16.xpose.msra.mxu0 0
        %7525 = vmatpush.bf16.xpose.msra.mxu0 0
        %7526 = vmatpush.bf16.xpose.msra.mxu0 0
        %7527 = vmatpush.bf16.xpose.msra.mxu0 0
        %7528 = vmatpush.bf16.xpose.msra.mxu0 0
        %7529 = vmatpush.bf16.xpose.msra.mxu0 0
        %7530 = vmatpush.bf16.xpose.msra.mxu0 %v3719
        %7531 = vmatmul.bf16.gmra.mxu0 %v1767
        %v7532 = vpop.f32.mrf.mxu0
        %v7533 = vadd.f32 %v7520, %v7532
        %v7534 = vpop.f32.mrf.mxu0
        %7535 = vdwg.mxu0
        %7536 = vmatpush.bf16.xpose.msra.mxu0 0
        %7537 = vmatpush.bf16.xpose.msra.mxu0 0
        %7538 = vmatpush.bf16.xpose.msra.mxu0 0
        %7539 = vmatpush.bf16.xpose.msra.mxu0 0
        %7540 = vmatpush.bf16.xpose.msra.mxu0 0
        %7541 = vmatpush.bf16.xpose.msra.mxu0 0
        %7542 = vmatpush.bf16.xpose.msra.mxu0 0
        %7543 = vmatpush.bf16.xpose.msra.mxu0 %v3720
        %7544 = vmatmul.bf16.gmra.mxu0 %v1768
        %v7545 = vpop.f32.mrf.mxu0
        %v7546 = vadd.f32 %v7533, %v7545
        %v7547 = vpop.f32.mrf.mxu0
        %7548 = vdwg.mxu0
        %7549 = vmatpush.bf16.xpose.msra.mxu0 0
        %7550 = vmatpush.bf16.xpose.msra.mxu0 0
        %7551 = vmatpush.bf16.xpose.msra.mxu0 0
        %7552 = vmatpush.bf16.xpose.msra.mxu0 0
        %7553 = vmatpush.bf16.xpose.msra.mxu0 0
        %7554 = vmatpush.bf16.xpose.msra.mxu0 0
        %7555 = vmatpush.bf16.xpose.msra.mxu0 0
        %7556 = vmatpush.bf16.xpose.msra.mxu0 %v3721
        %7557 = vmatmul.bf16.gmra.mxu0 %v1769
        %v7558 = vpop.f32.mrf.mxu0
        %v7559 = vadd.f32 %v7546, %v7558
        %v7560 = vpop.f32.mrf.mxu0
        %7561 = vdwg.mxu0
        %7562 = vmatpush.bf16.xpose.msra.mxu0 0
        %7563 = vmatpush.bf16.xpose.msra.mxu0 0
        %7564 = vmatpush.bf16.xpose.msra.mxu0 0
        %7565 = vmatpush.bf16.xpose.msra.mxu0 0
        %7566 = vmatpush.bf16.xpose.msra.mxu0 0
        %7567 = vmatpush.bf16.xpose.msra.mxu0 0
        %7568 = vmatpush.bf16.xpose.msra.mxu0 0
        %7569 = vmatpush.bf16.xpose.msra.mxu0 %v3722
        %7570 = vmatmul.bf16.gmra.mxu0 %v1772
        %v7571 = vpop.f32.mrf.mxu0
        %v7572 = vadd.f32 %v7559, %v7571
        %v7573 = vpop.f32.mrf.mxu0
        %7574 = vdwg.mxu0
        %7575 = vmatpush.bf16.xpose.msra.mxu0 0
        %7576 = vmatpush.bf16.xpose.msra.mxu0 0
        %7577 = vmatpush.bf16.xpose.msra.mxu0 0
        %7578 = vmatpush.bf16.xpose.msra.mxu0 0
        %7579 = vmatpush.bf16.xpose.msra.mxu0 0
        %7580 = vmatpush.bf16.xpose.msra.mxu0 0
        %7581 = vmatpush.bf16.xpose.msra.mxu0 0
        %7582 = vmatpush.bf16.xpose.msra.mxu0 %v3723
        %7583 = vmatmul.bf16.gmra.mxu0 %v1773
        %v7584 = vpop.f32.mrf.mxu0
        %v7585 = vadd.f32 %v7572, %v7584
        %v7586 = vpop.f32.mrf.mxu0
        %7587 = vdwg.mxu0
        %7588 = vmatpush.bf16.xpose.msra.mxu0 0
        %7589 = vmatpush.bf16.xpose.msra.mxu0 0
        %7590 = vmatpush.bf16.xpose.msra.mxu0 0
        %7591 = vmatpush.bf16.xpose.msra.mxu0 0
        %7592 = vmatpush.bf16.xpose.msra.mxu0 0
        %7593 = vmatpush.bf16.xpose.msra.mxu0 0
        %7594 = vmatpush.bf16.xpose.msra.mxu0 0
        %7595 = vmatpush.bf16.xpose.msra.mxu0 %v3724
        %7596 = vmatmul.bf16.gmra.mxu0 %v1774
        %v7597 = vpop.f32.mrf.mxu0
        %v7598 = vadd.f32 %v7585, %v7597
        %v7599 = vpop.f32.mrf.mxu0
        %7600 = vdwg.mxu0
        %7601 = vmatpush.bf16.xpose.msra.mxu0 0
        %7602 = vmatpush.bf16.xpose.msra.mxu0 0
        %7603 = vmatpush.bf16.xpose.msra.mxu0 0
        %7604 = vmatpush.bf16.xpose.msra.mxu0 0
        %7605 = vmatpush.bf16.xpose.msra.mxu0 0
        %7606 = vmatpush.bf16.xpose.msra.mxu0 0
        %7607 = vmatpush.bf16.xpose.msra.mxu0 0
        %7608 = vmatpush.bf16.xpose.msra.mxu0 %v3725
        %7609 = vmatmul.bf16.gmra.mxu0 %v1775
        %v7610 = vpop.f32.mrf.mxu0
        %v7611 = vadd.f32 %v7598, %v7610
        %v7612 = vpop.f32.mrf.mxu0
        %7613 = vdwg.mxu0
        %7614 = vmatpush.bf16.xpose.msra.mxu0 0
        %7615 = vmatpush.bf16.xpose.msra.mxu0 0
        %7616 = vmatpush.bf16.xpose.msra.mxu0 0
        %7617 = vmatpush.bf16.xpose.msra.mxu0 0
        %7618 = vmatpush.bf16.xpose.msra.mxu0 0
        %7619 = vmatpush.bf16.xpose.msra.mxu0 0
        %7620 = vmatpush.bf16.xpose.msra.mxu0 0
        %7621 = vmatpush.bf16.xpose.msra.mxu0 %v3726
        %7622 = vmatmul.bf16.gmra.mxu0 %v1776
        %v7623 = vpop.f32.mrf.mxu0
        %v7624 = vadd.f32 %v7611, %v7623
        %v7625 = vpop.f32.mrf.mxu0
        %7626 = vdwg.mxu0
        %7627 = vmatpush.bf16.xpose.msra.mxu0 0
        %7628 = vmatpush.bf16.xpose.msra.mxu0 0
        %7629 = vmatpush.bf16.xpose.msra.mxu0 0
        %7630 = vmatpush.bf16.xpose.msra.mxu0 0
        %7631 = vmatpush.bf16.xpose.msra.mxu0 0
        %7632 = vmatpush.bf16.xpose.msra.mxu0 0
        %7633 = vmatpush.bf16.xpose.msra.mxu0 0
        %7634 = vmatpush.bf16.xpose.msra.mxu0 %v3727
        %7635 = vmatmul.bf16.gmra.mxu0 %v1777
        %v7636 = vpop.f32.mrf.mxu0
        %v7637 = vadd.f32 %v7624, %v7636
        %v7638 = vpop.f32.mrf.mxu0
        %7639 = vdwg.mxu0
        %7640 = vmatpush.bf16.xpose.msra.mxu0 0
        %7641 = vmatpush.bf16.xpose.msra.mxu0 0
        %7642 = vmatpush.bf16.xpose.msra.mxu0 0
        %7643 = vmatpush.bf16.xpose.msra.mxu0 0
        %7644 = vmatpush.bf16.xpose.msra.mxu0 0
        %7645 = vmatpush.bf16.xpose.msra.mxu0 0
        %7646 = vmatpush.bf16.xpose.msra.mxu0 0
        %7647 = vmatpush.bf16.xpose.msra.mxu0 %v3728
        %7648 = vmatmul.bf16.gmra.mxu0 %v1778
        %v7649 = vpop.f32.mrf.mxu0
        %v7650 = vadd.f32 %v7637, %v7649
        %v7651 = vpop.f32.mrf.mxu0
        %7652 = vdwg.mxu0
        %7653 = vmatpush.bf16.xpose.msra.mxu0 0
        %7654 = vmatpush.bf16.xpose.msra.mxu0 0
        %7655 = vmatpush.bf16.xpose.msra.mxu0 0
        %7656 = vmatpush.bf16.xpose.msra.mxu0 0
        %7657 = vmatpush.bf16.xpose.msra.mxu0 0
        %7658 = vmatpush.bf16.xpose.msra.mxu0 0
        %7659 = vmatpush.bf16.xpose.msra.mxu0 0
        %7660 = vmatpush.bf16.xpose.msra.mxu0 %v3729
        %7661 = vmatmul.bf16.gmra.mxu0 %v1779
        %v7662 = vpop.f32.mrf.mxu0
        %v7663 = vadd.f32 %v7650, %v7662
        %v7664 = vpop.f32.mrf.mxu0
        %7665 = vdwg.mxu0
        %7666 = vmatpush.bf16.xpose.msra.mxu0 0
        %7667 = vmatpush.bf16.xpose.msra.mxu0 0
        %7668 = vmatpush.bf16.xpose.msra.mxu0 0
        %7669 = vmatpush.bf16.xpose.msra.mxu0 0
        %7670 = vmatpush.bf16.xpose.msra.mxu0 0
        %7671 = vmatpush.bf16.xpose.msra.mxu0 0
        %7672 = vmatpush.bf16.xpose.msra.mxu0 0
        %7673 = vmatpush.bf16.xpose.msra.mxu0 %v3730
        %7674 = vmatmul.bf16.gmra.mxu0 %v1782
        %v7675 = vpop.f32.mrf.mxu0
        %v7676 = vadd.f32 %v7663, %v7675
        %v7677 = vpop.f32.mrf.mxu0
        %7678 = vdwg.mxu0
        %7679 = vmatpush.bf16.xpose.msra.mxu0 0
        %7680 = vmatpush.bf16.xpose.msra.mxu0 0
        %7681 = vmatpush.bf16.xpose.msra.mxu0 0
        %7682 = vmatpush.bf16.xpose.msra.mxu0 0
        %7683 = vmatpush.bf16.xpose.msra.mxu0 0
        %7684 = vmatpush.bf16.xpose.msra.mxu0 0
        %7685 = vmatpush.bf16.xpose.msra.mxu0 0
        %7686 = vmatpush.bf16.xpose.msra.mxu0 %v3731
        %7687 = vmatmul.bf16.gmra.mxu0 %v1783
        %v7688 = vpop.f32.mrf.mxu0
        %v7689 = vadd.f32 %v7676, %v7688
        %v7690 = vpop.f32.mrf.mxu0
        %7691 = vdwg.mxu0
        %7692 = vmatpush.bf16.xpose.msra.mxu0 0
        %7693 = vmatpush.bf16.xpose.msra.mxu0 0
        %7694 = vmatpush.bf16.xpose.msra.mxu0 0
        %7695 = vmatpush.bf16.xpose.msra.mxu0 0
        %7696 = vmatpush.bf16.xpose.msra.mxu0 0
        %7697 = vmatpush.bf16.xpose.msra.mxu0 0
        %7698 = vmatpush.bf16.xpose.msra.mxu0 0
        %7699 = vmatpush.bf16.xpose.msra.mxu0 %v3732
        %7700 = vmatmul.bf16.gmra.mxu0 %v1784
        %v7701 = vpop.f32.mrf.mxu0
        %v7702 = vadd.f32 %v7689, %v7701
        %v7703 = vpop.f32.mrf.mxu0
        %7704 = vdwg.mxu0
        %7705 = vmatpush.bf16.xpose.msra.mxu0 0
        %7706 = vmatpush.bf16.xpose.msra.mxu0 0
        %7707 = vmatpush.bf16.xpose.msra.mxu0 0
        %7708 = vmatpush.bf16.xpose.msra.mxu0 0
        %7709 = vmatpush.bf16.xpose.msra.mxu0 0
        %7710 = vmatpush.bf16.xpose.msra.mxu0 0
        %7711 = vmatpush.bf16.xpose.msra.mxu0 0
        %7712 = vmatpush.bf16.xpose.msra.mxu0 %v3733
        %7713 = vmatmul.bf16.gmra.mxu0 %v1785
        %v7714 = vpop.f32.mrf.mxu0
        %v7715 = vadd.f32 %v7702, %v7714
        %v7716 = vpop.f32.mrf.mxu0
        %7717 = vdwg.mxu0
        %7718 = vmatpush.bf16.xpose.msra.mxu0 0
        %7719 = vmatpush.bf16.xpose.msra.mxu0 0
        %7720 = vmatpush.bf16.xpose.msra.mxu0 0
        %7721 = vmatpush.bf16.xpose.msra.mxu0 0
        %7722 = vmatpush.bf16.xpose.msra.mxu0 0
        %7723 = vmatpush.bf16.xpose.msra.mxu0 0
        %7724 = vmatpush.bf16.xpose.msra.mxu0 0
        %7725 = vmatpush.bf16.xpose.msra.mxu0 %v3734
        %7726 = vmatmul.bf16.gmra.mxu0 %v1786
        %v7727 = vpop.f32.mrf.mxu0
        %v7728 = vadd.f32 %v7715, %v7727
        %v7729 = vpop.f32.mrf.mxu0
        %7730 = vdwg.mxu0
        %7731 = vmatpush.bf16.xpose.msra.mxu0 0
        %7732 = vmatpush.bf16.xpose.msra.mxu0 0
        %7733 = vmatpush.bf16.xpose.msra.mxu0 0
        %7734 = vmatpush.bf16.xpose.msra.mxu0 0
        %7735 = vmatpush.bf16.xpose.msra.mxu0 0
        %7736 = vmatpush.bf16.xpose.msra.mxu0 0
        %7737 = vmatpush.bf16.xpose.msra.mxu0 0
        %7738 = vmatpush.bf16.xpose.msra.mxu0 %v3735
        %7739 = vmatmul.bf16.gmra.mxu0 %v1787
        %v7740 = vpop.f32.mrf.mxu0
        %v7741 = vadd.f32 %v7728, %v7740
        %v7742 = vpop.f32.mrf.mxu0
        %7743 = vdwg.mxu0
        %7744 = vmatpush.bf16.xpose.msra.mxu0 0
        %7745 = vmatpush.bf16.xpose.msra.mxu0 0
        %7746 = vmatpush.bf16.xpose.msra.mxu0 0
        %7747 = vmatpush.bf16.xpose.msra.mxu0 0
        %7748 = vmatpush.bf16.xpose.msra.mxu0 0
        %7749 = vmatpush.bf16.xpose.msra.mxu0 0
        %7750 = vmatpush.bf16.xpose.msra.mxu0 0
        %7751 = vmatpush.bf16.xpose.msra.mxu0 %v3736
        %7752 = vmatmul.bf16.gmra.mxu0 %v1788
        %v7753 = vpop.f32.mrf.mxu0
        %v7754 = vadd.f32 %v7741, %v7753
        %v7755 = vpop.f32.mrf.mxu0
        %7756 = vdwg.mxu0
        %7757 = vmatpush.bf16.xpose.msra.mxu0 0
        %7758 = vmatpush.bf16.xpose.msra.mxu0 0
        %7759 = vmatpush.bf16.xpose.msra.mxu0 0
        %7760 = vmatpush.bf16.xpose.msra.mxu0 0
        %7761 = vmatpush.bf16.xpose.msra.mxu0 0
        %7762 = vmatpush.bf16.xpose.msra.mxu0 0
        %7763 = vmatpush.bf16.xpose.msra.mxu0 0
        %7764 = vmatpush.bf16.xpose.msra.mxu0 %v3737
        %7765 = vmatmul.bf16.gmra.mxu0 %v1789
        %v7766 = vpop.f32.mrf.mxu0
        %v7767 = vadd.f32 %v7754, %v7766
        %v7768 = vpop.f32.mrf.mxu0
        %7769 = vdwg.mxu0
        %7770 = vmatpush.bf16.xpose.msra.mxu0 0
        %7771 = vmatpush.bf16.xpose.msra.mxu0 0
        %7772 = vmatpush.bf16.xpose.msra.mxu0 0
        %7773 = vmatpush.bf16.xpose.msra.mxu0 0
        %7774 = vmatpush.bf16.xpose.msra.mxu0 0
        %7775 = vmatpush.bf16.xpose.msra.mxu0 0
        %7776 = vmatpush.bf16.xpose.msra.mxu0 0
        %7777 = vmatpush.bf16.xpose.msra.mxu0 %v3738
        %7778 = vmatmul.bf16.gmra.mxu0 %v1792
        %v7779 = vpop.f32.mrf.mxu0
        %v7780 = vadd.f32 %v7767, %v7779
        %v7781 = vpop.f32.mrf.mxu0
        %7782 = vdwg.mxu0
        %7783 = vmatpush.bf16.xpose.msra.mxu0 0
        %7784 = vmatpush.bf16.xpose.msra.mxu0 0
        %7785 = vmatpush.bf16.xpose.msra.mxu0 0
        %7786 = vmatpush.bf16.xpose.msra.mxu0 0
        %7787 = vmatpush.bf16.xpose.msra.mxu0 0
        %7788 = vmatpush.bf16.xpose.msra.mxu0 0
        %7789 = vmatpush.bf16.xpose.msra.mxu0 0
        %7790 = vmatpush.bf16.xpose.msra.mxu0 %v3739
        %7791 = vmatmul.bf16.gmra.mxu0 %v1793
        %v7792 = vpop.f32.mrf.mxu0
        %v7793 = vadd.f32 %v7780, %v7792
        %v7794 = vpop.f32.mrf.mxu0
        %7795 = vdwg.mxu0
        %7796 = vmatpush.bf16.xpose.msra.mxu0 0
        %7797 = vmatpush.bf16.xpose.msra.mxu0 0
        %7798 = vmatpush.bf16.xpose.msra.mxu0 0
        %7799 = vmatpush.bf16.xpose.msra.mxu0 0
        %7800 = vmatpush.bf16.xpose.msra.mxu0 0
        %7801 = vmatpush.bf16.xpose.msra.mxu0 0
        %7802 = vmatpush.bf16.xpose.msra.mxu0 0
        %7803 = vmatpush.bf16.xpose.msra.mxu0 %v3740
        %7804 = vmatmul.bf16.gmra.mxu0 %v1794
        %v7805 = vpop.f32.mrf.mxu0
        %v7806 = vadd.f32 %v7793, %v7805
        %v7807 = vpop.f32.mrf.mxu0
        %7808 = vdwg.mxu0
        %7809 = vmatpush.bf16.xpose.msra.mxu0 0
        %7810 = vmatpush.bf16.xpose.msra.mxu0 0
        %7811 = vmatpush.bf16.xpose.msra.mxu0 0
        %7812 = vmatpush.bf16.xpose.msra.mxu0 0
        %7813 = vmatpush.bf16.xpose.msra.mxu0 0
        %7814 = vmatpush.bf16.xpose.msra.mxu0 0
        %7815 = vmatpush.bf16.xpose.msra.mxu0 0
        %7816 = vmatpush.bf16.xpose.msra.mxu0 %v3741
        %7817 = vmatmul.bf16.gmra.mxu0 %v1795
        %v7818 = vpop.f32.mrf.mxu0
        %v7819 = vadd.f32 %v7806, %v7818
        %v7820 = vpop.f32.mrf.mxu0
        %7821 = vdwg.mxu0
        %7822 = vmatpush.bf16.xpose.msra.mxu0 0
        %7823 = vmatpush.bf16.xpose.msra.mxu0 0
        %7824 = vmatpush.bf16.xpose.msra.mxu0 0
        %7825 = vmatpush.bf16.xpose.msra.mxu0 0
        %7826 = vmatpush.bf16.xpose.msra.mxu0 0
        %7827 = vmatpush.bf16.xpose.msra.mxu0 0
        %7828 = vmatpush.bf16.xpose.msra.mxu0 0
        %7829 = vmatpush.bf16.xpose.msra.mxu0 %v3742
        %7830 = vmatmul.bf16.gmra.mxu0 %v1796
        %v7831 = vpop.f32.mrf.mxu0
        %v7832 = vadd.f32 %v7819, %v7831
        %v7833 = vpop.f32.mrf.mxu0
        %7834 = vdwg.mxu0
        %7835 = vmatpush.bf16.xpose.msra.mxu0 0
        %7836 = vmatpush.bf16.xpose.msra.mxu0 0
        %7837 = vmatpush.bf16.xpose.msra.mxu0 0
        %7838 = vmatpush.bf16.xpose.msra.mxu0 0
        %7839 = vmatpush.bf16.xpose.msra.mxu0 0
        %7840 = vmatpush.bf16.xpose.msra.mxu0 0
        %7841 = vmatpush.bf16.xpose.msra.mxu0 0
        %7842 = vmatpush.bf16.xpose.msra.mxu0 %v3743
        %7843 = vmatmul.bf16.gmra.mxu0 %v1797
        %v7844 = vpop.f32.mrf.mxu0
        %v7845 = vadd.f32 %v7832, %v7844
        %v7846 = vpop.f32.mrf.mxu0
        %7847 = vdwg.mxu0
        %7848 = vmatpush.bf16.xpose.msra.mxu0 0
        %7849 = vmatpush.bf16.xpose.msra.mxu0 0
        %7850 = vmatpush.bf16.xpose.msra.mxu0 0
        %7851 = vmatpush.bf16.xpose.msra.mxu0 0
        %7852 = vmatpush.bf16.xpose.msra.mxu0 0
        %7853 = vmatpush.bf16.xpose.msra.mxu0 0
        %7854 = vmatpush.bf16.xpose.msra.mxu0 0
        %7855 = vmatpush.bf16.xpose.msra.mxu0 %v3744
        %7856 = vmatmul.bf16.gmra.mxu0 %v1798
        %v7857 = vpop.f32.mrf.mxu0
        %v7858 = vadd.f32 %v7845, %v7857
        %v7859 = vpop.f32.mrf.mxu0
        %7860 = vdwg.mxu0
        %7861 = vmatpush.bf16.xpose.msra.mxu0 0
        %7862 = vmatpush.bf16.xpose.msra.mxu0 0
        %7863 = vmatpush.bf16.xpose.msra.mxu0 0
        %7864 = vmatpush.bf16.xpose.msra.mxu0 0
        %7865 = vmatpush.bf16.xpose.msra.mxu0 0
        %7866 = vmatpush.bf16.xpose.msra.mxu0 0
        %7867 = vmatpush.bf16.xpose.msra.mxu0 0
        %7868 = vmatpush.bf16.xpose.msra.mxu0 %v3745
        %7869 = vmatmul.bf16.gmra.mxu0 %v1799
        %v7870 = vpop.f32.mrf.mxu0
        %v7871 = vadd.f32 %v7858, %v7870
        %v7872 = vpop.f32.mrf.mxu0
        %7873 = vdwg.mxu0
        %7874 = vmatpush.bf16.xpose.msra.mxu0 0
        %7875 = vmatpush.bf16.xpose.msra.mxu0 0
        %7876 = vmatpush.bf16.xpose.msra.mxu0 0
        %7877 = vmatpush.bf16.xpose.msra.mxu0 0
        %7878 = vmatpush.bf16.xpose.msra.mxu0 0
        %7879 = vmatpush.bf16.xpose.msra.mxu0 0
        %7880 = vmatpush.bf16.xpose.msra.mxu0 0
        %7881 = vmatpush.bf16.xpose.msra.mxu0 %v3746
        %7882 = vmatmul.bf16.gmra.mxu0 %v1802
        %v7883 = vpop.f32.mrf.mxu0
        %v7884 = vadd.f32 %v7871, %v7883
        %v7885 = vpop.f32.mrf.mxu0
        %7886 = vdwg.mxu0
        %7887 = vmatpush.bf16.xpose.msra.mxu0 0
        %7888 = vmatpush.bf16.xpose.msra.mxu0 0
        %7889 = vmatpush.bf16.xpose.msra.mxu0 0
        %7890 = vmatpush.bf16.xpose.msra.mxu0 0
        %7891 = vmatpush.bf16.xpose.msra.mxu0 0
        %7892 = vmatpush.bf16.xpose.msra.mxu0 0
        %7893 = vmatpush.bf16.xpose.msra.mxu0 0
        %7894 = vmatpush.bf16.xpose.msra.mxu0 %v3747
        %7895 = vmatmul.bf16.gmra.mxu0 %v1803
        %v7896 = vpop.f32.mrf.mxu0
        %v7897 = vadd.f32 %v7884, %v7896
        %v7898 = vpop.f32.mrf.mxu0
        %7899 = vdwg.mxu0
        %7900 = vmatpush.bf16.xpose.msra.mxu0 0
        %7901 = vmatpush.bf16.xpose.msra.mxu0 0
        %7902 = vmatpush.bf16.xpose.msra.mxu0 0
        %7903 = vmatpush.bf16.xpose.msra.mxu0 0
        %7904 = vmatpush.bf16.xpose.msra.mxu0 0
        %7905 = vmatpush.bf16.xpose.msra.mxu0 0
        %7906 = vmatpush.bf16.xpose.msra.mxu0 0
        %7907 = vmatpush.bf16.xpose.msra.mxu0 %v3748
        %7908 = vmatmul.bf16.gmra.mxu0 %v1804
        %v7909 = vpop.f32.mrf.mxu0
        %v7910 = vadd.f32 %v7897, %v7909
        %v7911 = vpop.f32.mrf.mxu0
        %7912 = vdwg.mxu0
        %7913 = vmatpush.bf16.xpose.msra.mxu0 0
        %7914 = vmatpush.bf16.xpose.msra.mxu0 0
        %7915 = vmatpush.bf16.xpose.msra.mxu0 0
        %7916 = vmatpush.bf16.xpose.msra.mxu0 0
        %7917 = vmatpush.bf16.xpose.msra.mxu0 0
        %7918 = vmatpush.bf16.xpose.msra.mxu0 0
        %7919 = vmatpush.bf16.xpose.msra.mxu0 0
        %7920 = vmatpush.bf16.xpose.msra.mxu0 %v3749
        %7921 = vmatmul.bf16.gmra.mxu0 %v1805
        %v7922 = vpop.f32.mrf.mxu0
        %v7923 = vadd.f32 %v7910, %v7922
        %v7924 = vpop.f32.mrf.mxu0
        %7925 = vdwg.mxu0
        %7926 = vmatpush.bf16.xpose.msra.mxu0 0
        %7927 = vmatpush.bf16.xpose.msra.mxu0 0
        %7928 = vmatpush.bf16.xpose.msra.mxu0 0
        %7929 = vmatpush.bf16.xpose.msra.mxu0 0
        %7930 = vmatpush.bf16.xpose.msra.mxu0 0
        %7931 = vmatpush.bf16.xpose.msra.mxu0 0
        %7932 = vmatpush.bf16.xpose.msra.mxu0 0
        %7933 = vmatpush.bf16.xpose.msra.mxu0 %v3750
        %7934 = vmatmul.bf16.gmra.mxu0 %v1806
        %v7935 = vpop.f32.mrf.mxu0
        %v7936 = vadd.f32 %v7923, %v7935
        %v7937 = vpop.f32.mrf.mxu0
        %7938 = vdwg.mxu0
        %7939 = vmatpush.bf16.xpose.msra.mxu0 0
        %7940 = vmatpush.bf16.xpose.msra.mxu0 0
        %7941 = vmatpush.bf16.xpose.msra.mxu0 0
        %7942 = vmatpush.bf16.xpose.msra.mxu0 0
        %7943 = vmatpush.bf16.xpose.msra.mxu0 0
        %7944 = vmatpush.bf16.xpose.msra.mxu0 0
        %7945 = vmatpush.bf16.xpose.msra.mxu0 0
        %7946 = vmatpush.bf16.xpose.msra.mxu0 %v3751
        %7947 = vmatmul.bf16.gmra.mxu0 %v1807
        %v7948 = vpop.f32.mrf.mxu0
        %v7949 = vadd.f32 %v7936, %v7948
        %v7950 = vpop.f32.mrf.mxu0
        %7951 = vdwg.mxu0
        %7952 = vmatpush.bf16.xpose.msra.mxu0 0
        %7953 = vmatpush.bf16.xpose.msra.mxu0 0
        %7954 = vmatpush.bf16.xpose.msra.mxu0 0
        %7955 = vmatpush.bf16.xpose.msra.mxu0 0
        %7956 = vmatpush.bf16.xpose.msra.mxu0 0
        %7957 = vmatpush.bf16.xpose.msra.mxu0 0
        %7958 = vmatpush.bf16.xpose.msra.mxu0 0
        %7959 = vmatpush.bf16.xpose.msra.mxu0 %v3752
        %7960 = vmatmul.bf16.gmra.mxu0 %v1808
        %v7961 = vpop.f32.mrf.mxu0
        %v7962 = vadd.f32 %v7949, %v7961
        %v7963 = vpop.f32.mrf.mxu0
        %7964 = vdwg.mxu0
        %7965 = vmatpush.bf16.xpose.msra.mxu0 0
        %7966 = vmatpush.bf16.xpose.msra.mxu0 0
        %7967 = vmatpush.bf16.xpose.msra.mxu0 0
        %7968 = vmatpush.bf16.xpose.msra.mxu0 0
        %7969 = vmatpush.bf16.xpose.msra.mxu0 0
        %7970 = vmatpush.bf16.xpose.msra.mxu0 0
        %7971 = vmatpush.bf16.xpose.msra.mxu0 0
        %7972 = vmatpush.bf16.xpose.msra.mxu0 %v3753
        %7973 = vmatmul.bf16.gmra.mxu0 %v1809
        %v7974 = vpop.f32.mrf.mxu0
        %v7975 = vadd.f32 %v7962, %v7974
        %v7976 = vpop.f32.mrf.mxu0
        %7977 = vdwg.mxu0
        %7978 = vmatpush.bf16.xpose.msra.mxu0 0
        %7979 = vmatpush.bf16.xpose.msra.mxu0 0
        %7980 = vmatpush.bf16.xpose.msra.mxu0 0
        %7981 = vmatpush.bf16.xpose.msra.mxu0 0
        %7982 = vmatpush.bf16.xpose.msra.mxu0 0
        %7983 = vmatpush.bf16.xpose.msra.mxu0 0
        %7984 = vmatpush.bf16.xpose.msra.mxu0 0
        %7985 = vmatpush.bf16.xpose.msra.mxu0 %v3754
        %7986 = vmatmul.bf16.gmra.mxu0 %v1812
        %v7987 = vpop.f32.mrf.mxu0
        %v7988 = vadd.f32 %v7975, %v7987
        %v7989 = vpop.f32.mrf.mxu0
        %7990 = vdwg.mxu0
        %7991 = vmatpush.bf16.xpose.msra.mxu0 0
        %7992 = vmatpush.bf16.xpose.msra.mxu0 0
        %7993 = vmatpush.bf16.xpose.msra.mxu0 0
        %7994 = vmatpush.bf16.xpose.msra.mxu0 0
        %7995 = vmatpush.bf16.xpose.msra.mxu0 0
        %7996 = vmatpush.bf16.xpose.msra.mxu0 0
        %7997 = vmatpush.bf16.xpose.msra.mxu0 0
        %7998 = vmatpush.bf16.xpose.msra.mxu0 %v3755
        %7999 = vmatmul.bf16.gmra.mxu0 %v1813
        %v8000 = vpop.f32.mrf.mxu0
        %v8001 = vadd.f32 %v7988, %v8000
        %v8002 = vpop.f32.mrf.mxu0
        %8003 = vdwg.mxu0
        %8004 = vmatpush.bf16.xpose.msra.mxu0 0
        %8005 = vmatpush.bf16.xpose.msra.mxu0 0
        %8006 = vmatpush.bf16.xpose.msra.mxu0 0
        %8007 = vmatpush.bf16.xpose.msra.mxu0 0
        %8008 = vmatpush.bf16.xpose.msra.mxu0 0
        %8009 = vmatpush.bf16.xpose.msra.mxu0 0
        %8010 = vmatpush.bf16.xpose.msra.mxu0 0
        %8011 = vmatpush.bf16.xpose.msra.mxu0 %v3756
        %8012 = vmatmul.bf16.gmra.mxu0 %v1814
        %v8013 = vpop.f32.mrf.mxu0
        %v8014 = vadd.f32 %v8001, %v8013
        %v8015 = vpop.f32.mrf.mxu0
        %8016 = vdwg.mxu0
        %8017 = vmatpush.bf16.xpose.msra.mxu0 0
        %8018 = vmatpush.bf16.xpose.msra.mxu0 0
        %8019 = vmatpush.bf16.xpose.msra.mxu0 0
        %8020 = vmatpush.bf16.xpose.msra.mxu0 0
        %8021 = vmatpush.bf16.xpose.msra.mxu0 0
        %8022 = vmatpush.bf16.xpose.msra.mxu0 0
        %8023 = vmatpush.bf16.xpose.msra.mxu0 0
        %8024 = vmatpush.bf16.xpose.msra.mxu0 %v3757
        %8025 = vmatmul.bf16.gmra.mxu0 %v1815
        %v8026 = vpop.f32.mrf.mxu0
        %v8027 = vadd.f32 %v8014, %v8026
        %v8028 = vpop.f32.mrf.mxu0
        %8029 = vdwg.mxu0
        %8030 = vmatpush.bf16.xpose.msra.mxu0 0
        %8031 = vmatpush.bf16.xpose.msra.mxu0 0
        %8032 = vmatpush.bf16.xpose.msra.mxu0 0
        %8033 = vmatpush.bf16.xpose.msra.mxu0 0
        %8034 = vmatpush.bf16.xpose.msra.mxu0 0
        %8035 = vmatpush.bf16.xpose.msra.mxu0 0
        %8036 = vmatpush.bf16.xpose.msra.mxu0 0
        %8037 = vmatpush.bf16.xpose.msra.mxu0 %v3758
        %8038 = vmatmul.bf16.gmra.mxu0 %v1816
        %v8039 = vpop.f32.mrf.mxu0
        %v8040 = vadd.f32 %v8027, %v8039
        %v8041 = vpop.f32.mrf.mxu0
        %8042 = vdwg.mxu0
        %8043 = vmatpush.bf16.xpose.msra.mxu0 0
        %8044 = vmatpush.bf16.xpose.msra.mxu0 0
        %8045 = vmatpush.bf16.xpose.msra.mxu0 0
        %8046 = vmatpush.bf16.xpose.msra.mxu0 0
        %8047 = vmatpush.bf16.xpose.msra.mxu0 0
        %8048 = vmatpush.bf16.xpose.msra.mxu0 0
        %8049 = vmatpush.bf16.xpose.msra.mxu0 0
        %8050 = vmatpush.bf16.xpose.msra.mxu0 %v3759
        %8051 = vmatmul.bf16.gmra.mxu0 %v1817
        %v8052 = vpop.f32.mrf.mxu0
        %v8053 = vadd.f32 %v8040, %v8052
        %v8054 = vpop.f32.mrf.mxu0
        %8055 = vdwg.mxu0
        %8056 = vmatpush.bf16.xpose.msra.mxu0 0
        %8057 = vmatpush.bf16.xpose.msra.mxu0 0
        %8058 = vmatpush.bf16.xpose.msra.mxu0 0
        %8059 = vmatpush.bf16.xpose.msra.mxu0 0
        %8060 = vmatpush.bf16.xpose.msra.mxu0 0
        %8061 = vmatpush.bf16.xpose.msra.mxu0 0
        %8062 = vmatpush.bf16.xpose.msra.mxu0 0
        %8063 = vmatpush.bf16.xpose.msra.mxu0 %v3760
        %8064 = vmatmul.bf16.gmra.mxu0 %v1818
        %v8065 = vpop.f32.mrf.mxu0
        %v8066 = vadd.f32 %v8053, %v8065
        %v8067 = vpop.f32.mrf.mxu0
        %8068 = vdwg.mxu0
        %8069 = vmatpush.bf16.xpose.msra.mxu0 0
        %8070 = vmatpush.bf16.xpose.msra.mxu0 0
        %8071 = vmatpush.bf16.xpose.msra.mxu0 0
        %8072 = vmatpush.bf16.xpose.msra.mxu0 0
        %8073 = vmatpush.bf16.xpose.msra.mxu0 0
        %8074 = vmatpush.bf16.xpose.msra.mxu0 0
        %8075 = vmatpush.bf16.xpose.msra.mxu0 0
        %8076 = vmatpush.bf16.xpose.msra.mxu0 %v3761
        %8077 = vmatmul.bf16.gmra.mxu0 %v1819
        %v8078 = vpop.f32.mrf.mxu0
        %v8079 = vadd.f32 %v8066, %v8078
        %v8080 = vpop.f32.mrf.mxu0
        %8081 = vdwg.mxu0
        %8082 = vmatpush.bf16.xpose.msra.mxu0 0
        %8083 = vmatpush.bf16.xpose.msra.mxu0 0
        %8084 = vmatpush.bf16.xpose.msra.mxu0 0
        %8085 = vmatpush.bf16.xpose.msra.mxu0 0
        %8086 = vmatpush.bf16.xpose.msra.mxu0 0
        %8087 = vmatpush.bf16.xpose.msra.mxu0 0
        %8088 = vmatpush.bf16.xpose.msra.mxu0 0
        %8089 = vmatpush.bf16.xpose.msra.mxu0 %v3762
        %8090 = vmatmul.bf16.gmra.mxu0 %v1822
        %v8091 = vpop.f32.mrf.mxu0
        %v8092 = vadd.f32 %v8079, %v8091
        %v8093 = vpop.f32.mrf.mxu0
        %8094 = vdwg.mxu0
        %8095 = vmatpush.bf16.xpose.msra.mxu0 0
        %8096 = vmatpush.bf16.xpose.msra.mxu0 0
        %8097 = vmatpush.bf16.xpose.msra.mxu0 0
        %8098 = vmatpush.bf16.xpose.msra.mxu0 0
        %8099 = vmatpush.bf16.xpose.msra.mxu0 0
        %8100 = vmatpush.bf16.xpose.msra.mxu0 0
        %8101 = vmatpush.bf16.xpose.msra.mxu0 0
        %8102 = vmatpush.bf16.xpose.msra.mxu0 %v3763
        %8103 = vmatmul.bf16.gmra.mxu0 %v1823
        %v8104 = vpop.f32.mrf.mxu0
        %v8105 = vadd.f32 %v8092, %v8104
        %v8106 = vpop.f32.mrf.mxu0
        %8107 = vdwg.mxu0
        %8108 = vmatpush.bf16.xpose.msra.mxu0 0
        %8109 = vmatpush.bf16.xpose.msra.mxu0 0
        %8110 = vmatpush.bf16.xpose.msra.mxu0 0
        %8111 = vmatpush.bf16.xpose.msra.mxu0 0
        %8112 = vmatpush.bf16.xpose.msra.mxu0 0
        %8113 = vmatpush.bf16.xpose.msra.mxu0 0
        %8114 = vmatpush.bf16.xpose.msra.mxu0 0
        %8115 = vmatpush.bf16.xpose.msra.mxu0 %v3764
        %8116 = vmatmul.bf16.gmra.mxu0 %v1824
        %v8117 = vpop.f32.mrf.mxu0
        %v8118 = vadd.f32 %v8105, %v8117
        %v8119 = vpop.f32.mrf.mxu0
        %8120 = vdwg.mxu0
        %8121 = vmatpush.bf16.xpose.msra.mxu0 0
        %8122 = vmatpush.bf16.xpose.msra.mxu0 0
        %8123 = vmatpush.bf16.xpose.msra.mxu0 0
        %8124 = vmatpush.bf16.xpose.msra.mxu0 0
        %8125 = vmatpush.bf16.xpose.msra.mxu0 0
        %8126 = vmatpush.bf16.xpose.msra.mxu0 0
        %8127 = vmatpush.bf16.xpose.msra.mxu0 0
        %8128 = vmatpush.bf16.xpose.msra.mxu0 %v3765
        %8129 = vmatmul.bf16.gmra.mxu0 %v1825
        %v8130 = vpop.f32.mrf.mxu0
        %v8131 = vadd.f32 %v8118, %v8130
        %v8132 = vpop.f32.mrf.mxu0
        %8133 = vdwg.mxu0
        %8134 = vmatpush.bf16.xpose.msra.mxu0 0
        %8135 = vmatpush.bf16.xpose.msra.mxu0 0
        %8136 = vmatpush.bf16.xpose.msra.mxu0 0
        %8137 = vmatpush.bf16.xpose.msra.mxu0 0
        %8138 = vmatpush.bf16.xpose.msra.mxu0 0
        %8139 = vmatpush.bf16.xpose.msra.mxu0 0
        %8140 = vmatpush.bf16.xpose.msra.mxu0 0
        %8141 = vmatpush.bf16.xpose.msra.mxu0 %v3766
        %8142 = vmatmul.bf16.gmra.mxu0 %v1826
        %v8143 = vpop.f32.mrf.mxu0
        %v8144 = vadd.f32 %v8131, %v8143
        %v8145 = vpop.f32.mrf.mxu0
        %8146 = vdwg.mxu0
        %8147 = vmatpush.bf16.xpose.msra.mxu0 0
        %8148 = vmatpush.bf16.xpose.msra.mxu0 0
        %8149 = vmatpush.bf16.xpose.msra.mxu0 0
        %8150 = vmatpush.bf16.xpose.msra.mxu0 0
        %8151 = vmatpush.bf16.xpose.msra.mxu0 0
        %8152 = vmatpush.bf16.xpose.msra.mxu0 0
        %8153 = vmatpush.bf16.xpose.msra.mxu0 0
        %8154 = vmatpush.bf16.xpose.msra.mxu0 %v3767
        %8155 = vmatmul.bf16.gmra.mxu0 %v1827
        %v8156 = vpop.f32.mrf.mxu0
        %v8157 = vadd.f32 %v8144, %v8156
        %v8158 = vpop.f32.mrf.mxu0
        %8159 = vdwg.mxu0
        %8160 = vmatpush.bf16.xpose.msra.mxu0 0
        %8161 = vmatpush.bf16.xpose.msra.mxu0 0
        %8162 = vmatpush.bf16.xpose.msra.mxu0 0
        %8163 = vmatpush.bf16.xpose.msra.mxu0 0
        %8164 = vmatpush.bf16.xpose.msra.mxu0 0
        %8165 = vmatpush.bf16.xpose.msra.mxu0 0
        %8166 = vmatpush.bf16.xpose.msra.mxu0 0
        %8167 = vmatpush.bf16.xpose.msra.mxu0 %v3768
        %8168 = vmatmul.bf16.gmra.mxu0 %v1828
        %v8169 = vpop.f32.mrf.mxu0
        %v8170 = vadd.f32 %v8157, %v8169
        %v8171 = vpop.f32.mrf.mxu0
        %8172 = vdwg.mxu0
        %8173 = vmatpush.bf16.xpose.msra.mxu0 0
        %8174 = vmatpush.bf16.xpose.msra.mxu0 0
        %8175 = vmatpush.bf16.xpose.msra.mxu0 0
        %8176 = vmatpush.bf16.xpose.msra.mxu0 0
        %8177 = vmatpush.bf16.xpose.msra.mxu0 0
        %8178 = vmatpush.bf16.xpose.msra.mxu0 0
        %8179 = vmatpush.bf16.xpose.msra.mxu0 0
        %8180 = vmatpush.bf16.xpose.msra.mxu0 %v3769
        %8181 = vmatmul.bf16.gmra.mxu0 %v1829
        %v8182 = vpop.f32.mrf.mxu0
        %v8183 = vadd.f32 %v8170, %v8182
        %v8184 = vpop.f32.mrf.mxu0
        %8185 = vdwg.mxu0
        %8186 = vmatpush.bf16.xpose.msra.mxu0 0
        %8187 = vmatpush.bf16.xpose.msra.mxu0 0
        %8188 = vmatpush.bf16.xpose.msra.mxu0 0
        %8189 = vmatpush.bf16.xpose.msra.mxu0 0
        %8190 = vmatpush.bf16.xpose.msra.mxu0 0
        %8191 = vmatpush.bf16.xpose.msra.mxu0 0
        %8192 = vmatpush.bf16.xpose.msra.mxu0 0
        %8193 = vmatpush.bf16.xpose.msra.mxu0 %v3770
        %8194 = vmatmul.bf16.gmra.mxu0 %v1832
        %v8195 = vpop.f32.mrf.mxu0
        %v8196 = vadd.f32 %v8183, %v8195
        %v8197 = vpop.f32.mrf.mxu0
        %8198 = vdwg.mxu0
        %8199 = vmatpush.bf16.xpose.msra.mxu0 0
        %8200 = vmatpush.bf16.xpose.msra.mxu0 0
        %8201 = vmatpush.bf16.xpose.msra.mxu0 0
        %8202 = vmatpush.bf16.xpose.msra.mxu0 0
        %8203 = vmatpush.bf16.xpose.msra.mxu0 0
        %8204 = vmatpush.bf16.xpose.msra.mxu0 0
        %8205 = vmatpush.bf16.xpose.msra.mxu0 0
        %8206 = vmatpush.bf16.xpose.msra.mxu0 %v3771
        %8207 = vmatmul.bf16.gmra.mxu0 %v1833
        %v8208 = vpop.f32.mrf.mxu0
        %v8209 = vadd.f32 %v8196, %v8208
        %v8210 = vpop.f32.mrf.mxu0
        %8211 = vdwg.mxu0
        %8212 = vmatpush.bf16.xpose.msra.mxu0 0
        %8213 = vmatpush.bf16.xpose.msra.mxu0 0
        %8214 = vmatpush.bf16.xpose.msra.mxu0 0
        %8215 = vmatpush.bf16.xpose.msra.mxu0 0
        %8216 = vmatpush.bf16.xpose.msra.mxu0 0
        %8217 = vmatpush.bf16.xpose.msra.mxu0 0
        %8218 = vmatpush.bf16.xpose.msra.mxu0 0
        %8219 = vmatpush.bf16.xpose.msra.mxu0 %v3772
        %8220 = vmatmul.bf16.gmra.mxu0 %v1834
        %v8221 = vpop.f32.mrf.mxu0
        %v8222 = vadd.f32 %v8209, %v8221
        %v8223 = vpop.f32.mrf.mxu0
        %8224 = vdwg.mxu0
        %8225 = vmatpush.bf16.xpose.msra.mxu0 0
        %8226 = vmatpush.bf16.xpose.msra.mxu0 0
        %8227 = vmatpush.bf16.xpose.msra.mxu0 0
        %8228 = vmatpush.bf16.xpose.msra.mxu0 0
        %8229 = vmatpush.bf16.xpose.msra.mxu0 0
        %8230 = vmatpush.bf16.xpose.msra.mxu0 0
        %8231 = vmatpush.bf16.xpose.msra.mxu0 0
        %8232 = vmatpush.bf16.xpose.msra.mxu0 %v3773
        %8233 = vmatmul.bf16.gmra.mxu0 %v1835
        %v8234 = vpop.f32.mrf.mxu0
        %v8235 = vadd.f32 %v8222, %v8234
        %v8236 = vpop.f32.mrf.mxu0
        %8237 = vdwg.mxu0
        %8238 = vmatpush.bf16.xpose.msra.mxu0 0
        %8239 = vmatpush.bf16.xpose.msra.mxu0 0
        %8240 = vmatpush.bf16.xpose.msra.mxu0 0
        %8241 = vmatpush.bf16.xpose.msra.mxu0 0
        %8242 = vmatpush.bf16.xpose.msra.mxu0 0
        %8243 = vmatpush.bf16.xpose.msra.mxu0 0
        %8244 = vmatpush.bf16.xpose.msra.mxu0 0
        %8245 = vmatpush.bf16.xpose.msra.mxu0 %v3774
        %8246 = vmatmul.bf16.gmra.mxu0 %v1836
        %v8247 = vpop.f32.mrf.mxu0
        %v8248 = vadd.f32 %v8235, %v8247
        %v8249 = vpop.f32.mrf.mxu0
        %8250 = vdwg.mxu0
        %8251 = vmatpush.bf16.xpose.msra.mxu0 0
        %8252 = vmatpush.bf16.xpose.msra.mxu0 0
        %8253 = vmatpush.bf16.xpose.msra.mxu0 0
        %8254 = vmatpush.bf16.xpose.msra.mxu0 0
        %8255 = vmatpush.bf16.xpose.msra.mxu0 0
        %8256 = vmatpush.bf16.xpose.msra.mxu0 0
        %8257 = vmatpush.bf16.xpose.msra.mxu0 0
        %8258 = vmatpush.bf16.xpose.msra.mxu0 %v3775
        %8259 = vmatmul.bf16.gmra.mxu0 %v1837
        %v8260 = vpop.f32.mrf.mxu0
        %v8261 = vadd.f32 %v8248, %v8260
        %v8262 = vpop.f32.mrf.mxu0
        %8263 = vdwg.mxu0
        %8264 = vmatpush.bf16.xpose.msra.mxu0 0
        %8265 = vmatpush.bf16.xpose.msra.mxu0 0
        %8266 = vmatpush.bf16.xpose.msra.mxu0 0
        %8267 = vmatpush.bf16.xpose.msra.mxu0 0
        %8268 = vmatpush.bf16.xpose.msra.mxu0 0
        %8269 = vmatpush.bf16.xpose.msra.mxu0 0
        %8270 = vmatpush.bf16.xpose.msra.mxu0 0
        %8271 = vmatpush.bf16.xpose.msra.mxu0 %v3776
        %8272 = vmatmul.bf16.gmra.mxu0 %v1838
        %v8273 = vpop.f32.mrf.mxu0
        %v8274 = vadd.f32 %v8261, %v8273
        %v8275 = vpop.f32.mrf.mxu0
        %8276 = vdwg.mxu0
        %8277 = vmatpush.bf16.xpose.msra.mxu0 0
        %8278 = vmatpush.bf16.xpose.msra.mxu0 0
        %8279 = vmatpush.bf16.xpose.msra.mxu0 0
        %8280 = vmatpush.bf16.xpose.msra.mxu0 0
        %8281 = vmatpush.bf16.xpose.msra.mxu0 0
        %8282 = vmatpush.bf16.xpose.msra.mxu0 0
        %8283 = vmatpush.bf16.xpose.msra.mxu0 0
        %8284 = vmatpush.bf16.xpose.msra.mxu0 %v3777
        %8285 = vmatmul.bf16.gmra.mxu0 %v1839
        %v8286 = vpop.f32.mrf.mxu0
        %v8287 = vadd.f32 %v8274, %v8286
        %v8288 = vpop.f32.mrf.mxu0
        %8289 = vdwg.mxu0
        %8290 = vmatpush.bf16.xpose.msra.mxu0 0
        %8291 = vmatpush.bf16.xpose.msra.mxu0 0
        %8292 = vmatpush.bf16.xpose.msra.mxu0 0
        %8293 = vmatpush.bf16.xpose.msra.mxu0 0
        %8294 = vmatpush.bf16.xpose.msra.mxu0 0
        %8295 = vmatpush.bf16.xpose.msra.mxu0 0
        %8296 = vmatpush.bf16.xpose.msra.mxu0 0
        %8297 = vmatpush.bf16.xpose.msra.mxu0 %v3778
        %8298 = vmatmul.bf16.gmra.mxu0 %v1842
        %v8299 = vpop.f32.mrf.mxu0
        %v8300 = vadd.f32 %v8287, %v8299
        %v8301 = vpop.f32.mrf.mxu0
        %8302 = vdwg.mxu0
        %8303 = vmatpush.bf16.xpose.msra.mxu0 0
        %8304 = vmatpush.bf16.xpose.msra.mxu0 0
        %8305 = vmatpush.bf16.xpose.msra.mxu0 0
        %8306 = vmatpush.bf16.xpose.msra.mxu0 0
        %8307 = vmatpush.bf16.xpose.msra.mxu0 0
        %8308 = vmatpush.bf16.xpose.msra.mxu0 0
        %8309 = vmatpush.bf16.xpose.msra.mxu0 0
        %8310 = vmatpush.bf16.xpose.msra.mxu0 %v3779
        %8311 = vmatmul.bf16.gmra.mxu0 %v1843
        %v8312 = vpop.f32.mrf.mxu0
        %v8313 = vadd.f32 %v8300, %v8312
        %v8314 = vpop.f32.mrf.mxu0
        %8315 = vdwg.mxu0
        %8316 = vmatpush.bf16.xpose.msra.mxu0 0
        %8317 = vmatpush.bf16.xpose.msra.mxu0 0
        %8318 = vmatpush.bf16.xpose.msra.mxu0 0
        %8319 = vmatpush.bf16.xpose.msra.mxu0 0
        %8320 = vmatpush.bf16.xpose.msra.mxu0 0
        %8321 = vmatpush.bf16.xpose.msra.mxu0 0
        %8322 = vmatpush.bf16.xpose.msra.mxu0 0
        %8323 = vmatpush.bf16.xpose.msra.mxu0 %v3780
        %8324 = vmatmul.bf16.gmra.mxu0 %v1844
        %v8325 = vpop.f32.mrf.mxu0
        %v8326 = vadd.f32 %v8313, %v8325
        %v8327 = vpop.f32.mrf.mxu0
        %8328 = vdwg.mxu0
        %8329 = vmatpush.bf16.xpose.msra.mxu0 0
        %8330 = vmatpush.bf16.xpose.msra.mxu0 0
        %8331 = vmatpush.bf16.xpose.msra.mxu0 0
        %8332 = vmatpush.bf16.xpose.msra.mxu0 0
        %8333 = vmatpush.bf16.xpose.msra.mxu0 0
        %8334 = vmatpush.bf16.xpose.msra.mxu0 0
        %8335 = vmatpush.bf16.xpose.msra.mxu0 0
        %8336 = vmatpush.bf16.xpose.msra.mxu0 %v3781
        %8337 = vmatmul.bf16.gmra.mxu0 %v1845
        %v8338 = vpop.f32.mrf.mxu0
        %v8339 = vadd.f32 %v8326, %v8338
        %v8340 = vpop.f32.mrf.mxu0
        %8341 = vdwg.mxu0
        %8342 = vmatpush.bf16.xpose.msra.mxu0 0
        %8343 = vmatpush.bf16.xpose.msra.mxu0 0
        %8344 = vmatpush.bf16.xpose.msra.mxu0 0
        %8345 = vmatpush.bf16.xpose.msra.mxu0 0
        %8346 = vmatpush.bf16.xpose.msra.mxu0 0
        %8347 = vmatpush.bf16.xpose.msra.mxu0 0
        %8348 = vmatpush.bf16.xpose.msra.mxu0 0
        %8349 = vmatpush.bf16.xpose.msra.mxu0 %v3782
        %8350 = vmatmul.bf16.gmra.mxu0 %v1846
        %v8351 = vpop.f32.mrf.mxu0
        %v8352 = vadd.f32 %v8339, %v8351
        %v8353 = vpop.f32.mrf.mxu0
        %8354 = vdwg.mxu0
        %8355 = vmatpush.bf16.xpose.msra.mxu0 0
        %8356 = vmatpush.bf16.xpose.msra.mxu0 0
        %8357 = vmatpush.bf16.xpose.msra.mxu0 0
        %8358 = vmatpush.bf16.xpose.msra.mxu0 0
        %8359 = vmatpush.bf16.xpose.msra.mxu0 0
        %8360 = vmatpush.bf16.xpose.msra.mxu0 0
        %8361 = vmatpush.bf16.xpose.msra.mxu0 0
        %8362 = vmatpush.bf16.xpose.msra.mxu0 %v3783
        %8363 = vmatmul.bf16.gmra.mxu0 %v1847
        %v8364 = vpop.f32.mrf.mxu0
        %v8365 = vadd.f32 %v8352, %v8364
        %v8366 = vpop.f32.mrf.mxu0
        %8367 = vdwg.mxu0
        %8368 = vmatpush.bf16.xpose.msra.mxu0 0
        %8369 = vmatpush.bf16.xpose.msra.mxu0 0
        %8370 = vmatpush.bf16.xpose.msra.mxu0 0
        %8371 = vmatpush.bf16.xpose.msra.mxu0 0
        %8372 = vmatpush.bf16.xpose.msra.mxu0 0
        %8373 = vmatpush.bf16.xpose.msra.mxu0 0
        %8374 = vmatpush.bf16.xpose.msra.mxu0 0
        %8375 = vmatpush.bf16.xpose.msra.mxu0 %v3784
        %8376 = vmatmul.bf16.gmra.mxu0 %v1848
        %v8377 = vpop.f32.mrf.mxu0
        %v8378 = vadd.f32 %v8365, %v8377
        %v8379 = vpop.f32.mrf.mxu0
        %8380 = vdwg.mxu0
        %8381 = vmatpush.bf16.xpose.msra.mxu0 0
        %8382 = vmatpush.bf16.xpose.msra.mxu0 0
        %8383 = vmatpush.bf16.xpose.msra.mxu0 0
        %8384 = vmatpush.bf16.xpose.msra.mxu0 0
        %8385 = vmatpush.bf16.xpose.msra.mxu0 0
        %8386 = vmatpush.bf16.xpose.msra.mxu0 0
        %8387 = vmatpush.bf16.xpose.msra.mxu0 0
        %8388 = vmatpush.bf16.xpose.msra.mxu0 %v3785
        %8389 = vmatmul.bf16.gmra.mxu0 %v1849
        %v8390 = vpop.f32.mrf.mxu0
        %v8391 = vadd.f32 %v8378, %v8390
        %v8392 = vpop.f32.mrf.mxu0
        %8393 = vdwg.mxu0
        %8394 = vmatpush.bf16.xpose.msra.mxu0 0
        %8395 = vmatpush.bf16.xpose.msra.mxu0 0
        %8396 = vmatpush.bf16.xpose.msra.mxu0 0
        %8397 = vmatpush.bf16.xpose.msra.mxu0 0
        %8398 = vmatpush.bf16.xpose.msra.mxu0 0
        %8399 = vmatpush.bf16.xpose.msra.mxu0 0
        %8400 = vmatpush.bf16.xpose.msra.mxu0 0
        %8401 = vmatpush.bf16.xpose.msra.mxu0 %v3786
        %8402 = vmatmul.bf16.gmra.mxu0 %v1852
        %v8403 = vpop.f32.mrf.mxu0
        %v8404 = vadd.f32 %v8391, %v8403
        %v8405 = vpop.f32.mrf.mxu0
        %8406 = vdwg.mxu0
        %8407 = vmatpush.bf16.xpose.msra.mxu0 0
        %8408 = vmatpush.bf16.xpose.msra.mxu0 0
        %8409 = vmatpush.bf16.xpose.msra.mxu0 0
        %8410 = vmatpush.bf16.xpose.msra.mxu0 0
        %8411 = vmatpush.bf16.xpose.msra.mxu0 0
        %8412 = vmatpush.bf16.xpose.msra.mxu0 0
        %8413 = vmatpush.bf16.xpose.msra.mxu0 0
        %8414 = vmatpush.bf16.xpose.msra.mxu0 %v3787
        %8415 = vmatmul.bf16.gmra.mxu0 %v1853
        %v8416 = vpop.f32.mrf.mxu0
        %v8417 = vadd.f32 %v8404, %v8416
        %v8418 = vpop.f32.mrf.mxu0
        %8419 = vdwg.mxu0
        %8420 = vmatpush.bf16.xpose.msra.mxu0 0
        %8421 = vmatpush.bf16.xpose.msra.mxu0 0
        %8422 = vmatpush.bf16.xpose.msra.mxu0 0
        %8423 = vmatpush.bf16.xpose.msra.mxu0 0
        %8424 = vmatpush.bf16.xpose.msra.mxu0 0
        %8425 = vmatpush.bf16.xpose.msra.mxu0 0
        %8426 = vmatpush.bf16.xpose.msra.mxu0 0
        %8427 = vmatpush.bf16.xpose.msra.mxu0 %v3788
        %8428 = vmatmul.bf16.gmra.mxu0 %v1854
        %v8429 = vpop.f32.mrf.mxu0
        %v8430 = vadd.f32 %v8417, %v8429
        %v8431 = vpop.f32.mrf.mxu0
        %8432 = vdwg.mxu0
        %8433 = vmatpush.bf16.xpose.msra.mxu0 0
        %8434 = vmatpush.bf16.xpose.msra.mxu0 0
        %8435 = vmatpush.bf16.xpose.msra.mxu0 0
        %8436 = vmatpush.bf16.xpose.msra.mxu0 0
        %8437 = vmatpush.bf16.xpose.msra.mxu0 0
        %8438 = vmatpush.bf16.xpose.msra.mxu0 0
        %8439 = vmatpush.bf16.xpose.msra.mxu0 0
        %8440 = vmatpush.bf16.xpose.msra.mxu0 %v3789
        %8441 = vmatmul.bf16.gmra.mxu0 %v1855
        %v8442 = vpop.f32.mrf.mxu0
        %v8443 = vadd.f32 %v8430, %v8442
        %v8444 = vpop.f32.mrf.mxu0
        %8445 = vdwg.mxu0
        %8446 = vmatpush.bf16.xpose.msra.mxu0 0
        %8447 = vmatpush.bf16.xpose.msra.mxu0 0
        %8448 = vmatpush.bf16.xpose.msra.mxu0 0
        %8449 = vmatpush.bf16.xpose.msra.mxu0 0
        %8450 = vmatpush.bf16.xpose.msra.mxu0 0
        %8451 = vmatpush.bf16.xpose.msra.mxu0 0
        %8452 = vmatpush.bf16.xpose.msra.mxu0 0
        %8453 = vmatpush.bf16.xpose.msra.mxu0 %v3790
        %8454 = vmatmul.bf16.gmra.mxu0 %v1856
        %v8455 = vpop.f32.mrf.mxu0
        %v8456 = vadd.f32 %v8443, %v8455
        %v8457 = vpop.f32.mrf.mxu0
        %8458 = vdwg.mxu0
        %8459 = vmatpush.bf16.xpose.msra.mxu0 0
        %8460 = vmatpush.bf16.xpose.msra.mxu0 0
        %8461 = vmatpush.bf16.xpose.msra.mxu0 0
        %8462 = vmatpush.bf16.xpose.msra.mxu0 0
        %8463 = vmatpush.bf16.xpose.msra.mxu0 0
        %8464 = vmatpush.bf16.xpose.msra.mxu0 0
        %8465 = vmatpush.bf16.xpose.msra.mxu0 0
        %8466 = vmatpush.bf16.xpose.msra.mxu0 %v3791
        %8467 = vmatmul.bf16.gmra.mxu0 %v1857
        %v8468 = vpop.f32.mrf.mxu0
        %v8469 = vadd.f32 %v8456, %v8468
        %v8470 = vpop.f32.mrf.mxu0
        %8471 = vdwg.mxu0
        %8472 = vmatpush.bf16.xpose.msra.mxu0 0
        %8473 = vmatpush.bf16.xpose.msra.mxu0 0
        %8474 = vmatpush.bf16.xpose.msra.mxu0 0
        %8475 = vmatpush.bf16.xpose.msra.mxu0 0
        %8476 = vmatpush.bf16.xpose.msra.mxu0 0
        %8477 = vmatpush.bf16.xpose.msra.mxu0 0
        %8478 = vmatpush.bf16.xpose.msra.mxu0 0
        %8479 = vmatpush.bf16.xpose.msra.mxu0 %v3792
        %8480 = vmatmul.bf16.gmra.mxu0 %v1858
        %v8481 = vpop.f32.mrf.mxu0
        %v8482 = vadd.f32 %v8469, %v8481
        %v8483 = vpop.f32.mrf.mxu0
        %8484 = vdwg.mxu0
        %8485 = vmatpush.bf16.xpose.msra.mxu0 0
        %8486 = vmatpush.bf16.xpose.msra.mxu0 0
        %8487 = vmatpush.bf16.xpose.msra.mxu0 0
        %8488 = vmatpush.bf16.xpose.msra.mxu0 0
        %8489 = vmatpush.bf16.xpose.msra.mxu0 0
        %8490 = vmatpush.bf16.xpose.msra.mxu0 0
        %8491 = vmatpush.bf16.xpose.msra.mxu0 0
        %8492 = vmatpush.bf16.xpose.msra.mxu0 %v3793
        %8493 = vmatmul.bf16.gmra.mxu0 %v1859
        %v8494 = vpop.f32.mrf.mxu0
        %v8495 = vadd.f32 %v8482, %v8494
        %v8496 = vpop.f32.mrf.mxu0
        %8497 = vdwg.mxu0
        %8498 = vmatpush.bf16.xpose.msra.mxu0 0
        %8499 = vmatpush.bf16.xpose.msra.mxu0 0
        %8500 = vmatpush.bf16.xpose.msra.mxu0 0
        %8501 = vmatpush.bf16.xpose.msra.mxu0 0
        %8502 = vmatpush.bf16.xpose.msra.mxu0 0
        %8503 = vmatpush.bf16.xpose.msra.mxu0 0
        %8504 = vmatpush.bf16.xpose.msra.mxu0 0
        %8505 = vmatpush.bf16.xpose.msra.mxu0 %v3794
        %8506 = vmatmul.bf16.gmra.mxu0 %v1862
        %v8507 = vpop.f32.mrf.mxu0
        %v8508 = vadd.f32 %v8495, %v8507
        %v8509 = vpop.f32.mrf.mxu0
        %8510 = vdwg.mxu0
        %8511 = vmatpush.bf16.xpose.msra.mxu0 0
        %8512 = vmatpush.bf16.xpose.msra.mxu0 0
        %8513 = vmatpush.bf16.xpose.msra.mxu0 0
        %8514 = vmatpush.bf16.xpose.msra.mxu0 0
        %8515 = vmatpush.bf16.xpose.msra.mxu0 0
        %8516 = vmatpush.bf16.xpose.msra.mxu0 0
        %8517 = vmatpush.bf16.xpose.msra.mxu0 0
        %8518 = vmatpush.bf16.xpose.msra.mxu0 %v3795
        %8519 = vmatmul.bf16.gmra.mxu0 %v1863
        %v8520 = vpop.f32.mrf.mxu0
        %v8521 = vadd.f32 %v8508, %v8520
        %v8522 = vpop.f32.mrf.mxu0
        %8523 = vdwg.mxu0
        %8524 = vmatpush.bf16.xpose.msra.mxu0 0
        %8525 = vmatpush.bf16.xpose.msra.mxu0 0
        %8526 = vmatpush.bf16.xpose.msra.mxu0 0
        %8527 = vmatpush.bf16.xpose.msra.mxu0 0
        %8528 = vmatpush.bf16.xpose.msra.mxu0 0
        %8529 = vmatpush.bf16.xpose.msra.mxu0 0
        %8530 = vmatpush.bf16.xpose.msra.mxu0 0
        %8531 = vmatpush.bf16.xpose.msra.mxu0 %v3796
        %8532 = vmatmul.bf16.gmra.mxu0 %v1864
        %v8533 = vpop.f32.mrf.mxu0
        %v8534 = vadd.f32 %v8521, %v8533
        %v8535 = vpop.f32.mrf.mxu0
        %8536 = vdwg.mxu0
        %8537 = vmatpush.bf16.xpose.msra.mxu0 0
        %8538 = vmatpush.bf16.xpose.msra.mxu0 0
        %8539 = vmatpush.bf16.xpose.msra.mxu0 0
        %8540 = vmatpush.bf16.xpose.msra.mxu0 0
        %8541 = vmatpush.bf16.xpose.msra.mxu0 0
        %8542 = vmatpush.bf16.xpose.msra.mxu0 0
        %8543 = vmatpush.bf16.xpose.msra.mxu0 0
        %8544 = vmatpush.bf16.xpose.msra.mxu0 %v3797
        %8545 = vmatmul.bf16.gmra.mxu0 %v1865
        %v8546 = vpop.f32.mrf.mxu0
        %v8547 = vadd.f32 %v8534, %v8546
        %v8548 = vpop.f32.mrf.mxu0
        %8549 = vdwg.mxu0
        %8550 = vmatpush.bf16.xpose.msra.mxu0 0
        %8551 = vmatpush.bf16.xpose.msra.mxu0 0
        %8552 = vmatpush.bf16.xpose.msra.mxu0 0
        %8553 = vmatpush.bf16.xpose.msra.mxu0 0
        %8554 = vmatpush.bf16.xpose.msra.mxu0 0
        %8555 = vmatpush.bf16.xpose.msra.mxu0 0
        %8556 = vmatpush.bf16.xpose.msra.mxu0 0
        %8557 = vmatpush.bf16.xpose.msra.mxu0 %v3798
        %8558 = vmatmul.bf16.gmra.mxu0 %v1866
        %v8559 = vpop.f32.mrf.mxu0
        %v8560 = vadd.f32 %v8547, %v8559
        %v8561 = vpop.f32.mrf.mxu0
        %8562 = vdwg.mxu0
        %8563 = vmatpush.bf16.xpose.msra.mxu0 0
        %8564 = vmatpush.bf16.xpose.msra.mxu0 0
        %8565 = vmatpush.bf16.xpose.msra.mxu0 0
        %8566 = vmatpush.bf16.xpose.msra.mxu0 0
        %8567 = vmatpush.bf16.xpose.msra.mxu0 0
        %8568 = vmatpush.bf16.xpose.msra.mxu0 0
        %8569 = vmatpush.bf16.xpose.msra.mxu0 0
        %8570 = vmatpush.bf16.xpose.msra.mxu0 %v3799
        %8571 = vmatmul.bf16.gmra.mxu0 %v1867
        %v8572 = vpop.f32.mrf.mxu0
        %v8573 = vadd.f32 %v8560, %v8572
        %v8574 = vpop.f32.mrf.mxu0
        %8575 = vdwg.mxu0
        %8576 = vmatpush.bf16.xpose.msra.mxu0 0
        %8577 = vmatpush.bf16.xpose.msra.mxu0 0
        %8578 = vmatpush.bf16.xpose.msra.mxu0 0
        %8579 = vmatpush.bf16.xpose.msra.mxu0 0
        %8580 = vmatpush.bf16.xpose.msra.mxu0 0
        %8581 = vmatpush.bf16.xpose.msra.mxu0 0
        %8582 = vmatpush.bf16.xpose.msra.mxu0 0
        %8583 = vmatpush.bf16.xpose.msra.mxu0 %v3800
        %8584 = vmatmul.bf16.gmra.mxu0 %v1868
        %v8585 = vpop.f32.mrf.mxu0
        %v8586 = vadd.f32 %v8573, %v8585
        %v8587 = vpop.f32.mrf.mxu0
        %8588 = vdwg.mxu0
        %8589 = vmatpush.bf16.xpose.msra.mxu0 0
        %8590 = vmatpush.bf16.xpose.msra.mxu0 0
        %8591 = vmatpush.bf16.xpose.msra.mxu0 0
        %8592 = vmatpush.bf16.xpose.msra.mxu0 0
        %8593 = vmatpush.bf16.xpose.msra.mxu0 0
        %8594 = vmatpush.bf16.xpose.msra.mxu0 0
        %8595 = vmatpush.bf16.xpose.msra.mxu0 0
        %8596 = vmatpush.bf16.xpose.msra.mxu0 %v3801
        %8597 = vmatmul.bf16.gmra.mxu0 %v1869
        %v8598 = vpop.f32.mrf.mxu0
        %v8599 = vadd.f32 %v8586, %v8598
        %v8600 = vpop.f32.mrf.mxu0
        %8601 = vdwg.mxu0
        %8602 = vmatpush.bf16.xpose.msra.mxu0 0
        %8603 = vmatpush.bf16.xpose.msra.mxu0 0
        %8604 = vmatpush.bf16.xpose.msra.mxu0 0
        %8605 = vmatpush.bf16.xpose.msra.mxu0 0
        %8606 = vmatpush.bf16.xpose.msra.mxu0 0
        %8607 = vmatpush.bf16.xpose.msra.mxu0 0
        %8608 = vmatpush.bf16.xpose.msra.mxu0 0
        %8609 = vmatpush.bf16.xpose.msra.mxu0 %v3802
        %8610 = vmatmul.bf16.gmra.mxu0 %v1872
        %v8611 = vpop.f32.mrf.mxu0
        %v8612 = vadd.f32 %v8599, %v8611
        %v8613 = vpop.f32.mrf.mxu0
        %8614 = vdwg.mxu0
        %8615 = vmatpush.bf16.xpose.msra.mxu0 0
        %8616 = vmatpush.bf16.xpose.msra.mxu0 0
        %8617 = vmatpush.bf16.xpose.msra.mxu0 0
        %8618 = vmatpush.bf16.xpose.msra.mxu0 0
        %8619 = vmatpush.bf16.xpose.msra.mxu0 0
        %8620 = vmatpush.bf16.xpose.msra.mxu0 0
        %8621 = vmatpush.bf16.xpose.msra.mxu0 0
        %8622 = vmatpush.bf16.xpose.msra.mxu0 %v3803
        %8623 = vmatmul.bf16.gmra.mxu0 %v1873
        %v8624 = vpop.f32.mrf.mxu0
        %v8625 = vadd.f32 %v8612, %v8624
        %v8626 = vpop.f32.mrf.mxu0
        %8627 = vdwg.mxu0
        %8628 = vmatpush.bf16.xpose.msra.mxu0 0
        %8629 = vmatpush.bf16.xpose.msra.mxu0 0
        %8630 = vmatpush.bf16.xpose.msra.mxu0 0
        %8631 = vmatpush.bf16.xpose.msra.mxu0 0
        %8632 = vmatpush.bf16.xpose.msra.mxu0 0
        %8633 = vmatpush.bf16.xpose.msra.mxu0 0
        %8634 = vmatpush.bf16.xpose.msra.mxu0 0
        %8635 = vmatpush.bf16.xpose.msra.mxu0 %v3804
        %8636 = vmatmul.bf16.gmra.mxu0 %v1874
        %v8637 = vpop.f32.mrf.mxu0
        %v8638 = vadd.f32 %v8625, %v8637
        %v8639 = vpop.f32.mrf.mxu0
        %8640 = vdwg.mxu0
        %8641 = vmatpush.bf16.xpose.msra.mxu0 0
        %8642 = vmatpush.bf16.xpose.msra.mxu0 0
        %8643 = vmatpush.bf16.xpose.msra.mxu0 0
        %8644 = vmatpush.bf16.xpose.msra.mxu0 0
        %8645 = vmatpush.bf16.xpose.msra.mxu0 0
        %8646 = vmatpush.bf16.xpose.msra.mxu0 0
        %8647 = vmatpush.bf16.xpose.msra.mxu0 0
        %8648 = vmatpush.bf16.xpose.msra.mxu0 %v3805
        %8649 = vmatmul.bf16.gmra.mxu0 %v1875
        %v8650 = vpop.f32.mrf.mxu0
        %v8651 = vadd.f32 %v8638, %v8650
        %v8652 = vpop.f32.mrf.mxu0
        %8653 = vdwg.mxu0
        %8654 = vmatpush.bf16.xpose.msra.mxu0 0
        %8655 = vmatpush.bf16.xpose.msra.mxu0 0
        %8656 = vmatpush.bf16.xpose.msra.mxu0 0
        %8657 = vmatpush.bf16.xpose.msra.mxu0 0
        %8658 = vmatpush.bf16.xpose.msra.mxu0 0
        %8659 = vmatpush.bf16.xpose.msra.mxu0 0
        %8660 = vmatpush.bf16.xpose.msra.mxu0 0
        %8661 = vmatpush.bf16.xpose.msra.mxu0 %v3806
        %8662 = vmatmul.bf16.gmra.mxu0 %v1876
        %v8663 = vpop.f32.mrf.mxu0
        %v8664 = vadd.f32 %v8651, %v8663
        %v8665 = vpop.f32.mrf.mxu0
        %8666 = vdwg.mxu0
        %8667 = vmatpush.bf16.xpose.msra.mxu0 0
        %8668 = vmatpush.bf16.xpose.msra.mxu0 0
        %8669 = vmatpush.bf16.xpose.msra.mxu0 0
        %8670 = vmatpush.bf16.xpose.msra.mxu0 0
        %8671 = vmatpush.bf16.xpose.msra.mxu0 0
        %8672 = vmatpush.bf16.xpose.msra.mxu0 0
        %8673 = vmatpush.bf16.xpose.msra.mxu0 0
        %8674 = vmatpush.bf16.xpose.msra.mxu0 %v3807
        %8675 = vmatmul.bf16.gmra.mxu0 %v1877
        %v8676 = vpop.f32.mrf.mxu0
        %v8677 = vadd.f32 %v8664, %v8676
        %v8678 = vpop.f32.mrf.mxu0
        %8679 = vdwg.mxu0
        %8680 = vmatpush.bf16.xpose.msra.mxu0 0
        %8681 = vmatpush.bf16.xpose.msra.mxu0 0
        %8682 = vmatpush.bf16.xpose.msra.mxu0 0
        %8683 = vmatpush.bf16.xpose.msra.mxu0 0
        %8684 = vmatpush.bf16.xpose.msra.mxu0 0
        %8685 = vmatpush.bf16.xpose.msra.mxu0 0
        %8686 = vmatpush.bf16.xpose.msra.mxu0 0
        %8687 = vmatpush.bf16.xpose.msra.mxu0 %v3808
        %8688 = vmatmul.bf16.gmra.mxu0 %v1878
        %v8689 = vpop.f32.mrf.mxu0
        %v8690 = vadd.f32 %v8677, %v8689
        %v8691 = vpop.f32.mrf.mxu0
        %8692 = vdwg.mxu0
        %8693 = vmatpush.bf16.xpose.msra.mxu0 0
        %8694 = vmatpush.bf16.xpose.msra.mxu0 0
        %8695 = vmatpush.bf16.xpose.msra.mxu0 0
        %8696 = vmatpush.bf16.xpose.msra.mxu0 0
        %8697 = vmatpush.bf16.xpose.msra.mxu0 0
        %8698 = vmatpush.bf16.xpose.msra.mxu0 0
        %8699 = vmatpush.bf16.xpose.msra.mxu0 0
        %8700 = vmatpush.bf16.xpose.msra.mxu0 %v3809
        %8701 = vmatmul.bf16.gmra.mxu0 %v1879
        %v8702 = vpop.f32.mrf.mxu0
        %v8703 = vadd.f32 %v8690, %v8702
        %v8704 = vpop.f32.mrf.mxu0
        %8705 = vdwg.mxu0
        %8706 = vmatpush.bf16.xpose.msra.mxu0 0
        %8707 = vmatpush.bf16.xpose.msra.mxu0 0
        %8708 = vmatpush.bf16.xpose.msra.mxu0 0
        %8709 = vmatpush.bf16.xpose.msra.mxu0 0
        %8710 = vmatpush.bf16.xpose.msra.mxu0 0
        %8711 = vmatpush.bf16.xpose.msra.mxu0 0
        %8712 = vmatpush.bf16.xpose.msra.mxu0 0
        %8713 = vmatpush.bf16.xpose.msra.mxu0 %v3810
        %8714 = vmatmul.bf16.gmra.mxu0 %v1882
        %v8715 = vpop.f32.mrf.mxu0
        %v8716 = vadd.f32 %v8703, %v8715
        %v8717 = vpop.f32.mrf.mxu0
        %8718 = vdwg.mxu0
        %8719 = vmatpush.bf16.xpose.msra.mxu0 0
        %8720 = vmatpush.bf16.xpose.msra.mxu0 0
        %8721 = vmatpush.bf16.xpose.msra.mxu0 0
        %8722 = vmatpush.bf16.xpose.msra.mxu0 0
        %8723 = vmatpush.bf16.xpose.msra.mxu0 0
        %8724 = vmatpush.bf16.xpose.msra.mxu0 0
        %8725 = vmatpush.bf16.xpose.msra.mxu0 0
        %8726 = vmatpush.bf16.xpose.msra.mxu0 %v3811
        %8727 = vmatmul.bf16.gmra.mxu0 %v1883
        %v8728 = vpop.f32.mrf.mxu0
        %v8729 = vadd.f32 %v8716, %v8728
        %v8730 = vpop.f32.mrf.mxu0
        %8731 = vdwg.mxu0
        %8732 = vmatpush.bf16.xpose.msra.mxu0 0
        %8733 = vmatpush.bf16.xpose.msra.mxu0 0
        %8734 = vmatpush.bf16.xpose.msra.mxu0 0
        %8735 = vmatpush.bf16.xpose.msra.mxu0 0
        %8736 = vmatpush.bf16.xpose.msra.mxu0 0
        %8737 = vmatpush.bf16.xpose.msra.mxu0 0
        %8738 = vmatpush.bf16.xpose.msra.mxu0 0
        %8739 = vmatpush.bf16.xpose.msra.mxu0 %v3812
        %8740 = vmatmul.bf16.gmra.mxu0 %v1884
        %v8741 = vpop.f32.mrf.mxu0
        %v8742 = vadd.f32 %v8729, %v8741
        %v8743 = vpop.f32.mrf.mxu0
        %8744 = vdwg.mxu0
        %8745 = vmatpush.bf16.xpose.msra.mxu0 0
        %8746 = vmatpush.bf16.xpose.msra.mxu0 0
        %8747 = vmatpush.bf16.xpose.msra.mxu0 0
        %8748 = vmatpush.bf16.xpose.msra.mxu0 0
        %8749 = vmatpush.bf16.xpose.msra.mxu0 0
        %8750 = vmatpush.bf16.xpose.msra.mxu0 0
        %8751 = vmatpush.bf16.xpose.msra.mxu0 0
        %8752 = vmatpush.bf16.xpose.msra.mxu0 %v3813
        %8753 = vmatmul.bf16.gmra.mxu0 %v1885
        %v8754 = vpop.f32.mrf.mxu0
        %v8755 = vadd.f32 %v8742, %v8754
        %v8756 = vpop.f32.mrf.mxu0
        %8757 = vdwg.mxu0
        %8758 = vmatpush.bf16.xpose.msra.mxu0 0
        %8759 = vmatpush.bf16.xpose.msra.mxu0 0
        %8760 = vmatpush.bf16.xpose.msra.mxu0 0
        %8761 = vmatpush.bf16.xpose.msra.mxu0 0
        %8762 = vmatpush.bf16.xpose.msra.mxu0 0
        %8763 = vmatpush.bf16.xpose.msra.mxu0 0
        %8764 = vmatpush.bf16.xpose.msra.mxu0 0
        %8765 = vmatpush.bf16.xpose.msra.mxu0 %v3814
        %8766 = vmatmul.bf16.gmra.mxu0 %v1886
        %v8767 = vpop.f32.mrf.mxu0
        %v8768 = vadd.f32 %v8755, %v8767
        %v8769 = vpop.f32.mrf.mxu0
        %8770 = vdwg.mxu0
        %8771 = vmatpush.bf16.xpose.msra.mxu0 0
        %8772 = vmatpush.bf16.xpose.msra.mxu0 0
        %8773 = vmatpush.bf16.xpose.msra.mxu0 0
        %8774 = vmatpush.bf16.xpose.msra.mxu0 0
        %8775 = vmatpush.bf16.xpose.msra.mxu0 0
        %8776 = vmatpush.bf16.xpose.msra.mxu0 0
        %8777 = vmatpush.bf16.xpose.msra.mxu0 0
        %8778 = vmatpush.bf16.xpose.msra.mxu0 %v3815
        %8779 = vmatmul.bf16.gmra.mxu0 %v1887
        %v8780 = vpop.f32.mrf.mxu0
        %v8781 = vadd.f32 %v8768, %v8780
        %v8782 = vpop.f32.mrf.mxu0
        %8783 = vdwg.mxu0
        %8784 = vmatpush.bf16.xpose.msra.mxu0 0
        %8785 = vmatpush.bf16.xpose.msra.mxu0 0
        %8786 = vmatpush.bf16.xpose.msra.mxu0 0
        %8787 = vmatpush.bf16.xpose.msra.mxu0 0
        %8788 = vmatpush.bf16.xpose.msra.mxu0 0
        %8789 = vmatpush.bf16.xpose.msra.mxu0 0
        %8790 = vmatpush.bf16.xpose.msra.mxu0 0
        %8791 = vmatpush.bf16.xpose.msra.mxu0 %v3816
        %8792 = vmatmul.bf16.gmra.mxu0 %v1888
        %v8793 = vpop.f32.mrf.mxu0
        %v8794 = vadd.f32 %v8781, %v8793
        %v8795 = vpop.f32.mrf.mxu0
        %8796 = vdwg.mxu0
        %8797 = vmatpush.bf16.xpose.msra.mxu0 0
        %8798 = vmatpush.bf16.xpose.msra.mxu0 0
        %8799 = vmatpush.bf16.xpose.msra.mxu0 0
        %8800 = vmatpush.bf16.xpose.msra.mxu0 0
        %8801 = vmatpush.bf16.xpose.msra.mxu0 0
        %8802 = vmatpush.bf16.xpose.msra.mxu0 0
        %8803 = vmatpush.bf16.xpose.msra.mxu0 0
        %8804 = vmatpush.bf16.xpose.msra.mxu0 %v3817
        %8805 = vmatmul.bf16.gmra.mxu0 %v1889
        %v8806 = vpop.f32.mrf.mxu0
        %v8807 = vadd.f32 %v8794, %v8806
        %v8808 = vpop.f32.mrf.mxu0
        %8809 = vdwg.mxu0
        %8810 = vmatpush.bf16.xpose.msra.mxu0 0
        %8811 = vmatpush.bf16.xpose.msra.mxu0 0
        %8812 = vmatpush.bf16.xpose.msra.mxu0 0
        %8813 = vmatpush.bf16.xpose.msra.mxu0 0
        %8814 = vmatpush.bf16.xpose.msra.mxu0 0
        %8815 = vmatpush.bf16.xpose.msra.mxu0 0
        %8816 = vmatpush.bf16.xpose.msra.mxu0 0
        %8817 = vmatpush.bf16.xpose.msra.mxu0 %v3818
        %8818 = vmatmul.bf16.gmra.mxu0 %v1892
        %v8819 = vpop.f32.mrf.mxu0
        %v8820 = vadd.f32 %v8807, %v8819
        %v8821 = vpop.f32.mrf.mxu0
        %8822 = vdwg.mxu0
        %8823 = vmatpush.bf16.xpose.msra.mxu0 0
        %8824 = vmatpush.bf16.xpose.msra.mxu0 0
        %8825 = vmatpush.bf16.xpose.msra.mxu0 0
        %8826 = vmatpush.bf16.xpose.msra.mxu0 0
        %8827 = vmatpush.bf16.xpose.msra.mxu0 0
        %8828 = vmatpush.bf16.xpose.msra.mxu0 0
        %8829 = vmatpush.bf16.xpose.msra.mxu0 0
        %8830 = vmatpush.bf16.xpose.msra.mxu0 %v3819
        %8831 = vmatmul.bf16.gmra.mxu0 %v1893
        %v8832 = vpop.f32.mrf.mxu0
        %v8833 = vadd.f32 %v8820, %v8832
        %v8834 = vpop.f32.mrf.mxu0
        %8835 = vdwg.mxu0
        %8836 = vmatpush.bf16.xpose.msra.mxu0 0
        %8837 = vmatpush.bf16.xpose.msra.mxu0 0
        %8838 = vmatpush.bf16.xpose.msra.mxu0 0
        %8839 = vmatpush.bf16.xpose.msra.mxu0 0
        %8840 = vmatpush.bf16.xpose.msra.mxu0 0
        %8841 = vmatpush.bf16.xpose.msra.mxu0 0
        %8842 = vmatpush.bf16.xpose.msra.mxu0 0
        %8843 = vmatpush.bf16.xpose.msra.mxu0 %v3820
        %8844 = vmatmul.bf16.gmra.mxu0 %v1894
        %v8845 = vpop.f32.mrf.mxu0
        %v8846 = vadd.f32 %v8833, %v8845
        %v8847 = vpop.f32.mrf.mxu0
        %8848 = vdwg.mxu0
        %8849 = vmatpush.bf16.xpose.msra.mxu0 0
        %8850 = vmatpush.bf16.xpose.msra.mxu0 0
        %8851 = vmatpush.bf16.xpose.msra.mxu0 0
        %8852 = vmatpush.bf16.xpose.msra.mxu0 0
        %8853 = vmatpush.bf16.xpose.msra.mxu0 0
        %8854 = vmatpush.bf16.xpose.msra.mxu0 0
        %8855 = vmatpush.bf16.xpose.msra.mxu0 0
        %8856 = vmatpush.bf16.xpose.msra.mxu0 %v3821
        %8857 = vmatmul.bf16.gmra.mxu0 %v1895
        %v8858 = vpop.f32.mrf.mxu0
        %v8859 = vadd.f32 %v8846, %v8858
        %v8860 = vpop.f32.mrf.mxu0
        %8861 = vdwg.mxu0
        %8862 = vmatpush.bf16.xpose.msra.mxu0 0
        %8863 = vmatpush.bf16.xpose.msra.mxu0 0
        %8864 = vmatpush.bf16.xpose.msra.mxu0 0
        %8865 = vmatpush.bf16.xpose.msra.mxu0 0
        %8866 = vmatpush.bf16.xpose.msra.mxu0 0
        %8867 = vmatpush.bf16.xpose.msra.mxu0 0
        %8868 = vmatpush.bf16.xpose.msra.mxu0 0
        %8869 = vmatpush.bf16.xpose.msra.mxu0 %v3822
        %8870 = vmatmul.bf16.gmra.mxu0 %v1896
        %v8871 = vpop.f32.mrf.mxu0
        %v8872 = vadd.f32 %v8859, %v8871
        %v8873 = vpop.f32.mrf.mxu0
        %8874 = vdwg.mxu0
        %8875 = vmatpush.bf16.xpose.msra.mxu0 0
        %8876 = vmatpush.bf16.xpose.msra.mxu0 0
        %8877 = vmatpush.bf16.xpose.msra.mxu0 0
        %8878 = vmatpush.bf16.xpose.msra.mxu0 0
        %8879 = vmatpush.bf16.xpose.msra.mxu0 0
        %8880 = vmatpush.bf16.xpose.msra.mxu0 0
        %8881 = vmatpush.bf16.xpose.msra.mxu0 0
        %8882 = vmatpush.bf16.xpose.msra.mxu0 %v3823
        %8883 = vmatmul.bf16.gmra.mxu0 %v1897
        %v8884 = vpop.f32.mrf.mxu0
        %v8885 = vadd.f32 %v8872, %v8884
        %v8886 = vpop.f32.mrf.mxu0
        %8887 = vdwg.mxu0
        %8888 = vmatpush.bf16.xpose.msra.mxu0 0
        %8889 = vmatpush.bf16.xpose.msra.mxu0 0
        %8890 = vmatpush.bf16.xpose.msra.mxu0 0
        %8891 = vmatpush.bf16.xpose.msra.mxu0 0
        %8892 = vmatpush.bf16.xpose.msra.mxu0 0
        %8893 = vmatpush.bf16.xpose.msra.mxu0 0
        %8894 = vmatpush.bf16.xpose.msra.mxu0 0
        %8895 = vmatpush.bf16.xpose.msra.mxu0 %v3824
        %8896 = vmatmul.bf16.gmra.mxu0 %v1898
        %v8897 = vpop.f32.mrf.mxu0
        %v8898 = vadd.f32 %v8885, %v8897
        %v8899 = vpop.f32.mrf.mxu0
        %8900 = vdwg.mxu0
        %8901 = vmatpush.bf16.xpose.msra.mxu0 0
        %8902 = vmatpush.bf16.xpose.msra.mxu0 0
        %8903 = vmatpush.bf16.xpose.msra.mxu0 0
        %8904 = vmatpush.bf16.xpose.msra.mxu0 0
        %8905 = vmatpush.bf16.xpose.msra.mxu0 0
        %8906 = vmatpush.bf16.xpose.msra.mxu0 0
        %8907 = vmatpush.bf16.xpose.msra.mxu0 0
        %8908 = vmatpush.bf16.xpose.msra.mxu0 %v3825
        %8909 = vmatmul.bf16.gmra.mxu0 %v1899
        %v8910 = vpop.f32.mrf.mxu0
        %v8911 = vadd.f32 %v8898, %v8910
        %v8912 = vpop.f32.mrf.mxu0
        %8913 = vdwg.mxu0
        %8914 = vmatpush.bf16.xpose.msra.mxu0 0
        %8915 = vmatpush.bf16.xpose.msra.mxu0 0
        %8916 = vmatpush.bf16.xpose.msra.mxu0 0
        %8917 = vmatpush.bf16.xpose.msra.mxu0 0
        %8918 = vmatpush.bf16.xpose.msra.mxu0 0
        %8919 = vmatpush.bf16.xpose.msra.mxu0 0
        %8920 = vmatpush.bf16.xpose.msra.mxu0 0
        %8921 = vmatpush.bf16.xpose.msra.mxu0 %v3826
        %8922 = vmatmul.bf16.gmra.mxu0 %v1902
        %v8923 = vpop.f32.mrf.mxu0
        %v8924 = vadd.f32 %v8911, %v8923
        %v8925 = vpop.f32.mrf.mxu0
        %8926 = vdwg.mxu0
        %8927 = vmatpush.bf16.xpose.msra.mxu0 0
        %8928 = vmatpush.bf16.xpose.msra.mxu0 0
        %8929 = vmatpush.bf16.xpose.msra.mxu0 0
        %8930 = vmatpush.bf16.xpose.msra.mxu0 0
        %8931 = vmatpush.bf16.xpose.msra.mxu0 0
        %8932 = vmatpush.bf16.xpose.msra.mxu0 0
        %8933 = vmatpush.bf16.xpose.msra.mxu0 0
        %8934 = vmatpush.bf16.xpose.msra.mxu0 %v3827
        %8935 = vmatmul.bf16.gmra.mxu0 %v1903
        %v8936 = vpop.f32.mrf.mxu0
        %v8937 = vadd.f32 %v8924, %v8936
        %v8938 = vpop.f32.mrf.mxu0
        %8939 = vdwg.mxu0
        %8940 = vmatpush.bf16.xpose.msra.mxu0 0
        %8941 = vmatpush.bf16.xpose.msra.mxu0 0
        %8942 = vmatpush.bf16.xpose.msra.mxu0 0
        %8943 = vmatpush.bf16.xpose.msra.mxu0 0
        %8944 = vmatpush.bf16.xpose.msra.mxu0 0
        %8945 = vmatpush.bf16.xpose.msra.mxu0 0
        %8946 = vmatpush.bf16.xpose.msra.mxu0 0
        %8947 = vmatpush.bf16.xpose.msra.mxu0 %v3828
        %8948 = vmatmul.bf16.gmra.mxu0 %v1904
        %v8949 = vpop.f32.mrf.mxu0
        %v8950 = vadd.f32 %v8937, %v8949
        %v8951 = vpop.f32.mrf.mxu0
        %8952 = vdwg.mxu0
        %8953 = vmatpush.bf16.xpose.msra.mxu0 0
        %8954 = vmatpush.bf16.xpose.msra.mxu0 0
        %8955 = vmatpush.bf16.xpose.msra.mxu0 0
        %8956 = vmatpush.bf16.xpose.msra.mxu0 0
        %8957 = vmatpush.bf16.xpose.msra.mxu0 0
        %8958 = vmatpush.bf16.xpose.msra.mxu0 0
        %8959 = vmatpush.bf16.xpose.msra.mxu0 0
        %8960 = vmatpush.bf16.xpose.msra.mxu0 %v3829
        %8961 = vmatmul.bf16.gmra.mxu0 %v1905
        %v8962 = vpop.f32.mrf.mxu0
        %v8963 = vadd.f32 %v8950, %v8962
        %v8964 = vpop.f32.mrf.mxu0
        %8965 = vdwg.mxu0
        %8966 = vmatpush.bf16.xpose.msra.mxu0 0
        %8967 = vmatpush.bf16.xpose.msra.mxu0 0
        %8968 = vmatpush.bf16.xpose.msra.mxu0 0
        %8969 = vmatpush.bf16.xpose.msra.mxu0 0
        %8970 = vmatpush.bf16.xpose.msra.mxu0 0
        %8971 = vmatpush.bf16.xpose.msra.mxu0 0
        %8972 = vmatpush.bf16.xpose.msra.mxu0 0
        %8973 = vmatpush.bf16.xpose.msra.mxu0 %v3830
        %8974 = vmatmul.bf16.gmra.mxu0 %v1906
        %v8975 = vpop.f32.mrf.mxu0
        %v8976 = vadd.f32 %v8963, %v8975
        %v8977 = vpop.f32.mrf.mxu0
        %8978 = vdwg.mxu0
        %8979 = vmatpush.bf16.xpose.msra.mxu0 0
        %8980 = vmatpush.bf16.xpose.msra.mxu0 0
        %8981 = vmatpush.bf16.xpose.msra.mxu0 0
        %8982 = vmatpush.bf16.xpose.msra.mxu0 0
        %8983 = vmatpush.bf16.xpose.msra.mxu0 0
        %8984 = vmatpush.bf16.xpose.msra.mxu0 0
        %8985 = vmatpush.bf16.xpose.msra.mxu0 0
        %8986 = vmatpush.bf16.xpose.msra.mxu0 %v3831
        %8987 = vmatmul.bf16.gmra.mxu0 %v1907
        %v8988 = vpop.f32.mrf.mxu0
        %v8989 = vadd.f32 %v8976, %v8988
        %v8990 = vpop.f32.mrf.mxu0
        %8991 = vdwg.mxu0
        %8992 = vmatpush.bf16.xpose.msra.mxu0 0
        %8993 = vmatpush.bf16.xpose.msra.mxu0 0
        %8994 = vmatpush.bf16.xpose.msra.mxu0 0
        %8995 = vmatpush.bf16.xpose.msra.mxu0 0
        %8996 = vmatpush.bf16.xpose.msra.mxu0 0
        %8997 = vmatpush.bf16.xpose.msra.mxu0 0
        %8998 = vmatpush.bf16.xpose.msra.mxu0 0
        %8999 = vmatpush.bf16.xpose.msra.mxu0 %v3832
        %9000 = vmatmul.bf16.gmra.mxu0 %v1908
        %v9001 = vpop.f32.mrf.mxu0
        %v9002 = vadd.f32 %v8989, %v9001
        %v9003 = vpop.f32.mrf.mxu0
        %9004 = vdwg.mxu0
        %9005 = vmatpush.bf16.xpose.msra.mxu0 0
        %9006 = vmatpush.bf16.xpose.msra.mxu0 0
        %9007 = vmatpush.bf16.xpose.msra.mxu0 0
        %9008 = vmatpush.bf16.xpose.msra.mxu0 0
        %9009 = vmatpush.bf16.xpose.msra.mxu0 0
        %9010 = vmatpush.bf16.xpose.msra.mxu0 0
        %9011 = vmatpush.bf16.xpose.msra.mxu0 0
        %9012 = vmatpush.bf16.xpose.msra.mxu0 %v3833
        %9013 = vmatmul.bf16.gmra.mxu0 %v1909
        %v9014 = vpop.f32.mrf.mxu0
        %v9015 = vadd.f32 %v9002, %v9014
        %v9016 = vpop.f32.mrf.mxu0
        %9017 = vdwg.mxu0
        %9018 = vmatpush.bf16.xpose.msra.mxu0 0
        %9019 = vmatpush.bf16.xpose.msra.mxu0 0
        %9020 = vmatpush.bf16.xpose.msra.mxu0 0
        %9021 = vmatpush.bf16.xpose.msra.mxu0 0
        %9022 = vmatpush.bf16.xpose.msra.mxu0 0
        %9023 = vmatpush.bf16.xpose.msra.mxu0 0
        %9024 = vmatpush.bf16.xpose.msra.mxu0 0
        %9025 = vmatpush.bf16.xpose.msra.mxu0 %v3834
        %9026 = vmatmul.bf16.gmra.mxu0 %v1912
        %v9027 = vpop.f32.mrf.mxu0
        %v9028 = vadd.f32 %v9015, %v9027
        %v9029 = vpop.f32.mrf.mxu0
        %9030 = vdwg.mxu0
        %9031 = vmatpush.bf16.xpose.msra.mxu0 0
        %9032 = vmatpush.bf16.xpose.msra.mxu0 0
        %9033 = vmatpush.bf16.xpose.msra.mxu0 0
        %9034 = vmatpush.bf16.xpose.msra.mxu0 0
        %9035 = vmatpush.bf16.xpose.msra.mxu0 0
        %9036 = vmatpush.bf16.xpose.msra.mxu0 0
        %9037 = vmatpush.bf16.xpose.msra.mxu0 0
        %9038 = vmatpush.bf16.xpose.msra.mxu0 %v3835
        %9039 = vmatmul.bf16.gmra.mxu0 %v1913
        %v9040 = vpop.f32.mrf.mxu0
        %v9041 = vadd.f32 %v9028, %v9040
        %v9042 = vpop.f32.mrf.mxu0
        %9043 = vdwg.mxu0
        %9044 = vmatpush.bf16.xpose.msra.mxu0 0
        %9045 = vmatpush.bf16.xpose.msra.mxu0 0
        %9046 = vmatpush.bf16.xpose.msra.mxu0 0
        %9047 = vmatpush.bf16.xpose.msra.mxu0 0
        %9048 = vmatpush.bf16.xpose.msra.mxu0 0
        %9049 = vmatpush.bf16.xpose.msra.mxu0 0
        %9050 = vmatpush.bf16.xpose.msra.mxu0 0
        %9051 = vmatpush.bf16.xpose.msra.mxu0 %v3836
        %9052 = vmatmul.bf16.gmra.mxu0 %v1914
        %v9053 = vpop.f32.mrf.mxu0
        %v9054 = vadd.f32 %v9041, %v9053
        %v9055 = vpop.f32.mrf.mxu0
        %9056 = vdwg.mxu0
        %9057 = vmatpush.bf16.xpose.msra.mxu0 0
        %9058 = vmatpush.bf16.xpose.msra.mxu0 0
        %9059 = vmatpush.bf16.xpose.msra.mxu0 0
        %9060 = vmatpush.bf16.xpose.msra.mxu0 0
        %9061 = vmatpush.bf16.xpose.msra.mxu0 0
        %9062 = vmatpush.bf16.xpose.msra.mxu0 0
        %9063 = vmatpush.bf16.xpose.msra.mxu0 0
        %9064 = vmatpush.bf16.xpose.msra.mxu0 %v3837
        %9065 = vmatmul.bf16.gmra.mxu0 %v1915
        %v9066 = vpop.f32.mrf.mxu0
        %v9067 = vadd.f32 %v9054, %v9066
        %v9068 = vpop.f32.mrf.mxu0
        %9069 = vdwg.mxu0
        %9070 = vmatpush.bf16.xpose.msra.mxu0 0
        %9071 = vmatpush.bf16.xpose.msra.mxu0 0
        %9072 = vmatpush.bf16.xpose.msra.mxu0 0
        %9073 = vmatpush.bf16.xpose.msra.mxu0 0
        %9074 = vmatpush.bf16.xpose.msra.mxu0 0
        %9075 = vmatpush.bf16.xpose.msra.mxu0 0
        %9076 = vmatpush.bf16.xpose.msra.mxu0 0
        %9077 = vmatpush.bf16.xpose.msra.mxu0 %v3838
        %9078 = vmatmul.bf16.gmra.mxu0 %v1916
        %v9079 = vpop.f32.mrf.mxu0
        %v9080 = vadd.f32 %v9067, %v9079
        %v9081 = vpop.f32.mrf.mxu0
        %9082 = vdwg.mxu0
        %9083 = vmatpush.bf16.xpose.msra.mxu0 0
        %9084 = vmatpush.bf16.xpose.msra.mxu0 0
        %9085 = vmatpush.bf16.xpose.msra.mxu0 0
        %9086 = vmatpush.bf16.xpose.msra.mxu0 0
        %9087 = vmatpush.bf16.xpose.msra.mxu0 0
        %9088 = vmatpush.bf16.xpose.msra.mxu0 0
        %9089 = vmatpush.bf16.xpose.msra.mxu0 0
        %9090 = vmatpush.bf16.xpose.msra.mxu0 %v3839
        %9091 = vmatmul.bf16.gmra.mxu0 %v1917
        %v9092 = vpop.f32.mrf.mxu0
        %v9093 = vadd.f32 %v9080, %v9092
        %v9094 = vpop.f32.mrf.mxu0
        %9095 = vdwg.mxu0
        %9096 = vmatpush.bf16.xpose.msra.mxu0 0
        %9097 = vmatpush.bf16.xpose.msra.mxu0 0
        %9098 = vmatpush.bf16.xpose.msra.mxu0 0
        %9099 = vmatpush.bf16.xpose.msra.mxu0 0
        %9100 = vmatpush.bf16.xpose.msra.mxu0 0
        %9101 = vmatpush.bf16.xpose.msra.mxu0 0
        %9102 = vmatpush.bf16.xpose.msra.mxu0 0
        %9103 = vmatpush.bf16.xpose.msra.mxu0 %v3840
        %9104 = vmatmul.bf16.gmra.mxu0 %v1918
        %v9105 = vpop.f32.mrf.mxu0
        %v9106 = vadd.f32 %v9093, %v9105
        %v9107 = vpop.f32.mrf.mxu0
        %9108 = vdwg.mxu0
        %9109 = vmatpush.bf16.xpose.msra.mxu0 0
        %9110 = vmatpush.bf16.xpose.msra.mxu0 0
        %9111 = vmatpush.bf16.xpose.msra.mxu0 0
        %9112 = vmatpush.bf16.xpose.msra.mxu0 0
        %9113 = vmatpush.bf16.xpose.msra.mxu0 0
        %9114 = vmatpush.bf16.xpose.msra.mxu0 0
        %9115 = vmatpush.bf16.xpose.msra.mxu0 0
        %9116 = vmatpush.bf16.xpose.msra.mxu0 %v3841
        %9117 = vmatmul.bf16.gmra.mxu0 %v1919
        %v9118 = vpop.f32.mrf.mxu0
        %v9119 = vadd.f32 %v9106, %v9118
        %v9120 = vpop.f32.mrf.mxu0
        %9121 = vdwg.mxu0
        %9122 = vmatpush.bf16.xpose.msra.mxu0 0
        %9123 = vmatpush.bf16.xpose.msra.mxu0 0
        %9124 = vmatpush.bf16.xpose.msra.mxu0 0
        %9125 = vmatpush.bf16.xpose.msra.mxu0 0
        %9126 = vmatpush.bf16.xpose.msra.mxu0 0
        %9127 = vmatpush.bf16.xpose.msra.mxu0 0
        %9128 = vmatpush.bf16.xpose.msra.mxu0 0
        %9129 = vmatpush.bf16.xpose.msra.mxu0 %v3842
        %9130 = vmatmul.bf16.gmra.mxu0 %v1922
        %v9131 = vpop.f32.mrf.mxu0
        %v9132 = vadd.f32 %v9119, %v9131
        %v9133 = vpop.f32.mrf.mxu0
        %9134 = vdwg.mxu0
        %9135 = vmatpush.bf16.xpose.msra.mxu0 0
        %9136 = vmatpush.bf16.xpose.msra.mxu0 0
        %9137 = vmatpush.bf16.xpose.msra.mxu0 0
        %9138 = vmatpush.bf16.xpose.msra.mxu0 0
        %9139 = vmatpush.bf16.xpose.msra.mxu0 0
        %9140 = vmatpush.bf16.xpose.msra.mxu0 0
        %9141 = vmatpush.bf16.xpose.msra.mxu0 0
        %9142 = vmatpush.bf16.xpose.msra.mxu0 %v3843
        %9143 = vmatmul.bf16.gmra.mxu0 %v1923
        %v9144 = vpop.f32.mrf.mxu0
        %v9145 = vadd.f32 %v9132, %v9144
        %v9146 = vpop.f32.mrf.mxu0
        %9147 = vdwg.mxu0
        %9148 = vmatpush.bf16.xpose.msra.mxu0 0
        %9149 = vmatpush.bf16.xpose.msra.mxu0 0
        %9150 = vmatpush.bf16.xpose.msra.mxu0 0
        %9151 = vmatpush.bf16.xpose.msra.mxu0 0
        %9152 = vmatpush.bf16.xpose.msra.mxu0 0
        %9153 = vmatpush.bf16.xpose.msra.mxu0 0
        %9154 = vmatpush.bf16.xpose.msra.mxu0 0
        %9155 = vmatpush.bf16.xpose.msra.mxu0 %v3844
        %9156 = vmatmul.bf16.gmra.mxu0 %v1924
        %v9157 = vpop.f32.mrf.mxu0
        %v9158 = vadd.f32 %v9145, %v9157
        %v9159 = vpop.f32.mrf.mxu0
        %9160 = vdwg.mxu0
        %9161 = vmatpush.bf16.xpose.msra.mxu0 0
        %9162 = vmatpush.bf16.xpose.msra.mxu0 0
        %9163 = vmatpush.bf16.xpose.msra.mxu0 0
        %9164 = vmatpush.bf16.xpose.msra.mxu0 0
        %9165 = vmatpush.bf16.xpose.msra.mxu0 0
        %9166 = vmatpush.bf16.xpose.msra.mxu0 0
        %9167 = vmatpush.bf16.xpose.msra.mxu0 0
        %9168 = vmatpush.bf16.xpose.msra.mxu0 %v3845
        %9169 = vmatmul.bf16.gmra.mxu0 %v1925
        %v9170 = vpop.f32.mrf.mxu0
        %v9171 = vadd.f32 %v9158, %v9170
        %v9172 = vpop.f32.mrf.mxu0
        %9173 = vdwg.mxu0
        %9174 = vmatpush.bf16.xpose.msra.mxu0 0
        %9175 = vmatpush.bf16.xpose.msra.mxu0 0
        %9176 = vmatpush.bf16.xpose.msra.mxu0 0
        %9177 = vmatpush.bf16.xpose.msra.mxu0 0
        %9178 = vmatpush.bf16.xpose.msra.mxu0 0
        %9179 = vmatpush.bf16.xpose.msra.mxu0 0
        %9180 = vmatpush.bf16.xpose.msra.mxu0 0
        %9181 = vmatpush.bf16.xpose.msra.mxu0 %v3846
        %9182 = vmatmul.bf16.gmra.mxu0 %v1926
        %v9183 = vpop.f32.mrf.mxu0
        %v9184 = vadd.f32 %v9171, %v9183
        %v9185 = vpop.f32.mrf.mxu0
        %9186 = vdwg.mxu0
        %9187 = vmatpush.bf16.xpose.msra.mxu0 0
        %9188 = vmatpush.bf16.xpose.msra.mxu0 0
        %9189 = vmatpush.bf16.xpose.msra.mxu0 0
        %9190 = vmatpush.bf16.xpose.msra.mxu0 0
        %9191 = vmatpush.bf16.xpose.msra.mxu0 0
        %9192 = vmatpush.bf16.xpose.msra.mxu0 0
        %9193 = vmatpush.bf16.xpose.msra.mxu0 0
        %9194 = vmatpush.bf16.xpose.msra.mxu0 %v3847
        %9195 = vmatmul.bf16.gmra.mxu0 %v1927
        %v9196 = vpop.f32.mrf.mxu0
        %v9197 = vadd.f32 %v9184, %v9196
        %v9198 = vpop.f32.mrf.mxu0
        %9199 = vdwg.mxu0
        %9200 = vmatpush.bf16.xpose.msra.mxu0 0
        %9201 = vmatpush.bf16.xpose.msra.mxu0 0
        %9202 = vmatpush.bf16.xpose.msra.mxu0 0
        %9203 = vmatpush.bf16.xpose.msra.mxu0 0
        %9204 = vmatpush.bf16.xpose.msra.mxu0 0
        %9205 = vmatpush.bf16.xpose.msra.mxu0 0
        %9206 = vmatpush.bf16.xpose.msra.mxu0 0
        %9207 = vmatpush.bf16.xpose.msra.mxu0 %v3848
        %9208 = vmatmul.bf16.gmra.mxu0 %v1928
        %v9209 = vpop.f32.mrf.mxu0
        %v9210 = vadd.f32 %v9197, %v9209
        %v9211 = vpop.f32.mrf.mxu0
        %9212 = vdwg.mxu0
        %9213 = vmatpush.bf16.xpose.msra.mxu0 0
        %9214 = vmatpush.bf16.xpose.msra.mxu0 0
        %9215 = vmatpush.bf16.xpose.msra.mxu0 0
        %9216 = vmatpush.bf16.xpose.msra.mxu0 0
        %9217 = vmatpush.bf16.xpose.msra.mxu0 0
        %9218 = vmatpush.bf16.xpose.msra.mxu0 0
        %9219 = vmatpush.bf16.xpose.msra.mxu0 0
        %9220 = vmatpush.bf16.xpose.msra.mxu0 %v3849
        %9221 = vmatmul.bf16.gmra.mxu0 %v1929
        %v9222 = vpop.f32.mrf.mxu0
        %v9223 = vadd.f32 %v9210, %v9222
        %v9224 = vpop.f32.mrf.mxu0
        %9225 = vdwg.mxu0
        %v9226 = vld [vmem:[%s1010] sm:$0x3]
        %v9227 = vadd.f32 %v9226, %v9223
        %vm9228 = vcmask 74752
        %9229 = vst.msk [vmem:[%s1010] sm:$0x3] %vm9228, %v9227
        %p9230 = scmp.lt.s32.totalorder %s18, 1
        %s9231 = scalar_select %p9230, %s18, 1
        %p9232 = scmp.lt.s32.totalorder %s19, 0
        %s9233 = scalar_select %p9232, %s19, 0
        %s9234 = sadd.s32 %s9233, %s9231
        %s9235 = smul.addr %s9234, 2
        %s9236 = scalar_lea.vmem %s2, %s9235
        // Predicated region
        $region56: #{mylinear_forward.1} parent=46 // pred_check
          %p9237 = pneg %p114
        $region57: #{mylinear_forward.1} parent=46 // pred_check_branch
          %9239 = sbr.rel (%p9237) target = $region59
        $region58: #{mylinear_forward.1} parent=46 // pred_region
          _
        $region59: #{mylinear_forward.1} parent=46 // pred_fallthru
          _
      $region47: #{mylinear_forward.1} parent=5 // pred_fallthru
        _
      %p9240 = scmp.le.s32.totalorder 2, %s8
      // Predicated region
      $region60: #{mylinear_forward.1} parent=5 // pred_check
        %p9241 = pneg %p9240
      $region61: #{mylinear_forward.1} parent=5 // pred_check_branch
        %9243 = sbr.rel (%p9241) target = $region63
      $region62: #{mylinear_forward.1} parent=5 // pred_region
        %s9244 = ssub.s32 %s8, 2
        // Predicated region
        $region64: #{mylinear_forward.1} parent=62 // pred_check
          %p9245 = pneg %p120
        $region65: #{mylinear_forward.1} parent=62 // pred_check_branch
          %9247 = sbr.rel (%p9245) target = $region67
        $region66: #{mylinear_forward.1} parent=62 // pred_region
          %p9248 = scmp.lt.s32.totalorder %s21, 1
          %s9249 = scalar_select %p9248, %s21, 1
          %p9250 = scmp.lt.s32.totalorder %s22, 0
          %s9251 = scalar_select %p9250, %s22, 0
          %s9252 = sadd.s32 %s9251, %s9249
          %s9253 = smul.addr %s9252, 2
          %s9254 = scalar_lea.vmem %s2, %s9253
        $region67: #{mylinear_forward.1} parent=62 // pred_fallthru
          _
      $region63: #{mylinear_forward.1} parent=5 // pred_fallthru
        _
    $region6: #{mylinear_forward.1} parent=1 // loop_footer
      %s12 = sadd.s32 1, %s8
    $region7: #{mylinear_forward.1} parent=1 // loop_footer_branch
      %7 = sbr.rel target = $region3
    $region8: #{mylinear_forward.1} parent=1 // loop_exit
      _

</llo_original>
